<compile_context>
chip_gen: v7x
topology: tpu7x:2x2x1
jax: 0.10.0
libtpu: 0.0.40
codegen_flags: <defaults>
</compile_context>

<pallas_src>
import jax
import jax.numpy as jnp
from jax import lax
from jax.experimental import pallas as pl
from jax.experimental.pallas import tpu as pltpu


def _round_up(v, m):
    return (v + m - 1) // m * m


def _cdiv(a, b):
    return (a + b - 1) // b


def _ch_lstm_f_kernel(x_ref,                      # (F, CP, Nt)      bf16  rows [x(f); x(F-1-f); 0-pad]
                      w_step_ref,                 # (8H, CP+2H)      bf16  block-structured fwd/bwd weights
                      bias_ref,                   # (8H, 1)          f32
                      wlin_ref,                   # (O, 2H)          bf16
                      blin_ref,                   # (O, 1)           f32
                      out_ref,                    # (F, O, Nt)       f32
                      histf_ref, histb_ref):      # (F, H, Nt) bf16  hidden histories (fwd / bwd)
    F, CP, Nt = x_ref.shape
    H = histf_ref.shape[1]
    bf16 = jnp.bfloat16

    # Hoist all weight loads out of the recurrence.
    w_step = w_step_ref[...]
    bias = bias_ref[...]
    wlin = wlin_ref[...]
    blin = blin_ref[...]

    def step(s, carry):
        h_f, c_f, h_b, c_b = carry                 # f32 (H, Nt) each
        tb = F - 1 - s
        # Single fused GEMM per step: input projection (both directions, the bwd
        # direction's time-reversed x is pre-packed in rows C:2C of x_ref[s]) and
        # both recurrent projections. All concat pieces are 16-row multiples, so
        # the bf16 concat is pure vreg assembly.
        op = jnp.concatenate(
            [x_ref[s], h_f.astype(bf16), h_b.astype(bf16)], axis=0)        # (CP+2H, Nt)
        gates = jnp.dot(w_step, op, preferred_element_type=jnp.float32) + bias  # (8H, Nt) f32

        def half(gs, c):
            # Per-direction gate row order is (i, f, o, g):
            #   one contiguous sigmoid range (3H rows), tanh only on g.
            # sigmoid(x) = 0.5*(tanh(0.5x)+1): single EUP op per element.
            sg = 0.5 * (jnp.tanh(0.5 * gs[0:3 * H]) + 1.0)
            g = jnp.tanh(gs[3 * H:4 * H])
            c_new = sg[H:2 * H] * c + sg[0:H] * g
            h_new = sg[2 * H:3 * H] * jnp.tanh(c_new)
            return h_new, c_new

        h_f, c_f = half(gates[0:4 * H], c_f)
        h_b, c_b = half(gates[4 * H:8 * H], c_b)
        histf_ref[s] = h_f.astype(bf16)
        histb_ref[tb] = h_b.astype(bf16)
        return h_f, c_f, h_b, c_b

    def emit(s, carry):
        # Output Linear, lane-dense store: out[s] = W_lin @ [h_fwd; h_bwd] + b.
        h2 = jnp.concatenate([histf_ref[s], histb_ref[s]], axis=0)          # (2H, Nt) bf16
        out_ref[s] = jnp.dot(wlin, h2, preferred_element_type=jnp.float32) + blin
        return carry

    zero = jnp.zeros((H, Nt), jnp.float32)
    carry = (zero, zero, zero, zero)
    if F <= 32:
        # Small F: full unroll gives the scheduler cross-step visibility
        # (fwd / bwd chains are independent and overlap).
        for s in range(F):
            carry = step(s, carry)
        for s in range(F):
            emit(s, 0)
    else:
        # Large F: bound live ranges / compile time with fori_loop + small unroll.
        carry = lax.fori_loop(0, F, step, carry, unroll=2)
        lax.fori_loop(0, F, emit, 0, unroll=2)


def _pack_params(p, in_ch, H, CP):
    """Pack raw (PyTorch-shaped) params into the kernel's fused, column-oriented operands."""
    bf16, f32 = jnp.bfloat16, jnp.float32
    # Reorder gate rows (i, f, g, o) -> (i, f, o, g) so sigmoid covers one contiguous range.
    perm = jnp.concatenate([jnp.arange(0, 2 * H), jnp.arange(3 * H, 4 * H),
                            jnp.arange(2 * H, 3 * H)])
    reord = lambda w: w[perm]

    K = CP + 2 * H
    w_step = jnp.zeros((8 * H, K), f32)
    # fwd gate rows: read x(s) (cols 0:C) and h_f (cols CP:CP+H)
    w_step = w_step.at[0:4 * H, 0:in_ch].set(reord(p["w_ih_f"]))
    w_step = w_step.at[0:4 * H, CP:CP + H].set(reord(p["w_hh_f"]))
    # bwd gate rows: read x(F-1-s) (cols C:2C) and h_b (cols CP+H:CP+2H)
    w_step = w_step.at[4 * H:8 * H, in_ch:2 * in_ch].set(reord(p["w_ih_b"]))
    w_step = w_step.at[4 * H:8 * H, CP + H:CP + 2 * H].set(reord(p["w_hh_b"]))

    bias = jnp.concatenate([reord(p["b_ih_f"] + p["b_hh_f"]),
                            reord(p["b_ih_b"] + p["b_hh_b"])])[:, None]      # (8H, 1)
    return (w_step.astype(bf16), bias.astype(f32),
            p["w_lin"].astype(bf16), p["b_lin"][:, None].astype(f32))


def ch_lstm_f_forward(x, params, feat_ch, out_ch):
    """x: (b, c, f, t) float.  Returns (b, out_ch, f, t) float32."""
    b, c, f, t = x.shape
    N = b * t
    H = feat_ch
    CP = _round_up(2 * c, 16)          # x-operand rows, aligned for bf16 sublane packing
    LANE = 128

    # ---- tiling: N on lanes, VMEM-budgeted tile, >=2 grid steps when N allows ----
    per_lane = (2 * f * CP * 2         # x block, bf16, double-buffered
                + 2 * f * out_ch * 4   # out block, f32, double-buffered
                + 2 * f * H * 2)       # hidden-history scratches, bf16
    budget = 24 << 20                  # conservative: resident + pipelined on v7x (64 MiB VMEM)
    n_pad = _round_up(max(N, LANE), LANE)
    tile_n = min(512, max(LANE, (budget // max(per_lane, 1)) // LANE * LANE))
    if n_pad >= 2 * LANE:              # allow >=2 grid steps so v7x uses both TensorCores
        tile_n = min(tile_n, _round_up(_cdiv(n_pad, 2), LANE))
    tile_n = min(tile_n, n_pad)
    n_pad = _round_up(n_pad, tile_n)
    grid_n = n_pad // tile_n

    # ---- operand packing (N on lanes) ----
    bf16 = jnp.bfloat16
    x_tm = jnp.transpose(x, (2, 1, 0, 3)).reshape(f, c, N).astype(bf16)     # (f, c, N)
    x2 = jnp.zeros((f, CP, n_pad), bf16)
    x2 = x2.at[:, 0:c, :N].set(x_tm)
    x2 = x2.at[:, c:2 * c, :N].set(x_tm[::-1])      # time-reversed copy feeds the bwd chain
    w_step, bias, wlin, blin = _pack_params(params, c, H, CP)

    n_blk = lambda n: (0, 0, n)        # x / out: tiled along N (lanes)
    w_blk = lambda n: (0, 0)           # weights: constant block
    in_specs = [
        pl.BlockSpec((f, CP, tile_n), n_blk),
        pl.BlockSpec((8 * H, CP + 2 * H), w_blk),
        pl.BlockSpec((8 * H, 1), w_blk),
        pl.BlockSpec((out_ch, 2 * H), w_blk),
        pl.BlockSpec((out_ch, 1), w_blk),
    ]
    out_specs = pl.BlockSpec((f, out_ch, tile_n), n_blk)

    flops = 2 * f * n_pad * (8 * H * (CP + 2 * H) + out_ch * 2 * H)
    transcend = f * n_pad * 10 * H                     # 6H sigmoid-tanh + 2H g-tanh + 2H c-tanh
    bytes_acc = (f * CP * n_pad * 2 + f * out_ch * n_pad * 4
                 + 8 * H * (CP + 2 * H) * 2 + 8 * H * 4 + out_ch * 2 * H * 2 + out_ch * 4)
    vmem_need = per_lane * tile_n + 4 * (8 * H * (CP + 2 * H) * 2 + out_ch * 2 * H * 2)
    vmem_limit = int(min(max(int(vmem_need * 1.5) + (4 << 20), 16 << 20), 100 << 20))

    out_tm = pl.pallas_call(
        _ch_lstm_f_kernel,
        out_shape=jax.ShapeDtypeStruct((f, out_ch, n_pad), jnp.float32),
        grid_spec=pltpu.PrefetchScalarGridSpec(
            num_scalar_prefetch=0,
            grid=(grid_n,),
            in_specs=in_specs,
            out_specs=out_specs,
            scratch_shapes=[
                pltpu.VMEM((f, H, tile_n), bf16),      # fwd hidden history
                pltpu.VMEM((f, H, tile_n), bf16),      # bwd hidden history
            ]),
        compiler_params=pltpu.CompilerParams(
            dimension_semantics=("parallel",),
            vmem_limit_bytes=vmem_limit),
        cost_estimate=pl.CostEstimate(flops=flops, transcendentals=transcend,
                                      bytes_accessed=bytes_acc),
    )(x2, w_step, bias, wlin, blin)

    # (f, O, n_pad) -> drop padding -> '(b t) f c -> b c f t'.
    y = out_tm[:, :, :N].reshape(f, out_ch, b, t)
    return jnp.transpose(y, (2, 1, 0, 3))


def make_params(key, in_ch, feat_ch, out_ch):
    """PyTorch-shaped parameters (nn.LSTM gate order i,f,g,o; nn.Linear),
    uniform(-1/sqrt(H), 1/sqrt(H)) like the torch defaults."""
    H = feat_ch
    k = 1.0 / jnp.sqrt(jnp.float32(H))
    keys = jax.random.split(key, 10)
    u = lambda kk, shape: jax.random.uniform(kk, shape, jnp.float32, -k, k)
    return dict(
        w_ih_f=u(keys[0], (4 * H, in_ch)), w_hh_f=u(keys[1], (4 * H, H)),
        b_ih_f=u(keys[2], (4 * H,)), b_hh_f=u(keys[3], (4 * H,)),
        w_ih_b=u(keys[4], (4 * H, in_ch)), w_hh_b=u(keys[5], (4 * H, H)),
        b_ih_b=u(keys[6], (4 * H,)), b_hh_b=u(keys[7], (4 * H,)),
        w_lin=u(keys[8], (out_ch, 2 * H)), b_lin=u(keys[9], (out_ch,)),
    )


def ref_forward(x, params, feat_ch, out_ch):
    """Pure-JAX f32 reference of the same forward pass (standard nn.LSTM semantics)."""
    b, c, f, t = x.shape
    N = b * t
    H = feat_ch
    xs = jnp.transpose(x, (2, 0, 3, 1)).reshape(f, N, c).astype(jnp.float32)   # (f, N, c)

    def run_dir(xseq, w_ih, w_hh, b_ih, b_hh):
        def step(carry, x_t):
            h, cst = carry
            gates = x_t @ w_ih.T + h @ w_hh.T + b_ih + b_hh
            i = jax.nn.sigmoid(gates[:, 0:H])
            fg = jax.nn.sigmoid(gates[:, H:2 * H])
            g = jnp.tanh(gates[:, 2 * H:3 * H])
            o = jax.nn.sigmoid(gates[:, 3 * H:4 * H])
            cst = fg * cst + i * g
            h = o * jnp.tanh(cst)
            return (h, cst), h
        init = (jnp.zeros((N, H), jnp.float32), jnp.zeros((N, H), jnp.float32))
        _, hs = lax.scan(step, init, xseq)
        return hs                                                # (f, N, H)

    hf = run_dir(xs, params["w_ih_f"], params["w_hh_f"], params["b_ih_f"], params["b_hh_f"])
    hb = run_dir(xs[::-1], params["w_ih_b"], params["w_hh_b"],
                 params["b_ih_b"], params["b_hh_b"])[::-1]
    hcat = jnp.concatenate([hf, hb], axis=-1)                    # (f, N, 2H)
    out = hcat @ params["w_lin"].T + params["b_lin"]
    y = out.reshape(f, b, t, out_ch)
    return jnp.transpose(y, (1, 3, 0, 2))


if __name__ == "__main__":
    # Small shapes consistent with the module's forward: x is (b, in_ch, f, t).
    b, in_ch, f, t = 2, 4, 16, 8
    feat_ch, out_ch = 32, 4

    key = jax.random.PRNGKey(0)
    kx, kp = jax.random.split(key)
    x = jax.random.normal(kx, (b, in_ch, f, t), jnp.float32)
    params = make_params(kp, in_ch, feat_ch, out_ch)

    y = jax.block_until_ready(ch_lstm_f_forward(x, params, feat_ch, out_ch))
    assert y.shape == (b, out_ch, f, t), y.shape

    y_ref = jax.block_until_ready(ref_forward(x, params, feat_ch, out_ch))
    max_err = float(jnp.max(jnp.abs(y - y_ref)))
    # bf16 MXU operands with f32 accumulation/state -> allow bf16-level error.
    assert max_err < 2e-2, max_err

    print("KERNEL_OK")
</pallas_src>

<mosaic_0001>
module attributes {stable_mosaic.version = 11 : i64} {
  func.func @_ch_lstm_f_kernel(%arg0: i32, %arg1: memref<16x16x128xbf16, #tpu.memory_space<vmem>>, %arg2: memref<256x80xbf16, #tpu.memory_space<vmem>>, %arg3: memref<256x1xf32, #tpu.memory_space<vmem>>, %arg4: memref<4x64xbf16, #tpu.memory_space<vmem>>, %arg5: memref<4x1xf32, #tpu.memory_space<vmem>>, %arg6: memref<16x4x128xf32, #tpu.memory_space<vmem>>, %arg7: memref<16x32x128xbf16, #tpu.memory_space<vmem>>, %arg8: memref<16x32x128xbf16, #tpu.memory_space<vmem>>) attributes {dimension_semantics = [#tpu.dimension_semantics<parallel>], iteration_bounds = array<i64: 1>, scalar_prefetch = 0 : i64, scratch_operands = 2 : i64, tpu.core_type = #tpu.core_type<tc>, window_params = [{transform_indices = @transform_0, window_bounds = array<i64: 16, 16, 128>}, {pipeline_mode = #tpu.pipeline_mode<synchronous>, transform_indices = @transform_1, window_bounds = array<i64: 256, 80>}, {pipeline_mode = #tpu.pipeline_mode<synchronous>, transform_indices = @transform_2, window_bounds = array<i64: 256, 1>}, {pipeline_mode = #tpu.pipeline_mode<synchronous>, transform_indices = @transform_3, window_bounds = array<i64: 4, 64>}, {pipeline_mode = #tpu.pipeline_mode<synchronous>, transform_indices = @transform_4, window_bounds = array<i64: 4, 1>}, {transform_indices = @transform_5, window_bounds = array<i64: 16, 4, 128>}]} {
    %c0 = arith.constant 0 : index
    %c0_0 = arith.constant 0 : index
    %0 = vector.load %arg2[%c0, %c0_0] : memref<256x80xbf16, #tpu.memory_space<vmem>>, vector<256x80xbf16>
    %c0_1 = arith.constant 0 : index
    %c0_2 = arith.constant 0 : index
    %1 = vector.load %arg3[%c0_1, %c0_2] : memref<256x1xf32, #tpu.memory_space<vmem>>, vector<256x1xf32>
    %c0_3 = arith.constant 0 : index
    %c0_4 = arith.constant 0 : index
    %2 = vector.load %arg4[%c0_3, %c0_4] : memref<4x64xbf16, #tpu.memory_space<vmem>>, vector<4x64xbf16>
    %c0_5 = arith.constant 0 : index
    %c0_6 = arith.constant 0 : index
    %3 = vector.load %arg5[%c0_5, %c0_6] : memref<4x1xf32, #tpu.memory_space<vmem>>, vector<4x1xf32>
    %cst = arith.constant 0.000000e+00 : f32
    %4 = vector.broadcast %cst : f32 to vector<32x128xf32>
    %c0_7 = arith.constant 0 : index
    %c0_8 = arith.constant 0 : index
    %c0_9 = arith.constant 0 : index
    %5 = vector.load %arg1[%c0_7, %c0_8, %c0_9] : memref<16x16x128xbf16, #tpu.memory_space<vmem>>, vector<1x16x128xbf16>
    %6 = vector.shape_cast %5 : vector<1x16x128xbf16> to vector<16x128xbf16>
    %7 = arith.truncf %4 : vector<32x128xf32> to vector<32x128xbf16>
    %8 = arith.truncf %4 : vector<32x128xf32> to vector<32x128xbf16>
    %9 = tpu.concatenate %6, %7, %8 in 0 : vector<16x128xbf16>, vector<32x128xbf16>, vector<32x128xbf16> -> vector<80x128xbf16>
    %cst_10 = arith.constant dense<0.000000e+00> : vector<256x128xf32>
    %10 = tpu.matmul %0, %9, %cst_10 {dimension_numbers = #tpu.dot_dimension_numbers<[1], [0], [0], [1], [0, 0, 1, 1], [], []>} : vector<256x80xbf16>, vector<80x128xbf16>, vector<256x128xf32> -> vector<256x128xf32>
    %11 = vector.broadcast %1 : vector<256x1xf32> to vector<256x128xf32>
    %12 = arith.addf %10, %11 : vector<256x128xf32>
    %13 = vector.extract_strided_slice %12 {offsets = [0, 0], sizes = [128, 128], strides = [1, 1]} : vector<256x128xf32> to vector<128x128xf32>
    %14 = vector.extract_strided_slice %13 {offsets = [0, 0], sizes = [96, 128], strides = [1, 1]} : vector<128x128xf32> to vector<96x128xf32>
    %cst_11 = arith.constant 5.000000e-01 : f32
    %15 = vector.broadcast %cst_11 : f32 to vector<96x128xf32>
    %16 = arith.mulf %15, %14 : vector<96x128xf32>
    %17 = math.tanh %16 : vector<96x128xf32>
    %cst_12 = arith.constant 1.000000e+00 : f32
    %18 = vector.broadcast %cst_12 : f32 to vector<96x128xf32>
    %19 = arith.addf %17, %18 : vector<96x128xf32>
    %cst_13 = arith.constant 5.000000e-01 : f32
    %20 = vector.broadcast %cst_13 : f32 to vector<96x128xf32>
    %21 = arith.mulf %20, %19 : vector<96x128xf32>
    %22 = vector.extract_strided_slice %13 {offsets = [96, 0], sizes = [32, 128], strides = [1, 1]} : vector<128x128xf32> to vector<32x128xf32>
    %23 = math.tanh %22 : vector<32x128xf32>
    %24 = vector.extract_strided_slice %21 {offsets = [32, 0], sizes = [32, 128], strides = [1, 1]} : vector<96x128xf32> to vector<32x128xf32>
    %25 = arith.mulf %24, %4 : vector<32x128xf32>
    %26 = vector.extract_strided_slice %21 {offsets = [0, 0], sizes = [32, 128], strides = [1, 1]} : vector<96x128xf32> to vector<32x128xf32>
    %27 = arith.mulf %26, %23 : vector<32x128xf32>
    %28 = arith.addf %25, %27 : vector<32x128xf32>
    %29 = vector.extract_strided_slice %21 {offsets = [64, 0], sizes = [32, 128], strides = [1, 1]} : vector<96x128xf32> to vector<32x128xf32>
    %30 = math.tanh %28 : vector<32x128xf32>
    %31 = arith.mulf %29, %30 : vector<32x128xf32>
    %32 = vector.extract_strided_slice %12 {offsets = [128, 0], sizes = [128, 128], strides = [1, 1]} : vector<256x128xf32> to vector<128x128xf32>
    %33 = vector.extract_strided_slice %32 {offsets = [0, 0], sizes = [96, 128], strides = [1, 1]} : vector<128x128xf32> to vector<96x128xf32>
    %cst_14 = arith.constant 5.000000e-01 : f32
    %34 = vector.broadcast %cst_14 : f32 to vector<96x128xf32>
    %35 = arith.mulf %34, %33 : vector<96x128xf32>
    %36 = math.tanh %35 : vector<96x128xf32>
    %cst_15 = arith.constant 1.000000e+00 : f32
    %37 = vector.broadcast %cst_15 : f32 to vector<96x128xf32>
    %38 = arith.addf %36, %37 : vector<96x128xf32>
    %cst_16 = arith.constant 5.000000e-01 : f32
    %39 = vector.broadcast %cst_16 : f32 to vector<96x128xf32>
    %40 = arith.mulf %39, %38 : vector<96x128xf32>
    %41 = vector.extract_strided_slice %32 {offsets = [96, 0], sizes = [32, 128], strides = [1, 1]} : vector<128x128xf32> to vector<32x128xf32>
    %42 = math.tanh %41 : vector<32x128xf32>
    %43 = vector.extract_strided_slice %40 {offsets = [32, 0], sizes = [32, 128], strides = [1, 1]} : vector<96x128xf32> to vector<32x128xf32>
    %44 = arith.mulf %43, %4 : vector<32x128xf32>
    %45 = vector.extract_strided_slice %40 {offsets = [0, 0], sizes = [32, 128], strides = [1, 1]} : vector<96x128xf32> to vector<32x128xf32>
    %46 = arith.mulf %45, %42 : vector<32x128xf32>
    %47 = arith.addf %44, %46 : vector<32x128xf32>
    %48 = vector.extract_strided_slice %40 {offsets = [64, 0], sizes = [32, 128], strides = [1, 1]} : vector<96x128xf32> to vector<32x128xf32>
    %49 = math.tanh %47 : vector<32x128xf32>
    %50 = arith.mulf %48, %49 : vector<32x128xf32>
    %51 = arith.truncf %31 : vector<32x128xf32> to vector<32x128xbf16>
    %c0_17 = arith.constant 0 : index
    %c0_18 = arith.constant 0 : index
    %c0_19 = arith.constant 0 : index
    %52 = vector.load %arg7[%c0_17, %c0_18, %c0_19] : memref<16x32x128xbf16, #tpu.memory_space<vmem>>, vector<1x32x128xbf16>
    %53 = vector.shape_cast %52 : vector<1x32x128xbf16> to vector<32x128xbf16>
    %54 = vector.shape_cast %51 : vector<32x128xbf16> to vector<1x32x128xbf16>
    tpu.vector_store %arg7[%c0_17, %c0_18, %c0_19], %54 {strides = array<i32>} : memref<16x32x128xbf16, #tpu.memory_space<vmem>>, vector<1x32x128xbf16>,
    %55 = arith.truncf %50 : vector<32x128xf32> to vector<32x128xbf16>
    %c15 = arith.constant 15 : index
    %c0_20 = arith.constant 0 : index
    %c0_21 = arith.constant 0 : index
    %56 = vector.load %arg8[%c15, %c0_20, %c0_21] : memref<16x32x128xbf16, #tpu.memory_space<vmem>>, vector<1x32x128xbf16>
    %57 = vector.shape_cast %56 : vector<1x32x128xbf16> to vector<32x128xbf16>
    %58 = vector.shape_cast %55 : vector<32x128xbf16> to vector<1x32x128xbf16>
    tpu.vector_store %arg8[%c15, %c0_20, %c0_21], %58 {strides = array<i32>} : memref<16x32x128xbf16, #tpu.memory_space<vmem>>, vector<1x32x128xbf16>,
    %c1 = arith.constant 1 : index
    %c0_22 = arith.constant 0 : index
    %c0_23 = arith.constant 0 : index
    %59 = vector.load %arg1[%c1, %c0_22, %c0_23] : memref<16x16x128xbf16, #tpu.memory_space<vmem>>, vector<1x16x128xbf16>
    %60 = vector.shape_cast %59 : vector<1x16x128xbf16> to vector<16x128xbf16>
    %61 = arith.truncf %31 : vector<32x128xf32> to vector<32x128xbf16>
    %62 = arith.truncf %50 : vector<32x128xf32> to vector<32x128xbf16>
    %63 = tpu.concatenate %60, %61, %62 in 0 : vector<16x128xbf16>, vector<32x128xbf16>, vector<32x128xbf16> -> vector<80x128xbf16>
    %cst_24 = arith.constant dense<0.000000e+00> : vector<256x128xf32>
    %64 = tpu.matmul %0, %63, %cst_24 {dimension_numbers = #tpu.dot_dimension_numbers<[1], [0], [0], [1], [0, 0, 1, 1], [], []>} : vector<256x80xbf16>, vector<80x128xbf16>, vector<256x128xf32> -> vector<256x128xf32>
    %65 = vector.broadcast %1 : vector<256x1xf32> to vector<256x128xf32>
    %66 = arith.addf %64, %65 : vector<256x128xf32>
    %67 = vector.extract_strided_slice %66 {offsets = [0, 0], sizes = [128, 128], strides = [1, 1]} : vector<256x128xf32> to vector<128x128xf32>
    %68 = vector.extract_strided_slice %67 {offsets = [0, 0], sizes = [96, 128], strides = [1, 1]} : vector<128x128xf32> to vector<96x128xf32>
    %cst_25 = arith.constant 5.000000e-01 : f32
    %69 = vector.broadcast %cst_25 : f32 to vector<96x128xf32>
    %70 = arith.mulf %69, %68 : vector<96x128xf32>
    %71 = math.tanh %70 : vector<96x128xf32>
    %cst_26 = arith.constant 1.000000e+00 : f32
    %72 = vector.broadcast %cst_26 : f32 to vector<96x128xf32>
    %73 = arith.addf %71, %72 : vector<96x128xf32>
    %cst_27 = arith.constant 5.000000e-01 : f32
    %74 = vector.broadcast %cst_27 : f32 to vector<96x128xf32>
    %75 = arith.mulf %74, %73 : vector<96x128xf32>
    %76 = vector.extract_strided_slice %67 {offsets = [96, 0], sizes = [32, 128], strides = [1, 1]} : vector<128x128xf32> to vector<32x128xf32>
    %77 = math.tanh %76 : vector<32x128xf32>
    %78 = vector.extract_strided_slice %75 {offsets = [32, 0], sizes = [32, 128], strides = [1, 1]} : vector<96x128xf32> to vector<32x128xf32>
    %79 = arith.mulf %78, %28 : vector<32x128xf32>
    %80 = vector.extract_strided_slice %75 {offsets = [0, 0], sizes = [32, 128], strides = [1, 1]} : vector<96x128xf32> to vector<32x128xf32>
    %81 = arith.mulf %80, %77 : vector<32x128xf32>
    %82 = arith.addf %79, %81 : vector<32x128xf32>
    %83 = vector.extract_strided_slice %75 {offsets = [64, 0], sizes = [32, 128], strides = [1, 1]} : vector<96x128xf32> to vector<32x128xf32>
    %84 = math.tanh %82 : vector<32x128xf32>
    %85 = arith.mulf %83, %84 : vector<32x128xf32>
    %86 = vector.extract_strided_slice %66 {offsets = [128, 0], sizes = [128, 128], strides = [1, 1]} : vector<256x128xf32> to vector<128x128xf32>
    %87 = vector.extract_strided_slice %86 {offsets = [0, 0], sizes = [96, 128], strides = [1, 1]} : vector<128x128xf32> to vector<96x128xf32>
    %cst_28 = arith.constant 5.000000e-01 : f32
    %88 = vector.broadcast %cst_28 : f32 to vector<96x128xf32>
    %89 = arith.mulf %88, %87 : vector<96x128xf32>
    %90 = math.tanh %89 : vector<96x128xf32>
    %cst_29 = arith.constant 1.000000e+00 : f32
    %91 = vector.broadcast %cst_29 : f32 to vector<96x128xf32>
    %92 = arith.addf %90, %91 : vector<96x128xf32>
    %cst_30 = arith.constant 5.000000e-01 : f32
    %93 = vector.broadcast %cst_30 : f32 to vector<96x128xf32>
    %94 = arith.mulf %93, %92 : vector<96x128xf32>
    %95 = vector.extract_strided_slice %86 {offsets = [96, 0], sizes = [32, 128], strides = [1, 1]} : vector<128x128xf32> to vector<32x128xf32>
    %96 = math.tanh %95 : vector<32x128xf32>
    %97 = vector.extract_strided_slice %94 {offsets = [32, 0], sizes = [32, 128], strides = [1, 1]} : vector<96x128xf32> to vector<32x128xf32>
    %98 = arith.mulf %97, %47 : vector<32x128xf32>
    %99 = vector.extract_strided_slice %94 {offsets = [0, 0], sizes = [32, 128], strides = [1, 1]} : vector<96x128xf32> to vector<32x128xf32>
    %100 = arith.mulf %99, %96 : vector<32x128xf32>
    %101 = arith.addf %98, %100 : vector<32x128xf32>
    %102 = vector.extract_strided_slice %94 {offsets = [64, 0], sizes = [32, 128], strides = [1, 1]} : vector<96x128xf32> to vector<32x128xf32>
    %103 = math.tanh %101 : vector<32x128xf32>
    %104 = arith.mulf %102, %103 : vector<32x128xf32>
    %105 = arith.truncf %85 : vector<32x128xf32> to vector<32x128xbf16>
    %c1_31 = arith.constant 1 : index
    %c0_32 = arith.constant 0 : index
    %c0_33 = arith.constant 0 : index
    %106 = vector.load %arg7[%c1_31, %c0_32, %c0_33] : memref<16x32x128xbf16, #tpu.memory_space<vmem>>, vector<1x32x128xbf16>
    %107 = vector.shape_cast %106 : vector<1x32x128xbf16> to vector<32x128xbf16>
    %108 = vector.shape_cast %105 : vector<32x128xbf16> to vector<1x32x128xbf16>
    tpu.vector_store %arg7[%c1_31, %c0_32, %c0_33], %108 {strides = array<i32>} : memref<16x32x128xbf16, #tpu.memory_space<vmem>>, vector<1x32x128xbf16>,
    %109 = arith.truncf %104 : vector<32x128xf32> to vector<32x128xbf16>
    %c14 = arith.constant 14 : index
    %c0_34 = arith.constant 0 : index
    %c0_35 = arith.constant 0 : index
    %110 = vector.load %arg8[%c14, %c0_34, %c0_35] : memref<16x32x128xbf16, #tpu.memory_space<vmem>>, vector<1x32x128xbf16>
    %111 = vector.shape_cast %110 : vector<1x32x128xbf16> to vector<32x128xbf16>
    %112 = vector.shape_cast %109 : vector<32x128xbf16> to vector<1x32x128xbf16>
    tpu.vector_store %arg8[%c14, %c0_34, %c0_35], %112 {strides = array<i32>} : memref<16x32x128xbf16, #tpu.memory_space<vmem>>, vector<1x32x128xbf16>,
    %c2 = arith.constant 2 : index
    %c0_36 = arith.constant 0 : index
    %c0_37 = arith.constant 0 : index
    %113 = vector.load %arg1[%c2, %c0_36, %c0_37] : memref<16x16x128xbf16, #tpu.memory_space<vmem>>, vector<1x16x128xbf16>
    %114 = vector.shape_cast %113 : vector<1x16x128xbf16> to vector<16x128xbf16>
    %115 = arith.truncf %85 : vector<32x128xf32> to vector<32x128xbf16>
    %116 = arith.truncf %104 : vector<32x128xf32> to vector<32x128xbf16>
    %117 = tpu.concatenate %114, %115, %116 in 0 : vector<16x128xbf16>, vector<32x128xbf16>, vector<32x128xbf16> -> vector<80x128xbf16>
    %cst_38 = arith.constant dense<0.000000e+00> : vector<256x128xf32>
    %118 = tpu.matmul %0, %117, %cst_38 {dimension_numbers = #tpu.dot_dimension_numbers<[1], [0], [0], [1], [0, 0, 1, 1], [], []>} : vector<256x80xbf16>, vector<80x128xbf16>, vector<256x128xf32> -> vector<256x128xf32>
    %119 = vector.broadcast %1 : vector<256x1xf32> to vector<256x128xf32>
    %120 = arith.addf %118, %119 : vector<256x128xf32>
    %121 = vector.extract_strided_slice %120 {offsets = [0, 0], sizes = [128, 128], strides = [1, 1]} : vector<256x128xf32> to vector<128x128xf32>
    %122 = vector.extract_strided_slice %121 {offsets = [0, 0], sizes = [96, 128], strides = [1, 1]} : vector<128x128xf32> to vector<96x128xf32>
    %cst_39 = arith.constant 5.000000e-01 : f32
    %123 = vector.broadcast %cst_39 : f32 to vector<96x128xf32>
    %124 = arith.mulf %123, %122 : vector<96x128xf32>
    %125 = math.tanh %124 : vector<96x128xf32>
    %cst_40 = arith.constant 1.000000e+00 : f32
    %126 = vector.broadcast %cst_40 : f32 to vector<96x128xf32>
    %127 = arith.addf %125, %126 : vector<96x128xf32>
    %cst_41 = arith.constant 5.000000e-01 : f32
    %128 = vector.broadcast %cst_41 : f32 to vector<96x128xf32>
    %129 = arith.mulf %128, %127 : vector<96x128xf32>
    %130 = vector.extract_strided_slice %121 {offsets = [96, 0], sizes = [32, 128], strides = [1, 1]} : vector<128x128xf32> to vector<32x128xf32>
    %131 = math.tanh %130 : vector<32x128xf32>
    %132 = vector.extract_strided_slice %129 {offsets = [32, 0], sizes = [32, 128], strides = [1, 1]} : vector<96x128xf32> to vector<32x128xf32>
    %133 = arith.mulf %132, %82 : vector<32x128xf32>
    %134 = vector.extract_strided_slice %129 {offsets = [0, 0], sizes = [32, 128], strides = [1, 1]} : vector<96x128xf32> to vector<32x128xf32>
    %135 = arith.mulf %134, %131 : vector<32x128xf32>
    %136 = arith.addf %133, %135 : vector<32x128xf32>
    %137 = vector.extract_strided_slice %129 {offsets = [64, 0], sizes = [32, 128], strides = [1, 1]} : vector<96x128xf32> to vector<32x128xf32>
    %138 = math.tanh %136 : vector<32x128xf32>
    %139 = arith.mulf %137, %138 : vector<32x128xf32>
    %140 = vector.extract_strided_slice %120 {offsets = [128, 0], sizes = [128, 128], strides = [1, 1]} : vector<256x128xf32> to vector<128x128xf32>
    %141 = vector.extract_strided_slice %140 {offsets = [0, 0], sizes = [96, 128], strides = [1, 1]} : vector<128x128xf32> to vector<96x128xf32>
    %cst_42 = arith.constant 5.000000e-01 : f32
    %142 = vector.broadcast %cst_42 : f32 to vector<96x128xf32>
    %143 = arith.mulf %142, %141 : vector<96x128xf32>
    %144 = math.tanh %143 : vector<96x128xf32>
    %cst_43 = arith.constant 1.000000e+00 : f32
    %145 = vector.broadcast %cst_43 : f32 to vector<96x128xf32>
    %146 = arith.addf %144, %145 : vector<96x128xf32>
    %cst_44 = arith.constant 5.000000e-01 : f32
    %147 = vector.broadcast %cst_44 : f32 to vector<96x128xf32>
    %148 = arith.mulf %147, %146 : vector<96x128xf32>
    %149 = vector.extract_strided_slice %140 {offsets = [96, 0], sizes = [32, 128], strides = [1, 1]} : vector<128x128xf32> to vector<32x128xf32>
    %150 = math.tanh %149 : vector<32x128xf32>
    %151 = vector.extract_strided_slice %148 {offsets = [32, 0], sizes = [32, 128], strides = [1, 1]} : vector<96x128xf32> to vector<32x128xf32>
    %152 = arith.mulf %151, %101 : vector<32x128xf32>
    %153 = vector.extract_strided_slice %148 {offsets = [0, 0], sizes = [32, 128], strides = [1, 1]} : vector<96x128xf32> to vector<32x128xf32>
    %154 = arith.mulf %153, %150 : vector<32x128xf32>
    %155 = arith.addf %152, %154 : vector<32x128xf32>
    %156 = vector.extract_strided_slice %148 {offsets = [64, 0], sizes = [32, 128], strides = [1, 1]} : vector<96x128xf32> to vector<32x128xf32>
    %157 = math.tanh %155 : vector<32x128xf32>
    %158 = arith.mulf %156, %157 : vector<32x128xf32>
    %159 = arith.truncf %139 : vector<32x128xf32> to vector<32x128xbf16>
    %c2_45 = arith.constant 2 : index
    %c0_46 = arith.constant 0 : index
    %c0_47 = arith.constant 0 : index
    %160 = vector.load %arg7[%c2_45, %c0_46, %c0_47] : memref<16x32x128xbf16, #tpu.memory_space<vmem>>, vector<1x32x128xbf16>
    %161 = vector.shape_cast %160 : vector<1x32x128xbf16> to vector<32x128xbf16>
    %162 = vector.shape_cast %159 : vector<32x128xbf16> to vector<1x32x128xbf16>
    tpu.vector_store %arg7[%c2_45, %c0_46, %c0_47], %162 {strides = array<i32>} : memref<16x32x128xbf16, #tpu.memory_space<vmem>>, vector<1x32x128xbf16>,
    %163 = arith.truncf %158 : vector<32x128xf32> to vector<32x128xbf16>
    %c13 = arith.constant 13 : index
    %c0_48 = arith.constant 0 : index
    %c0_49 = arith.constant 0 : index
    %164 = vector.load %arg8[%c13, %c0_48, %c0_49] : memref<16x32x128xbf16, #tpu.memory_space<vmem>>, vector<1x32x128xbf16>
    %165 = vector.shape_cast %164 : vector<1x32x128xbf16> to vector<32x128xbf16>
    %166 = vector.shape_cast %163 : vector<32x128xbf16> to vector<1x32x128xbf16>
    tpu.vector_store %arg8[%c13, %c0_48, %c0_49], %166 {strides = array<i32>} : memref<16x32x128xbf16, #tpu.memory_space<vmem>>, vector<1x32x128xbf16>,
    %c3 = arith.constant 3 : index
    %c0_50 = arith.constant 0 : index
    %c0_51 = arith.constant 0 : index
    %167 = vector.load %arg1[%c3, %c0_50, %c0_51] : memref<16x16x128xbf16, #tpu.memory_space<vmem>>, vector<1x16x128xbf16>
    %168 = vector.shape_cast %167 : vector<1x16x128xbf16> to vector<16x128xbf16>
    %169 = arith.truncf %139 : vector<32x128xf32> to vector<32x128xbf16>
    %170 = arith.truncf %158 : vector<32x128xf32> to vector<32x128xbf16>
    %171 = tpu.concatenate %168, %169, %170 in 0 : vector<16x128xbf16>, vector<32x128xbf16>, vector<32x128xbf16> -> vector<80x128xbf16>
    %cst_52 = arith.constant dense<0.000000e+00> : vector<256x128xf32>
    %172 = tpu.matmul %0, %171, %cst_52 {dimension_numbers = #tpu.dot_dimension_numbers<[1], [0], [0], [1], [0, 0, 1, 1], [], []>} : vector<256x80xbf16>, vector<80x128xbf16>, vector<256x128xf32> -> vector<256x128xf32>
    %173 = vector.broadcast %1 : vector<256x1xf32> to vector<256x128xf32>
    %174 = arith.addf %172, %173 : vector<256x128xf32>
    %175 = vector.extract_strided_slice %174 {offsets = [0, 0], sizes = [128, 128], strides = [1, 1]} : vector<256x128xf32> to vector<128x128xf32>
    %176 = vector.extract_strided_slice %175 {offsets = [0, 0], sizes = [96, 128], strides = [1, 1]} : vector<128x128xf32> to vector<96x128xf32>
    %cst_53 = arith.constant 5.000000e-01 : f32
    %177 = vector.broadcast %cst_53 : f32 to vector<96x128xf32>
    %178 = arith.mulf %177, %176 : vector<96x128xf32>
    %179 = math.tanh %178 : vector<96x128xf32>
    %cst_54 = arith.constant 1.000000e+00 : f32
    %180 = vector.broadcast %cst_54 : f32 to vector<96x128xf32>
    %181 = arith.addf %179, %180 : vector<96x128xf32>
    %cst_55 = arith.constant 5.000000e-01 : f32
    %182 = vector.broadcast %cst_55 : f32 to vector<96x128xf32>
    %183 = arith.mulf %182, %181 : vector<96x128xf32>
    %184 = vector.extract_strided_slice %175 {offsets = [96, 0], sizes = [32, 128], strides = [1, 1]} : vector<128x128xf32> to vector<32x128xf32>
    %185 = math.tanh %184 : vector<32x128xf32>
    %186 = vector.extract_strided_slice %183 {offsets = [32, 0], sizes = [32, 128], strides = [1, 1]} : vector<96x128xf32> to vector<32x128xf32>
    %187 = arith.mulf %186, %136 : vector<32x128xf32>
    %188 = vector.extract_strided_slice %183 {offsets = [0, 0], sizes = [32, 128], strides = [1, 1]} : vector<96x128xf32> to vector<32x128xf32>
    %189 = arith.mulf %188, %185 : vector<32x128xf32>
    %190 = arith.addf %187, %189 : vector<32x128xf32>
    %191 = vector.extract_strided_slice %183 {offsets = [64, 0], sizes = [32, 128], strides = [1, 1]} : vector<96x128xf32> to vector<32x128xf32>
    %192 = math.tanh %190 : vector<32x128xf32>
    %193 = arith.mulf %191, %192 : vector<32x128xf32>
    %194 = vector.extract_strided_slice %174 {offsets = [128, 0], sizes = [128, 128], strides = [1, 1]} : vector<256x128xf32> to vector<128x128xf32>
    %195 = vector.extract_strided_slice %194 {offsets = [0, 0], sizes = [96, 128], strides = [1, 1]} : vector<128x128xf32> to vector<96x128xf32>
    %cst_56 = arith.constant 5.000000e-01 : f32
    %196 = vector.broadcast %cst_56 : f32 to vector<96x128xf32>
    %197 = arith.mulf %196, %195 : vector<96x128xf32>
    %198 = math.tanh %197 : vector<96x128xf32>
    %cst_57 = arith.constant 1.000000e+00 : f32
    %199 = vector.broadcast %cst_57 : f32 to vector<96x128xf32>
    %200 = arith.addf %198, %199 : vector<96x128xf32>
    %cst_58 = arith.constant 5.000000e-01 : f32
    %201 = vector.broadcast %cst_58 : f32 to vector<96x128xf32>
    %202 = arith.mulf %201, %200 : vector<96x128xf32>
    %203 = vector.extract_strided_slice %194 {offsets = [96, 0], sizes = [32, 128], strides = [1, 1]} : vector<128x128xf32> to vector<32x128xf32>
    %204 = math.tanh %203 : vector<32x128xf32>
    %205 = vector.extract_strided_slice %202 {offsets = [32, 0], sizes = [32, 128], strides = [1, 1]} : vector<96x128xf32> to vector<32x128xf32>
    %206 = arith.mulf %205, %155 : vector<32x128xf32>
    %207 = vector.extract_strided_slice %202 {offsets = [0, 0], sizes = [32, 128], strides = [1, 1]} : vector<96x128xf32> to vector<32x128xf32>
    %208 = arith.mulf %207, %204 : vector<32x128xf32>
    %209 = arith.addf %206, %208 : vector<32x128xf32>
    %210 = vector.extract_strided_slice %202 {offsets = [64, 0], sizes = [32, 128], strides = [1, 1]} : vector<96x128xf32> to vector<32x128xf32>
    %211 = math.tanh %209 : vector<32x128xf32>
    %212 = arith.mulf %210, %211 : vector<32x128xf32>
    %213 = arith.truncf %193 : vector<32x128xf32> to vector<32x128xbf16>
    %c3_59 = arith.constant 3 : index
    %c0_60 = arith.constant 0 : index
    %c0_61 = arith.constant 0 : index
    %214 = vector.load %arg7[%c3_59, %c0_60, %c0_61] : memref<16x32x128xbf16, #tpu.memory_space<vmem>>, vector<1x32x128xbf16>
    %215 = vector.shape_cast %214 : vector<1x32x128xbf16> to vector<32x128xbf16>
    %216 = vector.shape_cast %213 : vector<32x128xbf16> to vector<1x32x128xbf16>
    tpu.vector_store %arg7[%c3_59, %c0_60, %c0_61], %216 {strides = array<i32>} : memref<16x32x128xbf16, #tpu.memory_space<vmem>>, vector<1x32x128xbf16>,
    %217 = arith.truncf %212 : vector<32x128xf32> to vector<32x128xbf16>
    %c12 = arith.constant 12 : index
    %c0_62 = arith.constant 0 : index
    %c0_63 = arith.constant 0 : index
    %218 = vector.load %arg8[%c12, %c0_62, %c0_63] : memref<16x32x128xbf16, #tpu.memory_space<vmem>>, vector<1x32x128xbf16>
    %219 = vector.shape_cast %218 : vector<1x32x128xbf16> to vector<32x128xbf16>
    %220 = vector.shape_cast %217 : vector<32x128xbf16> to vector<1x32x128xbf16>
    tpu.vector_store %arg8[%c12, %c0_62, %c0_63], %220 {strides = array<i32>} : memref<16x32x128xbf16, #tpu.memory_space<vmem>>, vector<1x32x128xbf16>,
    %c4 = arith.constant 4 : index
    %c0_64 = arith.constant 0 : index
    %c0_65 = arith.constant 0 : index
    %221 = vector.load %arg1[%c4, %c0_64, %c0_65] : memref<16x16x128xbf16, #tpu.memory_space<vmem>>, vector<1x16x128xbf16>
    %222 = vector.shape_cast %221 : vector<1x16x128xbf16> to vector<16x128xbf16>
    %223 = arith.truncf %193 : vector<32x128xf32> to vector<32x128xbf16>
    %224 = arith.truncf %212 : vector<32x128xf32> to vector<32x128xbf16>
    %225 = tpu.concatenate %222, %223, %224 in 0 : vector<16x128xbf16>, vector<32x128xbf16>, vector<32x128xbf16> -> vector<80x128xbf16>
    %cst_66 = arith.constant dense<0.000000e+00> : vector<256x128xf32>
    %226 = tpu.matmul %0, %225, %cst_66 {dimension_numbers = #tpu.dot_dimension_numbers<[1], [0], [0], [1], [0, 0, 1, 1], [], []>} : vector<256x80xbf16>, vector<80x128xbf16>, vector<256x128xf32> -> vector<256x128xf32>
    %227 = vector.broadcast %1 : vector<256x1xf32> to vector<256x128xf32>
    %228 = arith.addf %226, %227 : vector<256x128xf32>
    %229 = vector.extract_strided_slice %228 {offsets = [0, 0], sizes = [128, 128], strides = [1, 1]} : vector<256x128xf32> to vector<128x128xf32>
    %230 = vector.extract_strided_slice %229 {offsets = [0, 0], sizes = [96, 128], strides = [1, 1]} : vector<128x128xf32> to vector<96x128xf32>
    %cst_67 = arith.constant 5.000000e-01 : f32
    %231 = vector.broadcast %cst_67 : f32 to vector<96x128xf32>
    %232 = arith.mulf %231, %230 : vector<96x128xf32>
    %233 = math.tanh %232 : vector<96x128xf32>
    %cst_68 = arith.constant 1.000000e+00 : f32
    %234 = vector.broadcast %cst_68 : f32 to vector<96x128xf32>
    %235 = arith.addf %233, %234 : vector<96x128xf32>
    %cst_69 = arith.constant 5.000000e-01 : f32
    %236 = vector.broadcast %cst_69 : f32 to vector<96x128xf32>
    %237 = arith.mulf %236, %235 : vector<96x128xf32>
    %238 = vector.extract_strided_slice %229 {offsets = [96, 0], sizes = [32, 128], strides = [1, 1]} : vector<128x128xf32> to vector<32x128xf32>
    %239 = math.tanh %238 : vector<32x128xf32>
    %240 = vector.extract_strided_slice %237 {offsets = [32, 0], sizes = [32, 128], strides = [1, 1]} : vector<96x128xf32> to vector<32x128xf32>
    %241 = arith.mulf %240, %190 : vector<32x128xf32>
    %242 = vector.extract_strided_slice %237 {offsets = [0, 0], sizes = [32, 128], strides = [1, 1]} : vector<96x128xf32> to vector<32x128xf32>
    %243 = arith.mulf %242, %239 : vector<32x128xf32>
    %244 = arith.addf %241, %243 : vector<32x128xf32>
    %245 = vector.extract_strided_slice %237 {offsets = [64, 0], sizes = [32, 128], strides = [1, 1]} : vector<96x128xf32> to vector<32x128xf32>
    %246 = math.tanh %244 : vector<32x128xf32>
    %247 = arith.mulf %245, %246 : vector<32x128xf32>
    %248 = vector.extract_strided_slice %228 {offsets = [128, 0], sizes = [128, 128], strides = [1, 1]} : vector<256x128xf32> to vector<128x128xf32>
    %249 = vector.extract_strided_slice %248 {offsets = [0, 0], sizes = [96, 128], strides = [1, 1]} : vector<128x128xf32> to vector<96x128xf32>
    %cst_70 = arith.constant 5.000000e-01 : f32
    %250 = vector.broadcast %cst_70 : f32 to vector<96x128xf32>
    %251 = arith.mulf %250, %249 : vector<96x128xf32>
    %252 = math.tanh %251 : vector<96x128xf32>
    %cst_71 = arith.constant 1.000000e+00 : f32
    %253 = vector.broadcast %cst_71 : f32 to vector<96x128xf32>
    %254 = arith.addf %252, %253 : vector<96x128xf32>
    %cst_72 = arith.constant 5.000000e-01 : f32
    %255 = vector.broadcast %cst_72 : f32 to vector<96x128xf32>
    %256 = arith.mulf %255, %254 : vector<96x128xf32>
    %257 = vector.extract_strided_slice %248 {offsets = [96, 0], sizes = [32, 128], strides = [1, 1]} : vector<128x128xf32> to vector<32x128xf32>
    %258 = math.tanh %257 : vector<32x128xf32>
    %259 = vector.extract_strided_slice %256 {offsets = [32, 0], sizes = [32, 128], strides = [1, 1]} : vector<96x128xf32> to vector<32x128xf32>
    %260 = arith.mulf %259, %209 : vector<32x128xf32>
    %261 = vector.extract_strided_slice %256 {offsets = [0, 0], sizes = [32, 128], strides = [1, 1]} : vector<96x128xf32> to vector<32x128xf32>
    %262 = arith.mulf %261, %258 : vector<32x128xf32>
    %263 = arith.addf %260, %262 : vector<32x128xf32>
    %264 = vector.extract_strided_slice %256 {offsets = [64, 0], sizes = [32, 128], strides = [1, 1]} : vector<96x128xf32> to vector<32x128xf32>
    %265 = math.tanh %263 : vector<32x128xf32>
    %266 = arith.mulf %264, %265 : vector<32x128xf32>
    %267 = arith.truncf %247 : vector<32x128xf32> to vector<32x128xbf16>
    %c4_73 = arith.constant 4 : index
    %c0_74 = arith.constant 0 : index
    %c0_75 = arith.constant 0 : index
    %268 = vector.load %arg7[%c4_73, %c0_74, %c0_75] : memref<16x32x128xbf16, #tpu.memory_space<vmem>>, vector<1x32x128xbf16>
    %269 = vector.shape_cast %268 : vector<1x32x128xbf16> to vector<32x128xbf16>
    %270 = vector.shape_cast %267 : vector<32x128xbf16> to vector<1x32x128xbf16>
    tpu.vector_store %arg7[%c4_73, %c0_74, %c0_75], %270 {strides = array<i32>} : memref<16x32x128xbf16, #tpu.memory_space<vmem>>, vector<1x32x128xbf16>,
    %271 = arith.truncf %266 : vector<32x128xf32> to vector<32x128xbf16>
    %c11 = arith.constant 11 : index
    %c0_76 = arith.constant 0 : index
    %c0_77 = arith.constant 0 : index
    %272 = vector.load %arg8[%c11, %c0_76, %c0_77] : memref<16x32x128xbf16, #tpu.memory_space<vmem>>, vector<1x32x128xbf16>
    %273 = vector.shape_cast %272 : vector<1x32x128xbf16> to vector<32x128xbf16>
    %274 = vector.shape_cast %271 : vector<32x128xbf16> to vector<1x32x128xbf16>
    tpu.vector_store %arg8[%c11, %c0_76, %c0_77], %274 {strides = array<i32>} : memref<16x32x128xbf16, #tpu.memory_space<vmem>>, vector<1x32x128xbf16>,
    %c5 = arith.constant 5 : index
    %c0_78 = arith.constant 0 : index
    %c0_79 = arith.constant 0 : index
    %275 = vector.load %arg1[%c5, %c0_78, %c0_79] : memref<16x16x128xbf16, #tpu.memory_space<vmem>>, vector<1x16x128xbf16>
    %276 = vector.shape_cast %275 : vector<1x16x128xbf16> to vector<16x128xbf16>
    %277 = arith.truncf %247 : vector<32x128xf32> to vector<32x128xbf16>
    %278 = arith.truncf %266 : vector<32x128xf32> to vector<32x128xbf16>
    %279 = tpu.concatenate %276, %277, %278 in 0 : vector<16x128xbf16>, vector<32x128xbf16>, vector<32x128xbf16> -> vector<80x128xbf16>
    %cst_80 = arith.constant dense<0.000000e+00> : vector<256x128xf32>
    %280 = tpu.matmul %0, %279, %cst_80 {dimension_numbers = #tpu.dot_dimension_numbers<[1], [0], [0], [1], [0, 0, 1, 1], [], []>} : vector<256x80xbf16>, vector<80x128xbf16>, vector<256x128xf32> -> vector<256x128xf32>
    %281 = vector.broadcast %1 : vector<256x1xf32> to vector<256x128xf32>
    %282 = arith.addf %280, %281 : vector<256x128xf32>
    %283 = vector.extract_strided_slice %282 {offsets = [0, 0], sizes = [128, 128], strides = [1, 1]} : vector<256x128xf32> to vector<128x128xf32>
    %284 = vector.extract_strided_slice %283 {offsets = [0, 0], sizes = [96, 128], strides = [1, 1]} : vector<128x128xf32> to vector<96x128xf32>
    %cst_81 = arith.constant 5.000000e-01 : f32
    %285 = vector.broadcast %cst_81 : f32 to vector<96x128xf32>
    %286 = arith.mulf %285, %284 : vector<96x128xf32>
    %287 = math.tanh %286 : vector<96x128xf32>
    %cst_82 = arith.constant 1.000000e+00 : f32
    %288 = vector.broadcast %cst_82 : f32 to vector<96x128xf32>
    %289 = arith.addf %287, %288 : vector<96x128xf32>
    %cst_83 = arith.constant 5.000000e-01 : f32
    %290 = vector.broadcast %cst_83 : f32 to vector<96x128xf32>
    %291 = arith.mulf %290, %289 : vector<96x128xf32>
    %292 = vector.extract_strided_slice %283 {offsets = [96, 0], sizes = [32, 128], strides = [1, 1]} : vector<128x128xf32> to vector<32x128xf32>
    %293 = math.tanh %292 : vector<32x128xf32>
    %294 = vector.extract_strided_slice %291 {offsets = [32, 0], sizes = [32, 128], strides = [1, 1]} : vector<96x128xf32> to vector<32x128xf32>
    %295 = arith.mulf %294, %244 : vector<32x128xf32>
    %296 = vector.extract_strided_slice %291 {offsets = [0, 0], sizes = [32, 128], strides = [1, 1]} : vector<96x128xf32> to vector<32x128xf32>
    %297 = arith.mulf %296, %293 : vector<32x128xf32>
    %298 = arith.addf %295, %297 : vector<32x128xf32>
    %299 = vector.extract_strided_slice %291 {offsets = [64, 0], sizes = [32, 128], strides = [1, 1]} : vector<96x128xf32> to vector<32x128xf32>
    %300 = math.tanh %298 : vector<32x128xf32>
    %301 = arith.mulf %299, %300 : vector<32x128xf32>
    %302 = vector.extract_strided_slice %282 {offsets = [128, 0], sizes = [128, 128], strides = [1, 1]} : vector<256x128xf32> to vector<128x128xf32>
    %303 = vector.extract_strided_slice %302 {offsets = [0, 0], sizes = [96, 128], strides = [1, 1]} : vector<128x128xf32> to vector<96x128xf32>
    %cst_84 = arith.constant 5.000000e-01 : f32
    %304 = vector.broadcast %cst_84 : f32 to vector<96x128xf32>
    %305 = arith.mulf %304, %303 : vector<96x128xf32>
    %306 = math.tanh %305 : vector<96x128xf32>
    %cst_85 = arith.constant 1.000000e+00 : f32
    %307 = vector.broadcast %cst_85 : f32 to vector<96x128xf32>
    %308 = arith.addf %306, %307 : vector<96x128xf32>
    %cst_86 = arith.constant 5.000000e-01 : f32
    %309 = vector.broadcast %cst_86 : f32 to vector<96x128xf32>
    %310 = arith.mulf %309, %308 : vector<96x128xf32>
    %311 = vector.extract_strided_slice %302 {offsets = [96, 0], sizes = [32, 128], strides = [1, 1]} : vector<128x128xf32> to vector<32x128xf32>
    %312 = math.tanh %311 : vector<32x128xf32>
    %313 = vector.extract_strided_slice %310 {offsets = [32, 0], sizes = [32, 128], strides = [1, 1]} : vector<96x128xf32> to vector<32x128xf32>
    %314 = arith.mulf %313, %263 : vector<32x128xf32>
    %315 = vector.extract_strided_slice %310 {offsets = [0, 0], sizes = [32, 128], strides = [1, 1]} : vector<96x128xf32> to vector<32x128xf32>
    %316 = arith.mulf %315, %312 : vector<32x128xf32>
    %317 = arith.addf %314, %316 : vector<32x128xf32>
    %318 = vector.extract_strided_slice %310 {offsets = [64, 0], sizes = [32, 128], strides = [1, 1]} : vector<96x128xf32> to vector<32x128xf32>
    %319 = math.tanh %317 : vector<32x128xf32>
    %320 = arith.mulf %318, %319 : vector<32x128xf32>
    %321 = arith.truncf %301 : vector<32x128xf32> to vector<32x128xbf16>
    %c5_87 = arith.constant 5 : index
    %c0_88 = arith.constant 0 : index
    %c0_89 = arith.constant 0 : index
    %322 = vector.load %arg7[%c5_87, %c0_88, %c0_89] : memref<16x32x128xbf16, #tpu.memory_space<vmem>>, vector<1x32x128xbf16>
    %323 = vector.shape_cast %322 : vector<1x32x128xbf16> to vector<32x128xbf16>
    %324 = vector.shape_cast %321 : vector<32x128xbf16> to vector<1x32x128xbf16>
    tpu.vector_store %arg7[%c5_87, %c0_88, %c0_89], %324 {strides = array<i32>} : memref<16x32x128xbf16, #tpu.memory_space<vmem>>, vector<1x32x128xbf16>,
    %325 = arith.truncf %320 : vector<32x128xf32> to vector<32x128xbf16>
    %c10 = arith.constant 10 : index
    %c0_90 = arith.constant 0 : index
    %c0_91 = arith.constant 0 : index
    %326 = vector.load %arg8[%c10, %c0_90, %c0_91] : memref<16x32x128xbf16, #tpu.memory_space<vmem>>, vector<1x32x128xbf16>
    %327 = vector.shape_cast %326 : vector<1x32x128xbf16> to vector<32x128xbf16>
    %328 = vector.shape_cast %325 : vector<32x128xbf16> to vector<1x32x128xbf16>
    tpu.vector_store %arg8[%c10, %c0_90, %c0_91], %328 {strides = array<i32>} : memref<16x32x128xbf16, #tpu.memory_space<vmem>>, vector<1x32x128xbf16>,
    %c6 = arith.constant 6 : index
    %c0_92 = arith.constant 0 : index
    %c0_93 = arith.constant 0 : index
    %329 = vector.load %arg1[%c6, %c0_92, %c0_93] : memref<16x16x128xbf16, #tpu.memory_space<vmem>>, vector<1x16x128xbf16>
    %330 = vector.shape_cast %329 : vector<1x16x128xbf16> to vector<16x128xbf16>
    %331 = arith.truncf %301 : vector<32x128xf32> to vector<32x128xbf16>
    %332 = arith.truncf %320 : vector<32x128xf32> to vector<32x128xbf16>
    %333 = tpu.concatenate %330, %331, %332 in 0 : vector<16x128xbf16>, vector<32x128xbf16>, vector<32x128xbf16> -> vector<80x128xbf16>
    %cst_94 = arith.constant dense<0.000000e+00> : vector<256x128xf32>
    %334 = tpu.matmul %0, %333, %cst_94 {dimension_numbers = #tpu.dot_dimension_numbers<[1], [0], [0], [1], [0, 0, 1, 1], [], []>} : vector<256x80xbf16>, vector<80x128xbf16>, vector<256x128xf32> -> vector<256x128xf32>
    %335 = vector.broadcast %1 : vector<256x1xf32> to vector<256x128xf32>
    %336 = arith.addf %334, %335 : vector<256x128xf32>
    %337 = vector.extract_strided_slice %336 {offsets = [0, 0], sizes = [128, 128], strides = [1, 1]} : vector<256x128xf32> to vector<128x128xf32>
    %338 = vector.extract_strided_slice %337 {offsets = [0, 0], sizes = [96, 128], strides = [1, 1]} : vector<128x128xf32> to vector<96x128xf32>
    %cst_95 = arith.constant 5.000000e-01 : f32
    %339 = vector.broadcast %cst_95 : f32 to vector<96x128xf32>
    %340 = arith.mulf %339, %338 : vector<96x128xf32>
    %341 = math.tanh %340 : vector<96x128xf32>
    %cst_96 = arith.constant 1.000000e+00 : f32
    %342 = vector.broadcast %cst_96 : f32 to vector<96x128xf32>
    %343 = arith.addf %341, %342 : vector<96x128xf32>
    %cst_97 = arith.constant 5.000000e-01 : f32
    %344 = vector.broadcast %cst_97 : f32 to vector<96x128xf32>
    %345 = arith.mulf %344, %343 : vector<96x128xf32>
    %346 = vector.extract_strided_slice %337 {offsets = [96, 0], sizes = [32, 128], strides = [1, 1]} : vector<128x128xf32> to vector<32x128xf32>
    %347 = math.tanh %346 : vector<32x128xf32>
    %348 = vector.extract_strided_slice %345 {offsets = [32, 0], sizes = [32, 128], strides = [1, 1]} : vector<96x128xf32> to vector<32x128xf32>
    %349 = arith.mulf %348, %298 : vector<32x128xf32>
    %350 = vector.extract_strided_slice %345 {offsets = [0, 0], sizes = [32, 128], strides = [1, 1]} : vector<96x128xf32> to vector<32x128xf32>
    %351 = arith.mulf %350, %347 : vector<32x128xf32>
    %352 = arith.addf %349, %351 : vector<32x128xf32>
    %353 = vector.extract_strided_slice %345 {offsets = [64, 0], sizes = [32, 128], strides = [1, 1]} : vector<96x128xf32> to vector<32x128xf32>
    %354 = math.tanh %352 : vector<32x128xf32>
    %355 = arith.mulf %353, %354 : vector<32x128xf32>
    %356 = vector.extract_strided_slice %336 {offsets = [128, 0], sizes = [128, 128], strides = [1, 1]} : vector<256x128xf32> to vector<128x128xf32>
    %357 = vector.extract_strided_slice %356 {offsets = [0, 0], sizes = [96, 128], strides = [1, 1]} : vector<128x128xf32> to vector<96x128xf32>
    %cst_98 = arith.constant 5.000000e-01 : f32
    %358 = vector.broadcast %cst_98 : f32 to vector<96x128xf32>
    %359 = arith.mulf %358, %357 : vector<96x128xf32>
    %360 = math.tanh %359 : vector<96x128xf32>
    %cst_99 = arith.constant 1.000000e+00 : f32
    %361 = vector.broadcast %cst_99 : f32 to vector<96x128xf32>
    %362 = arith.addf %360, %361 : vector<96x128xf32>
    %cst_100 = arith.constant 5.000000e-01 : f32
    %363 = vector.broadcast %cst_100 : f32 to vector<96x128xf32>
    %364 = arith.mulf %363, %362 : vector<96x128xf32>
    %365 = vector.extract_strided_slice %356 {offsets = [96, 0], sizes = [32, 128], strides = [1, 1]} : vector<128x128xf32> to vector<32x128xf32>
    %366 = math.tanh %365 : vector<32x128xf32>
    %367 = vector.extract_strided_slice %364 {offsets = [32, 0], sizes = [32, 128], strides = [1, 1]} : vector<96x128xf32> to vector<32x128xf32>
    %368 = arith.mulf %367, %317 : vector<32x128xf32>
    %369 = vector.extract_strided_slice %364 {offsets = [0, 0], sizes = [32, 128], strides = [1, 1]} : vector<96x128xf32> to vector<32x128xf32>
    %370 = arith.mulf %369, %366 : vector<32x128xf32>
    %371 = arith.addf %368, %370 : vector<32x128xf32>
    %372 = vector.extract_strided_slice %364 {offsets = [64, 0], sizes = [32, 128], strides = [1, 1]} : vector<96x128xf32> to vector<32x128xf32>
    %373 = math.tanh %371 : vector<32x128xf32>
    %374 = arith.mulf %372, %373 : vector<32x128xf32>
    %375 = arith.truncf %355 : vector<32x128xf32> to vector<32x128xbf16>
    %c6_101 = arith.constant 6 : index
    %c0_102 = arith.constant 0 : index
    %c0_103 = arith.constant 0 : index
    %376 = vector.load %arg7[%c6_101, %c0_102, %c0_103] : memref<16x32x128xbf16, #tpu.memory_space<vmem>>, vector<1x32x128xbf16>
    %377 = vector.shape_cast %376 : vector<1x32x128xbf16> to vector<32x128xbf16>
    %378 = vector.shape_cast %375 : vector<32x128xbf16> to vector<1x32x128xbf16>
    tpu.vector_store %arg7[%c6_101, %c0_102, %c0_103], %378 {strides = array<i32>} : memref<16x32x128xbf16, #tpu.memory_space<vmem>>, vector<1x32x128xbf16>,
    %379 = arith.truncf %374 : vector<32x128xf32> to vector<32x128xbf16>
    %c9 = arith.constant 9 : index
    %c0_104 = arith.constant 0 : index
    %c0_105 = arith.constant 0 : index
    %380 = vector.load %arg8[%c9, %c0_104, %c0_105] : memref<16x32x128xbf16, #tpu.memory_space<vmem>>, vector<1x32x128xbf16>
    %381 = vector.shape_cast %380 : vector<1x32x128xbf16> to vector<32x128xbf16>
    %382 = vector.shape_cast %379 : vector<32x128xbf16> to vector<1x32x128xbf16>
    tpu.vector_store %arg8[%c9, %c0_104, %c0_105], %382 {strides = array<i32>} : memref<16x32x128xbf16, #tpu.memory_space<vmem>>, vector<1x32x128xbf16>,
    %c7 = arith.constant 7 : index
    %c0_106 = arith.constant 0 : index
    %c0_107 = arith.constant 0 : index
    %383 = vector.load %arg1[%c7, %c0_106, %c0_107] : memref<16x16x128xbf16, #tpu.memory_space<vmem>>, vector<1x16x128xbf16>
    %384 = vector.shape_cast %383 : vector<1x16x128xbf16> to vector<16x128xbf16>
    %385 = arith.truncf %355 : vector<32x128xf32> to vector<32x128xbf16>
    %386 = arith.truncf %374 : vector<32x128xf32> to vector<32x128xbf16>
    %387 = tpu.concatenate %384, %385, %386 in 0 : vector<16x128xbf16>, vector<32x128xbf16>, vector<32x128xbf16> -> vector<80x128xbf16>
    %cst_108 = arith.constant dense<0.000000e+00> : vector<256x128xf32>
    %388 = tpu.matmul %0, %387, %cst_108 {dimension_numbers = #tpu.dot_dimension_numbers<[1], [0], [0], [1], [0, 0, 1, 1], [], []>} : vector<256x80xbf16>, vector<80x128xbf16>, vector<256x128xf32> -> vector<256x128xf32>
    %389 = vector.broadcast %1 : vector<256x1xf32> to vector<256x128xf32>
    %390 = arith.addf %388, %389 : vector<256x128xf32>
    %391 = vector.extract_strided_slice %390 {offsets = [0, 0], sizes = [128, 128], strides = [1, 1]} : vector<256x128xf32> to vector<128x128xf32>
    %392 = vector.extract_strided_slice %391 {offsets = [0, 0], sizes = [96, 128], strides = [1, 1]} : vector<128x128xf32> to vector<96x128xf32>
    %cst_109 = arith.constant 5.000000e-01 : f32
    %393 = vector.broadcast %cst_109 : f32 to vector<96x128xf32>
    %394 = arith.mulf %393, %392 : vector<96x128xf32>
    %395 = math.tanh %394 : vector<96x128xf32>
    %cst_110 = arith.constant 1.000000e+00 : f32
    %396 = vector.broadcast %cst_110 : f32 to vector<96x128xf32>
    %397 = arith.addf %395, %396 : vector<96x128xf32>
    %cst_111 = arith.constant 5.000000e-01 : f32
    %398 = vector.broadcast %cst_111 : f32 to vector<96x128xf32>
    %399 = arith.mulf %398, %397 : vector<96x128xf32>
    %400 = vector.extract_strided_slice %391 {offsets = [96, 0], sizes = [32, 128], strides = [1, 1]} : vector<128x128xf32> to vector<32x128xf32>
    %401 = math.tanh %400 : vector<32x128xf32>
    %402 = vector.extract_strided_slice %399 {offsets = [32, 0], sizes = [32, 128], strides = [1, 1]} : vector<96x128xf32> to vector<32x128xf32>
    %403 = arith.mulf %402, %352 : vector<32x128xf32>
    %404 = vector.extract_strided_slice %399 {offsets = [0, 0], sizes = [32, 128], strides = [1, 1]} : vector<96x128xf32> to vector<32x128xf32>
    %405 = arith.mulf %404, %401 : vector<32x128xf32>
    %406 = arith.addf %403, %405 : vector<32x128xf32>
    %407 = vector.extract_strided_slice %399 {offsets = [64, 0], sizes = [32, 128], strides = [1, 1]} : vector<96x128xf32> to vector<32x128xf32>
    %408 = math.tanh %406 : vector<32x128xf32>
    %409 = arith.mulf %407, %408 : vector<32x128xf32>
    %410 = vector.extract_strided_slice %390 {offsets = [128, 0], sizes = [128, 128], strides = [1, 1]} : vector<256x128xf32> to vector<128x128xf32>
    %411 = vector.extract_strided_slice %410 {offsets = [0, 0], sizes = [96, 128], strides = [1, 1]} : vector<128x128xf32> to vector<96x128xf32>
    %cst_112 = arith.constant 5.000000e-01 : f32
    %412 = vector.broadcast %cst_112 : f32 to vector<96x128xf32>
    %413 = arith.mulf %412, %411 : vector<96x128xf32>
    %414 = math.tanh %413 : vector<96x128xf32>
    %cst_113 = arith.constant 1.000000e+00 : f32
    %415 = vector.broadcast %cst_113 : f32 to vector<96x128xf32>
    %416 = arith.addf %414, %415 : vector<96x128xf32>
    %cst_114 = arith.constant 5.000000e-01 : f32
    %417 = vector.broadcast %cst_114 : f32 to vector<96x128xf32>
    %418 = arith.mulf %417, %416 : vector<96x128xf32>
    %419 = vector.extract_strided_slice %410 {offsets = [96, 0], sizes = [32, 128], strides = [1, 1]} : vector<128x128xf32> to vector<32x128xf32>
    %420 = math.tanh %419 : vector<32x128xf32>
    %421 = vector.extract_strided_slice %418 {offsets = [32, 0], sizes = [32, 128], strides = [1, 1]} : vector<96x128xf32> to vector<32x128xf32>
    %422 = arith.mulf %421, %371 : vector<32x128xf32>
    %423 = vector.extract_strided_slice %418 {offsets = [0, 0], sizes = [32, 128], strides = [1, 1]} : vector<96x128xf32> to vector<32x128xf32>
    %424 = arith.mulf %423, %420 : vector<32x128xf32>
    %425 = arith.addf %422, %424 : vector<32x128xf32>
    %426 = vector.extract_strided_slice %418 {offsets = [64, 0], sizes = [32, 128], strides = [1, 1]} : vector<96x128xf32> to vector<32x128xf32>
    %427 = math.tanh %425 : vector<32x128xf32>
    %428 = arith.mulf %426, %427 : vector<32x128xf32>
    %429 = arith.truncf %409 : vector<32x128xf32> to vector<32x128xbf16>
    %c7_115 = arith.constant 7 : index
    %c0_116 = arith.constant 0 : index
    %c0_117 = arith.constant 0 : index
    %430 = vector.load %arg7[%c7_115, %c0_116, %c0_117] : memref<16x32x128xbf16, #tpu.memory_space<vmem>>, vector<1x32x128xbf16>
    %431 = vector.shape_cast %430 : vector<1x32x128xbf16> to vector<32x128xbf16>
    %432 = vector.shape_cast %429 : vector<32x128xbf16> to vector<1x32x128xbf16>
    tpu.vector_store %arg7[%c7_115, %c0_116, %c0_117], %432 {strides = array<i32>} : memref<16x32x128xbf16, #tpu.memory_space<vmem>>, vector<1x32x128xbf16>,
    %433 = arith.truncf %428 : vector<32x128xf32> to vector<32x128xbf16>
    %c8 = arith.constant 8 : index
    %c0_118 = arith.constant 0 : index
    %c0_119 = arith.constant 0 : index
    %434 = vector.load %arg8[%c8, %c0_118, %c0_119] : memref<16x32x128xbf16, #tpu.memory_space<vmem>>, vector<1x32x128xbf16>
    %435 = vector.shape_cast %434 : vector<1x32x128xbf16> to vector<32x128xbf16>
    %436 = vector.shape_cast %433 : vector<32x128xbf16> to vector<1x32x128xbf16>
    tpu.vector_store %arg8[%c8, %c0_118, %c0_119], %436 {strides = array<i32>} : memref<16x32x128xbf16, #tpu.memory_space<vmem>>, vector<1x32x128xbf16>,
    %c8_120 = arith.constant 8 : index
    %c0_121 = arith.constant 0 : index
    %c0_122 = arith.constant 0 : index
    %437 = vector.load %arg1[%c8_120, %c0_121, %c0_122] : memref<16x16x128xbf16, #tpu.memory_space<vmem>>, vector<1x16x128xbf16>
    %438 = vector.shape_cast %437 : vector<1x16x128xbf16> to vector<16x128xbf16>
    %439 = arith.truncf %409 : vector<32x128xf32> to vector<32x128xbf16>
    %440 = arith.truncf %428 : vector<32x128xf32> to vector<32x128xbf16>
    %441 = tpu.concatenate %438, %439, %440 in 0 : vector<16x128xbf16>, vector<32x128xbf16>, vector<32x128xbf16> -> vector<80x128xbf16>
    %cst_123 = arith.constant dense<0.000000e+00> : vector<256x128xf32>
    %442 = tpu.matmul %0, %441, %cst_123 {dimension_numbers = #tpu.dot_dimension_numbers<[1], [0], [0], [1], [0, 0, 1, 1], [], []>} : vector<256x80xbf16>, vector<80x128xbf16>, vector<256x128xf32> -> vector<256x128xf32>
    %443 = vector.broadcast %1 : vector<256x1xf32> to vector<256x128xf32>
    %444 = arith.addf %442, %443 : vector<256x128xf32>
    %445 = vector.extract_strided_slice %444 {offsets = [0, 0], sizes = [128, 128], strides = [1, 1]} : vector<256x128xf32> to vector<128x128xf32>
    %446 = vector.extract_strided_slice %445 {offsets = [0, 0], sizes = [96, 128], strides = [1, 1]} : vector<128x128xf32> to vector<96x128xf32>
    %cst_124 = arith.constant 5.000000e-01 : f32
    %447 = vector.broadcast %cst_124 : f32 to vector<96x128xf32>
    %448 = arith.mulf %447, %446 : vector<96x128xf32>
    %449 = math.tanh %448 : vector<96x128xf32>
    %cst_125 = arith.constant 1.000000e+00 : f32
    %450 = vector.broadcast %cst_125 : f32 to vector<96x128xf32>
    %451 = arith.addf %449, %450 : vector<96x128xf32>
    %cst_126 = arith.constant 5.000000e-01 : f32
    %452 = vector.broadcast %cst_126 : f32 to vector<96x128xf32>
    %453 = arith.mulf %452, %451 : vector<96x128xf32>
    %454 = vector.extract_strided_slice %445 {offsets = [96, 0], sizes = [32, 128], strides = [1, 1]} : vector<128x128xf32> to vector<32x128xf32>
    %455 = math.tanh %454 : vector<32x128xf32>
    %456 = vector.extract_strided_slice %453 {offsets = [32, 0], sizes = [32, 128], strides = [1, 1]} : vector<96x128xf32> to vector<32x128xf32>
    %457 = arith.mulf %456, %406 : vector<32x128xf32>
    %458 = vector.extract_strided_slice %453 {offsets = [0, 0], sizes = [32, 128], strides = [1, 1]} : vector<96x128xf32> to vector<32x128xf32>
    %459 = arith.mulf %458, %455 : vector<32x128xf32>
    %460 = arith.addf %457, %459 : vector<32x128xf32>
    %461 = vector.extract_strided_slice %453 {offsets = [64, 0], sizes = [32, 128], strides = [1, 1]} : vector<96x128xf32> to vector<32x128xf32>
    %462 = math.tanh %460 : vector<32x128xf32>
    %463 = arith.mulf %461, %462 : vector<32x128xf32>
    %464 = vector.extract_strided_slice %444 {offsets = [128, 0], sizes = [128, 128], strides = [1, 1]} : vector<256x128xf32> to vector<128x128xf32>
    %465 = vector.extract_strided_slice %464 {offsets = [0, 0], sizes = [96, 128], strides = [1, 1]} : vector<128x128xf32> to vector<96x128xf32>
    %cst_127 = arith.constant 5.000000e-01 : f32
    %466 = vector.broadcast %cst_127 : f32 to vector<96x128xf32>
    %467 = arith.mulf %466, %465 : vector<96x128xf32>
    %468 = math.tanh %467 : vector<96x128xf32>
    %cst_128 = arith.constant 1.000000e+00 : f32
    %469 = vector.broadcast %cst_128 : f32 to vector<96x128xf32>
    %470 = arith.addf %468, %469 : vector<96x128xf32>
    %cst_129 = arith.constant 5.000000e-01 : f32
    %471 = vector.broadcast %cst_129 : f32 to vector<96x128xf32>
    %472 = arith.mulf %471, %470 : vector<96x128xf32>
    %473 = vector.extract_strided_slice %464 {offsets = [96, 0], sizes = [32, 128], strides = [1, 1]} : vector<128x128xf32> to vector<32x128xf32>
    %474 = math.tanh %473 : vector<32x128xf32>
    %475 = vector.extract_strided_slice %472 {offsets = [32, 0], sizes = [32, 128], strides = [1, 1]} : vector<96x128xf32> to vector<32x128xf32>
    %476 = arith.mulf %475, %425 : vector<32x128xf32>
    %477 = vector.extract_strided_slice %472 {offsets = [0, 0], sizes = [32, 128], strides = [1, 1]} : vector<96x128xf32> to vector<32x128xf32>
    %478 = arith.mulf %477, %474 : vector<32x128xf32>
    %479 = arith.addf %476, %478 : vector<32x128xf32>
    %480 = vector.extract_strided_slice %472 {offsets = [64, 0], sizes = [32, 128], strides = [1, 1]} : vector<96x128xf32> to vector<32x128xf32>
    %481 = math.tanh %479 : vector<32x128xf32>
    %482 = arith.mulf %480, %481 : vector<32x128xf32>
    %483 = arith.truncf %463 : vector<32x128xf32> to vector<32x128xbf16>
    %c8_130 = arith.constant 8 : index
    %c0_131 = arith.constant 0 : index
    %c0_132 = arith.constant 0 : index
    %484 = vector.load %arg7[%c8_130, %c0_131, %c0_132] : memref<16x32x128xbf16, #tpu.memory_space<vmem>>, vector<1x32x128xbf16>
    %485 = vector.shape_cast %484 : vector<1x32x128xbf16> to vector<32x128xbf16>
    %486 = vector.shape_cast %483 : vector<32x128xbf16> to vector<1x32x128xbf16>
    tpu.vector_store %arg7[%c8_130, %c0_131, %c0_132], %486 {strides = array<i32>} : memref<16x32x128xbf16, #tpu.memory_space<vmem>>, vector<1x32x128xbf16>,
    %487 = arith.truncf %482 : vector<32x128xf32> to vector<32x128xbf16>
    %c7_133 = arith.constant 7 : index
    %c0_134 = arith.constant 0 : index
    %c0_135 = arith.constant 0 : index
    %488 = vector.load %arg8[%c7_133, %c0_134, %c0_135] : memref<16x32x128xbf16, #tpu.memory_space<vmem>>, vector<1x32x128xbf16>
    %489 = vector.shape_cast %488 : vector<1x32x128xbf16> to vector<32x128xbf16>
    %490 = vector.shape_cast %487 : vector<32x128xbf16> to vector<1x32x128xbf16>
    tpu.vector_store %arg8[%c7_133, %c0_134, %c0_135], %490 {strides = array<i32>} : memref<16x32x128xbf16, #tpu.memory_space<vmem>>, vector<1x32x128xbf16>,
    %c9_136 = arith.constant 9 : index
    %c0_137 = arith.constant 0 : index
    %c0_138 = arith.constant 0 : index
    %491 = vector.load %arg1[%c9_136, %c0_137, %c0_138] : memref<16x16x128xbf16, #tpu.memory_space<vmem>>, vector<1x16x128xbf16>
    %492 = vector.shape_cast %491 : vector<1x16x128xbf16> to vector<16x128xbf16>
    %493 = arith.truncf %463 : vector<32x128xf32> to vector<32x128xbf16>
    %494 = arith.truncf %482 : vector<32x128xf32> to vector<32x128xbf16>
    %495 = tpu.concatenate %492, %493, %494 in 0 : vector<16x128xbf16>, vector<32x128xbf16>, vector<32x128xbf16> -> vector<80x128xbf16>
    %cst_139 = arith.constant dense<0.000000e+00> : vector<256x128xf32>
    %496 = tpu.matmul %0, %495, %cst_139 {dimension_numbers = #tpu.dot_dimension_numbers<[1], [0], [0], [1], [0, 0, 1, 1], [], []>} : vector<256x80xbf16>, vector<80x128xbf16>, vector<256x128xf32> -> vector<256x128xf32>
    %497 = vector.broadcast %1 : vector<256x1xf32> to vector<256x128xf32>
    %498 = arith.addf %496, %497 : vector<256x128xf32>
    %499 = vector.extract_strided_slice %498 {offsets = [0, 0], sizes = [128, 128], strides = [1, 1]} : vector<256x128xf32> to vector<128x128xf32>
    %500 = vector.extract_strided_slice %499 {offsets = [0, 0], sizes = [96, 128], strides = [1, 1]} : vector<128x128xf32> to vector<96x128xf32>
    %cst_140 = arith.constant 5.000000e-01 : f32
    %501 = vector.broadcast %cst_140 : f32 to vector<96x128xf32>
    %502 = arith.mulf %501, %500 : vector<96x128xf32>
    %503 = math.tanh %502 : vector<96x128xf32>
    %cst_141 = arith.constant 1.000000e+00 : f32
    %504 = vector.broadcast %cst_141 : f32 to vector<96x128xf32>
    %505 = arith.addf %503, %504 : vector<96x128xf32>
    %cst_142 = arith.constant 5.000000e-01 : f32
    %506 = vector.broadcast %cst_142 : f32 to vector<96x128xf32>
    %507 = arith.mulf %506, %505 : vector<96x128xf32>
    %508 = vector.extract_strided_slice %499 {offsets = [96, 0], sizes = [32, 128], strides = [1, 1]} : vector<128x128xf32> to vector<32x128xf32>
    %509 = math.tanh %508 : vector<32x128xf32>
    %510 = vector.extract_strided_slice %507 {offsets = [32, 0], sizes = [32, 128], strides = [1, 1]} : vector<96x128xf32> to vector<32x128xf32>
    %511 = arith.mulf %510, %460 : vector<32x128xf32>
    %512 = vector.extract_strided_slice %507 {offsets = [0, 0], sizes = [32, 128], strides = [1, 1]} : vector<96x128xf32> to vector<32x128xf32>
    %513 = arith.mulf %512, %509 : vector<32x128xf32>
    %514 = arith.addf %511, %513 : vector<32x128xf32>
    %515 = vector.extract_strided_slice %507 {offsets = [64, 0], sizes = [32, 128], strides = [1, 1]} : vector<96x128xf32> to vector<32x128xf32>
    %516 = math.tanh %514 : vector<32x128xf32>
    %517 = arith.mulf %515, %516 : vector<32x128xf32>
    %518 = vector.extract_strided_slice %498 {offsets = [128, 0], sizes = [128, 128], strides = [1, 1]} : vector<256x128xf32> to vector<128x128xf32>
    %519 = vector.extract_strided_slice %518 {offsets = [0, 0], sizes = [96, 128], strides = [1, 1]} : vector<128x128xf32> to vector<96x128xf32>
    %cst_143 = arith.constant 5.000000e-01 : f32
    %520 = vector.broadcast %cst_143 : f32 to vector<96x128xf32>
    %521 = arith.mulf %520, %519 : vector<96x128xf32>
    %522 = math.tanh %521 : vector<96x128xf32>
    %cst_144 = arith.constant 1.000000e+00 : f32
    %523 = vector.broadcast %cst_144 : f32 to vector<96x128xf32>
    %524 = arith.addf %522, %523 : vector<96x128xf32>
    %cst_145 = arith.constant 5.000000e-01 : f32
    %525 = vector.broadcast %cst_145 : f32 to vector<96x128xf32>
    %526 = arith.mulf %525, %524 : vector<96x128xf32>
    %527 = vector.extract_strided_slice %518 {offsets = [96, 0], sizes = [32, 128], strides = [1, 1]} : vector<128x128xf32> to vector<32x128xf32>
    %528 = math.tanh %527 : vector<32x128xf32>
    %529 = vector.extract_strided_slice %526 {offsets = [32, 0], sizes = [32, 128], strides = [1, 1]} : vector<96x128xf32> to vector<32x128xf32>
    %530 = arith.mulf %529, %479 : vector<32x128xf32>
    %531 = vector.extract_strided_slice %526 {offsets = [0, 0], sizes = [32, 128], strides = [1, 1]} : vector<96x128xf32> to vector<32x128xf32>
    %532 = arith.mulf %531, %528 : vector<32x128xf32>
    %533 = arith.addf %530, %532 : vector<32x128xf32>
    %534 = vector.extract_strided_slice %526 {offsets = [64, 0], sizes = [32, 128], strides = [1, 1]} : vector<96x128xf32> to vector<32x128xf32>
    %535 = math.tanh %533 : vector<32x128xf32>
    %536 = arith.mulf %534, %535 : vector<32x128xf32>
    %537 = arith.truncf %517 : vector<32x128xf32> to vector<32x128xbf16>
    %c9_146 = arith.constant 9 : index
    %c0_147 = arith.constant 0 : index
    %c0_148 = arith.constant 0 : index
    %538 = vector.load %arg7[%c9_146, %c0_147, %c0_148] : memref<16x32x128xbf16, #tpu.memory_space<vmem>>, vector<1x32x128xbf16>
    %539 = vector.shape_cast %538 : vector<1x32x128xbf16> to vector<32x128xbf16>
    %540 = vector.shape_cast %537 : vector<32x128xbf16> to vector<1x32x128xbf16>
    tpu.vector_store %arg7[%c9_146, %c0_147, %c0_148], %540 {strides = array<i32>} : memref<16x32x128xbf16, #tpu.memory_space<vmem>>, vector<1x32x128xbf16>,
    %541 = arith.truncf %536 : vector<32x128xf32> to vector<32x128xbf16>
    %c6_149 = arith.constant 6 : index
    %c0_150 = arith.constant 0 : index
    %c0_151 = arith.constant 0 : index
    %542 = vector.load %arg8[%c6_149, %c0_150, %c0_151] : memref<16x32x128xbf16, #tpu.memory_space<vmem>>, vector<1x32x128xbf16>
    %543 = vector.shape_cast %542 : vector<1x32x128xbf16> to vector<32x128xbf16>
    %544 = vector.shape_cast %541 : vector<32x128xbf16> to vector<1x32x128xbf16>
    tpu.vector_store %arg8[%c6_149, %c0_150, %c0_151], %544 {strides = array<i32>} : memref<16x32x128xbf16, #tpu.memory_space<vmem>>, vector<1x32x128xbf16>,
    %c10_152 = arith.constant 10 : index
    %c0_153 = arith.constant 0 : index
    %c0_154 = arith.constant 0 : index
    %545 = vector.load %arg1[%c10_152, %c0_153, %c0_154] : memref<16x16x128xbf16, #tpu.memory_space<vmem>>, vector<1x16x128xbf16>
    %546 = vector.shape_cast %545 : vector<1x16x128xbf16> to vector<16x128xbf16>
    %547 = arith.truncf %517 : vector<32x128xf32> to vector<32x128xbf16>
    %548 = arith.truncf %536 : vector<32x128xf32> to vector<32x128xbf16>
    %549 = tpu.concatenate %546, %547, %548 in 0 : vector<16x128xbf16>, vector<32x128xbf16>, vector<32x128xbf16> -> vector<80x128xbf16>
    %cst_155 = arith.constant dense<0.000000e+00> : vector<256x128xf32>
    %550 = tpu.matmul %0, %549, %cst_155 {dimension_numbers = #tpu.dot_dimension_numbers<[1], [0], [0], [1], [0, 0, 1, 1], [], []>} : vector<256x80xbf16>, vector<80x128xbf16>, vector<256x128xf32> -> vector<256x128xf32>
    %551 = vector.broadcast %1 : vector<256x1xf32> to vector<256x128xf32>
    %552 = arith.addf %550, %551 : vector<256x128xf32>
    %553 = vector.extract_strided_slice %552 {offsets = [0, 0], sizes = [128, 128], strides = [1, 1]} : vector<256x128xf32> to vector<128x128xf32>
    %554 = vector.extract_strided_slice %553 {offsets = [0, 0], sizes = [96, 128], strides = [1, 1]} : vector<128x128xf32> to vector<96x128xf32>
    %cst_156 = arith.constant 5.000000e-01 : f32
    %555 = vector.broadcast %cst_156 : f32 to vector<96x128xf32>
    %556 = arith.mulf %555, %554 : vector<96x128xf32>
    %557 = math.tanh %556 : vector<96x128xf32>
    %cst_157 = arith.constant 1.000000e+00 : f32
    %558 = vector.broadcast %cst_157 : f32 to vector<96x128xf32>
    %559 = arith.addf %557, %558 : vector<96x128xf32>
    %cst_158 = arith.constant 5.000000e-01 : f32
    %560 = vector.broadcast %cst_158 : f32 to vector<96x128xf32>
    %561 = arith.mulf %560, %559 : vector<96x128xf32>
    %562 = vector.extract_strided_slice %553 {offsets = [96, 0], sizes = [32, 128], strides = [1, 1]} : vector<128x128xf32> to vector<32x128xf32>
    %563 = math.tanh %562 : vector<32x128xf32>
    %564 = vector.extract_strided_slice %561 {offsets = [32, 0], sizes = [32, 128], strides = [1, 1]} : vector<96x128xf32> to vector<32x128xf32>
    %565 = arith.mulf %564, %514 : vector<32x128xf32>
    %566 = vector.extract_strided_slice %561 {offsets = [0, 0], sizes = [32, 128], strides = [1, 1]} : vector<96x128xf32> to vector<32x128xf32>
    %567 = arith.mulf %566, %563 : vector<32x128xf32>
    %568 = arith.addf %565, %567 : vector<32x128xf32>
    %569 = vector.extract_strided_slice %561 {offsets = [64, 0], sizes = [32, 128], strides = [1, 1]} : vector<96x128xf32> to vector<32x128xf32>
    %570 = math.tanh %568 : vector<32x128xf32>
    %571 = arith.mulf %569, %570 : vector<32x128xf32>
    %572 = vector.extract_strided_slice %552 {offsets = [128, 0], sizes = [128, 128], strides = [1, 1]} : vector<256x128xf32> to vector<128x128xf32>
    %573 = vector.extract_strided_slice %572 {offsets = [0, 0], sizes = [96, 128], strides = [1, 1]} : vector<128x128xf32> to vector<96x128xf32>
    %cst_159 = arith.constant 5.000000e-01 : f32
    %574 = vector.broadcast %cst_159 : f32 to vector<96x128xf32>
    %575 = arith.mulf %574, %573 : vector<96x128xf32>
    %576 = math.tanh %575 : vector<96x128xf32>
    %cst_160 = arith.constant 1.000000e+00 : f32
    %577 = vector.broadcast %cst_160 : f32 to vector<96x128xf32>
    %578 = arith.addf %576, %577 : vector<96x128xf32>
    %cst_161 = arith.constant 5.000000e-01 : f32
    %579 = vector.broadcast %cst_161 : f32 to vector<96x128xf32>
    %580 = arith.mulf %579, %578 : vector<96x128xf32>
    %581 = vector.extract_strided_slice %572 {offsets = [96, 0], sizes = [32, 128], strides = [1, 1]} : vector<128x128xf32> to vector<32x128xf32>
    %582 = math.tanh %581 : vector<32x128xf32>
    %583 = vector.extract_strided_slice %580 {offsets = [32, 0], sizes = [32, 128], strides = [1, 1]} : vector<96x128xf32> to vector<32x128xf32>
    %584 = arith.mulf %583, %533 : vector<32x128xf32>
    %585 = vector.extract_strided_slice %580 {offsets = [0, 0], sizes = [32, 128], strides = [1, 1]} : vector<96x128xf32> to vector<32x128xf32>
    %586 = arith.mulf %585, %582 : vector<32x128xf32>
    %587 = arith.addf %584, %586 : vector<32x128xf32>
    %588 = vector.extract_strided_slice %580 {offsets = [64, 0], sizes = [32, 128], strides = [1, 1]} : vector<96x128xf32> to vector<32x128xf32>
    %589 = math.tanh %587 : vector<32x128xf32>
    %590 = arith.mulf %588, %589 : vector<32x128xf32>
    %591 = arith.truncf %571 : vector<32x128xf32> to vector<32x128xbf16>
    %c10_162 = arith.constant 10 : index
    %c0_163 = arith.constant 0 : index
    %c0_164 = arith.constant 0 : index
    %592 = vector.load %arg7[%c10_162, %c0_163, %c0_164] : memref<16x32x128xbf16, #tpu.memory_space<vmem>>, vector<1x32x128xbf16>
    %593 = vector.shape_cast %592 : vector<1x32x128xbf16> to vector<32x128xbf16>
    %594 = vector.shape_cast %591 : vector<32x128xbf16> to vector<1x32x128xbf16>
    tpu.vector_store %arg7[%c10_162, %c0_163, %c0_164], %594 {strides = array<i32>} : memref<16x32x128xbf16, #tpu.memory_space<vmem>>, vector<1x32x128xbf16>,
    %595 = arith.truncf %590 : vector<32x128xf32> to vector<32x128xbf16>
    %c5_165 = arith.constant 5 : index
    %c0_166 = arith.constant 0 : index
    %c0_167 = arith.constant 0 : index
    %596 = vector.load %arg8[%c5_165, %c0_166, %c0_167] : memref<16x32x128xbf16, #tpu.memory_space<vmem>>, vector<1x32x128xbf16>
    %597 = vector.shape_cast %596 : vector<1x32x128xbf16> to vector<32x128xbf16>
    %598 = vector.shape_cast %595 : vector<32x128xbf16> to vector<1x32x128xbf16>
    tpu.vector_store %arg8[%c5_165, %c0_166, %c0_167], %598 {strides = array<i32>} : memref<16x32x128xbf16, #tpu.memory_space<vmem>>, vector<1x32x128xbf16>,
    %c11_168 = arith.constant 11 : index
    %c0_169 = arith.constant 0 : index
    %c0_170 = arith.constant 0 : index
    %599 = vector.load %arg1[%c11_168, %c0_169, %c0_170] : memref<16x16x128xbf16, #tpu.memory_space<vmem>>, vector<1x16x128xbf16>
    %600 = vector.shape_cast %599 : vector<1x16x128xbf16> to vector<16x128xbf16>
    %601 = arith.truncf %571 : vector<32x128xf32> to vector<32x128xbf16>
    %602 = arith.truncf %590 : vector<32x128xf32> to vector<32x128xbf16>
    %603 = tpu.concatenate %600, %601, %602 in 0 : vector<16x128xbf16>, vector<32x128xbf16>, vector<32x128xbf16> -> vector<80x128xbf16>
    %cst_171 = arith.constant dense<0.000000e+00> : vector<256x128xf32>
    %604 = tpu.matmul %0, %603, %cst_171 {dimension_numbers = #tpu.dot_dimension_numbers<[1], [0], [0], [1], [0, 0, 1, 1], [], []>} : vector<256x80xbf16>, vector<80x128xbf16>, vector<256x128xf32> -> vector<256x128xf32>
    %605 = vector.broadcast %1 : vector<256x1xf32> to vector<256x128xf32>
    %606 = arith.addf %604, %605 : vector<256x128xf32>
    %607 = vector.extract_strided_slice %606 {offsets = [0, 0], sizes = [128, 128], strides = [1, 1]} : vector<256x128xf32> to vector<128x128xf32>
    %608 = vector.extract_strided_slice %607 {offsets = [0, 0], sizes = [96, 128], strides = [1, 1]} : vector<128x128xf32> to vector<96x128xf32>
    %cst_172 = arith.constant 5.000000e-01 : f32
    %609 = vector.broadcast %cst_172 : f32 to vector<96x128xf32>
    %610 = arith.mulf %609, %608 : vector<96x128xf32>
    %611 = math.tanh %610 : vector<96x128xf32>
    %cst_173 = arith.constant 1.000000e+00 : f32
    %612 = vector.broadcast %cst_173 : f32 to vector<96x128xf32>
    %613 = arith.addf %611, %612 : vector<96x128xf32>
    %cst_174 = arith.constant 5.000000e-01 : f32
    %614 = vector.broadcast %cst_174 : f32 to vector<96x128xf32>
    %615 = arith.mulf %614, %613 : vector<96x128xf32>
    %616 = vector.extract_strided_slice %607 {offsets = [96, 0], sizes = [32, 128], strides = [1, 1]} : vector<128x128xf32> to vector<32x128xf32>
    %617 = math.tanh %616 : vector<32x128xf32>
    %618 = vector.extract_strided_slice %615 {offsets = [32, 0], sizes = [32, 128], strides = [1, 1]} : vector<96x128xf32> to vector<32x128xf32>
    %619 = arith.mulf %618, %568 : vector<32x128xf32>
    %620 = vector.extract_strided_slice %615 {offsets = [0, 0], sizes = [32, 128], strides = [1, 1]} : vector<96x128xf32> to vector<32x128xf32>
    %621 = arith.mulf %620, %617 : vector<32x128xf32>
    %622 = arith.addf %619, %621 : vector<32x128xf32>
    %623 = vector.extract_strided_slice %615 {offsets = [64, 0], sizes = [32, 128], strides = [1, 1]} : vector<96x128xf32> to vector<32x128xf32>
    %624 = math.tanh %622 : vector<32x128xf32>
    %625 = arith.mulf %623, %624 : vector<32x128xf32>
    %626 = vector.extract_strided_slice %606 {offsets = [128, 0], sizes = [128, 128], strides = [1, 1]} : vector<256x128xf32> to vector<128x128xf32>
    %627 = vector.extract_strided_slice %626 {offsets = [0, 0], sizes = [96, 128], strides = [1, 1]} : vector<128x128xf32> to vector<96x128xf32>
    %cst_175 = arith.constant 5.000000e-01 : f32
    %628 = vector.broadcast %cst_175 : f32 to vector<96x128xf32>
    %629 = arith.mulf %628, %627 : vector<96x128xf32>
    %630 = math.tanh %629 : vector<96x128xf32>
    %cst_176 = arith.constant 1.000000e+00 : f32
    %631 = vector.broadcast %cst_176 : f32 to vector<96x128xf32>
    %632 = arith.addf %630, %631 : vector<96x128xf32>
    %cst_177 = arith.constant 5.000000e-01 : f32
    %633 = vector.broadcast %cst_177 : f32 to vector<96x128xf32>
    %634 = arith.mulf %633, %632 : vector<96x128xf32>
    %635 = vector.extract_strided_slice %626 {offsets = [96, 0], sizes = [32, 128], strides = [1, 1]} : vector<128x128xf32> to vector<32x128xf32>
    %636 = math.tanh %635 : vector<32x128xf32>
    %637 = vector.extract_strided_slice %634 {offsets = [32, 0], sizes = [32, 128], strides = [1, 1]} : vector<96x128xf32> to vector<32x128xf32>
    %638 = arith.mulf %637, %587 : vector<32x128xf32>
    %639 = vector.extract_strided_slice %634 {offsets = [0, 0], sizes = [32, 128], strides = [1, 1]} : vector<96x128xf32> to vector<32x128xf32>
    %640 = arith.mulf %639, %636 : vector<32x128xf32>
    %641 = arith.addf %638, %640 : vector<32x128xf32>
    %642 = vector.extract_strided_slice %634 {offsets = [64, 0], sizes = [32, 128], strides = [1, 1]} : vector<96x128xf32> to vector<32x128xf32>
    %643 = math.tanh %641 : vector<32x128xf32>
    %644 = arith.mulf %642, %643 : vector<32x128xf32>
    %645 = arith.truncf %625 : vector<32x128xf32> to vector<32x128xbf16>
    %c11_178 = arith.constant 11 : index
    %c0_179 = arith.constant 0 : index
    %c0_180 = arith.constant 0 : index
    %646 = vector.load %arg7[%c11_178, %c0_179, %c0_180] : memref<16x32x128xbf16, #tpu.memory_space<vmem>>, vector<1x32x128xbf16>
    %647 = vector.shape_cast %646 : vector<1x32x128xbf16> to vector<32x128xbf16>
    %648 = vector.shape_cast %645 : vector<32x128xbf16> to vector<1x32x128xbf16>
    tpu.vector_store %arg7[%c11_178, %c0_179, %c0_180], %648 {strides = array<i32>} : memref<16x32x128xbf16, #tpu.memory_space<vmem>>, vector<1x32x128xbf16>,
    %649 = arith.truncf %644 : vector<32x128xf32> to vector<32x128xbf16>
    %c4_181 = arith.constant 4 : index
    %c0_182 = arith.constant 0 : index
    %c0_183 = arith.constant 0 : index
    %650 = vector.load %arg8[%c4_181, %c0_182, %c0_183] : memref<16x32x128xbf16, #tpu.memory_space<vmem>>, vector<1x32x128xbf16>
    %651 = vector.shape_cast %650 : vector<1x32x128xbf16> to vector<32x128xbf16>
    %652 = vector.shape_cast %649 : vector<32x128xbf16> to vector<1x32x128xbf16>
    tpu.vector_store %arg8[%c4_181, %c0_182, %c0_183], %652 {strides = array<i32>} : memref<16x32x128xbf16, #tpu.memory_space<vmem>>, vector<1x32x128xbf16>,
    %c12_184 = arith.constant 12 : index
    %c0_185 = arith.constant 0 : index
    %c0_186 = arith.constant 0 : index
    %653 = vector.load %arg1[%c12_184, %c0_185, %c0_186] : memref<16x16x128xbf16, #tpu.memory_space<vmem>>, vector<1x16x128xbf16>
    %654 = vector.shape_cast %653 : vector<1x16x128xbf16> to vector<16x128xbf16>
    %655 = arith.truncf %625 : vector<32x128xf32> to vector<32x128xbf16>
    %656 = arith.truncf %644 : vector<32x128xf32> to vector<32x128xbf16>
    %657 = tpu.concatenate %654, %655, %656 in 0 : vector<16x128xbf16>, vector<32x128xbf16>, vector<32x128xbf16> -> vector<80x128xbf16>
    %cst_187 = arith.constant dense<0.000000e+00> : vector<256x128xf32>
    %658 = tpu.matmul %0, %657, %cst_187 {dimension_numbers = #tpu.dot_dimension_numbers<[1], [0], [0], [1], [0, 0, 1, 1], [], []>} : vector<256x80xbf16>, vector<80x128xbf16>, vector<256x128xf32> -> vector<256x128xf32>
    %659 = vector.broadcast %1 : vector<256x1xf32> to vector<256x128xf32>
    %660 = arith.addf %658, %659 : vector<256x128xf32>
    %661 = vector.extract_strided_slice %660 {offsets = [0, 0], sizes = [128, 128], strides = [1, 1]} : vector<256x128xf32> to vector<128x128xf32>
    %662 = vector.extract_strided_slice %661 {offsets = [0, 0], sizes = [96, 128], strides = [1, 1]} : vector<128x128xf32> to vector<96x128xf32>
    %cst_188 = arith.constant 5.000000e-01 : f32
    %663 = vector.broadcast %cst_188 : f32 to vector<96x128xf32>
    %664 = arith.mulf %663, %662 : vector<96x128xf32>
    %665 = math.tanh %664 : vector<96x128xf32>
    %cst_189 = arith.constant 1.000000e+00 : f32
    %666 = vector.broadcast %cst_189 : f32 to vector<96x128xf32>
    %667 = arith.addf %665, %666 : vector<96x128xf32>
    %cst_190 = arith.constant 5.000000e-01 : f32
    %668 = vector.broadcast %cst_190 : f32 to vector<96x128xf32>
    %669 = arith.mulf %668, %667 : vector<96x128xf32>
    %670 = vector.extract_strided_slice %661 {offsets = [96, 0], sizes = [32, 128], strides = [1, 1]} : vector<128x128xf32> to vector<32x128xf32>
    %671 = math.tanh %670 : vector<32x128xf32>
    %672 = vector.extract_strided_slice %669 {offsets = [32, 0], sizes = [32, 128], strides = [1, 1]} : vector<96x128xf32> to vector<32x128xf32>
    %673 = arith.mulf %672, %622 : vector<32x128xf32>
    %674 = vector.extract_strided_slice %669 {offsets = [0, 0], sizes = [32, 128], strides = [1, 1]} : vector<96x128xf32> to vector<32x128xf32>
    %675 = arith.mulf %674, %671 : vector<32x128xf32>
    %676 = arith.addf %673, %675 : vector<32x128xf32>
    %677 = vector.extract_strided_slice %669 {offsets = [64, 0], sizes = [32, 128], strides = [1, 1]} : vector<96x128xf32> to vector<32x128xf32>
    %678 = math.tanh %676 : vector<32x128xf32>
    %679 = arith.mulf %677, %678 : vector<32x128xf32>
    %680 = vector.extract_strided_slice %660 {offsets = [128, 0], sizes = [128, 128], strides = [1, 1]} : vector<256x128xf32> to vector<128x128xf32>
    %681 = vector.extract_strided_slice %680 {offsets = [0, 0], sizes = [96, 128], strides = [1, 1]} : vector<128x128xf32> to vector<96x128xf32>
    %cst_191 = arith.constant 5.000000e-01 : f32
    %682 = vector.broadcast %cst_191 : f32 to vector<96x128xf32>
    %683 = arith.mulf %682, %681 : vector<96x128xf32>
    %684 = math.tanh %683 : vector<96x128xf32>
    %cst_192 = arith.constant 1.000000e+00 : f32
    %685 = vector.broadcast %cst_192 : f32 to vector<96x128xf32>
    %686 = arith.addf %684, %685 : vector<96x128xf32>
    %cst_193 = arith.constant 5.000000e-01 : f32
    %687 = vector.broadcast %cst_193 : f32 to vector<96x128xf32>
    %688 = arith.mulf %687, %686 : vector<96x128xf32>
    %689 = vector.extract_strided_slice %680 {offsets = [96, 0], sizes = [32, 128], strides = [1, 1]} : vector<128x128xf32> to vector<32x128xf32>
    %690 = math.tanh %689 : vector<32x128xf32>
    %691 = vector.extract_strided_slice %688 {offsets = [32, 0], sizes = [32, 128], strides = [1, 1]} : vector<96x128xf32> to vector<32x128xf32>
    %692 = arith.mulf %691, %641 : vector<32x128xf32>
    %693 = vector.extract_strided_slice %688 {offsets = [0, 0], sizes = [32, 128], strides = [1, 1]} : vector<96x128xf32> to vector<32x128xf32>
    %694 = arith.mulf %693, %690 : vector<32x128xf32>
    %695 = arith.addf %692, %694 : vector<32x128xf32>
    %696 = vector.extract_strided_slice %688 {offsets = [64, 0], sizes = [32, 128], strides = [1, 1]} : vector<96x128xf32> to vector<32x128xf32>
    %697 = math.tanh %695 : vector<32x128xf32>
    %698 = arith.mulf %696, %697 : vector<32x128xf32>
    %699 = arith.truncf %679 : vector<32x128xf32> to vector<32x128xbf16>
    %c12_194 = arith.constant 12 : index
    %c0_195 = arith.constant 0 : index
    %c0_196 = arith.constant 0 : index
    %700 = vector.load %arg7[%c12_194, %c0_195, %c0_196] : memref<16x32x128xbf16, #tpu.memory_space<vmem>>, vector<1x32x128xbf16>
    %701 = vector.shape_cast %700 : vector<1x32x128xbf16> to vector<32x128xbf16>
    %702 = vector.shape_cast %699 : vector<32x128xbf16> to vector<1x32x128xbf16>
    tpu.vector_store %arg7[%c12_194, %c0_195, %c0_196], %702 {strides = array<i32>} : memref<16x32x128xbf16, #tpu.memory_space<vmem>>, vector<1x32x128xbf16>,
    %703 = arith.truncf %698 : vector<32x128xf32> to vector<32x128xbf16>
    %c3_197 = arith.constant 3 : index
    %c0_198 = arith.constant 0 : index
    %c0_199 = arith.constant 0 : index
    %704 = vector.load %arg8[%c3_197, %c0_198, %c0_199] : memref<16x32x128xbf16, #tpu.memory_space<vmem>>, vector<1x32x128xbf16>
    %705 = vector.shape_cast %704 : vector<1x32x128xbf16> to vector<32x128xbf16>
    %706 = vector.shape_cast %703 : vector<32x128xbf16> to vector<1x32x128xbf16>
    tpu.vector_store %arg8[%c3_197, %c0_198, %c0_199], %706 {strides = array<i32>} : memref<16x32x128xbf16, #tpu.memory_space<vmem>>, vector<1x32x128xbf16>,
    %c13_200 = arith.constant 13 : index
    %c0_201 = arith.constant 0 : index
    %c0_202 = arith.constant 0 : index
    %707 = vector.load %arg1[%c13_200, %c0_201, %c0_202] : memref<16x16x128xbf16, #tpu.memory_space<vmem>>, vector<1x16x128xbf16>
    %708 = vector.shape_cast %707 : vector<1x16x128xbf16> to vector<16x128xbf16>
    %709 = arith.truncf %679 : vector<32x128xf32> to vector<32x128xbf16>
    %710 = arith.truncf %698 : vector<32x128xf32> to vector<32x128xbf16>
    %711 = tpu.concatenate %708, %709, %710 in 0 : vector<16x128xbf16>, vector<32x128xbf16>, vector<32x128xbf16> -> vector<80x128xbf16>
    %cst_203 = arith.constant dense<0.000000e+00> : vector<256x128xf32>
    %712 = tpu.matmul %0, %711, %cst_203 {dimension_numbers = #tpu.dot_dimension_numbers<[1], [0], [0], [1], [0, 0, 1, 1], [], []>} : vector<256x80xbf16>, vector<80x128xbf16>, vector<256x128xf32> -> vector<256x128xf32>
    %713 = vector.broadcast %1 : vector<256x1xf32> to vector<256x128xf32>
    %714 = arith.addf %712, %713 : vector<256x128xf32>
    %715 = vector.extract_strided_slice %714 {offsets = [0, 0], sizes = [128, 128], strides = [1, 1]} : vector<256x128xf32> to vector<128x128xf32>
    %716 = vector.extract_strided_slice %715 {offsets = [0, 0], sizes = [96, 128], strides = [1, 1]} : vector<128x128xf32> to vector<96x128xf32>
    %cst_204 = arith.constant 5.000000e-01 : f32
    %717 = vector.broadcast %cst_204 : f32 to vector<96x128xf32>
    %718 = arith.mulf %717, %716 : vector<96x128xf32>
    %719 = math.tanh %718 : vector<96x128xf32>
    %cst_205 = arith.constant 1.000000e+00 : f32
    %720 = vector.broadcast %cst_205 : f32 to vector<96x128xf32>
    %721 = arith.addf %719, %720 : vector<96x128xf32>
    %cst_206 = arith.constant 5.000000e-01 : f32
    %722 = vector.broadcast %cst_206 : f32 to vector<96x128xf32>
    %723 = arith.mulf %722, %721 : vector<96x128xf32>
    %724 = vector.extract_strided_slice %715 {offsets = [96, 0], sizes = [32, 128], strides = [1, 1]} : vector<128x128xf32> to vector<32x128xf32>
    %725 = math.tanh %724 : vector<32x128xf32>
    %726 = vector.extract_strided_slice %723 {offsets = [32, 0], sizes = [32, 128], strides = [1, 1]} : vector<96x128xf32> to vector<32x128xf32>
    %727 = arith.mulf %726, %676 : vector<32x128xf32>
    %728 = vector.extract_strided_slice %723 {offsets = [0, 0], sizes = [32, 128], strides = [1, 1]} : vector<96x128xf32> to vector<32x128xf32>
    %729 = arith.mulf %728, %725 : vector<32x128xf32>
    %730 = arith.addf %727, %729 : vector<32x128xf32>
    %731 = vector.extract_strided_slice %723 {offsets = [64, 0], sizes = [32, 128], strides = [1, 1]} : vector<96x128xf32> to vector<32x128xf32>
    %732 = math.tanh %730 : vector<32x128xf32>
    %733 = arith.mulf %731, %732 : vector<32x128xf32>
    %734 = vector.extract_strided_slice %714 {offsets = [128, 0], sizes = [128, 128], strides = [1, 1]} : vector<256x128xf32> to vector<128x128xf32>
    %735 = vector.extract_strided_slice %734 {offsets = [0, 0], sizes = [96, 128], strides = [1, 1]} : vector<128x128xf32> to vector<96x128xf32>
    %cst_207 = arith.constant 5.000000e-01 : f32
    %736 = vector.broadcast %cst_207 : f32 to vector<96x128xf32>
    %737 = arith.mulf %736, %735 : vector<96x128xf32>
    %738 = math.tanh %737 : vector<96x128xf32>
    %cst_208 = arith.constant 1.000000e+00 : f32
    %739 = vector.broadcast %cst_208 : f32 to vector<96x128xf32>
    %740 = arith.addf %738, %739 : vector<96x128xf32>
    %cst_209 = arith.constant 5.000000e-01 : f32
    %741 = vector.broadcast %cst_209 : f32 to vector<96x128xf32>
    %742 = arith.mulf %741, %740 : vector<96x128xf32>
    %743 = vector.extract_strided_slice %734 {offsets = [96, 0], sizes = [32, 128], strides = [1, 1]} : vector<128x128xf32> to vector<32x128xf32>
    %744 = math.tanh %743 : vector<32x128xf32>
    %745 = vector.extract_strided_slice %742 {offsets = [32, 0], sizes = [32, 128], strides = [1, 1]} : vector<96x128xf32> to vector<32x128xf32>
    %746 = arith.mulf %745, %695 : vector<32x128xf32>
    %747 = vector.extract_strided_slice %742 {offsets = [0, 0], sizes = [32, 128], strides = [1, 1]} : vector<96x128xf32> to vector<32x128xf32>
    %748 = arith.mulf %747, %744 : vector<32x128xf32>
    %749 = arith.addf %746, %748 : vector<32x128xf32>
    %750 = vector.extract_strided_slice %742 {offsets = [64, 0], sizes = [32, 128], strides = [1, 1]} : vector<96x128xf32> to vector<32x128xf32>
    %751 = math.tanh %749 : vector<32x128xf32>
    %752 = arith.mulf %750, %751 : vector<32x128xf32>
    %753 = arith.truncf %733 : vector<32x128xf32> to vector<32x128xbf16>
    %c13_210 = arith.constant 13 : index
    %c0_211 = arith.constant 0 : index
    %c0_212 = arith.constant 0 : index
    %754 = vector.load %arg7[%c13_210, %c0_211, %c0_212] : memref<16x32x128xbf16, #tpu.memory_space<vmem>>, vector<1x32x128xbf16>
    %755 = vector.shape_cast %754 : vector<1x32x128xbf16> to vector<32x128xbf16>
    %756 = vector.shape_cast %753 : vector<32x128xbf16> to vector<1x32x128xbf16>
    tpu.vector_store %arg7[%c13_210, %c0_211, %c0_212], %756 {strides = array<i32>} : memref<16x32x128xbf16, #tpu.memory_space<vmem>>, vector<1x32x128xbf16>,
    %757 = arith.truncf %752 : vector<32x128xf32> to vector<32x128xbf16>
    %c2_213 = arith.constant 2 : index
    %c0_214 = arith.constant 0 : index
    %c0_215 = arith.constant 0 : index
    %758 = vector.load %arg8[%c2_213, %c0_214, %c0_215] : memref<16x32x128xbf16, #tpu.memory_space<vmem>>, vector<1x32x128xbf16>
    %759 = vector.shape_cast %758 : vector<1x32x128xbf16> to vector<32x128xbf16>
    %760 = vector.shape_cast %757 : vector<32x128xbf16> to vector<1x32x128xbf16>
    tpu.vector_store %arg8[%c2_213, %c0_214, %c0_215], %760 {strides = array<i32>} : memref<16x32x128xbf16, #tpu.memory_space<vmem>>, vector<1x32x128xbf16>,
    %c14_216 = arith.constant 14 : index
    %c0_217 = arith.constant 0 : index
    %c0_218 = arith.constant 0 : index
    %761 = vector.load %arg1[%c14_216, %c0_217, %c0_218] : memref<16x16x128xbf16, #tpu.memory_space<vmem>>, vector<1x16x128xbf16>
    %762 = vector.shape_cast %761 : vector<1x16x128xbf16> to vector<16x128xbf16>
    %763 = arith.truncf %733 : vector<32x128xf32> to vector<32x128xbf16>
    %764 = arith.truncf %752 : vector<32x128xf32> to vector<32x128xbf16>
    %765 = tpu.concatenate %762, %763, %764 in 0 : vector<16x128xbf16>, vector<32x128xbf16>, vector<32x128xbf16> -> vector<80x128xbf16>
    %cst_219 = arith.constant dense<0.000000e+00> : vector<256x128xf32>
    %766 = tpu.matmul %0, %765, %cst_219 {dimension_numbers = #tpu.dot_dimension_numbers<[1], [0], [0], [1], [0, 0, 1, 1], [], []>} : vector<256x80xbf16>, vector<80x128xbf16>, vector<256x128xf32> -> vector<256x128xf32>
    %767 = vector.broadcast %1 : vector<256x1xf32> to vector<256x128xf32>
    %768 = arith.addf %766, %767 : vector<256x128xf32>
    %769 = vector.extract_strided_slice %768 {offsets = [0, 0], sizes = [128, 128], strides = [1, 1]} : vector<256x128xf32> to vector<128x128xf32>
    %770 = vector.extract_strided_slice %769 {offsets = [0, 0], sizes = [96, 128], strides = [1, 1]} : vector<128x128xf32> to vector<96x128xf32>
    %cst_220 = arith.constant 5.000000e-01 : f32
    %771 = vector.broadcast %cst_220 : f32 to vector<96x128xf32>
    %772 = arith.mulf %771, %770 : vector<96x128xf32>
    %773 = math.tanh %772 : vector<96x128xf32>
    %cst_221 = arith.constant 1.000000e+00 : f32
    %774 = vector.broadcast %cst_221 : f32 to vector<96x128xf32>
    %775 = arith.addf %773, %774 : vector<96x128xf32>
    %cst_222 = arith.constant 5.000000e-01 : f32
    %776 = vector.broadcast %cst_222 : f32 to vector<96x128xf32>
    %777 = arith.mulf %776, %775 : vector<96x128xf32>
    %778 = vector.extract_strided_slice %769 {offsets = [96, 0], sizes = [32, 128], strides = [1, 1]} : vector<128x128xf32> to vector<32x128xf32>
    %779 = math.tanh %778 : vector<32x128xf32>
    %780 = vector.extract_strided_slice %777 {offsets = [32, 0], sizes = [32, 128], strides = [1, 1]} : vector<96x128xf32> to vector<32x128xf32>
    %781 = arith.mulf %780, %730 : vector<32x128xf32>
    %782 = vector.extract_strided_slice %777 {offsets = [0, 0], sizes = [32, 128], strides = [1, 1]} : vector<96x128xf32> to vector<32x128xf32>
    %783 = arith.mulf %782, %779 : vector<32x128xf32>
    %784 = arith.addf %781, %783 : vector<32x128xf32>
    %785 = vector.extract_strided_slice %777 {offsets = [64, 0], sizes = [32, 128], strides = [1, 1]} : vector<96x128xf32> to vector<32x128xf32>
    %786 = math.tanh %784 : vector<32x128xf32>
    %787 = arith.mulf %785, %786 : vector<32x128xf32>
    %788 = vector.extract_strided_slice %768 {offsets = [128, 0], sizes = [128, 128], strides = [1, 1]} : vector<256x128xf32> to vector<128x128xf32>
    %789 = vector.extract_strided_slice %788 {offsets = [0, 0], sizes = [96, 128], strides = [1, 1]} : vector<128x128xf32> to vector<96x128xf32>
    %cst_223 = arith.constant 5.000000e-01 : f32
    %790 = vector.broadcast %cst_223 : f32 to vector<96x128xf32>
    %791 = arith.mulf %790, %789 : vector<96x128xf32>
    %792 = math.tanh %791 : vector<96x128xf32>
    %cst_224 = arith.constant 1.000000e+00 : f32
    %793 = vector.broadcast %cst_224 : f32 to vector<96x128xf32>
    %794 = arith.addf %792, %793 : vector<96x128xf32>
    %cst_225 = arith.constant 5.000000e-01 : f32
    %795 = vector.broadcast %cst_225 : f32 to vector<96x128xf32>
    %796 = arith.mulf %795, %794 : vector<96x128xf32>
    %797 = vector.extract_strided_slice %788 {offsets = [96, 0], sizes = [32, 128], strides = [1, 1]} : vector<128x128xf32> to vector<32x128xf32>
    %798 = math.tanh %797 : vector<32x128xf32>
    %799 = vector.extract_strided_slice %796 {offsets = [32, 0], sizes = [32, 128], strides = [1, 1]} : vector<96x128xf32> to vector<32x128xf32>
    %800 = arith.mulf %799, %749 : vector<32x128xf32>
    %801 = vector.extract_strided_slice %796 {offsets = [0, 0], sizes = [32, 128], strides = [1, 1]} : vector<96x128xf32> to vector<32x128xf32>
    %802 = arith.mulf %801, %798 : vector<32x128xf32>
    %803 = arith.addf %800, %802 : vector<32x128xf32>
    %804 = vector.extract_strided_slice %796 {offsets = [64, 0], sizes = [32, 128], strides = [1, 1]} : vector<96x128xf32> to vector<32x128xf32>
    %805 = math.tanh %803 : vector<32x128xf32>
    %806 = arith.mulf %804, %805 : vector<32x128xf32>
    %807 = arith.truncf %787 : vector<32x128xf32> to vector<32x128xbf16>
    %c14_226 = arith.constant 14 : index
    %c0_227 = arith.constant 0 : index
    %c0_228 = arith.constant 0 : index
    %808 = vector.load %arg7[%c14_226, %c0_227, %c0_228] : memref<16x32x128xbf16, #tpu.memory_space<vmem>>, vector<1x32x128xbf16>
    %809 = vector.shape_cast %808 : vector<1x32x128xbf16> to vector<32x128xbf16>
    %810 = vector.shape_cast %807 : vector<32x128xbf16> to vector<1x32x128xbf16>
    tpu.vector_store %arg7[%c14_226, %c0_227, %c0_228], %810 {strides = array<i32>} : memref<16x32x128xbf16, #tpu.memory_space<vmem>>, vector<1x32x128xbf16>,
    %811 = arith.truncf %806 : vector<32x128xf32> to vector<32x128xbf16>
    %c1_229 = arith.constant 1 : index
    %c0_230 = arith.constant 0 : index
    %c0_231 = arith.constant 0 : index
    %812 = vector.load %arg8[%c1_229, %c0_230, %c0_231] : memref<16x32x128xbf16, #tpu.memory_space<vmem>>, vector<1x32x128xbf16>
    %813 = vector.shape_cast %812 : vector<1x32x128xbf16> to vector<32x128xbf16>
    %814 = vector.shape_cast %811 : vector<32x128xbf16> to vector<1x32x128xbf16>
    tpu.vector_store %arg8[%c1_229, %c0_230, %c0_231], %814 {strides = array<i32>} : memref<16x32x128xbf16, #tpu.memory_space<vmem>>, vector<1x32x128xbf16>,
    %c15_232 = arith.constant 15 : index
    %c0_233 = arith.constant 0 : index
    %c0_234 = arith.constant 0 : index
    %815 = vector.load %arg1[%c15_232, %c0_233, %c0_234] : memref<16x16x128xbf16, #tpu.memory_space<vmem>>, vector<1x16x128xbf16>
    %816 = vector.shape_cast %815 : vector<1x16x128xbf16> to vector<16x128xbf16>
    %817 = arith.truncf %787 : vector<32x128xf32> to vector<32x128xbf16>
    %818 = arith.truncf %806 : vector<32x128xf32> to vector<32x128xbf16>
    %819 = tpu.concatenate %816, %817, %818 in 0 : vector<16x128xbf16>, vector<32x128xbf16>, vector<32x128xbf16> -> vector<80x128xbf16>
    %cst_235 = arith.constant dense<0.000000e+00> : vector<256x128xf32>
    %820 = tpu.matmul %0, %819, %cst_235 {dimension_numbers = #tpu.dot_dimension_numbers<[1], [0], [0], [1], [0, 0, 1, 1], [], []>} : vector<256x80xbf16>, vector<80x128xbf16>, vector<256x128xf32> -> vector<256x128xf32>
    %821 = vector.broadcast %1 : vector<256x1xf32> to vector<256x128xf32>
    %822 = arith.addf %820, %821 : vector<256x128xf32>
    %823 = vector.extract_strided_slice %822 {offsets = [0, 0], sizes = [128, 128], strides = [1, 1]} : vector<256x128xf32> to vector<128x128xf32>
    %824 = vector.extract_strided_slice %823 {offsets = [0, 0], sizes = [96, 128], strides = [1, 1]} : vector<128x128xf32> to vector<96x128xf32>
    %cst_236 = arith.constant 5.000000e-01 : f32
    %825 = vector.broadcast %cst_236 : f32 to vector<96x128xf32>
    %826 = arith.mulf %825, %824 : vector<96x128xf32>
    %827 = math.tanh %826 : vector<96x128xf32>
    %cst_237 = arith.constant 1.000000e+00 : f32
    %828 = vector.broadcast %cst_237 : f32 to vector<96x128xf32>
    %829 = arith.addf %827, %828 : vector<96x128xf32>
    %cst_238 = arith.constant 5.000000e-01 : f32
    %830 = vector.broadcast %cst_238 : f32 to vector<96x128xf32>
    %831 = arith.mulf %830, %829 : vector<96x128xf32>
    %832 = vector.extract_strided_slice %823 {offsets = [96, 0], sizes = [32, 128], strides = [1, 1]} : vector<128x128xf32> to vector<32x128xf32>
    %833 = math.tanh %832 : vector<32x128xf32>
    %834 = vector.extract_strided_slice %831 {offsets = [32, 0], sizes = [32, 128], strides = [1, 1]} : vector<96x128xf32> to vector<32x128xf32>
    %835 = arith.mulf %834, %784 : vector<32x128xf32>
    %836 = vector.extract_strided_slice %831 {offsets = [0, 0], sizes = [32, 128], strides = [1, 1]} : vector<96x128xf32> to vector<32x128xf32>
    %837 = arith.mulf %836, %833 : vector<32x128xf32>
    %838 = arith.addf %835, %837 : vector<32x128xf32>
    %839 = vector.extract_strided_slice %831 {offsets = [64, 0], sizes = [32, 128], strides = [1, 1]} : vector<96x128xf32> to vector<32x128xf32>
    %840 = math.tanh %838 : vector<32x128xf32>
    %841 = arith.mulf %839, %840 : vector<32x128xf32>
    %842 = vector.extract_strided_slice %822 {offsets = [128, 0], sizes = [128, 128], strides = [1, 1]} : vector<256x128xf32> to vector<128x128xf32>
    %843 = vector.extract_strided_slice %842 {offsets = [0, 0], sizes = [96, 128], strides = [1, 1]} : vector<128x128xf32> to vector<96x128xf32>
    %cst_239 = arith.constant 5.000000e-01 : f32
    %844 = vector.broadcast %cst_239 : f32 to vector<96x128xf32>
    %845 = arith.mulf %844, %843 : vector<96x128xf32>
    %846 = math.tanh %845 : vector<96x128xf32>
    %cst_240 = arith.constant 1.000000e+00 : f32
    %847 = vector.broadcast %cst_240 : f32 to vector<96x128xf32>
    %848 = arith.addf %846, %847 : vector<96x128xf32>
    %cst_241 = arith.constant 5.000000e-01 : f32
    %849 = vector.broadcast %cst_241 : f32 to vector<96x128xf32>
    %850 = arith.mulf %849, %848 : vector<96x128xf32>
    %851 = vector.extract_strided_slice %842 {offsets = [96, 0], sizes = [32, 128], strides = [1, 1]} : vector<128x128xf32> to vector<32x128xf32>
    %852 = math.tanh %851 : vector<32x128xf32>
    %853 = vector.extract_strided_slice %850 {offsets = [32, 0], sizes = [32, 128], strides = [1, 1]} : vector<96x128xf32> to vector<32x128xf32>
    %854 = arith.mulf %853, %803 : vector<32x128xf32>
    %855 = vector.extract_strided_slice %850 {offsets = [0, 0], sizes = [32, 128], strides = [1, 1]} : vector<96x128xf32> to vector<32x128xf32>
    %856 = arith.mulf %855, %852 : vector<32x128xf32>
    %857 = arith.addf %854, %856 : vector<32x128xf32>
    %858 = vector.extract_strided_slice %850 {offsets = [64, 0], sizes = [32, 128], strides = [1, 1]} : vector<96x128xf32> to vector<32x128xf32>
    %859 = math.tanh %857 : vector<32x128xf32>
    %860 = arith.mulf %858, %859 : vector<32x128xf32>
    %861 = arith.truncf %841 : vector<32x128xf32> to vector<32x128xbf16>
    %c15_242 = arith.constant 15 : index
    %c0_243 = arith.constant 0 : index
    %c0_244 = arith.constant 0 : index
    %862 = vector.load %arg7[%c15_242, %c0_243, %c0_244] : memref<16x32x128xbf16, #tpu.memory_space<vmem>>, vector<1x32x128xbf16>
    %863 = vector.shape_cast %862 : vector<1x32x128xbf16> to vector<32x128xbf16>
    %864 = vector.shape_cast %861 : vector<32x128xbf16> to vector<1x32x128xbf16>
    tpu.vector_store %arg7[%c15_242, %c0_243, %c0_244], %864 {strides = array<i32>} : memref<16x32x128xbf16, #tpu.memory_space<vmem>>, vector<1x32x128xbf16>,
    %865 = arith.truncf %860 : vector<32x128xf32> to vector<32x128xbf16>
    %c0_245 = arith.constant 0 : index
    %c0_246 = arith.constant 0 : index
    %c0_247 = arith.constant 0 : index
    %866 = vector.load %arg8[%c0_245, %c0_246, %c0_247] : memref<16x32x128xbf16, #tpu.memory_space<vmem>>, vector<1x32x128xbf16>
    %867 = vector.shape_cast %866 : vector<1x32x128xbf16> to vector<32x128xbf16>
    %868 = vector.shape_cast %865 : vector<32x128xbf16> to vector<1x32x128xbf16>
    tpu.vector_store %arg8[%c0_245, %c0_246, %c0_247], %868 {strides = array<i32>} : memref<16x32x128xbf16, #tpu.memory_space<vmem>>, vector<1x32x128xbf16>,
    %c0_248 = arith.constant 0 : index
    %c0_249 = arith.constant 0 : index
    %c0_250 = arith.constant 0 : index
    %869 = vector.load %arg7[%c0_248, %c0_249, %c0_250] : memref<16x32x128xbf16, #tpu.memory_space<vmem>>, vector<1x32x128xbf16>
    %870 = vector.shape_cast %869 : vector<1x32x128xbf16> to vector<32x128xbf16>
    %c0_251 = arith.constant 0 : index
    %c0_252 = arith.constant 0 : index
    %c0_253 = arith.constant 0 : index
    %871 = vector.load %arg8[%c0_251, %c0_252, %c0_253] : memref<16x32x128xbf16, #tpu.memory_space<vmem>>, vector<1x32x128xbf16>
    %872 = vector.shape_cast %871 : vector<1x32x128xbf16> to vector<32x128xbf16>
    %873 = tpu.concatenate %870, %872 in 0 : vector<32x128xbf16>, vector<32x128xbf16> -> vector<64x128xbf16>
    %cst_254 = arith.constant dense<0.000000e+00> : vector<4x128xf32>
    %874 = tpu.matmul %2, %873, %cst_254 {dimension_numbers = #tpu.dot_dimension_numbers<[1], [0], [0], [1], [0, 0, 1, 1], [], []>} : vector<4x64xbf16>, vector<64x128xbf16>, vector<4x128xf32> -> vector<4x128xf32>
    %875 = vector.broadcast %3 : vector<4x1xf32> to vector<4x128xf32>
    %876 = arith.addf %874, %875 : vector<4x128xf32>
    %c0_255 = arith.constant 0 : index
    %c0_256 = arith.constant 0 : index
    %c0_257 = arith.constant 0 : index
    %877 = vector.load %arg6[%c0_255, %c0_256, %c0_257] : memref<16x4x128xf32, #tpu.memory_space<vmem>>, vector<1x4x128xf32>
    %878 = vector.shape_cast %877 : vector<1x4x128xf32> to vector<4x128xf32>
    %879 = vector.shape_cast %876 : vector<4x128xf32> to vector<1x4x128xf32>
    tpu.vector_store %arg6[%c0_255, %c0_256, %c0_257], %879 {strides = array<i32>} : memref<16x4x128xf32, #tpu.memory_space<vmem>>, vector<1x4x128xf32>,
    %c1_258 = arith.constant 1 : index
    %c0_259 = arith.constant 0 : index
    %c0_260 = arith.constant 0 : index
    %880 = vector.load %arg7[%c1_258, %c0_259, %c0_260] : memref<16x32x128xbf16, #tpu.memory_space<vmem>>, vector<1x32x128xbf16>
    %881 = vector.shape_cast %880 : vector<1x32x128xbf16> to vector<32x128xbf16>
    %c1_261 = arith.constant 1 : index
    %c0_262 = arith.constant 0 : index
    %c0_263 = arith.constant 0 : index
    %882 = vector.load %arg8[%c1_261, %c0_262, %c0_263] : memref<16x32x128xbf16, #tpu.memory_space<vmem>>, vector<1x32x128xbf16>
    %883 = vector.shape_cast %882 : vector<1x32x128xbf16> to vector<32x128xbf16>
    %884 = tpu.concatenate %881, %883 in 0 : vector<32x128xbf16>, vector<32x128xbf16> -> vector<64x128xbf16>
    %cst_264 = arith.constant dense<0.000000e+00> : vector<4x128xf32>
    %885 = tpu.matmul %2, %884, %cst_264 {dimension_numbers = #tpu.dot_dimension_numbers<[1], [0], [0], [1], [0, 0, 1, 1], [], []>} : vector<4x64xbf16>, vector<64x128xbf16>, vector<4x128xf32> -> vector<4x128xf32>
    %886 = vector.broadcast %3 : vector<4x1xf32> to vector<4x128xf32>
    %887 = arith.addf %885, %886 : vector<4x128xf32>
    %c1_265 = arith.constant 1 : index
    %c0_266 = arith.constant 0 : index
    %c0_267 = arith.constant 0 : index
    %888 = vector.load %arg6[%c1_265, %c0_266, %c0_267] : memref<16x4x128xf32, #tpu.memory_space<vmem>>, vector<1x4x128xf32>
    %889 = vector.shape_cast %888 : vector<1x4x128xf32> to vector<4x128xf32>
    %890 = vector.shape_cast %887 : vector<4x128xf32> to vector<1x4x128xf32>
    tpu.vector_store %arg6[%c1_265, %c0_266, %c0_267], %890 {strides = array<i32>} : memref<16x4x128xf32, #tpu.memory_space<vmem>>, vector<1x4x128xf32>,
    %c2_268 = arith.constant 2 : index
    %c0_269 = arith.constant 0 : index
    %c0_270 = arith.constant 0 : index
    %891 = vector.load %arg7[%c2_268, %c0_269, %c0_270] : memref<16x32x128xbf16, #tpu.memory_space<vmem>>, vector<1x32x128xbf16>
    %892 = vector.shape_cast %891 : vector<1x32x128xbf16> to vector<32x128xbf16>
    %c2_271 = arith.constant 2 : index
    %c0_272 = arith.constant 0 : index
    %c0_273 = arith.constant 0 : index
    %893 = vector.load %arg8[%c2_271, %c0_272, %c0_273] : memref<16x32x128xbf16, #tpu.memory_space<vmem>>, vector<1x32x128xbf16>
    %894 = vector.shape_cast %893 : vector<1x32x128xbf16> to vector<32x128xbf16>
    %895 = tpu.concatenate %892, %894 in 0 : vector<32x128xbf16>, vector<32x128xbf16> -> vector<64x128xbf16>
    %cst_274 = arith.constant dense<0.000000e+00> : vector<4x128xf32>
    %896 = tpu.matmul %2, %895, %cst_274 {dimension_numbers = #tpu.dot_dimension_numbers<[1], [0], [0], [1], [0, 0, 1, 1], [], []>} : vector<4x64xbf16>, vector<64x128xbf16>, vector<4x128xf32> -> vector<4x128xf32>
    %897 = vector.broadcast %3 : vector<4x1xf32> to vector<4x128xf32>
    %898 = arith.addf %896, %897 : vector<4x128xf32>
    %c2_275 = arith.constant 2 : index
    %c0_276 = arith.constant 0 : index
    %c0_277 = arith.constant 0 : index
    %899 = vector.load %arg6[%c2_275, %c0_276, %c0_277] : memref<16x4x128xf32, #tpu.memory_space<vmem>>, vector<1x4x128xf32>
    %900 = vector.shape_cast %899 : vector<1x4x128xf32> to vector<4x128xf32>
    %901 = vector.shape_cast %898 : vector<4x128xf32> to vector<1x4x128xf32>
    tpu.vector_store %arg6[%c2_275, %c0_276, %c0_277], %901 {strides = array<i32>} : memref<16x4x128xf32, #tpu.memory_space<vmem>>, vector<1x4x128xf32>,
    %c3_278 = arith.constant 3 : index
    %c0_279 = arith.constant 0 : index
    %c0_280 = arith.constant 0 : index
    %902 = vector.load %arg7[%c3_278, %c0_279, %c0_280] : memref<16x32x128xbf16, #tpu.memory_space<vmem>>, vector<1x32x128xbf16>
    %903 = vector.shape_cast %902 : vector<1x32x128xbf16> to vector<32x128xbf16>
    %c3_281 = arith.constant 3 : index
    %c0_282 = arith.constant 0 : index
    %c0_283 = arith.constant 0 : index
    %904 = vector.load %arg8[%c3_281, %c0_282, %c0_283] : memref<16x32x128xbf16, #tpu.memory_space<vmem>>, vector<1x32x128xbf16>
    %905 = vector.shape_cast %904 : vector<1x32x128xbf16> to vector<32x128xbf16>
    %906 = tpu.concatenate %903, %905 in 0 : vector<32x128xbf16>, vector<32x128xbf16> -> vector<64x128xbf16>
    %cst_284 = arith.constant dense<0.000000e+00> : vector<4x128xf32>
    %907 = tpu.matmul %2, %906, %cst_284 {dimension_numbers = #tpu.dot_dimension_numbers<[1], [0], [0], [1], [0, 0, 1, 1], [], []>} : vector<4x64xbf16>, vector<64x128xbf16>, vector<4x128xf32> -> vector<4x128xf32>
    %908 = vector.broadcast %3 : vector<4x1xf32> to vector<4x128xf32>
    %909 = arith.addf %907, %908 : vector<4x128xf32>
    %c3_285 = arith.constant 3 : index
    %c0_286 = arith.constant 0 : index
    %c0_287 = arith.constant 0 : index
    %910 = vector.load %arg6[%c3_285, %c0_286, %c0_287] : memref<16x4x128xf32, #tpu.memory_space<vmem>>, vector<1x4x128xf32>
    %911 = vector.shape_cast %910 : vector<1x4x128xf32> to vector<4x128xf32>
    %912 = vector.shape_cast %909 : vector<4x128xf32> to vector<1x4x128xf32>
    tpu.vector_store %arg6[%c3_285, %c0_286, %c0_287], %912 {strides = array<i32>} : memref<16x4x128xf32, #tpu.memory_space<vmem>>, vector<1x4x128xf32>,
    %c4_288 = arith.constant 4 : index
    %c0_289 = arith.constant 0 : index
    %c0_290 = arith.constant 0 : index
    %913 = vector.load %arg7[%c4_288, %c0_289, %c0_290] : memref<16x32x128xbf16, #tpu.memory_space<vmem>>, vector<1x32x128xbf16>
    %914 = vector.shape_cast %913 : vector<1x32x128xbf16> to vector<32x128xbf16>
    %c4_291 = arith.constant 4 : index
    %c0_292 = arith.constant 0 : index
    %c0_293 = arith.constant 0 : index
    %915 = vector.load %arg8[%c4_291, %c0_292, %c0_293] : memref<16x32x128xbf16, #tpu.memory_space<vmem>>, vector<1x32x128xbf16>
    %916 = vector.shape_cast %915 : vector<1x32x128xbf16> to vector<32x128xbf16>
    %917 = tpu.concatenate %914, %916 in 0 : vector<32x128xbf16>, vector<32x128xbf16> -> vector<64x128xbf16>
    %cst_294 = arith.constant dense<0.000000e+00> : vector<4x128xf32>
    %918 = tpu.matmul %2, %917, %cst_294 {dimension_numbers = #tpu.dot_dimension_numbers<[1], [0], [0], [1], [0, 0, 1, 1], [], []>} : vector<4x64xbf16>, vector<64x128xbf16>, vector<4x128xf32> -> vector<4x128xf32>
    %919 = vector.broadcast %3 : vector<4x1xf32> to vector<4x128xf32>
    %920 = arith.addf %918, %919 : vector<4x128xf32>
    %c4_295 = arith.constant 4 : index
    %c0_296 = arith.constant 0 : index
    %c0_297 = arith.constant 0 : index
    %921 = vector.load %arg6[%c4_295, %c0_296, %c0_297] : memref<16x4x128xf32, #tpu.memory_space<vmem>>, vector<1x4x128xf32>
    %922 = vector.shape_cast %921 : vector<1x4x128xf32> to vector<4x128xf32>
    %923 = vector.shape_cast %920 : vector<4x128xf32> to vector<1x4x128xf32>
    tpu.vector_store %arg6[%c4_295, %c0_296, %c0_297], %923 {strides = array<i32>} : memref<16x4x128xf32, #tpu.memory_space<vmem>>, vector<1x4x128xf32>,
    %c5_298 = arith.constant 5 : index
    %c0_299 = arith.constant 0 : index
    %c0_300 = arith.constant 0 : index
    %924 = vector.load %arg7[%c5_298, %c0_299, %c0_300] : memref<16x32x128xbf16, #tpu.memory_space<vmem>>, vector<1x32x128xbf16>
    %925 = vector.shape_cast %924 : vector<1x32x128xbf16> to vector<32x128xbf16>
    %c5_301 = arith.constant 5 : index
    %c0_302 = arith.constant 0 : index
    %c0_303 = arith.constant 0 : index
    %926 = vector.load %arg8[%c5_301, %c0_302, %c0_303] : memref<16x32x128xbf16, #tpu.memory_space<vmem>>, vector<1x32x128xbf16>
    %927 = vector.shape_cast %926 : vector<1x32x128xbf16> to vector<32x128xbf16>
    %928 = tpu.concatenate %925, %927 in 0 : vector<32x128xbf16>, vector<32x128xbf16> -> vector<64x128xbf16>
    %cst_304 = arith.constant dense<0.000000e+00> : vector<4x128xf32>
    %929 = tpu.matmul %2, %928, %cst_304 {dimension_numbers = #tpu.dot_dimension_numbers<[1], [0], [0], [1], [0, 0, 1, 1], [], []>} : vector<4x64xbf16>, vector<64x128xbf16>, vector<4x128xf32> -> vector<4x128xf32>
    %930 = vector.broadcast %3 : vector<4x1xf32> to vector<4x128xf32>
    %931 = arith.addf %929, %930 : vector<4x128xf32>
    %c5_305 = arith.constant 5 : index
    %c0_306 = arith.constant 0 : index
    %c0_307 = arith.constant 0 : index
    %932 = vector.load %arg6[%c5_305, %c0_306, %c0_307] : memref<16x4x128xf32, #tpu.memory_space<vmem>>, vector<1x4x128xf32>
    %933 = vector.shape_cast %932 : vector<1x4x128xf32> to vector<4x128xf32>
    %934 = vector.shape_cast %931 : vector<4x128xf32> to vector<1x4x128xf32>
    tpu.vector_store %arg6[%c5_305, %c0_306, %c0_307], %934 {strides = array<i32>} : memref<16x4x128xf32, #tpu.memory_space<vmem>>, vector<1x4x128xf32>,
    %c6_308 = arith.constant 6 : index
    %c0_309 = arith.constant 0 : index
    %c0_310 = arith.constant 0 : index
    %935 = vector.load %arg7[%c6_308, %c0_309, %c0_310] : memref<16x32x128xbf16, #tpu.memory_space<vmem>>, vector<1x32x128xbf16>
    %936 = vector.shape_cast %935 : vector<1x32x128xbf16> to vector<32x128xbf16>
    %c6_311 = arith.constant 6 : index
    %c0_312 = arith.constant 0 : index
    %c0_313 = arith.constant 0 : index
    %937 = vector.load %arg8[%c6_311, %c0_312, %c0_313] : memref<16x32x128xbf16, #tpu.memory_space<vmem>>, vector<1x32x128xbf16>
    %938 = vector.shape_cast %937 : vector<1x32x128xbf16> to vector<32x128xbf16>
    %939 = tpu.concatenate %936, %938 in 0 : vector<32x128xbf16>, vector<32x128xbf16> -> vector<64x128xbf16>
    %cst_314 = arith.constant dense<0.000000e+00> : vector<4x128xf32>
    %940 = tpu.matmul %2, %939, %cst_314 {dimension_numbers = #tpu.dot_dimension_numbers<[1], [0], [0], [1], [0, 0, 1, 1], [], []>} : vector<4x64xbf16>, vector<64x128xbf16>, vector<4x128xf32> -> vector<4x128xf32>
    %941 = vector.broadcast %3 : vector<4x1xf32> to vector<4x128xf32>
    %942 = arith.addf %940, %941 : vector<4x128xf32>
    %c6_315 = arith.constant 6 : index
    %c0_316 = arith.constant 0 : index
    %c0_317 = arith.constant 0 : index
    %943 = vector.load %arg6[%c6_315, %c0_316, %c0_317] : memref<16x4x128xf32, #tpu.memory_space<vmem>>, vector<1x4x128xf32>
    %944 = vector.shape_cast %943 : vector<1x4x128xf32> to vector<4x128xf32>
    %945 = vector.shape_cast %942 : vector<4x128xf32> to vector<1x4x128xf32>
    tpu.vector_store %arg6[%c6_315, %c0_316, %c0_317], %945 {strides = array<i32>} : memref<16x4x128xf32, #tpu.memory_space<vmem>>, vector<1x4x128xf32>,
    %c7_318 = arith.constant 7 : index
    %c0_319 = arith.constant 0 : index
    %c0_320 = arith.constant 0 : index
    %946 = vector.load %arg7[%c7_318, %c0_319, %c0_320] : memref<16x32x128xbf16, #tpu.memory_space<vmem>>, vector<1x32x128xbf16>
    %947 = vector.shape_cast %946 : vector<1x32x128xbf16> to vector<32x128xbf16>
    %c7_321 = arith.constant 7 : index
    %c0_322 = arith.constant 0 : index
    %c0_323 = arith.constant 0 : index
    %948 = vector.load %arg8[%c7_321, %c0_322, %c0_323] : memref<16x32x128xbf16, #tpu.memory_space<vmem>>, vector<1x32x128xbf16>
    %949 = vector.shape_cast %948 : vector<1x32x128xbf16> to vector<32x128xbf16>
    %950 = tpu.concatenate %947, %949 in 0 : vector<32x128xbf16>, vector<32x128xbf16> -> vector<64x128xbf16>
    %cst_324 = arith.constant dense<0.000000e+00> : vector<4x128xf32>
    %951 = tpu.matmul %2, %950, %cst_324 {dimension_numbers = #tpu.dot_dimension_numbers<[1], [0], [0], [1], [0, 0, 1, 1], [], []>} : vector<4x64xbf16>, vector<64x128xbf16>, vector<4x128xf32> -> vector<4x128xf32>
    %952 = vector.broadcast %3 : vector<4x1xf32> to vector<4x128xf32>
    %953 = arith.addf %951, %952 : vector<4x128xf32>
    %c7_325 = arith.constant 7 : index
    %c0_326 = arith.constant 0 : index
    %c0_327 = arith.constant 0 : index
    %954 = vector.load %arg6[%c7_325, %c0_326, %c0_327] : memref<16x4x128xf32, #tpu.memory_space<vmem>>, vector<1x4x128xf32>
    %955 = vector.shape_cast %954 : vector<1x4x128xf32> to vector<4x128xf32>
    %956 = vector.shape_cast %953 : vector<4x128xf32> to vector<1x4x128xf32>
    tpu.vector_store %arg6[%c7_325, %c0_326, %c0_327], %956 {strides = array<i32>} : memref<16x4x128xf32, #tpu.memory_space<vmem>>, vector<1x4x128xf32>,
    %c8_328 = arith.constant 8 : index
    %c0_329 = arith.constant 0 : index
    %c0_330 = arith.constant 0 : index
    %957 = vector.load %arg7[%c8_328, %c0_329, %c0_330] : memref<16x32x128xbf16, #tpu.memory_space<vmem>>, vector<1x32x128xbf16>
    %958 = vector.shape_cast %957 : vector<1x32x128xbf16> to vector<32x128xbf16>
    %c8_331 = arith.constant 8 : index
    %c0_332 = arith.constant 0 : index
    %c0_333 = arith.constant 0 : index
    %959 = vector.load %arg8[%c8_331, %c0_332, %c0_333] : memref<16x32x128xbf16, #tpu.memory_space<vmem>>, vector<1x32x128xbf16>
    %960 = vector.shape_cast %959 : vector<1x32x128xbf16> to vector<32x128xbf16>
    %961 = tpu.concatenate %958, %960 in 0 : vector<32x128xbf16>, vector<32x128xbf16> -> vector<64x128xbf16>
    %cst_334 = arith.constant dense<0.000000e+00> : vector<4x128xf32>
    %962 = tpu.matmul %2, %961, %cst_334 {dimension_numbers = #tpu.dot_dimension_numbers<[1], [0], [0], [1], [0, 0, 1, 1], [], []>} : vector<4x64xbf16>, vector<64x128xbf16>, vector<4x128xf32> -> vector<4x128xf32>
    %963 = vector.broadcast %3 : vector<4x1xf32> to vector<4x128xf32>
    %964 = arith.addf %962, %963 : vector<4x128xf32>
    %c8_335 = arith.constant 8 : index
    %c0_336 = arith.constant 0 : index
    %c0_337 = arith.constant 0 : index
    %965 = vector.load %arg6[%c8_335, %c0_336, %c0_337] : memref<16x4x128xf32, #tpu.memory_space<vmem>>, vector<1x4x128xf32>
    %966 = vector.shape_cast %965 : vector<1x4x128xf32> to vector<4x128xf32>
    %967 = vector.shape_cast %964 : vector<4x128xf32> to vector<1x4x128xf32>
    tpu.vector_store %arg6[%c8_335, %c0_336, %c0_337], %967 {strides = array<i32>} : memref<16x4x128xf32, #tpu.memory_space<vmem>>, vector<1x4x128xf32>,
    %c9_338 = arith.constant 9 : index
    %c0_339 = arith.constant 0 : index
    %c0_340 = arith.constant 0 : index
    %968 = vector.load %arg7[%c9_338, %c0_339, %c0_340] : memref<16x32x128xbf16, #tpu.memory_space<vmem>>, vector<1x32x128xbf16>
    %969 = vector.shape_cast %968 : vector<1x32x128xbf16> to vector<32x128xbf16>
    %c9_341 = arith.constant 9 : index
    %c0_342 = arith.constant 0 : index
    %c0_343 = arith.constant 0 : index
    %970 = vector.load %arg8[%c9_341, %c0_342, %c0_343] : memref<16x32x128xbf16, #tpu.memory_space<vmem>>, vector<1x32x128xbf16>
    %971 = vector.shape_cast %970 : vector<1x32x128xbf16> to vector<32x128xbf16>
    %972 = tpu.concatenate %969, %971 in 0 : vector<32x128xbf16>, vector<32x128xbf16> -> vector<64x128xbf16>
    %cst_344 = arith.constant dense<0.000000e+00> : vector<4x128xf32>
    %973 = tpu.matmul %2, %972, %cst_344 {dimension_numbers = #tpu.dot_dimension_numbers<[1], [0], [0], [1], [0, 0, 1, 1], [], []>} : vector<4x64xbf16>, vector<64x128xbf16>, vector<4x128xf32> -> vector<4x128xf32>
    %974 = vector.broadcast %3 : vector<4x1xf32> to vector<4x128xf32>
    %975 = arith.addf %973, %974 : vector<4x128xf32>
    %c9_345 = arith.constant 9 : index
    %c0_346 = arith.constant 0 : index
    %c0_347 = arith.constant 0 : index
    %976 = vector.load %arg6[%c9_345, %c0_346, %c0_347] : memref<16x4x128xf32, #tpu.memory_space<vmem>>, vector<1x4x128xf32>
    %977 = vector.shape_cast %976 : vector<1x4x128xf32> to vector<4x128xf32>
    %978 = vector.shape_cast %975 : vector<4x128xf32> to vector<1x4x128xf32>
    tpu.vector_store %arg6[%c9_345, %c0_346, %c0_347], %978 {strides = array<i32>} : memref<16x4x128xf32, #tpu.memory_space<vmem>>, vector<1x4x128xf32>,
    %c10_348 = arith.constant 10 : index
    %c0_349 = arith.constant 0 : index
    %c0_350 = arith.constant 0 : index
    %979 = vector.load %arg7[%c10_348, %c0_349, %c0_350] : memref<16x32x128xbf16, #tpu.memory_space<vmem>>, vector<1x32x128xbf16>
    %980 = vector.shape_cast %979 : vector<1x32x128xbf16> to vector<32x128xbf16>
    %c10_351 = arith.constant 10 : index
    %c0_352 = arith.constant 0 : index
    %c0_353 = arith.constant 0 : index
    %981 = vector.load %arg8[%c10_351, %c0_352, %c0_353] : memref<16x32x128xbf16, #tpu.memory_space<vmem>>, vector<1x32x128xbf16>
    %982 = vector.shape_cast %981 : vector<1x32x128xbf16> to vector<32x128xbf16>
    %983 = tpu.concatenate %980, %982 in 0 : vector<32x128xbf16>, vector<32x128xbf16> -> vector<64x128xbf16>
    %cst_354 = arith.constant dense<0.000000e+00> : vector<4x128xf32>
    %984 = tpu.matmul %2, %983, %cst_354 {dimension_numbers = #tpu.dot_dimension_numbers<[1], [0], [0], [1], [0, 0, 1, 1], [], []>} : vector<4x64xbf16>, vector<64x128xbf16>, vector<4x128xf32> -> vector<4x128xf32>
    %985 = vector.broadcast %3 : vector<4x1xf32> to vector<4x128xf32>
    %986 = arith.addf %984, %985 : vector<4x128xf32>
    %c10_355 = arith.constant 10 : index
    %c0_356 = arith.constant 0 : index
    %c0_357 = arith.constant 0 : index
    %987 = vector.load %arg6[%c10_355, %c0_356, %c0_357] : memref<16x4x128xf32, #tpu.memory_space<vmem>>, vector<1x4x128xf32>
    %988 = vector.shape_cast %987 : vector<1x4x128xf32> to vector<4x128xf32>
    %989 = vector.shape_cast %986 : vector<4x128xf32> to vector<1x4x128xf32>
    tpu.vector_store %arg6[%c10_355, %c0_356, %c0_357], %989 {strides = array<i32>} : memref<16x4x128xf32, #tpu.memory_space<vmem>>, vector<1x4x128xf32>,
    %c11_358 = arith.constant 11 : index
    %c0_359 = arith.constant 0 : index
    %c0_360 = arith.constant 0 : index
    %990 = vector.load %arg7[%c11_358, %c0_359, %c0_360] : memref<16x32x128xbf16, #tpu.memory_space<vmem>>, vector<1x32x128xbf16>
    %991 = vector.shape_cast %990 : vector<1x32x128xbf16> to vector<32x128xbf16>
    %c11_361 = arith.constant 11 : index
    %c0_362 = arith.constant 0 : index
    %c0_363 = arith.constant 0 : index
    %992 = vector.load %arg8[%c11_361, %c0_362, %c0_363] : memref<16x32x128xbf16, #tpu.memory_space<vmem>>, vector<1x32x128xbf16>
    %993 = vector.shape_cast %992 : vector<1x32x128xbf16> to vector<32x128xbf16>
    %994 = tpu.concatenate %991, %993 in 0 : vector<32x128xbf16>, vector<32x128xbf16> -> vector<64x128xbf16>
    %cst_364 = arith.constant dense<0.000000e+00> : vector<4x128xf32>
    %995 = tpu.matmul %2, %994, %cst_364 {dimension_numbers = #tpu.dot_dimension_numbers<[1], [0], [0], [1], [0, 0, 1, 1], [], []>} : vector<4x64xbf16>, vector<64x128xbf16>, vector<4x128xf32> -> vector<4x128xf32>
    %996 = vector.broadcast %3 : vector<4x1xf32> to vector<4x128xf32>
    %997 = arith.addf %995, %996 : vector<4x128xf32>
    %c11_365 = arith.constant 11 : index
    %c0_366 = arith.constant 0 : index
    %c0_367 = arith.constant 0 : index
    %998 = vector.load %arg6[%c11_365, %c0_366, %c0_367] : memref<16x4x128xf32, #tpu.memory_space<vmem>>, vector<1x4x128xf32>
    %999 = vector.shape_cast %998 : vector<1x4x128xf32> to vector<4x128xf32>
    %1000 = vector.shape_cast %997 : vector<4x128xf32> to vector<1x4x128xf32>
    tpu.vector_store %arg6[%c11_365, %c0_366, %c0_367], %1000 {strides = array<i32>} : memref<16x4x128xf32, #tpu.memory_space<vmem>>, vector<1x4x128xf32>,
    %c12_368 = arith.constant 12 : index
    %c0_369 = arith.constant 0 : index
    %c0_370 = arith.constant 0 : index
    %1001 = vector.load %arg7[%c12_368, %c0_369, %c0_370] : memref<16x32x128xbf16, #tpu.memory_space<vmem>>, vector<1x32x128xbf16>
    %1002 = vector.shape_cast %1001 : vector<1x32x128xbf16> to vector<32x128xbf16>
    %c12_371 = arith.constant 12 : index
    %c0_372 = arith.constant 0 : index
    %c0_373 = arith.constant 0 : index
    %1003 = vector.load %arg8[%c12_371, %c0_372, %c0_373] : memref<16x32x128xbf16, #tpu.memory_space<vmem>>, vector<1x32x128xbf16>
    %1004 = vector.shape_cast %1003 : vector<1x32x128xbf16> to vector<32x128xbf16>
    %1005 = tpu.concatenate %1002, %1004 in 0 : vector<32x128xbf16>, vector<32x128xbf16> -> vector<64x128xbf16>
    %cst_374 = arith.constant dense<0.000000e+00> : vector<4x128xf32>
    %1006 = tpu.matmul %2, %1005, %cst_374 {dimension_numbers = #tpu.dot_dimension_numbers<[1], [0], [0], [1], [0, 0, 1, 1], [], []>} : vector<4x64xbf16>, vector<64x128xbf16>, vector<4x128xf32> -> vector<4x128xf32>
    %1007 = vector.broadcast %3 : vector<4x1xf32> to vector<4x128xf32>
    %1008 = arith.addf %1006, %1007 : vector<4x128xf32>
    %c12_375 = arith.constant 12 : index
    %c0_376 = arith.constant 0 : index
    %c0_377 = arith.constant 0 : index
    %1009 = vector.load %arg6[%c12_375, %c0_376, %c0_377] : memref<16x4x128xf32, #tpu.memory_space<vmem>>, vector<1x4x128xf32>
    %1010 = vector.shape_cast %1009 : vector<1x4x128xf32> to vector<4x128xf32>
    %1011 = vector.shape_cast %1008 : vector<4x128xf32> to vector<1x4x128xf32>
    tpu.vector_store %arg6[%c12_375, %c0_376, %c0_377], %1011 {strides = array<i32>} : memref<16x4x128xf32, #tpu.memory_space<vmem>>, vector<1x4x128xf32>,
    %c13_378 = arith.constant 13 : index
    %c0_379 = arith.constant 0 : index
    %c0_380 = arith.constant 0 : index
    %1012 = vector.load %arg7[%c13_378, %c0_379, %c0_380] : memref<16x32x128xbf16, #tpu.memory_space<vmem>>, vector<1x32x128xbf16>
    %1013 = vector.shape_cast %1012 : vector<1x32x128xbf16> to vector<32x128xbf16>
    %c13_381 = arith.constant 13 : index
    %c0_382 = arith.constant 0 : index
    %c0_383 = arith.constant 0 : index
    %1014 = vector.load %arg8[%c13_381, %c0_382, %c0_383] : memref<16x32x128xbf16, #tpu.memory_space<vmem>>, vector<1x32x128xbf16>
    %1015 = vector.shape_cast %1014 : vector<1x32x128xbf16> to vector<32x128xbf16>
    %1016 = tpu.concatenate %1013, %1015 in 0 : vector<32x128xbf16>, vector<32x128xbf16> -> vector<64x128xbf16>
    %cst_384 = arith.constant dense<0.000000e+00> : vector<4x128xf32>
    %1017 = tpu.matmul %2, %1016, %cst_384 {dimension_numbers = #tpu.dot_dimension_numbers<[1], [0], [0], [1], [0, 0, 1, 1], [], []>} : vector<4x64xbf16>, vector<64x128xbf16>, vector<4x128xf32> -> vector<4x128xf32>
    %1018 = vector.broadcast %3 : vector<4x1xf32> to vector<4x128xf32>
    %1019 = arith.addf %1017, %1018 : vector<4x128xf32>
    %c13_385 = arith.constant 13 : index
    %c0_386 = arith.constant 0 : index
    %c0_387 = arith.constant 0 : index
    %1020 = vector.load %arg6[%c13_385, %c0_386, %c0_387] : memref<16x4x128xf32, #tpu.memory_space<vmem>>, vector<1x4x128xf32>
    %1021 = vector.shape_cast %1020 : vector<1x4x128xf32> to vector<4x128xf32>
    %1022 = vector.shape_cast %1019 : vector<4x128xf32> to vector<1x4x128xf32>
    tpu.vector_store %arg6[%c13_385, %c0_386, %c0_387], %1022 {strides = array<i32>} : memref<16x4x128xf32, #tpu.memory_space<vmem>>, vector<1x4x128xf32>,
    %c14_388 = arith.constant 14 : index
    %c0_389 = arith.constant 0 : index
    %c0_390 = arith.constant 0 : index
    %1023 = vector.load %arg7[%c14_388, %c0_389, %c0_390] : memref<16x32x128xbf16, #tpu.memory_space<vmem>>, vector<1x32x128xbf16>
    %1024 = vector.shape_cast %1023 : vector<1x32x128xbf16> to vector<32x128xbf16>
    %c14_391 = arith.constant 14 : index
    %c0_392 = arith.constant 0 : index
    %c0_393 = arith.constant 0 : index
    %1025 = vector.load %arg8[%c14_391, %c0_392, %c0_393] : memref<16x32x128xbf16, #tpu.memory_space<vmem>>, vector<1x32x128xbf16>
    %1026 = vector.shape_cast %1025 : vector<1x32x128xbf16> to vector<32x128xbf16>
    %1027 = tpu.concatenate %1024, %1026 in 0 : vector<32x128xbf16>, vector<32x128xbf16> -> vector<64x128xbf16>
    %cst_394 = arith.constant dense<0.000000e+00> : vector<4x128xf32>
    %1028 = tpu.matmul %2, %1027, %cst_394 {dimension_numbers = #tpu.dot_dimension_numbers<[1], [0], [0], [1], [0, 0, 1, 1], [], []>} : vector<4x64xbf16>, vector<64x128xbf16>, vector<4x128xf32> -> vector<4x128xf32>
    %1029 = vector.broadcast %3 : vector<4x1xf32> to vector<4x128xf32>
    %1030 = arith.addf %1028, %1029 : vector<4x128xf32>
    %c14_395 = arith.constant 14 : index
    %c0_396 = arith.constant 0 : index
    %c0_397 = arith.constant 0 : index
    %1031 = vector.load %arg6[%c14_395, %c0_396, %c0_397] : memref<16x4x128xf32, #tpu.memory_space<vmem>>, vector<1x4x128xf32>
    %1032 = vector.shape_cast %1031 : vector<1x4x128xf32> to vector<4x128xf32>
    %1033 = vector.shape_cast %1030 : vector<4x128xf32> to vector<1x4x128xf32>
    tpu.vector_store %arg6[%c14_395, %c0_396, %c0_397], %1033 {strides = array<i32>} : memref<16x4x128xf32, #tpu.memory_space<vmem>>, vector<1x4x128xf32>,
    %c15_398 = arith.constant 15 : index
    %c0_399 = arith.constant 0 : index
    %c0_400 = arith.constant 0 : index
    %1034 = vector.load %arg7[%c15_398, %c0_399, %c0_400] : memref<16x32x128xbf16, #tpu.memory_space<vmem>>, vector<1x32x128xbf16>
    %1035 = vector.shape_cast %1034 : vector<1x32x128xbf16> to vector<32x128xbf16>
    %c15_401 = arith.constant 15 : index
    %c0_402 = arith.constant 0 : index
    %c0_403 = arith.constant 0 : index
    %1036 = vector.load %arg8[%c15_401, %c0_402, %c0_403] : memref<16x32x128xbf16, #tpu.memory_space<vmem>>, vector<1x32x128xbf16>
    %1037 = vector.shape_cast %1036 : vector<1x32x128xbf16> to vector<32x128xbf16>
    %1038 = tpu.concatenate %1035, %1037 in 0 : vector<32x128xbf16>, vector<32x128xbf16> -> vector<64x128xbf16>
    %cst_404 = arith.constant dense<0.000000e+00> : vector<4x128xf32>
    %1039 = tpu.matmul %2, %1038, %cst_404 {dimension_numbers = #tpu.dot_dimension_numbers<[1], [0], [0], [1], [0, 0, 1, 1], [], []>} : vector<4x64xbf16>, vector<64x128xbf16>, vector<4x128xf32> -> vector<4x128xf32>
    %1040 = vector.broadcast %3 : vector<4x1xf32> to vector<4x128xf32>
    %1041 = arith.addf %1039, %1040 : vector<4x128xf32>
    %c15_405 = arith.constant 15 : index
    %c0_406 = arith.constant 0 : index
    %c0_407 = arith.constant 0 : index
    %1042 = vector.load %arg6[%c15_405, %c0_406, %c0_407] : memref<16x4x128xf32, #tpu.memory_space<vmem>>, vector<1x4x128xf32>
    %1043 = vector.shape_cast %1042 : vector<1x4x128xf32> to vector<4x128xf32>
    %1044 = vector.shape_cast %1041 : vector<4x128xf32> to vector<1x4x128xf32>
    tpu.vector_store %arg6[%c15_405, %c0_406, %c0_407], %1044 {strides = array<i32>} : memref<16x4x128xf32, #tpu.memory_space<vmem>>, vector<1x4x128xf32>,
    return
  }
  func.func @transform_0(%arg0: i32) -> (i32, i32, i32) {
    %c0_i32 = arith.constant 0 : i32
    %c0_i32_0 = arith.constant 0 : i32
    %c0_i32_1 = arith.constant 0 : i32
    return %c0_i32, %c0_i32_0, %arg0 : i32, i32, i32
  }
  func.func @transform_1(%arg0: i32) -> (i32, i32) {
    %c0_i32 = arith.constant 0 : i32
    %c0_i32_0 = arith.constant 0 : i32
    %c0_i32_1 = arith.constant 0 : i32
    return %c0_i32, %c0_i32_0 : i32, i32
  }
  func.func @transform_2(%arg0: i32) -> (i32, i32) {
    %c0_i32 = arith.constant 0 : i32
    %c0_i32_0 = arith.constant 0 : i32
    %c0_i32_1 = arith.constant 0 : i32
    return %c0_i32, %c0_i32_0 : i32, i32
  }
  func.func @transform_3(%arg0: i32) -> (i32, i32) {
    %c0_i32 = arith.constant 0 : i32
    %c0_i32_0 = arith.constant 0 : i32
    %c0_i32_1 = arith.constant 0 : i32
    return %c0_i32, %c0_i32_0 : i32, i32
  }
  func.func @transform_4(%arg0: i32) -> (i32, i32) {
    %c0_i32 = arith.constant 0 : i32
    %c0_i32_0 = arith.constant 0 : i32
    %c0_i32_1 = arith.constant 0 : i32
    return %c0_i32, %c0_i32_0 : i32, i32
  }
  func.func @transform_5(%arg0: i32) -> (i32, i32, i32) {
    %c0_i32 = arith.constant 0 : i32
    %c0_i32_0 = arith.constant 0 : i32
    %c0_i32_1 = arith.constant 0 : i32
    return %c0_i32, %c0_i32_0, %arg0 : i32, i32, i32
  }
}

</mosaic_0001>

<llo_original>
// kernel: tpu_custom_call.1
$region0: #{tpu_custom_call.1}
  #allocation0 [shape = 'u32[]', space=smem, size = 0x4, offset = 0x4, fixed_abs, tag = 'smem constant byte address 0x4 - core index']
  #allocation1 [shape = 'u32[144,128]{1,0:T(1,128)}', space=vmem, size = 0x12000, scoped, tag = 'internal scratch']
  #allocation2 [shape = 'bf16[16,32,128]{2,1,0:T(16,128)(2,1)}', space=vmem, size = 0x20000, scoped, tag = 'scratch operand']
  #allocation3 [shape = 'bf16[16,32,128]{2,1,0:T(16,128)(2,1)}', space=vmem, size = 0x20000, scoped, tag = 'scratch operand']
  %s0 = inlined_call_operand.vmem [shape: bf16[16,16,128], index: 0, kind: input, shape index: {}]
  %s1 = inlined_call_operand.vmem [shape: bf16[256,80], index: 1, kind: input, shape index: {}]
  %s2 = inlined_call_operand.vmem [shape: f32[256,1], index: 2, kind: input, shape index: {}]
  %s3 = inlined_call_operand.vmem [shape: bf16[4,64], index: 3, kind: input, shape index: {}]
  %s4 = inlined_call_operand.vmem [shape: f32[4,1], index: 4, kind: input, shape index: {}]
  %s5 = inlined_call_operand.hbm [shape: f32[16,4,128], index: 5, kind: output, shape index: {}]
  %s6 = sld [smem:[#allocation0]]
  $region30: #{tpu_custom_call.1} parent=0
    _
  %s8 = ssub.s32 1, %s6
  %s9 = scalar_select 0, %s8, %s6
  $region1: #{tpu_custom_call.1} parent=0
    #allocation4 [shape = 'u8[32768]{0}', space=vmem, size = 0x8000, scoped, tag = 'output window, operand 0, single buffered']
    #allocation5 [shape = 's32[1]{0}', space=sflag, size = 0x4, scoped, tag = 'scoped memory for tpu_custom_call.1']
    %10 = vsyncpa [#allocation5], 0
    // Predicated region
    $region2: #{tpu_custom_call.1} parent=1 // pred_check
      _
    $region3: #{tpu_custom_call.1} parent=1 // pred_check_branch
      %12 = sbr.rel (0) target = $region5
    $region4: #{tpu_custom_call.1} parent=1 // pred_region
      _
    $region5: #{tpu_custom_call.1} parent=1 // pred_fallthru
      _
    // Predicated region
    $region6: #{tpu_custom_call.1} parent=1 // pred_check
      _
    $region7: #{tpu_custom_call.1} parent=1 // pred_check_branch
      %14 = sbr.rel (0) target = $region9
    $region8: #{tpu_custom_call.1} parent=1 // pred_region
      _
    $region9: #{tpu_custom_call.1} parent=1 // pred_fallthru
      _
    // Predicated region
    $region10: #{tpu_custom_call.1} parent=1 // pred_check
      _
    $region11: #{tpu_custom_call.1} parent=1 // pred_check_branch
      %16 = sbr.rel (0) target = $region13
    $region12: #{tpu_custom_call.1} parent=1 // pred_region
      _
    $region13: #{tpu_custom_call.1} parent=1 // pred_fallthru
      _
    // Predicated region
    $region14: #{tpu_custom_call.1} parent=1 // pred_check
      _
    $region15: #{tpu_custom_call.1} parent=1 // pred_check_branch
      %18 = sbr.rel (0) target = $region17
    $region16: #{tpu_custom_call.1} parent=1 // pred_region
      _
    $region17: #{tpu_custom_call.1} parent=1 // pred_fallthru
      _
    // Predicated region
    $region18: #{tpu_custom_call.1} parent=1 // pred_check
      _
    $region19: #{tpu_custom_call.1} parent=1 // pred_check_branch
      %20 = sbr.rel (0) target = $region21
    $region20: #{tpu_custom_call.1} parent=1 // pred_region
      _
    $region21: #{tpu_custom_call.1} parent=1 // pred_fallthru
      _
    %v22 = vld [vmem:[%s1] sm:$0xf]
    %v23 = vld [vmem:[%s1 + $0x4] sm:$0xf]
    %v24 = vld [vmem:[%s1 + $0x8] sm:$0xf]
    %v25 = vld [vmem:[%s1 + $0xc] sm:$0xf]
    %v26 = vld [vmem:[%s1 + $0x10] sm:$0xf]
    %v27 = vld [vmem:[%s1 + $0x14] sm:$0xf]
    %v28 = vld [vmem:[%s1 + $0x18] sm:$0xf]
    %v29 = vld [vmem:[%s1 + $0x1c] sm:$0xf]
    %v30 = vld [vmem:[%s1 + $0x20] sm:$0xf]
    %v31 = vld [vmem:[%s1 + $0x24] sm:$0xf]
    %v32 = vld [vmem:[%s1 + $0x28] sm:$0xf]
    %v33 = vld [vmem:[%s1 + $0x2c] sm:$0xf]
    %v34 = vld [vmem:[%s1 + $0x30] sm:$0xf]
    %v35 = vld [vmem:[%s1 + $0x34] sm:$0xf]
    %v36 = vld [vmem:[%s1 + $0x38] sm:$0xf]
    %v37 = vld [vmem:[%s1 + $0x3c] sm:$0xf]
    %v38 = vld [vmem:[%s1 + $0x40] sm:$0xf]
    %v39 = vld [vmem:[%s1 + $0x44] sm:$0xf]
    %v40 = vld [vmem:[%s1 + $0x48] sm:$0xf]
    %v41 = vld [vmem:[%s1 + $0x4c] sm:$0xf]
    %v42 = vld [vmem:[%s1 + $0x50] sm:$0xf]
    %v43 = vld [vmem:[%s1 + $0x54] sm:$0xf]
    %v44 = vld [vmem:[%s1 + $0x58] sm:$0xf]
    %v45 = vld [vmem:[%s1 + $0x5c] sm:$0xf]
    %v46 = vld [vmem:[%s1 + $0x60] sm:$0xf]
    %v47 = vld [vmem:[%s1 + $0x64] sm:$0xf]
    %v48 = vld [vmem:[%s1 + $0x68] sm:$0xf]
    %v49 = vld [vmem:[%s1 + $0x6c] sm:$0xf]
    %v50 = vld [vmem:[%s1 + $0x70] sm:$0xf]
    %v51 = vld [vmem:[%s1 + $0x74] sm:$0xf]
    %v52 = vld [vmem:[%s1 + $0x78] sm:$0xf]
    %v53 = vld [vmem:[%s1 + $0x7c] sm:$0xf]
    %v54 = vld [vmem:[%s2] sm:$0xff]
    %v55 = vld [vmem:[%s2 + $0x8] sm:$0xff]
    %v56 = vld [vmem:[%s2 + $0x10] sm:$0xff]
    %v57 = vld [vmem:[%s2 + $0x18] sm:$0xff]
    %v58 = vld [vmem:[%s2 + $0x20] sm:$0xff]
    %v59 = vld [vmem:[%s2 + $0x28] sm:$0xff]
    %v60 = vld [vmem:[%s2 + $0x30] sm:$0xff]
    %v61 = vld [vmem:[%s2 + $0x38] sm:$0xff]
    %v62 = vld [vmem:[%s2 + $0x40] sm:$0xff]
    %v63 = vld [vmem:[%s2 + $0x48] sm:$0xff]
    %v64 = vld [vmem:[%s2 + $0x50] sm:$0xff]
    %v65 = vld [vmem:[%s2 + $0x58] sm:$0xff]
    %v66 = vld [vmem:[%s2 + $0x60] sm:$0xff]
    %v67 = vld [vmem:[%s2 + $0x68] sm:$0xff]
    %v68 = vld [vmem:[%s2 + $0x70] sm:$0xff]
    %v69 = vld [vmem:[%s2 + $0x78] sm:$0xff]
    %v70 = vld [vmem:[%s2 + $0x80] sm:$0xff]
    %v71 = vld [vmem:[%s2 + $0x88] sm:$0xff]
    %v72 = vld [vmem:[%s2 + $0x90] sm:$0xff]
    %v73 = vld [vmem:[%s2 + $0x98] sm:$0xff]
    %v74 = vld [vmem:[%s2 + $0xa0] sm:$0xff]
    %v75 = vld [vmem:[%s2 + $0xa8] sm:$0xff]
    %v76 = vld [vmem:[%s2 + $0xb0] sm:$0xff]
    %v77 = vld [vmem:[%s2 + $0xb8] sm:$0xff]
    %v78 = vld [vmem:[%s2 + $0xc0] sm:$0xff]
    %v79 = vld [vmem:[%s2 + $0xc8] sm:$0xff]
    %v80 = vld [vmem:[%s2 + $0xd0] sm:$0xff]
    %v81 = vld [vmem:[%s2 + $0xd8] sm:$0xff]
    %v82 = vld [vmem:[%s2 + $0xe0] sm:$0xff]
    %v83 = vld [vmem:[%s2 + $0xe8] sm:$0xff]
    %v84 = vld [vmem:[%s2 + $0xf0] sm:$0xff]
    %v85 = vld [vmem:[%s2 + $0xf8] sm:$0xff]
    %v86 = vld [vmem:[%s3] sm:$0x3]
    %v87 = vld [vmem:[%s4] sm:$0xf]
    %v88 = vld [vmem:[%s0] sm:$0xf]
    %v89 = vld [vmem:[%s0 + $0x4] sm:$0xf]
    %v92 = vunpack.c.l.b16 %v88
    %v93 = vunpack.c.l.b16 %v89
    %v94 = vpack.c.b16 %v93, %v92
    %97 = vset.pattern.permute.xlu0 0
    %98 = vperm.xlu0 %97, %v54
    %v99 = vpop.permute.xlu0 %98
    %102 = vset.pattern.permute.xlu0 0
    %103 = vperm.xlu0 %102, %v55
    %v104 = vpop.permute.xlu0 %103
    %107 = vset.pattern.permute.xlu0 0
    %108 = vperm.xlu0 %107, %v56
    %v109 = vpop.permute.xlu0 %108
    %112 = vset.pattern.permute.xlu0 0
    %113 = vperm.xlu0 %112, %v57
    %v114 = vpop.permute.xlu0 %113
    %117 = vset.pattern.permute.xlu0 0
    %118 = vperm.xlu0 %117, %v58
    %v119 = vpop.permute.xlu0 %118
    %122 = vset.pattern.permute.xlu0 0
    %123 = vperm.xlu0 %122, %v59
    %v124 = vpop.permute.xlu0 %123
    %127 = vset.pattern.permute.xlu0 0
    %128 = vperm.xlu0 %127, %v60
    %v129 = vpop.permute.xlu0 %128
    %132 = vset.pattern.permute.xlu0 0
    %133 = vperm.xlu0 %132, %v61
    %v134 = vpop.permute.xlu0 %133
    %137 = vset.pattern.permute.xlu0 0
    %138 = vperm.xlu0 %137, %v62
    %v139 = vpop.permute.xlu0 %138
    %142 = vset.pattern.permute.xlu0 0
    %143 = vperm.xlu0 %142, %v63
    %v144 = vpop.permute.xlu0 %143
    %147 = vset.pattern.permute.xlu0 0
    %148 = vperm.xlu0 %147, %v64
    %v149 = vpop.permute.xlu0 %148
    %152 = vset.pattern.permute.xlu0 0
    %153 = vperm.xlu0 %152, %v65
    %v154 = vpop.permute.xlu0 %153
    %157 = vset.pattern.permute.xlu0 0
    %158 = vperm.xlu0 %157, %v66
    %v159 = vpop.permute.xlu0 %158
    %162 = vset.pattern.permute.xlu0 0
    %163 = vperm.xlu0 %162, %v67
    %v164 = vpop.permute.xlu0 %163
    %167 = vset.pattern.permute.xlu0 0
    %168 = vperm.xlu0 %167, %v68
    %v169 = vpop.permute.xlu0 %168
    %172 = vset.pattern.permute.xlu0 0
    %173 = vperm.xlu0 %172, %v69
    %v174 = vpop.permute.xlu0 %173
    %177 = vset.pattern.permute.xlu0 0
    %178 = vperm.xlu0 %177, %v70
    %v179 = vpop.permute.xlu0 %178
    %182 = vset.pattern.permute.xlu0 0
    %183 = vperm.xlu0 %182, %v71
    %v184 = vpop.permute.xlu0 %183
    %187 = vset.pattern.permute.xlu0 0
    %188 = vperm.xlu0 %187, %v72
    %v189 = vpop.permute.xlu0 %188
    %192 = vset.pattern.permute.xlu0 0
    %193 = vperm.xlu0 %192, %v73
    %v194 = vpop.permute.xlu0 %193
    %197 = vset.pattern.permute.xlu0 0
    %198 = vperm.xlu0 %197, %v74
    %v199 = vpop.permute.xlu0 %198
    %202 = vset.pattern.permute.xlu0 0
    %203 = vperm.xlu0 %202, %v75
    %v204 = vpop.permute.xlu0 %203
    %207 = vset.pattern.permute.xlu0 0
    %208 = vperm.xlu0 %207, %v76
    %v209 = vpop.permute.xlu0 %208
    %212 = vset.pattern.permute.xlu0 0
    %213 = vperm.xlu0 %212, %v77
    %v214 = vpop.permute.xlu0 %213
    %217 = vset.pattern.permute.xlu0 0
    %218 = vperm.xlu0 %217, %v78
    %v219 = vpop.permute.xlu0 %218
    %222 = vset.pattern.permute.xlu0 0
    %223 = vperm.xlu0 %222, %v79
    %v224 = vpop.permute.xlu0 %223
    %227 = vset.pattern.permute.xlu0 0
    %228 = vperm.xlu0 %227, %v80
    %v229 = vpop.permute.xlu0 %228
    %232 = vset.pattern.permute.xlu0 0
    %233 = vperm.xlu0 %232, %v81
    %v234 = vpop.permute.xlu0 %233
    %237 = vset.pattern.permute.xlu0 0
    %238 = vperm.xlu0 %237, %v82
    %v239 = vpop.permute.xlu0 %238
    %242 = vset.pattern.permute.xlu0 0
    %243 = vperm.xlu0 %242, %v83
    %v244 = vpop.permute.xlu0 %243
    %247 = vset.pattern.permute.xlu0 0
    %248 = vperm.xlu0 %247, %v84
    %v249 = vpop.permute.xlu0 %248
    %252 = vset.pattern.permute.xlu0 0
    %253 = vperm.xlu0 %252, %v85
    %v254 = vpop.permute.xlu0 %253
    %v288 = vunpack.c.l.b16 %v22
    %v289 = vunpack.c.l.b16 %v23
    %v290 = vunpack.c.l.b16 %v24
    %v291 = vunpack.c.l.b16 %v25
    %v292 = vunpack.c.l.b16 %v26
    %v293 = vunpack.c.l.b16 %v27
    %v294 = vunpack.c.l.b16 %v28
    %v295 = vunpack.c.l.b16 %v29
    %v296 = vunpack.c.l.b16 %v30
    %v297 = vunpack.c.l.b16 %v31
    %v298 = vunpack.c.l.b16 %v32
    %v299 = vunpack.c.l.b16 %v33
    %v300 = vunpack.c.l.b16 %v34
    %v301 = vunpack.c.l.b16 %v35
    %v302 = vunpack.c.l.b16 %v36
    %v303 = vunpack.c.l.b16 %v37
    %v304 = vunpack.c.l.b16 %v38
    %v305 = vunpack.c.l.b16 %v39
    %v306 = vunpack.c.l.b16 %v40
    %v307 = vunpack.c.l.b16 %v41
    %v308 = vunpack.c.l.b16 %v42
    %v309 = vunpack.c.l.b16 %v43
    %v310 = vunpack.c.l.b16 %v44
    %v311 = vunpack.c.l.b16 %v45
    %v312 = vunpack.c.l.b16 %v46
    %v313 = vunpack.c.l.b16 %v47
    %v314 = vunpack.c.l.b16 %v48
    %v315 = vunpack.c.l.b16 %v49
    %v316 = vunpack.c.l.b16 %v50
    %v317 = vunpack.c.l.b16 %v51
    %v318 = vunpack.c.l.b16 %v52
    %v319 = vunpack.c.l.b16 %v53
    %v320 = vpack.c.b16 %v289, %v288
    %v321 = vpack.c.b16 %v291, %v290
    %v322 = vpack.c.b16 %v293, %v292
    %v323 = vpack.c.b16 %v295, %v294
    %v324 = vpack.c.b16 %v297, %v296
    %v325 = vpack.c.b16 %v299, %v298
    %v326 = vpack.c.b16 %v301, %v300
    %v327 = vpack.c.b16 %v303, %v302
    %v328 = vpack.c.b16 %v305, %v304
    %v329 = vpack.c.b16 %v307, %v306
    %v330 = vpack.c.b16 %v309, %v308
    %v331 = vpack.c.b16 %v311, %v310
    %v332 = vpack.c.b16 %v313, %v312
    %v333 = vpack.c.b16 %v315, %v314
    %v334 = vpack.c.b16 %v317, %v316
    %v335 = vpack.c.b16 %v319, %v318
    %vm336 = vcmask 654336
    %v338 = vsel %vm336, %v320, 0
    %v341 = vsel %vm336, %v321, 0
    %v344 = vsel %vm336, %v322, 0
    %v347 = vsel %vm336, %v323, 0
    %v350 = vsel %vm336, %v324, 0
    %v353 = vsel %vm336, %v325, 0
    %v356 = vsel %vm336, %v326, 0
    %v359 = vsel %vm336, %v327, 0
    %v362 = vsel %vm336, %v328, 0
    %v365 = vsel %vm336, %v329, 0
    %v368 = vsel %vm336, %v330, 0
    %v371 = vsel %vm336, %v331, 0
    %v374 = vsel %vm336, %v332, 0
    %v377 = vsel %vm336, %v333, 0
    %v380 = vsel %vm336, %v334, 0
    %v383 = vsel %vm336, %v335, 0
    %385 = vmatprep.subr.bf16.mxu0 0
    %386 = vmatpush1.bf16.msra.mxu0 %v94
    %387 = vmatprep.subr.bf16.mxu0 0
    %388 = vmatpush1.bf16.msra.mxu0 0
    %389 = vmatprep.subr.bf16.mxu0 0
    %390 = vmatpush1.bf16.msra.mxu0 0
    %391 = vmatprep.subr.bf16.mxu0 0
    %392 = vmatpush1.bf16.msra.mxu0 0
    %393 = vmatprep.subr.bf16.mxu0 0
    %394 = vmatpush1.bf16.msra.mxu0 0
    %395 = vmatprep.subr.bf16.mxu0 0
    %396 = vmatpush1.bf16.msra.mxu0 0
    %397 = vmatprep.subr.bf16.mxu0 0
    %398 = vmatpush1.bf16.msra.mxu0 0
    %399 = vmatprep.subr.bf16.mxu0 0
    %400 = vmatpush1.bf16.msra.mxu0 0
    %401 = vmatprep.subr.bf16.mxu0 0
    %402 = vmatpush1.bf16.msra.mxu0 0
    %403 = vmatprep.subr.bf16.mxu0 0
    %404 = vmatpush1.bf16.msra.mxu0 0
    %405 = vmatprep.subr.bf16.mxu0 0
    %406 = vmatpush1.bf16.msra.mxu0 0
    %407 = vmatprep.subr.bf16.mxu0 0
    %408 = vmatpush1.bf16.msra.mxu0 0
    %409 = vmatprep.subr.bf16.mxu0 0
    %410 = vmatpush1.bf16.msra.mxu0 0
    %411 = vmatprep.subr.bf16.mxu0 0
    %412 = vmatpush1.bf16.msra.mxu0 0
    %413 = vmatprep.subr.bf16.mxu0 0
    %414 = vmatpush1.bf16.msra.mxu0 0
    %415 = vmatprep.subr.bf16.mxu0 0
    %416 = vmatpush1.bf16.msra.mxu0 0
    %417 = vmatprep.mubr.bf16.mxu0 0
    %418 = vmatmul.mubr.bf16.gmra.mrb[0].mxu0 %v338
    %v419 = vpop.f32.mrb[0].mxu0
    %v420 = vadd.f32 %v99, %v419
    %v421 = vpop.f32.mrb[0].mxu0
    %v422 = vpop.f32.mrb[0].mxu0
    %v423 = vadd.f32 %v104, %v422
    %v424 = vpop.f32.mrb[0].mxu0
    %425 = vmatprep.mubr.bf16.mxu0 0
    %426 = vmatmul.mubr.bf16.gmra.mrb[0].mxu0 %v341
    %v427 = vpop.f32.mrb[0].mxu0
    %v428 = vadd.f32 %v109, %v427
    %v429 = vpop.f32.mrb[0].mxu0
    %v430 = vpop.f32.mrb[0].mxu0
    %v431 = vadd.f32 %v114, %v430
    %v432 = vpop.f32.mrb[0].mxu0
    %433 = vmatprep.mubr.bf16.mxu0 0
    %434 = vmatmul.mubr.bf16.gmra.mrb[0].mxu0 %v344
    %v435 = vpop.f32.mrb[0].mxu0
    %v436 = vadd.f32 %v119, %v435
    %v437 = vpop.f32.mrb[0].mxu0
    %v438 = vpop.f32.mrb[0].mxu0
    %v439 = vadd.f32 %v124, %v438
    %v440 = vpop.f32.mrb[0].mxu0
    %441 = vmatprep.mubr.bf16.mxu0 0
    %442 = vmatmul.mubr.bf16.gmra.mrb[0].mxu0 %v347
    %v443 = vpop.f32.mrb[0].mxu0
    %v444 = vadd.f32 %v129, %v443
    %v445 = vpop.f32.mrb[0].mxu0
    %v446 = vpop.f32.mrb[0].mxu0
    %v447 = vadd.f32 %v134, %v446
    %v448 = vpop.f32.mrb[0].mxu0
    %449 = vmatprep.mubr.bf16.mxu0 0
    %450 = vmatmul.mubr.bf16.gmra.mrb[0].mxu0 %v350
    %v451 = vpop.f32.mrb[0].mxu0
    %v452 = vadd.f32 %v139, %v451
    %v453 = vpop.f32.mrb[0].mxu0
    %v454 = vpop.f32.mrb[0].mxu0
    %v455 = vadd.f32 %v144, %v454
    %v456 = vpop.f32.mrb[0].mxu0
    %457 = vmatprep.mubr.bf16.mxu0 0
    %458 = vmatmul.mubr.bf16.gmra.mrb[0].mxu0 %v353
    %v459 = vpop.f32.mrb[0].mxu0
    %v460 = vadd.f32 %v149, %v459
    %v461 = vpop.f32.mrb[0].mxu0
    %v462 = vpop.f32.mrb[0].mxu0
    %v463 = vadd.f32 %v154, %v462
    %v464 = vpop.f32.mrb[0].mxu0
    %465 = vmatprep.mubr.bf16.mxu0 0
    %466 = vmatmul.mubr.bf16.gmra.mrb[0].mxu0 %v356
    %v467 = vpop.f32.mrb[0].mxu0
    %v468 = vadd.f32 %v159, %v467
    %v469 = vpop.f32.mrb[0].mxu0
    %v470 = vpop.f32.mrb[0].mxu0
    %v471 = vadd.f32 %v164, %v470
    %v472 = vpop.f32.mrb[0].mxu0
    %473 = vmatprep.mubr.bf16.mxu0 0
    %474 = vmatmul.mubr.bf16.gmra.mrb[0].mxu0 %v359
    %v475 = vpop.f32.mrb[0].mxu0
    %v476 = vadd.f32 %v169, %v475
    %v477 = vpop.f32.mrb[0].mxu0
    %v478 = vpop.f32.mrb[0].mxu0
    %v479 = vadd.f32 %v174, %v478
    %v480 = vpop.f32.mrb[0].mxu0
    %481 = vmatprep.mubr.bf16.mxu0 0
    %482 = vmatmul.mubr.bf16.gmra.mrb[0].mxu0 %v362
    %v483 = vpop.f32.mrb[0].mxu0
    %v484 = vadd.f32 %v179, %v483
    %v485 = vpop.f32.mrb[0].mxu0
    %v486 = vpop.f32.mrb[0].mxu0
    %v487 = vadd.f32 %v184, %v486
    %v488 = vpop.f32.mrb[0].mxu0
    %489 = vmatprep.mubr.bf16.mxu0 0
    %490 = vmatmul.mubr.bf16.gmra.mrb[0].mxu0 %v365
    %v491 = vpop.f32.mrb[0].mxu0
    %v492 = vadd.f32 %v189, %v491
    %v493 = vpop.f32.mrb[0].mxu0
    %v494 = vpop.f32.mrb[0].mxu0
    %v495 = vadd.f32 %v194, %v494
    %v496 = vpop.f32.mrb[0].mxu0
    %497 = vmatprep.mubr.bf16.mxu0 0
    %498 = vmatmul.mubr.bf16.gmra.mrb[0].mxu0 %v368
    %v499 = vpop.f32.mrb[0].mxu0
    %v500 = vadd.f32 %v199, %v499
    %v501 = vpop.f32.mrb[0].mxu0
    %v502 = vpop.f32.mrb[0].mxu0
    %v503 = vadd.f32 %v204, %v502
    %v504 = vpop.f32.mrb[0].mxu0
    %505 = vmatprep.mubr.bf16.mxu0 0
    %506 = vmatmul.mubr.bf16.gmra.mrb[0].mxu0 %v371
    %v507 = vpop.f32.mrb[0].mxu0
    %v508 = vadd.f32 %v209, %v507
    %v509 = vpop.f32.mrb[0].mxu0
    %v510 = vpop.f32.mrb[0].mxu0
    %v511 = vadd.f32 %v214, %v510
    %v512 = vpop.f32.mrb[0].mxu0
    %513 = vmatprep.mubr.bf16.mxu0 0
    %514 = vmatmul.mubr.bf16.gmra.mrb[0].mxu0 %v374
    %v515 = vpop.f32.mrb[0].mxu0
    %v516 = vadd.f32 %v219, %v515
    %v517 = vpop.f32.mrb[0].mxu0
    %v518 = vpop.f32.mrb[0].mxu0
    %v519 = vadd.f32 %v224, %v518
    %v520 = vpop.f32.mrb[0].mxu0
    %521 = vmatprep.mubr.bf16.mxu0 0
    %522 = vmatmul.mubr.bf16.gmra.mrb[0].mxu0 %v377
    %v523 = vpop.f32.mrb[0].mxu0
    %v524 = vadd.f32 %v229, %v523
    %v525 = vpop.f32.mrb[0].mxu0
    %v526 = vpop.f32.mrb[0].mxu0
    %v527 = vadd.f32 %v234, %v526
    %v528 = vpop.f32.mrb[0].mxu0
    %529 = vmatprep.mubr.bf16.mxu0 0
    %530 = vmatmul.mubr.bf16.gmra.mrb[0].mxu0 %v380
    %v531 = vpop.f32.mrb[0].mxu0
    %v532 = vadd.f32 %v239, %v531
    %v533 = vpop.f32.mrb[0].mxu0
    %v534 = vpop.f32.mrb[0].mxu0
    %v535 = vadd.f32 %v244, %v534
    %v536 = vpop.f32.mrb[0].mxu0
    %537 = vmatprep.mubr.bf16.mxu0 0
    %538 = vmatmul.mubr.bf16.gmra.mrb[0].mxu0 %v383
    %v539 = vpop.f32.mrb[0].mxu0
    %v540 = vadd.f32 %v249, %v539
    %v541 = vpop.f32.mrb[0].mxu0
    %v542 = vpop.f32.mrb[0].mxu0
    %v543 = vadd.f32 %v254, %v542
    %v544 = vpop.f32.mrb[0].mxu0
    %545 = vdwg.mxu0
    %v546 = vmul.f32 %v420, 0.5
    %v547 = vmul.f32 %v423, 0.5
    %v548 = vmul.f32 %v428, 0.5
    %v549 = vmul.f32 %v431, 0.5
    %v550 = vmul.f32 %v436, 0.5
    %v551 = vmul.f32 %v439, 0.5
    %v552 = vmul.f32 %v444, 0.5
    %v553 = vmul.f32 %v447, 0.5
    %v554 = vmul.f32 %v452, 0.5
    %v555 = vmul.f32 %v455, 0.5
    %v556 = vmul.f32 %v460, 0.5
    %v557 = vmul.f32 %v463, 0.5
    %v558 = vtanh.pop %v546
    %v559 = vtanh.pop %v547
    %v560 = vtanh.pop %v548
    %v561 = vtanh.pop %v549
    %v562 = vtanh.pop %v550
    %v563 = vtanh.pop %v551
    %v564 = vtanh.pop %v552
    %v565 = vtanh.pop %v553
    %v566 = vtanh.pop %v554
    %v567 = vtanh.pop %v555
    %v568 = vtanh.pop %v556
    %v569 = vtanh.pop %v557
    %v570 = vadd.f32 %v558, 1.0
    %v571 = vadd.f32 %v559, 1.0
    %v572 = vadd.f32 %v560, 1.0
    %v573 = vadd.f32 %v561, 1.0
    %v574 = vadd.f32 %v562, 1.0
    %v575 = vadd.f32 %v563, 1.0
    %v576 = vadd.f32 %v564, 1.0
    %v577 = vadd.f32 %v565, 1.0
    %v578 = vadd.f32 %v566, 1.0
    %v579 = vadd.f32 %v567, 1.0
    %v580 = vadd.f32 %v568, 1.0
    %v581 = vadd.f32 %v569, 1.0
    %v582 = vmul.f32 %v570, 0.5
    %v583 = vmul.f32 %v571, 0.5
    %v584 = vmul.f32 %v572, 0.5
    %v585 = vmul.f32 %v573, 0.5
    %v586 = vmul.f32 %v574, 0.5
    %v587 = vmul.f32 %v575, 0.5
    %v588 = vmul.f32 %v576, 0.5
    %v589 = vmul.f32 %v577, 0.5
    %v590 = vmul.f32 %v578, 0.5
    %v591 = vmul.f32 %v579, 0.5
    %v592 = vmul.f32 %v580, 0.5
    %v593 = vmul.f32 %v581, 0.5
    %v594 = vtanh.pop %v468
    %v595 = vtanh.pop %v471
    %v596 = vtanh.pop %v476
    %v597 = vtanh.pop %v479
    %v598 = vmul.f32 %v586, 0.0
    %v599 = vmul.f32 %v587, 0.0
    %v600 = vmul.f32 %v588, 0.0
    %v601 = vmul.f32 %v589, 0.0
    %v602 = vmul.f32 %v582, %v594
    %v603 = vmul.f32 %v583, %v595
    %v604 = vmul.f32 %v584, %v596
    %v605 = vmul.f32 %v585, %v597
    %v606 = vadd.f32 %v598, %v602
    %v607 = vadd.f32 %v599, %v603
    %v608 = vadd.f32 %v600, %v604
    %v609 = vadd.f32 %v601, %v605
    %v610 = vtanh.pop %v606
    %v611 = vtanh.pop %v607
    %v612 = vtanh.pop %v608
    %v613 = vtanh.pop %v609
    %v614 = vmul.f32 %v590, %v610
    %v615 = vmul.f32 %v591, %v611
    %v616 = vmul.f32 %v592, %v612
    %v617 = vmul.f32 %v593, %v613
    %v618 = vmul.f32 %v484, 0.5
    %v619 = vmul.f32 %v487, 0.5
    %v620 = vmul.f32 %v492, 0.5
    %v621 = vmul.f32 %v495, 0.5
    %v622 = vmul.f32 %v500, 0.5
    %v623 = vmul.f32 %v503, 0.5
    %v624 = vmul.f32 %v508, 0.5
    %v625 = vmul.f32 %v511, 0.5
    %v626 = vmul.f32 %v516, 0.5
    %v627 = vmul.f32 %v519, 0.5
    %v628 = vmul.f32 %v524, 0.5
    %v629 = vmul.f32 %v527, 0.5
    %v630 = vtanh.pop %v618
    %v631 = vtanh.pop %v619
    %v632 = vtanh.pop %v620
    %v633 = vtanh.pop %v621
    %v634 = vtanh.pop %v622
    %v635 = vtanh.pop %v623
    %v636 = vtanh.pop %v624
    %v637 = vtanh.pop %v625
    %v638 = vtanh.pop %v626
    %v639 = vtanh.pop %v627
    %v640 = vtanh.pop %v628
    %v641 = vtanh.pop %v629
    %v642 = vadd.f32 %v630, 1.0
    %v643 = vadd.f32 %v631, 1.0
    %v644 = vadd.f32 %v632, 1.0
    %v645 = vadd.f32 %v633, 1.0
    %v646 = vadd.f32 %v634, 1.0
    %v647 = vadd.f32 %v635, 1.0
    %v648 = vadd.f32 %v636, 1.0
    %v649 = vadd.f32 %v637, 1.0
    %v650 = vadd.f32 %v638, 1.0
    %v651 = vadd.f32 %v639, 1.0
    %v652 = vadd.f32 %v640, 1.0
    %v653 = vadd.f32 %v641, 1.0
    %v654 = vmul.f32 %v642, 0.5
    %v655 = vmul.f32 %v643, 0.5
    %v656 = vmul.f32 %v644, 0.5
    %v657 = vmul.f32 %v645, 0.5
    %v658 = vmul.f32 %v646, 0.5
    %v659 = vmul.f32 %v647, 0.5
    %v660 = vmul.f32 %v648, 0.5
    %v661 = vmul.f32 %v649, 0.5
    %v662 = vmul.f32 %v650, 0.5
    %v663 = vmul.f32 %v651, 0.5
    %v664 = vmul.f32 %v652, 0.5
    %v665 = vmul.f32 %v653, 0.5
    %v666 = vtanh.pop %v532
    %v667 = vtanh.pop %v535
    %v668 = vtanh.pop %v540
    %v669 = vtanh.pop %v543
    %v670 = vmul.f32 %v658, 0.0
    %v671 = vmul.f32 %v659, 0.0
    %v672 = vmul.f32 %v660, 0.0
    %v673 = vmul.f32 %v661, 0.0
    %v674 = vmul.f32 %v654, %v666
    %v675 = vmul.f32 %v655, %v667
    %v676 = vmul.f32 %v656, %v668
    %v677 = vmul.f32 %v657, %v669
    %v678 = vadd.f32 %v670, %v674
    %v679 = vadd.f32 %v671, %v675
    %v680 = vadd.f32 %v672, %v676
    %v681 = vadd.f32 %v673, %v677
    %v682 = vtanh.pop %v678
    %v683 = vtanh.pop %v679
    %v684 = vtanh.pop %v680
    %v685 = vtanh.pop %v681
    %v686 = vmul.f32 %v662, %v682
    %v687 = vmul.f32 %v663, %v683
    %v688 = vmul.f32 %v664, %v684
    %v689 = vmul.f32 %v665, %v685
    %v690 = vpack.c.bf16 %v615, %v614
    %v691 = vpack.c.bf16 %v617, %v616
    %692 = vst [vmem:[#allocation2] sm:$0xff] %v690
    %693 = vst [vmem:[#allocation2 + $0x8] sm:$0xff] %v691
    %v694 = vpack.c.bf16 %v687, %v686
    %v695 = vpack.c.bf16 %v689, %v688
    %s696 = scalar_lea.vmem [#allocation3], 240
    %697 = vst [vmem:[%s696] sm:$0xff] %v694
    %698 = vst [vmem:[%s696 + $0x8] sm:$0xff] %v695
    %s699 = scalar_lea.vmem %s0, 8
    %v700 = vld [vmem:[%s699] sm:$0xf]
    %v701 = vld [vmem:[%s699 + $0x4] sm:$0xf]
    %v704 = vunpack.c.l.b16 %v700
    %v705 = vunpack.c.l.b16 %v701
    %v706 = vpack.c.b16 %v705, %v704
    %708 = vmatprep.subr.bf16.mxu0 0
    %709 = vmatpush1.bf16.msra.mxu0 %v706
    %710 = vmatprep.subr.bf16.mxu0 0
    %711 = vmatpush1.bf16.msra.mxu0 %v690
    %712 = vmatprep.subr.bf16.mxu0 0
    %713 = vmatpush1.bf16.msra.mxu0 %v691
    %714 = vmatprep.subr.bf16.mxu0 0
    %715 = vmatpush1.bf16.msra.mxu0 %v694
    %716 = vmatprep.subr.bf16.mxu0 0
    %717 = vmatpush1.bf16.msra.mxu0 %v695
    %718 = vmatprep.subr.bf16.mxu0 0
    %719 = vmatpush1.bf16.msra.mxu0 0
    %720 = vmatprep.subr.bf16.mxu0 0
    %721 = vmatpush1.bf16.msra.mxu0 0
    %722 = vmatprep.subr.bf16.mxu0 0
    %723 = vmatpush1.bf16.msra.mxu0 0
    %724 = vmatprep.subr.bf16.mxu0 0
    %725 = vmatpush1.bf16.msra.mxu0 0
    %726 = vmatprep.subr.bf16.mxu0 0
    %727 = vmatpush1.bf16.msra.mxu0 0
    %728 = vmatprep.subr.bf16.mxu0 0
    %729 = vmatpush1.bf16.msra.mxu0 0
    %730 = vmatprep.subr.bf16.mxu0 0
    %731 = vmatpush1.bf16.msra.mxu0 0
    %732 = vmatprep.subr.bf16.mxu0 0
    %733 = vmatpush1.bf16.msra.mxu0 0
    %734 = vmatprep.subr.bf16.mxu0 0
    %735 = vmatpush1.bf16.msra.mxu0 0
    %736 = vmatprep.subr.bf16.mxu0 0
    %737 = vmatpush1.bf16.msra.mxu0 0
    %738 = vmatprep.subr.bf16.mxu0 0
    %739 = vmatpush1.bf16.msra.mxu0 0
    %740 = vmatprep.mubr.bf16.mxu0 0
    %741 = vmatmul.mubr.bf16.gmra.mrb[0].mxu0 %v338
    %v742 = vpop.f32.mrb[0].mxu0
    %v743 = vadd.f32 %v99, %v742
    %v744 = vpop.f32.mrb[0].mxu0
    %v745 = vpop.f32.mrb[0].mxu0
    %v746 = vadd.f32 %v104, %v745
    %v747 = vpop.f32.mrb[0].mxu0
    %748 = vmatprep.mubr.bf16.mxu0 0
    %749 = vmatmul.mubr.bf16.gmra.mrb[0].mxu0 %v341
    %v750 = vpop.f32.mrb[0].mxu0
    %v751 = vadd.f32 %v109, %v750
    %v752 = vpop.f32.mrb[0].mxu0
    %v753 = vpop.f32.mrb[0].mxu0
    %v754 = vadd.f32 %v114, %v753
    %v755 = vpop.f32.mrb[0].mxu0
    %756 = vmatprep.mubr.bf16.mxu0 0
    %757 = vmatmul.mubr.bf16.gmra.mrb[0].mxu0 %v344
    %v758 = vpop.f32.mrb[0].mxu0
    %v759 = vadd.f32 %v119, %v758
    %v760 = vpop.f32.mrb[0].mxu0
    %v761 = vpop.f32.mrb[0].mxu0
    %v762 = vadd.f32 %v124, %v761
    %v763 = vpop.f32.mrb[0].mxu0
    %764 = vmatprep.mubr.bf16.mxu0 0
    %765 = vmatmul.mubr.bf16.gmra.mrb[0].mxu0 %v347
    %v766 = vpop.f32.mrb[0].mxu0
    %v767 = vadd.f32 %v129, %v766
    %v768 = vpop.f32.mrb[0].mxu0
    %v769 = vpop.f32.mrb[0].mxu0
    %v770 = vadd.f32 %v134, %v769
    %v771 = vpop.f32.mrb[0].mxu0
    %772 = vmatprep.mubr.bf16.mxu0 0
    %773 = vmatmul.mubr.bf16.gmra.mrb[0].mxu0 %v350
    %v774 = vpop.f32.mrb[0].mxu0
    %v775 = vadd.f32 %v139, %v774
    %v776 = vpop.f32.mrb[0].mxu0
    %v777 = vpop.f32.mrb[0].mxu0
    %v778 = vadd.f32 %v144, %v777
    %v779 = vpop.f32.mrb[0].mxu0
    %780 = vmatprep.mubr.bf16.mxu0 0
    %781 = vmatmul.mubr.bf16.gmra.mrb[0].mxu0 %v353
    %v782 = vpop.f32.mrb[0].mxu0
    %v783 = vadd.f32 %v149, %v782
    %v784 = vpop.f32.mrb[0].mxu0
    %v785 = vpop.f32.mrb[0].mxu0
    %v786 = vadd.f32 %v154, %v785
    %v787 = vpop.f32.mrb[0].mxu0
    %788 = vmatprep.mubr.bf16.mxu0 0
    %789 = vmatmul.mubr.bf16.gmra.mrb[0].mxu0 %v356
    %v790 = vpop.f32.mrb[0].mxu0
    %v791 = vadd.f32 %v159, %v790
    %v792 = vpop.f32.mrb[0].mxu0
    %v793 = vpop.f32.mrb[0].mxu0
    %v794 = vadd.f32 %v164, %v793
    %v795 = vpop.f32.mrb[0].mxu0
    %796 = vmatprep.mubr.bf16.mxu0 0
    %797 = vmatmul.mubr.bf16.gmra.mrb[0].mxu0 %v359
    %v798 = vpop.f32.mrb[0].mxu0
    %v799 = vadd.f32 %v169, %v798
    %v800 = vpop.f32.mrb[0].mxu0
    %v801 = vpop.f32.mrb[0].mxu0
    %v802 = vadd.f32 %v174, %v801
    %v803 = vpop.f32.mrb[0].mxu0
    %804 = vmatprep.mubr.bf16.mxu0 0
    %805 = vmatmul.mubr.bf16.gmra.mrb[0].mxu0 %v362
    %v806 = vpop.f32.mrb[0].mxu0
    %v807 = vadd.f32 %v179, %v806
    %v808 = vpop.f32.mrb[0].mxu0
    %v809 = vpop.f32.mrb[0].mxu0
    %v810 = vadd.f32 %v184, %v809
    %v811 = vpop.f32.mrb[0].mxu0
    %812 = vmatprep.mubr.bf16.mxu0 0
    %813 = vmatmul.mubr.bf16.gmra.mrb[0].mxu0 %v365
    %v814 = vpop.f32.mrb[0].mxu0
    %v815 = vadd.f32 %v189, %v814
    %v816 = vpop.f32.mrb[0].mxu0
    %v817 = vpop.f32.mrb[0].mxu0
    %v818 = vadd.f32 %v194, %v817
    %v819 = vpop.f32.mrb[0].mxu0
    %820 = vmatprep.mubr.bf16.mxu0 0
    %821 = vmatmul.mubr.bf16.gmra.mrb[0].mxu0 %v368
    %v822 = vpop.f32.mrb[0].mxu0
    %v823 = vadd.f32 %v199, %v822
    %v824 = vpop.f32.mrb[0].mxu0
    %v825 = vpop.f32.mrb[0].mxu0
    %v826 = vadd.f32 %v204, %v825
    %v827 = vpop.f32.mrb[0].mxu0
    %828 = vmatprep.mubr.bf16.mxu0 0
    %829 = vmatmul.mubr.bf16.gmra.mrb[0].mxu0 %v371
    %v830 = vpop.f32.mrb[0].mxu0
    %v831 = vadd.f32 %v209, %v830
    %v832 = vpop.f32.mrb[0].mxu0
    %v833 = vpop.f32.mrb[0].mxu0
    %v834 = vadd.f32 %v214, %v833
    %v835 = vpop.f32.mrb[0].mxu0
    %836 = vmatprep.mubr.bf16.mxu0 0
    %837 = vmatmul.mubr.bf16.gmra.mrb[0].mxu0 %v374
    %v838 = vpop.f32.mrb[0].mxu0
    %v839 = vadd.f32 %v219, %v838
    %v840 = vpop.f32.mrb[0].mxu0
    %v841 = vpop.f32.mrb[0].mxu0
    %v842 = vadd.f32 %v224, %v841
    %v843 = vpop.f32.mrb[0].mxu0
    %844 = vmatprep.mubr.bf16.mxu0 0
    %845 = vmatmul.mubr.bf16.gmra.mrb[0].mxu0 %v377
    %v846 = vpop.f32.mrb[0].mxu0
    %v847 = vadd.f32 %v229, %v846
    %v848 = vpop.f32.mrb[0].mxu0
    %v849 = vpop.f32.mrb[0].mxu0
    %v850 = vadd.f32 %v234, %v849
    %v851 = vpop.f32.mrb[0].mxu0
    %852 = vmatprep.mubr.bf16.mxu0 0
    %853 = vmatmul.mubr.bf16.gmra.mrb[0].mxu0 %v380
    %v854 = vpop.f32.mrb[0].mxu0
    %v855 = vadd.f32 %v239, %v854
    %v856 = vpop.f32.mrb[0].mxu0
    %v857 = vpop.f32.mrb[0].mxu0
    %v858 = vadd.f32 %v244, %v857
    %v859 = vpop.f32.mrb[0].mxu0
    %860 = vmatprep.mubr.bf16.mxu0 0
    %861 = vmatmul.mubr.bf16.gmra.mrb[0].mxu0 %v383
    %v862 = vpop.f32.mrb[0].mxu0
    %v863 = vadd.f32 %v249, %v862
    %v864 = vpop.f32.mrb[0].mxu0
    %v865 = vpop.f32.mrb[0].mxu0
    %v866 = vadd.f32 %v254, %v865
    %v867 = vpop.f32.mrb[0].mxu0
    %868 = vdwg.mxu0
    %v869 = vmul.f32 %v743, 0.5
    %v870 = vmul.f32 %v746, 0.5
    %v871 = vmul.f32 %v751, 0.5
    %v872 = vmul.f32 %v754, 0.5
    %v873 = vmul.f32 %v759, 0.5
    %v874 = vmul.f32 %v762, 0.5
    %v875 = vmul.f32 %v767, 0.5
    %v876 = vmul.f32 %v770, 0.5
    %v877 = vmul.f32 %v775, 0.5
    %v878 = vmul.f32 %v778, 0.5
    %v879 = vmul.f32 %v783, 0.5
    %v880 = vmul.f32 %v786, 0.5
    %v881 = vtanh.pop %v869
    %v882 = vtanh.pop %v870
    %v883 = vtanh.pop %v871
    %v884 = vtanh.pop %v872
    %v885 = vtanh.pop %v873
    %v886 = vtanh.pop %v874
    %v887 = vtanh.pop %v875
    %v888 = vtanh.pop %v876
    %v889 = vtanh.pop %v877
    %v890 = vtanh.pop %v878
    %v891 = vtanh.pop %v879
    %v892 = vtanh.pop %v880
    %v893 = vadd.f32 %v881, 1.0
    %v894 = vadd.f32 %v882, 1.0
    %v895 = vadd.f32 %v883, 1.0
    %v896 = vadd.f32 %v884, 1.0
    %v897 = vadd.f32 %v885, 1.0
    %v898 = vadd.f32 %v886, 1.0
    %v899 = vadd.f32 %v887, 1.0
    %v900 = vadd.f32 %v888, 1.0
    %v901 = vadd.f32 %v889, 1.0
    %v902 = vadd.f32 %v890, 1.0
    %v903 = vadd.f32 %v891, 1.0
    %v904 = vadd.f32 %v892, 1.0
    %v905 = vmul.f32 %v893, 0.5
    %v906 = vmul.f32 %v894, 0.5
    %v907 = vmul.f32 %v895, 0.5
    %v908 = vmul.f32 %v896, 0.5
    %v909 = vmul.f32 %v897, 0.5
    %v910 = vmul.f32 %v898, 0.5
    %v911 = vmul.f32 %v899, 0.5
    %v912 = vmul.f32 %v900, 0.5
    %v913 = vmul.f32 %v901, 0.5
    %v914 = vmul.f32 %v902, 0.5
    %v915 = vmul.f32 %v903, 0.5
    %v916 = vmul.f32 %v904, 0.5
    %v917 = vtanh.pop %v791
    %v918 = vtanh.pop %v794
    %v919 = vtanh.pop %v799
    %v920 = vtanh.pop %v802
    %v921 = vmul.f32 %v909, %v606
    %v922 = vmul.f32 %v910, %v607
    %v923 = vmul.f32 %v911, %v608
    %v924 = vmul.f32 %v912, %v609
    %v925 = vmul.f32 %v905, %v917
    %v926 = vmul.f32 %v906, %v918
    %v927 = vmul.f32 %v907, %v919
    %v928 = vmul.f32 %v908, %v920
    %v929 = vadd.f32 %v921, %v925
    %v930 = vadd.f32 %v922, %v926
    %v931 = vadd.f32 %v923, %v927
    %v932 = vadd.f32 %v924, %v928
    %v933 = vtanh.pop %v929
    %v934 = vtanh.pop %v930
    %v935 = vtanh.pop %v931
    %v936 = vtanh.pop %v932
    %v937 = vmul.f32 %v913, %v933
    %v938 = vmul.f32 %v914, %v934
    %v939 = vmul.f32 %v915, %v935
    %v940 = vmul.f32 %v916, %v936
    %v941 = vmul.f32 %v807, 0.5
    %v942 = vmul.f32 %v810, 0.5
    %v943 = vmul.f32 %v815, 0.5
    %v944 = vmul.f32 %v818, 0.5
    %v945 = vmul.f32 %v823, 0.5
    %v946 = vmul.f32 %v826, 0.5
    %v947 = vmul.f32 %v831, 0.5
    %v948 = vmul.f32 %v834, 0.5
    %v949 = vmul.f32 %v839, 0.5
    %v950 = vmul.f32 %v842, 0.5
    %v951 = vmul.f32 %v847, 0.5
    %v952 = vmul.f32 %v850, 0.5
    %v953 = vtanh.pop %v941
    %v954 = vtanh.pop %v942
    %v955 = vtanh.pop %v943
    %v956 = vtanh.pop %v944
    %v957 = vtanh.pop %v945
    %v958 = vtanh.pop %v946
    %v959 = vtanh.pop %v947
    %v960 = vtanh.pop %v948
    %v961 = vtanh.pop %v949
    %v962 = vtanh.pop %v950
    %v963 = vtanh.pop %v951
    %v964 = vtanh.pop %v952
    %v965 = vadd.f32 %v953, 1.0
    %v966 = vadd.f32 %v954, 1.0
    %v967 = vadd.f32 %v955, 1.0
    %v968 = vadd.f32 %v956, 1.0
    %v969 = vadd.f32 %v957, 1.0
    %v970 = vadd.f32 %v958, 1.0
    %v971 = vadd.f32 %v959, 1.0
    %v972 = vadd.f32 %v960, 1.0
    %v973 = vadd.f32 %v961, 1.0
    %v974 = vadd.f32 %v962, 1.0
    %v975 = vadd.f32 %v963, 1.0
    %v976 = vadd.f32 %v964, 1.0
    %v977 = vmul.f32 %v965, 0.5
    %v978 = vmul.f32 %v966, 0.5
    %v979 = vmul.f32 %v967, 0.5
    %v980 = vmul.f32 %v968, 0.5
    %v981 = vmul.f32 %v969, 0.5
    %v982 = vmul.f32 %v970, 0.5
    %v983 = vmul.f32 %v971, 0.5
    %v984 = vmul.f32 %v972, 0.5
    %v985 = vmul.f32 %v973, 0.5
    %v986 = vmul.f32 %v974, 0.5
    %v987 = vmul.f32 %v975, 0.5
    %v988 = vmul.f32 %v976, 0.5
    %v989 = vtanh.pop %v855
    %v990 = vtanh.pop %v858
    %v991 = vtanh.pop %v863
    %v992 = vtanh.pop %v866
    %v993 = vmul.f32 %v981, %v678
    %v994 = vmul.f32 %v982, %v679
    %v995 = vmul.f32 %v983, %v680
    %v996 = vmul.f32 %v984, %v681
    %v997 = vmul.f32 %v977, %v989
    %v998 = vmul.f32 %v978, %v990
    %v999 = vmul.f32 %v979, %v991
    %v1000 = vmul.f32 %v980, %v992
    %v1001 = vadd.f32 %v993, %v997
    %v1002 = vadd.f32 %v994, %v998
    %v1003 = vadd.f32 %v995, %v999
    %v1004 = vadd.f32 %v996, %v1000
    %v1005 = vtanh.pop %v1001
    %v1006 = vtanh.pop %v1002
    %v1007 = vtanh.pop %v1003
    %v1008 = vtanh.pop %v1004
    %v1009 = vmul.f32 %v985, %v1005
    %v1010 = vmul.f32 %v986, %v1006
    %v1011 = vmul.f32 %v987, %v1007
    %v1012 = vmul.f32 %v988, %v1008
    %v1013 = vpack.c.bf16 %v938, %v937
    %v1014 = vpack.c.bf16 %v940, %v939
    %s1015 = scalar_lea.vmem [#allocation2], 16
    %1016 = vst [vmem:[%s1015] sm:$0xff] %v1013
    %1017 = vst [vmem:[%s1015 + $0x8] sm:$0xff] %v1014
    %v1018 = vpack.c.bf16 %v1010, %v1009
    %v1019 = vpack.c.bf16 %v1012, %v1011
    %s1020 = scalar_lea.vmem [#allocation3], 224
    %1021 = vst [vmem:[%s1020] sm:$0xff] %v1018
    %1022 = vst [vmem:[%s1020 + $0x8] sm:$0xff] %v1019
    %s1023 = scalar_lea.vmem %s0, 16
    %v1024 = vld [vmem:[%s1023] sm:$0xf]
    %v1025 = vld [vmem:[%s1023 + $0x4] sm:$0xf]
    %v1028 = vunpack.c.l.b16 %v1024
    %v1029 = vunpack.c.l.b16 %v1025
    %v1030 = vpack.c.b16 %v1029, %v1028
    %1032 = vmatprep.subr.bf16.mxu0 0
    %1033 = vmatpush1.bf16.msra.mxu0 %v1030
    %1034 = vmatprep.subr.bf16.mxu0 0
    %1035 = vmatpush1.bf16.msra.mxu0 %v1013
    %1036 = vmatprep.subr.bf16.mxu0 0
    %1037 = vmatpush1.bf16.msra.mxu0 %v1014
    %1038 = vmatprep.subr.bf16.mxu0 0
    %1039 = vmatpush1.bf16.msra.mxu0 %v1018
    %1040 = vmatprep.subr.bf16.mxu0 0
    %1041 = vmatpush1.bf16.msra.mxu0 %v1019
    %1042 = vmatprep.subr.bf16.mxu0 0
    %1043 = vmatpush1.bf16.msra.mxu0 0
    %1044 = vmatprep.subr.bf16.mxu0 0
    %1045 = vmatpush1.bf16.msra.mxu0 0
    %1046 = vmatprep.subr.bf16.mxu0 0
    %1047 = vmatpush1.bf16.msra.mxu0 0
    %1048 = vmatprep.subr.bf16.mxu0 0
    %1049 = vmatpush1.bf16.msra.mxu0 0
    %1050 = vmatprep.subr.bf16.mxu0 0
    %1051 = vmatpush1.bf16.msra.mxu0 0
    %1052 = vmatprep.subr.bf16.mxu0 0
    %1053 = vmatpush1.bf16.msra.mxu0 0
    %1054 = vmatprep.subr.bf16.mxu0 0
    %1055 = vmatpush1.bf16.msra.mxu0 0
    %1056 = vmatprep.subr.bf16.mxu0 0
    %1057 = vmatpush1.bf16.msra.mxu0 0
    %1058 = vmatprep.subr.bf16.mxu0 0
    %1059 = vmatpush1.bf16.msra.mxu0 0
    %1060 = vmatprep.subr.bf16.mxu0 0
    %1061 = vmatpush1.bf16.msra.mxu0 0
    %1062 = vmatprep.subr.bf16.mxu0 0
    %1063 = vmatpush1.bf16.msra.mxu0 0
    %1064 = vmatprep.mubr.bf16.mxu0 0
    %1065 = vmatmul.mubr.bf16.gmra.mrb[0].mxu0 %v338
    %v1066 = vpop.f32.mrb[0].mxu0
    %v1067 = vadd.f32 %v99, %v1066
    %v1068 = vpop.f32.mrb[0].mxu0
    %v1069 = vpop.f32.mrb[0].mxu0
    %v1070 = vadd.f32 %v104, %v1069
    %v1071 = vpop.f32.mrb[0].mxu0
    %1072 = vmatprep.mubr.bf16.mxu0 0
    %1073 = vmatmul.mubr.bf16.gmra.mrb[0].mxu0 %v341
    %v1074 = vpop.f32.mrb[0].mxu0
    %v1075 = vadd.f32 %v109, %v1074
    %v1076 = vpop.f32.mrb[0].mxu0
    %v1077 = vpop.f32.mrb[0].mxu0
    %v1078 = vadd.f32 %v114, %v1077
    %v1079 = vpop.f32.mrb[0].mxu0
    %1080 = vmatprep.mubr.bf16.mxu0 0
    %1081 = vmatmul.mubr.bf16.gmra.mrb[0].mxu0 %v344
    %v1082 = vpop.f32.mrb[0].mxu0
    %v1083 = vadd.f32 %v119, %v1082
    %v1084 = vpop.f32.mrb[0].mxu0
    %v1085 = vpop.f32.mrb[0].mxu0
    %v1086 = vadd.f32 %v124, %v1085
    %v1087 = vpop.f32.mrb[0].mxu0
    %1088 = vmatprep.mubr.bf16.mxu0 0
    %1089 = vmatmul.mubr.bf16.gmra.mrb[0].mxu0 %v347
    %v1090 = vpop.f32.mrb[0].mxu0
    %v1091 = vadd.f32 %v129, %v1090
    %v1092 = vpop.f32.mrb[0].mxu0
    %v1093 = vpop.f32.mrb[0].mxu0
    %v1094 = vadd.f32 %v134, %v1093
    %v1095 = vpop.f32.mrb[0].mxu0
    %1096 = vmatprep.mubr.bf16.mxu0 0
    %1097 = vmatmul.mubr.bf16.gmra.mrb[0].mxu0 %v350
    %v1098 = vpop.f32.mrb[0].mxu0
    %v1099 = vadd.f32 %v139, %v1098
    %v1100 = vpop.f32.mrb[0].mxu0
    %v1101 = vpop.f32.mrb[0].mxu0
    %v1102 = vadd.f32 %v144, %v1101
    %v1103 = vpop.f32.mrb[0].mxu0
    %1104 = vmatprep.mubr.bf16.mxu0 0
    %1105 = vmatmul.mubr.bf16.gmra.mrb[0].mxu0 %v353
    %v1106 = vpop.f32.mrb[0].mxu0
    %v1107 = vadd.f32 %v149, %v1106
    %v1108 = vpop.f32.mrb[0].mxu0
    %v1109 = vpop.f32.mrb[0].mxu0
    %v1110 = vadd.f32 %v154, %v1109
    %v1111 = vpop.f32.mrb[0].mxu0
    %1112 = vmatprep.mubr.bf16.mxu0 0
    %1113 = vmatmul.mubr.bf16.gmra.mrb[0].mxu0 %v356
    %v1114 = vpop.f32.mrb[0].mxu0
    %v1115 = vadd.f32 %v159, %v1114
    %v1116 = vpop.f32.mrb[0].mxu0
    %v1117 = vpop.f32.mrb[0].mxu0
    %v1118 = vadd.f32 %v164, %v1117
    %v1119 = vpop.f32.mrb[0].mxu0
    %1120 = vmatprep.mubr.bf16.mxu0 0
    %1121 = vmatmul.mubr.bf16.gmra.mrb[0].mxu0 %v359
    %v1122 = vpop.f32.mrb[0].mxu0
    %v1123 = vadd.f32 %v169, %v1122
    %v1124 = vpop.f32.mrb[0].mxu0
    %v1125 = vpop.f32.mrb[0].mxu0
    %v1126 = vadd.f32 %v174, %v1125
    %v1127 = vpop.f32.mrb[0].mxu0
    %1128 = vmatprep.mubr.bf16.mxu0 0
    %1129 = vmatmul.mubr.bf16.gmra.mrb[0].mxu0 %v362
    %v1130 = vpop.f32.mrb[0].mxu0
    %v1131 = vadd.f32 %v179, %v1130
    %v1132 = vpop.f32.mrb[0].mxu0
    %v1133 = vpop.f32.mrb[0].mxu0
    %v1134 = vadd.f32 %v184, %v1133
    %v1135 = vpop.f32.mrb[0].mxu0
    %1136 = vmatprep.mubr.bf16.mxu0 0
    %1137 = vmatmul.mubr.bf16.gmra.mrb[0].mxu0 %v365
    %v1138 = vpop.f32.mrb[0].mxu0
    %v1139 = vadd.f32 %v189, %v1138
    %v1140 = vpop.f32.mrb[0].mxu0
    %v1141 = vpop.f32.mrb[0].mxu0
    %v1142 = vadd.f32 %v194, %v1141
    %v1143 = vpop.f32.mrb[0].mxu0
    %1144 = vmatprep.mubr.bf16.mxu0 0
    %1145 = vmatmul.mubr.bf16.gmra.mrb[0].mxu0 %v368
    %v1146 = vpop.f32.mrb[0].mxu0
    %v1147 = vadd.f32 %v199, %v1146
    %v1148 = vpop.f32.mrb[0].mxu0
    %v1149 = vpop.f32.mrb[0].mxu0
    %v1150 = vadd.f32 %v204, %v1149
    %v1151 = vpop.f32.mrb[0].mxu0
    %1152 = vmatprep.mubr.bf16.mxu0 0
    %1153 = vmatmul.mubr.bf16.gmra.mrb[0].mxu0 %v371
    %v1154 = vpop.f32.mrb[0].mxu0
    %v1155 = vadd.f32 %v209, %v1154
    %v1156 = vpop.f32.mrb[0].mxu0
    %v1157 = vpop.f32.mrb[0].mxu0
    %v1158 = vadd.f32 %v214, %v1157
    %v1159 = vpop.f32.mrb[0].mxu0
    %1160 = vmatprep.mubr.bf16.mxu0 0
    %1161 = vmatmul.mubr.bf16.gmra.mrb[0].mxu0 %v374
    %v1162 = vpop.f32.mrb[0].mxu0
    %v1163 = vadd.f32 %v219, %v1162
    %v1164 = vpop.f32.mrb[0].mxu0
    %v1165 = vpop.f32.mrb[0].mxu0
    %v1166 = vadd.f32 %v224, %v1165
    %v1167 = vpop.f32.mrb[0].mxu0
    %1168 = vmatprep.mubr.bf16.mxu0 0
    %1169 = vmatmul.mubr.bf16.gmra.mrb[0].mxu0 %v377
    %v1170 = vpop.f32.mrb[0].mxu0
    %v1171 = vadd.f32 %v229, %v1170
    %v1172 = vpop.f32.mrb[0].mxu0
    %v1173 = vpop.f32.mrb[0].mxu0
    %v1174 = vadd.f32 %v234, %v1173
    %v1175 = vpop.f32.mrb[0].mxu0
    %1176 = vmatprep.mubr.bf16.mxu0 0
    %1177 = vmatmul.mubr.bf16.gmra.mrb[0].mxu0 %v380
    %v1178 = vpop.f32.mrb[0].mxu0
    %v1179 = vadd.f32 %v239, %v1178
    %v1180 = vpop.f32.mrb[0].mxu0
    %v1181 = vpop.f32.mrb[0].mxu0
    %v1182 = vadd.f32 %v244, %v1181
    %v1183 = vpop.f32.mrb[0].mxu0
    %1184 = vmatprep.mubr.bf16.mxu0 0
    %1185 = vmatmul.mubr.bf16.gmra.mrb[0].mxu0 %v383
    %v1186 = vpop.f32.mrb[0].mxu0
    %v1187 = vadd.f32 %v249, %v1186
    %v1188 = vpop.f32.mrb[0].mxu0
    %v1189 = vpop.f32.mrb[0].mxu0
    %v1190 = vadd.f32 %v254, %v1189
    %v1191 = vpop.f32.mrb[0].mxu0
    %1192 = vdwg.mxu0
    %v1193 = vmul.f32 %v1067, 0.5
    %v1194 = vmul.f32 %v1070, 0.5
    %v1195 = vmul.f32 %v1075, 0.5
    %v1196 = vmul.f32 %v1078, 0.5
    %v1197 = vmul.f32 %v1083, 0.5
    %v1198 = vmul.f32 %v1086, 0.5
    %v1199 = vmul.f32 %v1091, 0.5
    %v1200 = vmul.f32 %v1094, 0.5
    %v1201 = vmul.f32 %v1099, 0.5
    %v1202 = vmul.f32 %v1102, 0.5
    %v1203 = vmul.f32 %v1107, 0.5
    %v1204 = vmul.f32 %v1110, 0.5
    %v1205 = vtanh.pop %v1193
    %v1206 = vtanh.pop %v1194
    %v1207 = vtanh.pop %v1195
    %v1208 = vtanh.pop %v1196
    %v1209 = vtanh.pop %v1197
    %v1210 = vtanh.pop %v1198
    %v1211 = vtanh.pop %v1199
    %v1212 = vtanh.pop %v1200
    %v1213 = vtanh.pop %v1201
    %v1214 = vtanh.pop %v1202
    %v1215 = vtanh.pop %v1203
    %v1216 = vtanh.pop %v1204
    %v1217 = vadd.f32 %v1205, 1.0
    %v1218 = vadd.f32 %v1206, 1.0
    %v1219 = vadd.f32 %v1207, 1.0
    %v1220 = vadd.f32 %v1208, 1.0
    %v1221 = vadd.f32 %v1209, 1.0
    %v1222 = vadd.f32 %v1210, 1.0
    %v1223 = vadd.f32 %v1211, 1.0
    %v1224 = vadd.f32 %v1212, 1.0
    %v1225 = vadd.f32 %v1213, 1.0
    %v1226 = vadd.f32 %v1214, 1.0
    %v1227 = vadd.f32 %v1215, 1.0
    %v1228 = vadd.f32 %v1216, 1.0
    %v1229 = vmul.f32 %v1217, 0.5
    %v1230 = vmul.f32 %v1218, 0.5
    %v1231 = vmul.f32 %v1219, 0.5
    %v1232 = vmul.f32 %v1220, 0.5
    %v1233 = vmul.f32 %v1221, 0.5
    %v1234 = vmul.f32 %v1222, 0.5
    %v1235 = vmul.f32 %v1223, 0.5
    %v1236 = vmul.f32 %v1224, 0.5
    %v1237 = vmul.f32 %v1225, 0.5
    %v1238 = vmul.f32 %v1226, 0.5
    %v1239 = vmul.f32 %v1227, 0.5
    %v1240 = vmul.f32 %v1228, 0.5
    %v1241 = vtanh.pop %v1115
    %v1242 = vtanh.pop %v1118
    %v1243 = vtanh.pop %v1123
    %v1244 = vtanh.pop %v1126
    %v1245 = vmul.f32 %v1233, %v929
    %v1246 = vmul.f32 %v1234, %v930
    %v1247 = vmul.f32 %v1235, %v931
    %v1248 = vmul.f32 %v1236, %v932
    %v1249 = vmul.f32 %v1229, %v1241
    %v1250 = vmul.f32 %v1230, %v1242
    %v1251 = vmul.f32 %v1231, %v1243
    %v1252 = vmul.f32 %v1232, %v1244
    %v1253 = vadd.f32 %v1245, %v1249
    %v1254 = vadd.f32 %v1246, %v1250
    %v1255 = vadd.f32 %v1247, %v1251
    %v1256 = vadd.f32 %v1248, %v1252
    %v1257 = vtanh.pop %v1253
    %v1258 = vtanh.pop %v1254
    %v1259 = vtanh.pop %v1255
    %v1260 = vtanh.pop %v1256
    %v1261 = vmul.f32 %v1237, %v1257
    %v1262 = vmul.f32 %v1238, %v1258
    %v1263 = vmul.f32 %v1239, %v1259
    %v1264 = vmul.f32 %v1240, %v1260
    %v1265 = vmul.f32 %v1131, 0.5
    %v1266 = vmul.f32 %v1134, 0.5
    %v1267 = vmul.f32 %v1139, 0.5
    %v1268 = vmul.f32 %v1142, 0.5
    %v1269 = vmul.f32 %v1147, 0.5
    %v1270 = vmul.f32 %v1150, 0.5
    %v1271 = vmul.f32 %v1155, 0.5
    %v1272 = vmul.f32 %v1158, 0.5
    %v1273 = vmul.f32 %v1163, 0.5
    %v1274 = vmul.f32 %v1166, 0.5
    %v1275 = vmul.f32 %v1171, 0.5
    %v1276 = vmul.f32 %v1174, 0.5
    %v1277 = vtanh.pop %v1265
    %v1278 = vtanh.pop %v1266
    %v1279 = vtanh.pop %v1267
    %v1280 = vtanh.pop %v1268
    %v1281 = vtanh.pop %v1269
    %v1282 = vtanh.pop %v1270
    %v1283 = vtanh.pop %v1271
    %v1284 = vtanh.pop %v1272
    %v1285 = vtanh.pop %v1273
    %v1286 = vtanh.pop %v1274
    %v1287 = vtanh.pop %v1275
    %v1288 = vtanh.pop %v1276
    %v1289 = vadd.f32 %v1277, 1.0
    %v1290 = vadd.f32 %v1278, 1.0
    %v1291 = vadd.f32 %v1279, 1.0
    %v1292 = vadd.f32 %v1280, 1.0
    %v1293 = vadd.f32 %v1281, 1.0
    %v1294 = vadd.f32 %v1282, 1.0
    %v1295 = vadd.f32 %v1283, 1.0
    %v1296 = vadd.f32 %v1284, 1.0
    %v1297 = vadd.f32 %v1285, 1.0
    %v1298 = vadd.f32 %v1286, 1.0
    %v1299 = vadd.f32 %v1287, 1.0
    %v1300 = vadd.f32 %v1288, 1.0
    %v1301 = vmul.f32 %v1289, 0.5
    %v1302 = vmul.f32 %v1290, 0.5
    %v1303 = vmul.f32 %v1291, 0.5
    %v1304 = vmul.f32 %v1292, 0.5
    %v1305 = vmul.f32 %v1293, 0.5
    %v1306 = vmul.f32 %v1294, 0.5
    %v1307 = vmul.f32 %v1295, 0.5
    %v1308 = vmul.f32 %v1296, 0.5
    %v1309 = vmul.f32 %v1297, 0.5
    %v1310 = vmul.f32 %v1298, 0.5
    %v1311 = vmul.f32 %v1299, 0.5
    %v1312 = vmul.f32 %v1300, 0.5
    %v1313 = vtanh.pop %v1179
    %v1314 = vtanh.pop %v1182
    %v1315 = vtanh.pop %v1187
    %v1316 = vtanh.pop %v1190
    %v1317 = vmul.f32 %v1305, %v1001
    %v1318 = vmul.f32 %v1306, %v1002
    %v1319 = vmul.f32 %v1307, %v1003
    %v1320 = vmul.f32 %v1308, %v1004
    %v1321 = vmul.f32 %v1301, %v1313
    %v1322 = vmul.f32 %v1302, %v1314
    %v1323 = vmul.f32 %v1303, %v1315
    %v1324 = vmul.f32 %v1304, %v1316
    %v1325 = vadd.f32 %v1317, %v1321
    %v1326 = vadd.f32 %v1318, %v1322
    %v1327 = vadd.f32 %v1319, %v1323
    %v1328 = vadd.f32 %v1320, %v1324
    %v1329 = vtanh.pop %v1325
    %v1330 = vtanh.pop %v1326
    %v1331 = vtanh.pop %v1327
    %v1332 = vtanh.pop %v1328
    %v1333 = vmul.f32 %v1309, %v1329
    %v1334 = vmul.f32 %v1310, %v1330
    %v1335 = vmul.f32 %v1311, %v1331
    %v1336 = vmul.f32 %v1312, %v1332
    %v1337 = vpack.c.bf16 %v1262, %v1261
    %v1338 = vpack.c.bf16 %v1264, %v1263
    %s1339 = scalar_lea.vmem [#allocation2], 32
    %1340 = vst [vmem:[%s1339] sm:$0xff] %v1337
    %1341 = vst [vmem:[%s1339 + $0x8] sm:$0xff] %v1338
    %v1342 = vpack.c.bf16 %v1334, %v1333
    %v1343 = vpack.c.bf16 %v1336, %v1335
    %s1344 = scalar_lea.vmem [#allocation3], 208
    %1345 = vst [vmem:[%s1344] sm:$0xff] %v1342
    %1346 = vst [vmem:[%s1344 + $0x8] sm:$0xff] %v1343
    %s1347 = scalar_lea.vmem %s0, 24
    %v1348 = vld [vmem:[%s1347] sm:$0xf]
    %v1349 = vld [vmem:[%s1347 + $0x4] sm:$0xf]
    %v1352 = vunpack.c.l.b16 %v1348
    %v1353 = vunpack.c.l.b16 %v1349
    %v1354 = vpack.c.b16 %v1353, %v1352
    %1356 = vmatprep.subr.bf16.mxu0 0
    %1357 = vmatpush1.bf16.msra.mxu0 %v1354
    %1358 = vmatprep.subr.bf16.mxu0 0
    %1359 = vmatpush1.bf16.msra.mxu0 %v1337
    %1360 = vmatprep.subr.bf16.mxu0 0
    %1361 = vmatpush1.bf16.msra.mxu0 %v1338
    %1362 = vmatprep.subr.bf16.mxu0 0
    %1363 = vmatpush1.bf16.msra.mxu0 %v1342
    %1364 = vmatprep.subr.bf16.mxu0 0
    %1365 = vmatpush1.bf16.msra.mxu0 %v1343
    %1366 = vmatprep.subr.bf16.mxu0 0
    %1367 = vmatpush1.bf16.msra.mxu0 0
    %1368 = vmatprep.subr.bf16.mxu0 0
    %1369 = vmatpush1.bf16.msra.mxu0 0
    %1370 = vmatprep.subr.bf16.mxu0 0
    %1371 = vmatpush1.bf16.msra.mxu0 0
    %1372 = vmatprep.subr.bf16.mxu0 0
    %1373 = vmatpush1.bf16.msra.mxu0 0
    %1374 = vmatprep.subr.bf16.mxu0 0
    %1375 = vmatpush1.bf16.msra.mxu0 0
    %1376 = vmatprep.subr.bf16.mxu0 0
    %1377 = vmatpush1.bf16.msra.mxu0 0
    %1378 = vmatprep.subr.bf16.mxu0 0
    %1379 = vmatpush1.bf16.msra.mxu0 0
    %1380 = vmatprep.subr.bf16.mxu0 0
    %1381 = vmatpush1.bf16.msra.mxu0 0
    %1382 = vmatprep.subr.bf16.mxu0 0
    %1383 = vmatpush1.bf16.msra.mxu0 0
    %1384 = vmatprep.subr.bf16.mxu0 0
    %1385 = vmatpush1.bf16.msra.mxu0 0
    %1386 = vmatprep.subr.bf16.mxu0 0
    %1387 = vmatpush1.bf16.msra.mxu0 0
    %1388 = vmatprep.mubr.bf16.mxu0 0
    %1389 = vmatmul.mubr.bf16.gmra.mrb[0].mxu0 %v338
    %v1390 = vpop.f32.mrb[0].mxu0
    %v1391 = vadd.f32 %v99, %v1390
    %v1392 = vpop.f32.mrb[0].mxu0
    %v1393 = vpop.f32.mrb[0].mxu0
    %v1394 = vadd.f32 %v104, %v1393
    %v1395 = vpop.f32.mrb[0].mxu0
    %1396 = vmatprep.mubr.bf16.mxu0 0
    %1397 = vmatmul.mubr.bf16.gmra.mrb[0].mxu0 %v341
    %v1398 = vpop.f32.mrb[0].mxu0
    %v1399 = vadd.f32 %v109, %v1398
    %v1400 = vpop.f32.mrb[0].mxu0
    %v1401 = vpop.f32.mrb[0].mxu0
    %v1402 = vadd.f32 %v114, %v1401
    %v1403 = vpop.f32.mrb[0].mxu0
    %1404 = vmatprep.mubr.bf16.mxu0 0
    %1405 = vmatmul.mubr.bf16.gmra.mrb[0].mxu0 %v344
    %v1406 = vpop.f32.mrb[0].mxu0
    %v1407 = vadd.f32 %v119, %v1406
    %v1408 = vpop.f32.mrb[0].mxu0
    %v1409 = vpop.f32.mrb[0].mxu0
    %v1410 = vadd.f32 %v124, %v1409
    %v1411 = vpop.f32.mrb[0].mxu0
    %1412 = vmatprep.mubr.bf16.mxu0 0
    %1413 = vmatmul.mubr.bf16.gmra.mrb[0].mxu0 %v347
    %v1414 = vpop.f32.mrb[0].mxu0
    %v1415 = vadd.f32 %v129, %v1414
    %v1416 = vpop.f32.mrb[0].mxu0
    %v1417 = vpop.f32.mrb[0].mxu0
    %v1418 = vadd.f32 %v134, %v1417
    %v1419 = vpop.f32.mrb[0].mxu0
    %1420 = vmatprep.mubr.bf16.mxu0 0
    %1421 = vmatmul.mubr.bf16.gmra.mrb[0].mxu0 %v350
    %v1422 = vpop.f32.mrb[0].mxu0
    %v1423 = vadd.f32 %v139, %v1422
    %v1424 = vpop.f32.mrb[0].mxu0
    %v1425 = vpop.f32.mrb[0].mxu0
    %v1426 = vadd.f32 %v144, %v1425
    %v1427 = vpop.f32.mrb[0].mxu0
    %1428 = vmatprep.mubr.bf16.mxu0 0
    %1429 = vmatmul.mubr.bf16.gmra.mrb[0].mxu0 %v353
    %v1430 = vpop.f32.mrb[0].mxu0
    %v1431 = vadd.f32 %v149, %v1430
    %v1432 = vpop.f32.mrb[0].mxu0
    %v1433 = vpop.f32.mrb[0].mxu0
    %v1434 = vadd.f32 %v154, %v1433
    %v1435 = vpop.f32.mrb[0].mxu0
    %1436 = vmatprep.mubr.bf16.mxu0 0
    %1437 = vmatmul.mubr.bf16.gmra.mrb[0].mxu0 %v356
    %v1438 = vpop.f32.mrb[0].mxu0
    %v1439 = vadd.f32 %v159, %v1438
    %v1440 = vpop.f32.mrb[0].mxu0
    %v1441 = vpop.f32.mrb[0].mxu0
    %v1442 = vadd.f32 %v164, %v1441
    %v1443 = vpop.f32.mrb[0].mxu0
    %1444 = vmatprep.mubr.bf16.mxu0 0
    %1445 = vmatmul.mubr.bf16.gmra.mrb[0].mxu0 %v359
    %v1446 = vpop.f32.mrb[0].mxu0
    %v1447 = vadd.f32 %v169, %v1446
    %v1448 = vpop.f32.mrb[0].mxu0
    %v1449 = vpop.f32.mrb[0].mxu0
    %v1450 = vadd.f32 %v174, %v1449
    %v1451 = vpop.f32.mrb[0].mxu0
    %1452 = vmatprep.mubr.bf16.mxu0 0
    %1453 = vmatmul.mubr.bf16.gmra.mrb[0].mxu0 %v362
    %v1454 = vpop.f32.mrb[0].mxu0
    %v1455 = vadd.f32 %v179, %v1454
    %v1456 = vpop.f32.mrb[0].mxu0
    %v1457 = vpop.f32.mrb[0].mxu0
    %v1458 = vadd.f32 %v184, %v1457
    %v1459 = vpop.f32.mrb[0].mxu0
    %1460 = vmatprep.mubr.bf16.mxu0 0
    %1461 = vmatmul.mubr.bf16.gmra.mrb[0].mxu0 %v365
    %v1462 = vpop.f32.mrb[0].mxu0
    %v1463 = vadd.f32 %v189, %v1462
    %v1464 = vpop.f32.mrb[0].mxu0
    %v1465 = vpop.f32.mrb[0].mxu0
    %v1466 = vadd.f32 %v194, %v1465
    %v1467 = vpop.f32.mrb[0].mxu0
    %1468 = vmatprep.mubr.bf16.mxu0 0
    %1469 = vmatmul.mubr.bf16.gmra.mrb[0].mxu0 %v368
    %v1470 = vpop.f32.mrb[0].mxu0
    %v1471 = vadd.f32 %v199, %v1470
    %v1472 = vpop.f32.mrb[0].mxu0
    %v1473 = vpop.f32.mrb[0].mxu0
    %v1474 = vadd.f32 %v204, %v1473
    %v1475 = vpop.f32.mrb[0].mxu0
    %1476 = vmatprep.mubr.bf16.mxu0 0
    %1477 = vmatmul.mubr.bf16.gmra.mrb[0].mxu0 %v371
    %v1478 = vpop.f32.mrb[0].mxu0
    %v1479 = vadd.f32 %v209, %v1478
    %v1480 = vpop.f32.mrb[0].mxu0
    %v1481 = vpop.f32.mrb[0].mxu0
    %v1482 = vadd.f32 %v214, %v1481
    %v1483 = vpop.f32.mrb[0].mxu0
    %1484 = vmatprep.mubr.bf16.mxu0 0
    %1485 = vmatmul.mubr.bf16.gmra.mrb[0].mxu0 %v374
    %v1486 = vpop.f32.mrb[0].mxu0
    %v1487 = vadd.f32 %v219, %v1486
    %v1488 = vpop.f32.mrb[0].mxu0
    %v1489 = vpop.f32.mrb[0].mxu0
    %v1490 = vadd.f32 %v224, %v1489
    %v1491 = vpop.f32.mrb[0].mxu0
    %1492 = vmatprep.mubr.bf16.mxu0 0
    %1493 = vmatmul.mubr.bf16.gmra.mrb[0].mxu0 %v377
    %v1494 = vpop.f32.mrb[0].mxu0
    %v1495 = vadd.f32 %v229, %v1494
    %v1496 = vpop.f32.mrb[0].mxu0
    %v1497 = vpop.f32.mrb[0].mxu0
    %v1498 = vadd.f32 %v234, %v1497
    %v1499 = vpop.f32.mrb[0].mxu0
    %1500 = vmatprep.mubr.bf16.mxu0 0
    %1501 = vmatmul.mubr.bf16.gmra.mrb[0].mxu0 %v380
    %v1502 = vpop.f32.mrb[0].mxu0
    %v1503 = vadd.f32 %v239, %v1502
    %v1504 = vpop.f32.mrb[0].mxu0
    %v1505 = vpop.f32.mrb[0].mxu0
    %v1506 = vadd.f32 %v244, %v1505
    %v1507 = vpop.f32.mrb[0].mxu0
    %1508 = vmatprep.mubr.bf16.mxu0 0
    %1509 = vmatmul.mubr.bf16.gmra.mrb[0].mxu0 %v383
    %v1510 = vpop.f32.mrb[0].mxu0
    %v1511 = vadd.f32 %v249, %v1510
    %v1512 = vpop.f32.mrb[0].mxu0
    %v1513 = vpop.f32.mrb[0].mxu0
    %v1514 = vadd.f32 %v254, %v1513
    %v1515 = vpop.f32.mrb[0].mxu0
    %1516 = vdwg.mxu0
    %v1517 = vmul.f32 %v1391, 0.5
    %v1518 = vmul.f32 %v1394, 0.5
    %v1519 = vmul.f32 %v1399, 0.5
    %v1520 = vmul.f32 %v1402, 0.5
    %v1521 = vmul.f32 %v1407, 0.5
    %v1522 = vmul.f32 %v1410, 0.5
    %v1523 = vmul.f32 %v1415, 0.5
    %v1524 = vmul.f32 %v1418, 0.5
    %v1525 = vmul.f32 %v1423, 0.5
    %v1526 = vmul.f32 %v1426, 0.5
    %v1527 = vmul.f32 %v1431, 0.5
    %v1528 = vmul.f32 %v1434, 0.5
    %v1529 = vtanh.pop %v1517
    %v1530 = vtanh.pop %v1518
    %v1531 = vtanh.pop %v1519
    %v1532 = vtanh.pop %v1520
    %v1533 = vtanh.pop %v1521
    %v1534 = vtanh.pop %v1522
    %v1535 = vtanh.pop %v1523
    %v1536 = vtanh.pop %v1524
    %v1537 = vtanh.pop %v1525
    %v1538 = vtanh.pop %v1526
    %v1539 = vtanh.pop %v1527
    %v1540 = vtanh.pop %v1528
    %v1541 = vadd.f32 %v1529, 1.0
    %v1542 = vadd.f32 %v1530, 1.0
    %v1543 = vadd.f32 %v1531, 1.0
    %v1544 = vadd.f32 %v1532, 1.0
    %v1545 = vadd.f32 %v1533, 1.0
    %v1546 = vadd.f32 %v1534, 1.0
    %v1547 = vadd.f32 %v1535, 1.0
    %v1548 = vadd.f32 %v1536, 1.0
    %v1549 = vadd.f32 %v1537, 1.0
    %v1550 = vadd.f32 %v1538, 1.0
    %v1551 = vadd.f32 %v1539, 1.0
    %v1552 = vadd.f32 %v1540, 1.0
    %v1553 = vmul.f32 %v1541, 0.5
    %v1554 = vmul.f32 %v1542, 0.5
    %v1555 = vmul.f32 %v1543, 0.5
    %v1556 = vmul.f32 %v1544, 0.5
    %v1557 = vmul.f32 %v1545, 0.5
    %v1558 = vmul.f32 %v1546, 0.5
    %v1559 = vmul.f32 %v1547, 0.5
    %v1560 = vmul.f32 %v1548, 0.5
    %v1561 = vmul.f32 %v1549, 0.5
    %v1562 = vmul.f32 %v1550, 0.5
    %v1563 = vmul.f32 %v1551, 0.5
    %v1564 = vmul.f32 %v1552, 0.5
    %v1565 = vtanh.pop %v1439
    %v1566 = vtanh.pop %v1442
    %v1567 = vtanh.pop %v1447
    %v1568 = vtanh.pop %v1450
    %v1569 = vmul.f32 %v1557, %v1253
    %v1570 = vmul.f32 %v1558, %v1254
    %v1571 = vmul.f32 %v1559, %v1255
    %v1572 = vmul.f32 %v1560, %v1256
    %v1573 = vmul.f32 %v1553, %v1565
    %v1574 = vmul.f32 %v1554, %v1566
    %v1575 = vmul.f32 %v1555, %v1567
    %v1576 = vmul.f32 %v1556, %v1568
    %v1577 = vadd.f32 %v1569, %v1573
    %v1578 = vadd.f32 %v1570, %v1574
    %v1579 = vadd.f32 %v1571, %v1575
    %v1580 = vadd.f32 %v1572, %v1576
    %v1581 = vtanh.pop %v1577
    %v1582 = vtanh.pop %v1578
    %v1583 = vtanh.pop %v1579
    %v1584 = vtanh.pop %v1580
    %v1585 = vmul.f32 %v1561, %v1581
    %v1586 = vmul.f32 %v1562, %v1582
    %v1587 = vmul.f32 %v1563, %v1583
    %v1588 = vmul.f32 %v1564, %v1584
    %v1589 = vmul.f32 %v1455, 0.5
    %v1590 = vmul.f32 %v1458, 0.5
    %v1591 = vmul.f32 %v1463, 0.5
    %v1592 = vmul.f32 %v1466, 0.5
    %v1593 = vmul.f32 %v1471, 0.5
    %v1594 = vmul.f32 %v1474, 0.5
    %v1595 = vmul.f32 %v1479, 0.5
    %v1596 = vmul.f32 %v1482, 0.5
    %v1597 = vmul.f32 %v1487, 0.5
    %v1598 = vmul.f32 %v1490, 0.5
    %v1599 = vmul.f32 %v1495, 0.5
    %v1600 = vmul.f32 %v1498, 0.5
    %v1601 = vtanh.pop %v1589
    %v1602 = vtanh.pop %v1590
    %v1603 = vtanh.pop %v1591
    %v1604 = vtanh.pop %v1592
    %v1605 = vtanh.pop %v1593
    %v1606 = vtanh.pop %v1594
    %v1607 = vtanh.pop %v1595
    %v1608 = vtanh.pop %v1596
    %v1609 = vtanh.pop %v1597
    %v1610 = vtanh.pop %v1598
    %v1611 = vtanh.pop %v1599
    %v1612 = vtanh.pop %v1600
    %v1613 = vadd.f32 %v1601, 1.0
    %v1614 = vadd.f32 %v1602, 1.0
    %v1615 = vadd.f32 %v1603, 1.0
    %v1616 = vadd.f32 %v1604, 1.0
    %v1617 = vadd.f32 %v1605, 1.0
    %v1618 = vadd.f32 %v1606, 1.0
    %v1619 = vadd.f32 %v1607, 1.0
    %v1620 = vadd.f32 %v1608, 1.0
    %v1621 = vadd.f32 %v1609, 1.0
    %v1622 = vadd.f32 %v1610, 1.0
    %v1623 = vadd.f32 %v1611, 1.0
    %v1624 = vadd.f32 %v1612, 1.0
    %v1625 = vmul.f32 %v1613, 0.5
    %v1626 = vmul.f32 %v1614, 0.5
    %v1627 = vmul.f32 %v1615, 0.5
    %v1628 = vmul.f32 %v1616, 0.5
    %v1629 = vmul.f32 %v1617, 0.5
    %v1630 = vmul.f32 %v1618, 0.5
    %v1631 = vmul.f32 %v1619, 0.5
    %v1632 = vmul.f32 %v1620, 0.5
    %v1633 = vmul.f32 %v1621, 0.5
    %v1634 = vmul.f32 %v1622, 0.5
    %v1635 = vmul.f32 %v1623, 0.5
    %v1636 = vmul.f32 %v1624, 0.5
    %v1637 = vtanh.pop %v1503
    %v1638 = vtanh.pop %v1506
    %v1639 = vtanh.pop %v1511
    %v1640 = vtanh.pop %v1514
    %v1641 = vmul.f32 %v1629, %v1325
    %v1642 = vmul.f32 %v1630, %v1326
    %v1643 = vmul.f32 %v1631, %v1327
    %v1644 = vmul.f32 %v1632, %v1328
    %v1645 = vmul.f32 %v1625, %v1637
    %v1646 = vmul.f32 %v1626, %v1638
    %v1647 = vmul.f32 %v1627, %v1639
    %v1648 = vmul.f32 %v1628, %v1640
    %v1649 = vadd.f32 %v1641, %v1645
    %v1650 = vadd.f32 %v1642, %v1646
    %v1651 = vadd.f32 %v1643, %v1647
    %v1652 = vadd.f32 %v1644, %v1648
    %v1653 = vtanh.pop %v1649
    %v1654 = vtanh.pop %v1650
    %v1655 = vtanh.pop %v1651
    %v1656 = vtanh.pop %v1652
    %v1657 = vmul.f32 %v1633, %v1653
    %v1658 = vmul.f32 %v1634, %v1654
    %v1659 = vmul.f32 %v1635, %v1655
    %v1660 = vmul.f32 %v1636, %v1656
    %v1661 = vpack.c.bf16 %v1586, %v1585
    %v1662 = vpack.c.bf16 %v1588, %v1587
    %s1663 = scalar_lea.vmem [#allocation2], 48
    %1664 = vst [vmem:[%s1663] sm:$0xff] %v1661
    %1665 = vst [vmem:[%s1663 + $0x8] sm:$0xff] %v1662
    %v1666 = vpack.c.bf16 %v1658, %v1657
    %v1667 = vpack.c.bf16 %v1660, %v1659
    %s1668 = scalar_lea.vmem [#allocation3], 192
    %1669 = vst [vmem:[%s1668] sm:$0xff] %v1666
    %1670 = vst [vmem:[%s1668 + $0x8] sm:$0xff] %v1667
    %s1671 = scalar_lea.vmem %s0, 32
    %v1672 = vld [vmem:[%s1671] sm:$0xf]
    %v1673 = vld [vmem:[%s1671 + $0x4] sm:$0xf]
    %v1676 = vunpack.c.l.b16 %v1672
    %v1677 = vunpack.c.l.b16 %v1673
    %v1678 = vpack.c.b16 %v1677, %v1676
    %1680 = vmatprep.subr.bf16.mxu0 0
    %1681 = vmatpush1.bf16.msra.mxu0 %v1678
    %1682 = vmatprep.subr.bf16.mxu0 0
    %1683 = vmatpush1.bf16.msra.mxu0 %v1661
    %1684 = vmatprep.subr.bf16.mxu0 0
    %1685 = vmatpush1.bf16.msra.mxu0 %v1662
    %1686 = vmatprep.subr.bf16.mxu0 0
    %1687 = vmatpush1.bf16.msra.mxu0 %v1666
    %1688 = vmatprep.subr.bf16.mxu0 0
    %1689 = vmatpush1.bf16.msra.mxu0 %v1667
    %1690 = vmatprep.subr.bf16.mxu0 0
    %1691 = vmatpush1.bf16.msra.mxu0 0
    %1692 = vmatprep.subr.bf16.mxu0 0
    %1693 = vmatpush1.bf16.msra.mxu0 0
    %1694 = vmatprep.subr.bf16.mxu0 0
    %1695 = vmatpush1.bf16.msra.mxu0 0
    %1696 = vmatprep.subr.bf16.mxu0 0
    %1697 = vmatpush1.bf16.msra.mxu0 0
    %1698 = vmatprep.subr.bf16.mxu0 0
    %1699 = vmatpush1.bf16.msra.mxu0 0
    %1700 = vmatprep.subr.bf16.mxu0 0
    %1701 = vmatpush1.bf16.msra.mxu0 0
    %1702 = vmatprep.subr.bf16.mxu0 0
    %1703 = vmatpush1.bf16.msra.mxu0 0
    %1704 = vmatprep.subr.bf16.mxu0 0
    %1705 = vmatpush1.bf16.msra.mxu0 0
    %1706 = vmatprep.subr.bf16.mxu0 0
    %1707 = vmatpush1.bf16.msra.mxu0 0
    %1708 = vmatprep.subr.bf16.mxu0 0
    %1709 = vmatpush1.bf16.msra.mxu0 0
    %1710 = vmatprep.subr.bf16.mxu0 0
    %1711 = vmatpush1.bf16.msra.mxu0 0
    %1712 = vmatprep.mubr.bf16.mxu0 0
    %1713 = vmatmul.mubr.bf16.gmra.mrb[0].mxu0 %v338
    %v1714 = vpop.f32.mrb[0].mxu0
    %v1715 = vadd.f32 %v99, %v1714
    %v1716 = vpop.f32.mrb[0].mxu0
    %v1717 = vpop.f32.mrb[0].mxu0
    %v1718 = vadd.f32 %v104, %v1717
    %v1719 = vpop.f32.mrb[0].mxu0
    %1720 = vmatprep.mubr.bf16.mxu0 0
    %1721 = vmatmul.mubr.bf16.gmra.mrb[0].mxu0 %v341
    %v1722 = vpop.f32.mrb[0].mxu0
    %v1723 = vadd.f32 %v109, %v1722
    %v1724 = vpop.f32.mrb[0].mxu0
    %v1725 = vpop.f32.mrb[0].mxu0
    %v1726 = vadd.f32 %v114, %v1725
    %v1727 = vpop.f32.mrb[0].mxu0
    %1728 = vmatprep.mubr.bf16.mxu0 0
    %1729 = vmatmul.mubr.bf16.gmra.mrb[0].mxu0 %v344
    %v1730 = vpop.f32.mrb[0].mxu0
    %v1731 = vadd.f32 %v119, %v1730
    %v1732 = vpop.f32.mrb[0].mxu0
    %v1733 = vpop.f32.mrb[0].mxu0
    %v1734 = vadd.f32 %v124, %v1733
    %v1735 = vpop.f32.mrb[0].mxu0
    %1736 = vmatprep.mubr.bf16.mxu0 0
    %1737 = vmatmul.mubr.bf16.gmra.mrb[0].mxu0 %v347
    %v1738 = vpop.f32.mrb[0].mxu0
    %v1739 = vadd.f32 %v129, %v1738
    %v1740 = vpop.f32.mrb[0].mxu0
    %v1741 = vpop.f32.mrb[0].mxu0
    %v1742 = vadd.f32 %v134, %v1741
    %v1743 = vpop.f32.mrb[0].mxu0
    %1744 = vmatprep.mubr.bf16.mxu0 0
    %1745 = vmatmul.mubr.bf16.gmra.mrb[0].mxu0 %v350
    %v1746 = vpop.f32.mrb[0].mxu0
    %v1747 = vadd.f32 %v139, %v1746
    %v1748 = vpop.f32.mrb[0].mxu0
    %v1749 = vpop.f32.mrb[0].mxu0
    %v1750 = vadd.f32 %v144, %v1749
    %v1751 = vpop.f32.mrb[0].mxu0
    %1752 = vmatprep.mubr.bf16.mxu0 0
    %1753 = vmatmul.mubr.bf16.gmra.mrb[0].mxu0 %v353
    %v1754 = vpop.f32.mrb[0].mxu0
    %v1755 = vadd.f32 %v149, %v1754
    %v1756 = vpop.f32.mrb[0].mxu0
    %v1757 = vpop.f32.mrb[0].mxu0
    %v1758 = vadd.f32 %v154, %v1757
    %v1759 = vpop.f32.mrb[0].mxu0
    %1760 = vmatprep.mubr.bf16.mxu0 0
    %1761 = vmatmul.mubr.bf16.gmra.mrb[0].mxu0 %v356
    %v1762 = vpop.f32.mrb[0].mxu0
    %v1763 = vadd.f32 %v159, %v1762
    %v1764 = vpop.f32.mrb[0].mxu0
    %v1765 = vpop.f32.mrb[0].mxu0
    %v1766 = vadd.f32 %v164, %v1765
    %v1767 = vpop.f32.mrb[0].mxu0
    %1768 = vmatprep.mubr.bf16.mxu0 0
    %1769 = vmatmul.mubr.bf16.gmra.mrb[0].mxu0 %v359
    %v1770 = vpop.f32.mrb[0].mxu0
    %v1771 = vadd.f32 %v169, %v1770
    %v1772 = vpop.f32.mrb[0].mxu0
    %v1773 = vpop.f32.mrb[0].mxu0
    %v1774 = vadd.f32 %v174, %v1773
    %v1775 = vpop.f32.mrb[0].mxu0
    %1776 = vmatprep.mubr.bf16.mxu0 0
    %1777 = vmatmul.mubr.bf16.gmra.mrb[0].mxu0 %v362
    %v1778 = vpop.f32.mrb[0].mxu0
    %v1779 = vadd.f32 %v179, %v1778
    %v1780 = vpop.f32.mrb[0].mxu0
    %v1781 = vpop.f32.mrb[0].mxu0
    %v1782 = vadd.f32 %v184, %v1781
    %v1783 = vpop.f32.mrb[0].mxu0
    %1784 = vmatprep.mubr.bf16.mxu0 0
    %1785 = vmatmul.mubr.bf16.gmra.mrb[0].mxu0 %v365
    %v1786 = vpop.f32.mrb[0].mxu0
    %v1787 = vadd.f32 %v189, %v1786
    %v1788 = vpop.f32.mrb[0].mxu0
    %v1789 = vpop.f32.mrb[0].mxu0
    %v1790 = vadd.f32 %v194, %v1789
    %v1791 = vpop.f32.mrb[0].mxu0
    %1792 = vmatprep.mubr.bf16.mxu0 0
    %1793 = vmatmul.mubr.bf16.gmra.mrb[0].mxu0 %v368
    %v1794 = vpop.f32.mrb[0].mxu0
    %v1795 = vadd.f32 %v199, %v1794
    %v1796 = vpop.f32.mrb[0].mxu0
    %v1797 = vpop.f32.mrb[0].mxu0
    %v1798 = vadd.f32 %v204, %v1797
    %v1799 = vpop.f32.mrb[0].mxu0
    %1800 = vmatprep.mubr.bf16.mxu0 0
    %1801 = vmatmul.mubr.bf16.gmra.mrb[0].mxu0 %v371
    %v1802 = vpop.f32.mrb[0].mxu0
    %v1803 = vadd.f32 %v209, %v1802
    %v1804 = vpop.f32.mrb[0].mxu0
    %v1805 = vpop.f32.mrb[0].mxu0
    %v1806 = vadd.f32 %v214, %v1805
    %v1807 = vpop.f32.mrb[0].mxu0
    %1808 = vmatprep.mubr.bf16.mxu0 0
    %1809 = vmatmul.mubr.bf16.gmra.mrb[0].mxu0 %v374
    %v1810 = vpop.f32.mrb[0].mxu0
    %v1811 = vadd.f32 %v219, %v1810
    %v1812 = vpop.f32.mrb[0].mxu0
    %v1813 = vpop.f32.mrb[0].mxu0
    %v1814 = vadd.f32 %v224, %v1813
    %v1815 = vpop.f32.mrb[0].mxu0
    %1816 = vmatprep.mubr.bf16.mxu0 0
    %1817 = vmatmul.mubr.bf16.gmra.mrb[0].mxu0 %v377
    %v1818 = vpop.f32.mrb[0].mxu0
    %v1819 = vadd.f32 %v229, %v1818
    %v1820 = vpop.f32.mrb[0].mxu0
    %v1821 = vpop.f32.mrb[0].mxu0
    %v1822 = vadd.f32 %v234, %v1821
    %v1823 = vpop.f32.mrb[0].mxu0
    %1824 = vmatprep.mubr.bf16.mxu0 0
    %1825 = vmatmul.mubr.bf16.gmra.mrb[0].mxu0 %v380
    %v1826 = vpop.f32.mrb[0].mxu0
    %v1827 = vadd.f32 %v239, %v1826
    %v1828 = vpop.f32.mrb[0].mxu0
    %v1829 = vpop.f32.mrb[0].mxu0
    %v1830 = vadd.f32 %v244, %v1829
    %v1831 = vpop.f32.mrb[0].mxu0
    %1832 = vmatprep.mubr.bf16.mxu0 0
    %1833 = vmatmul.mubr.bf16.gmra.mrb[0].mxu0 %v383
    %v1834 = vpop.f32.mrb[0].mxu0
    %v1835 = vadd.f32 %v249, %v1834
    %v1836 = vpop.f32.mrb[0].mxu0
    %v1837 = vpop.f32.mrb[0].mxu0
    %v1838 = vadd.f32 %v254, %v1837
    %v1839 = vpop.f32.mrb[0].mxu0
    %1840 = vdwg.mxu0
    %v1841 = vmul.f32 %v1715, 0.5
    %v1842 = vmul.f32 %v1718, 0.5
    %v1843 = vmul.f32 %v1723, 0.5
    %v1844 = vmul.f32 %v1726, 0.5
    %v1845 = vmul.f32 %v1731, 0.5
    %v1846 = vmul.f32 %v1734, 0.5
    %v1847 = vmul.f32 %v1739, 0.5
    %v1848 = vmul.f32 %v1742, 0.5
    %v1849 = vmul.f32 %v1747, 0.5
    %v1850 = vmul.f32 %v1750, 0.5
    %v1851 = vmul.f32 %v1755, 0.5
    %v1852 = vmul.f32 %v1758, 0.5
    %v1853 = vtanh.pop %v1841
    %v1854 = vtanh.pop %v1842
    %v1855 = vtanh.pop %v1843
    %v1856 = vtanh.pop %v1844
    %v1857 = vtanh.pop %v1845
    %v1858 = vtanh.pop %v1846
    %v1859 = vtanh.pop %v1847
    %v1860 = vtanh.pop %v1848
    %v1861 = vtanh.pop %v1849
    %v1862 = vtanh.pop %v1850
    %v1863 = vtanh.pop %v1851
    %v1864 = vtanh.pop %v1852
    %v1865 = vadd.f32 %v1853, 1.0
    %v1866 = vadd.f32 %v1854, 1.0
    %v1867 = vadd.f32 %v1855, 1.0
    %v1868 = vadd.f32 %v1856, 1.0
    %v1869 = vadd.f32 %v1857, 1.0
    %v1870 = vadd.f32 %v1858, 1.0
    %v1871 = vadd.f32 %v1859, 1.0
    %v1872 = vadd.f32 %v1860, 1.0
    %v1873 = vadd.f32 %v1861, 1.0
    %v1874 = vadd.f32 %v1862, 1.0
    %v1875 = vadd.f32 %v1863, 1.0
    %v1876 = vadd.f32 %v1864, 1.0
    %v1877 = vmul.f32 %v1865, 0.5
    %v1878 = vmul.f32 %v1866, 0.5
    %v1879 = vmul.f32 %v1867, 0.5
    %v1880 = vmul.f32 %v1868, 0.5
    %v1881 = vmul.f32 %v1869, 0.5
    %v1882 = vmul.f32 %v1870, 0.5
    %v1883 = vmul.f32 %v1871, 0.5
    %v1884 = vmul.f32 %v1872, 0.5
    %v1885 = vmul.f32 %v1873, 0.5
    %v1886 = vmul.f32 %v1874, 0.5
    %v1887 = vmul.f32 %v1875, 0.5
    %v1888 = vmul.f32 %v1876, 0.5
    %v1889 = vtanh.pop %v1763
    %v1890 = vtanh.pop %v1766
    %v1891 = vtanh.pop %v1771
    %v1892 = vtanh.pop %v1774
    %v1893 = vmul.f32 %v1881, %v1577
    %v1894 = vmul.f32 %v1882, %v1578
    %v1895 = vmul.f32 %v1883, %v1579
    %v1896 = vmul.f32 %v1884, %v1580
    %v1897 = vmul.f32 %v1877, %v1889
    %v1898 = vmul.f32 %v1878, %v1890
    %v1899 = vmul.f32 %v1879, %v1891
    %v1900 = vmul.f32 %v1880, %v1892
    %v1901 = vadd.f32 %v1893, %v1897
    %v1902 = vadd.f32 %v1894, %v1898
    %v1903 = vadd.f32 %v1895, %v1899
    %v1904 = vadd.f32 %v1896, %v1900
    %v1905 = vtanh.pop %v1901
    %v1906 = vtanh.pop %v1902
    %v1907 = vtanh.pop %v1903
    %v1908 = vtanh.pop %v1904
    %v1909 = vmul.f32 %v1885, %v1905
    %v1910 = vmul.f32 %v1886, %v1906
    %v1911 = vmul.f32 %v1887, %v1907
    %v1912 = vmul.f32 %v1888, %v1908
    %v1913 = vmul.f32 %v1779, 0.5
    %v1914 = vmul.f32 %v1782, 0.5
    %v1915 = vmul.f32 %v1787, 0.5
    %v1916 = vmul.f32 %v1790, 0.5
    %v1917 = vmul.f32 %v1795, 0.5
    %v1918 = vmul.f32 %v1798, 0.5
    %v1919 = vmul.f32 %v1803, 0.5
    %v1920 = vmul.f32 %v1806, 0.5
    %v1921 = vmul.f32 %v1811, 0.5
    %v1922 = vmul.f32 %v1814, 0.5
    %v1923 = vmul.f32 %v1819, 0.5
    %v1924 = vmul.f32 %v1822, 0.5
    %v1925 = vtanh.pop %v1913
    %v1926 = vtanh.pop %v1914
    %v1927 = vtanh.pop %v1915
    %v1928 = vtanh.pop %v1916
    %v1929 = vtanh.pop %v1917
    %v1930 = vtanh.pop %v1918
    %v1931 = vtanh.pop %v1919
    %v1932 = vtanh.pop %v1920
    %v1933 = vtanh.pop %v1921
    %v1934 = vtanh.pop %v1922
    %v1935 = vtanh.pop %v1923
    %v1936 = vtanh.pop %v1924
    %v1937 = vadd.f32 %v1925, 1.0
    %v1938 = vadd.f32 %v1926, 1.0
    %v1939 = vadd.f32 %v1927, 1.0
    %v1940 = vadd.f32 %v1928, 1.0
    %v1941 = vadd.f32 %v1929, 1.0
    %v1942 = vadd.f32 %v1930, 1.0
    %v1943 = vadd.f32 %v1931, 1.0
    %v1944 = vadd.f32 %v1932, 1.0
    %v1945 = vadd.f32 %v1933, 1.0
    %v1946 = vadd.f32 %v1934, 1.0
    %v1947 = vadd.f32 %v1935, 1.0
    %v1948 = vadd.f32 %v1936, 1.0
    %v1949 = vmul.f32 %v1937, 0.5
    %v1950 = vmul.f32 %v1938, 0.5
    %v1951 = vmul.f32 %v1939, 0.5
    %v1952 = vmul.f32 %v1940, 0.5
    %v1953 = vmul.f32 %v1941, 0.5
    %v1954 = vmul.f32 %v1942, 0.5
    %v1955 = vmul.f32 %v1943, 0.5
    %v1956 = vmul.f32 %v1944, 0.5
    %v1957 = vmul.f32 %v1945, 0.5
    %v1958 = vmul.f32 %v1946, 0.5
    %v1959 = vmul.f32 %v1947, 0.5
    %v1960 = vmul.f32 %v1948, 0.5
    %v1961 = vtanh.pop %v1827
    %v1962 = vtanh.pop %v1830
    %v1963 = vtanh.pop %v1835
    %v1964 = vtanh.pop %v1838
    %v1965 = vmul.f32 %v1953, %v1649
    %v1966 = vmul.f32 %v1954, %v1650
    %v1967 = vmul.f32 %v1955, %v1651
    %v1968 = vmul.f32 %v1956, %v1652
    %v1969 = vmul.f32 %v1949, %v1961
    %v1970 = vmul.f32 %v1950, %v1962
    %v1971 = vmul.f32 %v1951, %v1963
    %v1972 = vmul.f32 %v1952, %v1964
    %v1973 = vadd.f32 %v1965, %v1969
    %v1974 = vadd.f32 %v1966, %v1970
    %v1975 = vadd.f32 %v1967, %v1971
    %v1976 = vadd.f32 %v1968, %v1972
    %v1977 = vtanh.pop %v1973
    %v1978 = vtanh.pop %v1974
    %v1979 = vtanh.pop %v1975
    %v1980 = vtanh.pop %v1976
    %v1981 = vmul.f32 %v1957, %v1977
    %v1982 = vmul.f32 %v1958, %v1978
    %v1983 = vmul.f32 %v1959, %v1979
    %v1984 = vmul.f32 %v1960, %v1980
    %v1985 = vpack.c.bf16 %v1910, %v1909
    %v1986 = vpack.c.bf16 %v1912, %v1911
    %s1987 = scalar_lea.vmem [#allocation2], 64
    %1988 = vst [vmem:[%s1987] sm:$0xff] %v1985
    %1989 = vst [vmem:[%s1987 + $0x8] sm:$0xff] %v1986
    %v1990 = vpack.c.bf16 %v1982, %v1981
    %v1991 = vpack.c.bf16 %v1984, %v1983
    %s1992 = scalar_lea.vmem [#allocation3], 176
    %1993 = vst [vmem:[%s1992] sm:$0xff] %v1990
    %1994 = vst [vmem:[%s1992 + $0x8] sm:$0xff] %v1991
    %s1995 = scalar_lea.vmem %s0, 40
    %v1996 = vld [vmem:[%s1995] sm:$0xf]
    %v1997 = vld [vmem:[%s1995 + $0x4] sm:$0xf]
    %v2000 = vunpack.c.l.b16 %v1996
    %v2001 = vunpack.c.l.b16 %v1997
    %v2002 = vpack.c.b16 %v2001, %v2000
    %2004 = vmatprep.subr.bf16.mxu0 0
    %2005 = vmatpush1.bf16.msra.mxu0 %v2002
    %2006 = vmatprep.subr.bf16.mxu0 0
    %2007 = vmatpush1.bf16.msra.mxu0 %v1985
    %2008 = vmatprep.subr.bf16.mxu0 0
    %2009 = vmatpush1.bf16.msra.mxu0 %v1986
    %2010 = vmatprep.subr.bf16.mxu0 0
    %2011 = vmatpush1.bf16.msra.mxu0 %v1990
    %2012 = vmatprep.subr.bf16.mxu0 0
    %2013 = vmatpush1.bf16.msra.mxu0 %v1991
    %2014 = vmatprep.subr.bf16.mxu0 0
    %2015 = vmatpush1.bf16.msra.mxu0 0
    %2016 = vmatprep.subr.bf16.mxu0 0
    %2017 = vmatpush1.bf16.msra.mxu0 0
    %2018 = vmatprep.subr.bf16.mxu0 0
    %2019 = vmatpush1.bf16.msra.mxu0 0
    %2020 = vmatprep.subr.bf16.mxu0 0
    %2021 = vmatpush1.bf16.msra.mxu0 0
    %2022 = vmatprep.subr.bf16.mxu0 0
    %2023 = vmatpush1.bf16.msra.mxu0 0
    %2024 = vmatprep.subr.bf16.mxu0 0
    %2025 = vmatpush1.bf16.msra.mxu0 0
    %2026 = vmatprep.subr.bf16.mxu0 0
    %2027 = vmatpush1.bf16.msra.mxu0 0
    %2028 = vmatprep.subr.bf16.mxu0 0
    %2029 = vmatpush1.bf16.msra.mxu0 0
    %2030 = vmatprep.subr.bf16.mxu0 0
    %2031 = vmatpush1.bf16.msra.mxu0 0
    %2032 = vmatprep.subr.bf16.mxu0 0
    %2033 = vmatpush1.bf16.msra.mxu0 0
    %2034 = vmatprep.subr.bf16.mxu0 0
    %2035 = vmatpush1.bf16.msra.mxu0 0
    %2036 = vmatprep.mubr.bf16.mxu0 0
    %2037 = vmatmul.mubr.bf16.gmra.mrb[0].mxu0 %v338
    %v2038 = vpop.f32.mrb[0].mxu0
    %v2039 = vadd.f32 %v99, %v2038
    %v2040 = vpop.f32.mrb[0].mxu0
    %v2041 = vpop.f32.mrb[0].mxu0
    %v2042 = vadd.f32 %v104, %v2041
    %v2043 = vpop.f32.mrb[0].mxu0
    %2044 = vmatprep.mubr.bf16.mxu0 0
    %2045 = vmatmul.mubr.bf16.gmra.mrb[0].mxu0 %v341
    %v2046 = vpop.f32.mrb[0].mxu0
    %v2047 = vadd.f32 %v109, %v2046
    %v2048 = vpop.f32.mrb[0].mxu0
    %v2049 = vpop.f32.mrb[0].mxu0
    %v2050 = vadd.f32 %v114, %v2049
    %v2051 = vpop.f32.mrb[0].mxu0
    %2052 = vmatprep.mubr.bf16.mxu0 0
    %2053 = vmatmul.mubr.bf16.gmra.mrb[0].mxu0 %v344
    %v2054 = vpop.f32.mrb[0].mxu0
    %v2055 = vadd.f32 %v119, %v2054
    %v2056 = vpop.f32.mrb[0].mxu0
    %v2057 = vpop.f32.mrb[0].mxu0
    %v2058 = vadd.f32 %v124, %v2057
    %v2059 = vpop.f32.mrb[0].mxu0
    %2060 = vmatprep.mubr.bf16.mxu0 0
    %2061 = vmatmul.mubr.bf16.gmra.mrb[0].mxu0 %v347
    %v2062 = vpop.f32.mrb[0].mxu0
    %v2063 = vadd.f32 %v129, %v2062
    %v2064 = vpop.f32.mrb[0].mxu0
    %v2065 = vpop.f32.mrb[0].mxu0
    %v2066 = vadd.f32 %v134, %v2065
    %v2067 = vpop.f32.mrb[0].mxu0
    %2068 = vmatprep.mubr.bf16.mxu0 0
    %2069 = vmatmul.mubr.bf16.gmra.mrb[0].mxu0 %v350
    %v2070 = vpop.f32.mrb[0].mxu0
    %v2071 = vadd.f32 %v139, %v2070
    %v2072 = vpop.f32.mrb[0].mxu0
    %v2073 = vpop.f32.mrb[0].mxu0
    %v2074 = vadd.f32 %v144, %v2073
    %v2075 = vpop.f32.mrb[0].mxu0
    %2076 = vmatprep.mubr.bf16.mxu0 0
    %2077 = vmatmul.mubr.bf16.gmra.mrb[0].mxu0 %v353
    %v2078 = vpop.f32.mrb[0].mxu0
    %v2079 = vadd.f32 %v149, %v2078
    %v2080 = vpop.f32.mrb[0].mxu0
    %v2081 = vpop.f32.mrb[0].mxu0
    %v2082 = vadd.f32 %v154, %v2081
    %v2083 = vpop.f32.mrb[0].mxu0
    %2084 = vmatprep.mubr.bf16.mxu0 0
    %2085 = vmatmul.mubr.bf16.gmra.mrb[0].mxu0 %v356
    %v2086 = vpop.f32.mrb[0].mxu0
    %v2087 = vadd.f32 %v159, %v2086
    %v2088 = vpop.f32.mrb[0].mxu0
    %v2089 = vpop.f32.mrb[0].mxu0
    %v2090 = vadd.f32 %v164, %v2089
    %v2091 = vpop.f32.mrb[0].mxu0
    %2092 = vmatprep.mubr.bf16.mxu0 0
    %2093 = vmatmul.mubr.bf16.gmra.mrb[0].mxu0 %v359
    %v2094 = vpop.f32.mrb[0].mxu0
    %v2095 = vadd.f32 %v169, %v2094
    %v2096 = vpop.f32.mrb[0].mxu0
    %v2097 = vpop.f32.mrb[0].mxu0
    %v2098 = vadd.f32 %v174, %v2097
    %v2099 = vpop.f32.mrb[0].mxu0
    %2100 = vmatprep.mubr.bf16.mxu0 0
    %2101 = vmatmul.mubr.bf16.gmra.mrb[0].mxu0 %v362
    %v2102 = vpop.f32.mrb[0].mxu0
    %v2103 = vadd.f32 %v179, %v2102
    %v2104 = vpop.f32.mrb[0].mxu0
    %v2105 = vpop.f32.mrb[0].mxu0
    %v2106 = vadd.f32 %v184, %v2105
    %v2107 = vpop.f32.mrb[0].mxu0
    %2108 = vmatprep.mubr.bf16.mxu0 0
    %2109 = vmatmul.mubr.bf16.gmra.mrb[0].mxu0 %v365
    %v2110 = vpop.f32.mrb[0].mxu0
    %v2111 = vadd.f32 %v189, %v2110
    %v2112 = vpop.f32.mrb[0].mxu0
    %v2113 = vpop.f32.mrb[0].mxu0
    %v2114 = vadd.f32 %v194, %v2113
    %v2115 = vpop.f32.mrb[0].mxu0
    %2116 = vmatprep.mubr.bf16.mxu0 0
    %2117 = vmatmul.mubr.bf16.gmra.mrb[0].mxu0 %v368
    %v2118 = vpop.f32.mrb[0].mxu0
    %v2119 = vadd.f32 %v199, %v2118
    %v2120 = vpop.f32.mrb[0].mxu0
    %v2121 = vpop.f32.mrb[0].mxu0
    %v2122 = vadd.f32 %v204, %v2121
    %v2123 = vpop.f32.mrb[0].mxu0
    %2124 = vmatprep.mubr.bf16.mxu0 0
    %2125 = vmatmul.mubr.bf16.gmra.mrb[0].mxu0 %v371
    %v2126 = vpop.f32.mrb[0].mxu0
    %v2127 = vadd.f32 %v209, %v2126
    %v2128 = vpop.f32.mrb[0].mxu0
    %v2129 = vpop.f32.mrb[0].mxu0
    %v2130 = vadd.f32 %v214, %v2129
    %v2131 = vpop.f32.mrb[0].mxu0
    %2132 = vmatprep.mubr.bf16.mxu0 0
    %2133 = vmatmul.mubr.bf16.gmra.mrb[0].mxu0 %v374
    %v2134 = vpop.f32.mrb[0].mxu0
    %v2135 = vadd.f32 %v219, %v2134
    %v2136 = vpop.f32.mrb[0].mxu0
    %v2137 = vpop.f32.mrb[0].mxu0
    %v2138 = vadd.f32 %v224, %v2137
    %v2139 = vpop.f32.mrb[0].mxu0
    %2140 = vmatprep.mubr.bf16.mxu0 0
    %2141 = vmatmul.mubr.bf16.gmra.mrb[0].mxu0 %v377
    %v2142 = vpop.f32.mrb[0].mxu0
    %v2143 = vadd.f32 %v229, %v2142
    %v2144 = vpop.f32.mrb[0].mxu0
    %v2145 = vpop.f32.mrb[0].mxu0
    %v2146 = vadd.f32 %v234, %v2145
    %v2147 = vpop.f32.mrb[0].mxu0
    %2148 = vmatprep.mubr.bf16.mxu0 0
    %2149 = vmatmul.mubr.bf16.gmra.mrb[0].mxu0 %v380
    %v2150 = vpop.f32.mrb[0].mxu0
    %v2151 = vadd.f32 %v239, %v2150
    %v2152 = vpop.f32.mrb[0].mxu0
    %v2153 = vpop.f32.mrb[0].mxu0
    %v2154 = vadd.f32 %v244, %v2153
    %v2155 = vpop.f32.mrb[0].mxu0
    %2156 = vmatprep.mubr.bf16.mxu0 0
    %2157 = vmatmul.mubr.bf16.gmra.mrb[0].mxu0 %v383
    %v2158 = vpop.f32.mrb[0].mxu0
    %v2159 = vadd.f32 %v249, %v2158
    %v2160 = vpop.f32.mrb[0].mxu0
    %v2161 = vpop.f32.mrb[0].mxu0
    %v2162 = vadd.f32 %v254, %v2161
    %v2163 = vpop.f32.mrb[0].mxu0
    %2164 = vdwg.mxu0
    %v2165 = vmul.f32 %v2039, 0.5
    %v2166 = vmul.f32 %v2042, 0.5
    %v2167 = vmul.f32 %v2047, 0.5
    %v2168 = vmul.f32 %v2050, 0.5
    %v2169 = vmul.f32 %v2055, 0.5
    %v2170 = vmul.f32 %v2058, 0.5
    %v2171 = vmul.f32 %v2063, 0.5
    %v2172 = vmul.f32 %v2066, 0.5
    %v2173 = vmul.f32 %v2071, 0.5
    %v2174 = vmul.f32 %v2074, 0.5
    %v2175 = vmul.f32 %v2079, 0.5
    %v2176 = vmul.f32 %v2082, 0.5
    %v2177 = vtanh.pop %v2165
    %v2178 = vtanh.pop %v2166
    %v2179 = vtanh.pop %v2167
    %v2180 = vtanh.pop %v2168
    %v2181 = vtanh.pop %v2169
    %v2182 = vtanh.pop %v2170
    %v2183 = vtanh.pop %v2171
    %v2184 = vtanh.pop %v2172
    %v2185 = vtanh.pop %v2173
    %v2186 = vtanh.pop %v2174
    %v2187 = vtanh.pop %v2175
    %v2188 = vtanh.pop %v2176
    %v2189 = vadd.f32 %v2177, 1.0
    %v2190 = vadd.f32 %v2178, 1.0
    %v2191 = vadd.f32 %v2179, 1.0
    %v2192 = vadd.f32 %v2180, 1.0
    %v2193 = vadd.f32 %v2181, 1.0
    %v2194 = vadd.f32 %v2182, 1.0
    %v2195 = vadd.f32 %v2183, 1.0
    %v2196 = vadd.f32 %v2184, 1.0
    %v2197 = vadd.f32 %v2185, 1.0
    %v2198 = vadd.f32 %v2186, 1.0
    %v2199 = vadd.f32 %v2187, 1.0
    %v2200 = vadd.f32 %v2188, 1.0
    %v2201 = vmul.f32 %v2189, 0.5
    %v2202 = vmul.f32 %v2190, 0.5
    %v2203 = vmul.f32 %v2191, 0.5
    %v2204 = vmul.f32 %v2192, 0.5
    %v2205 = vmul.f32 %v2193, 0.5
    %v2206 = vmul.f32 %v2194, 0.5
    %v2207 = vmul.f32 %v2195, 0.5
    %v2208 = vmul.f32 %v2196, 0.5
    %v2209 = vmul.f32 %v2197, 0.5
    %v2210 = vmul.f32 %v2198, 0.5
    %v2211 = vmul.f32 %v2199, 0.5
    %v2212 = vmul.f32 %v2200, 0.5
    %v2213 = vtanh.pop %v2087
    %v2214 = vtanh.pop %v2090
    %v2215 = vtanh.pop %v2095
    %v2216 = vtanh.pop %v2098
    %v2217 = vmul.f32 %v2205, %v1901
    %v2218 = vmul.f32 %v2206, %v1902
    %v2219 = vmul.f32 %v2207, %v1903
    %v2220 = vmul.f32 %v2208, %v1904
    %v2221 = vmul.f32 %v2201, %v2213
    %v2222 = vmul.f32 %v2202, %v2214
    %v2223 = vmul.f32 %v2203, %v2215
    %v2224 = vmul.f32 %v2204, %v2216
    %v2225 = vadd.f32 %v2217, %v2221
    %v2226 = vadd.f32 %v2218, %v2222
    %v2227 = vadd.f32 %v2219, %v2223
    %v2228 = vadd.f32 %v2220, %v2224
    %v2229 = vtanh.pop %v2225
    %v2230 = vtanh.pop %v2226
    %v2231 = vtanh.pop %v2227
    %v2232 = vtanh.pop %v2228
    %v2233 = vmul.f32 %v2209, %v2229
    %v2234 = vmul.f32 %v2210, %v2230
    %v2235 = vmul.f32 %v2211, %v2231
    %v2236 = vmul.f32 %v2212, %v2232
    %v2237 = vmul.f32 %v2103, 0.5
    %v2238 = vmul.f32 %v2106, 0.5
    %v2239 = vmul.f32 %v2111, 0.5
    %v2240 = vmul.f32 %v2114, 0.5
    %v2241 = vmul.f32 %v2119, 0.5
    %v2242 = vmul.f32 %v2122, 0.5
    %v2243 = vmul.f32 %v2127, 0.5
    %v2244 = vmul.f32 %v2130, 0.5
    %v2245 = vmul.f32 %v2135, 0.5
    %v2246 = vmul.f32 %v2138, 0.5
    %v2247 = vmul.f32 %v2143, 0.5
    %v2248 = vmul.f32 %v2146, 0.5
    %v2249 = vtanh.pop %v2237
    %v2250 = vtanh.pop %v2238
    %v2251 = vtanh.pop %v2239
    %v2252 = vtanh.pop %v2240
    %v2253 = vtanh.pop %v2241
    %v2254 = vtanh.pop %v2242
    %v2255 = vtanh.pop %v2243
    %v2256 = vtanh.pop %v2244
    %v2257 = vtanh.pop %v2245
    %v2258 = vtanh.pop %v2246
    %v2259 = vtanh.pop %v2247
    %v2260 = vtanh.pop %v2248
    %v2261 = vadd.f32 %v2249, 1.0
    %v2262 = vadd.f32 %v2250, 1.0
    %v2263 = vadd.f32 %v2251, 1.0
    %v2264 = vadd.f32 %v2252, 1.0
    %v2265 = vadd.f32 %v2253, 1.0
    %v2266 = vadd.f32 %v2254, 1.0
    %v2267 = vadd.f32 %v2255, 1.0
    %v2268 = vadd.f32 %v2256, 1.0
    %v2269 = vadd.f32 %v2257, 1.0
    %v2270 = vadd.f32 %v2258, 1.0
    %v2271 = vadd.f32 %v2259, 1.0
    %v2272 = vadd.f32 %v2260, 1.0
    %v2273 = vmul.f32 %v2261, 0.5
    %v2274 = vmul.f32 %v2262, 0.5
    %v2275 = vmul.f32 %v2263, 0.5
    %v2276 = vmul.f32 %v2264, 0.5
    %v2277 = vmul.f32 %v2265, 0.5
    %v2278 = vmul.f32 %v2266, 0.5
    %v2279 = vmul.f32 %v2267, 0.5
    %v2280 = vmul.f32 %v2268, 0.5
    %v2281 = vmul.f32 %v2269, 0.5
    %v2282 = vmul.f32 %v2270, 0.5
    %v2283 = vmul.f32 %v2271, 0.5
    %v2284 = vmul.f32 %v2272, 0.5
    %v2285 = vtanh.pop %v2151
    %v2286 = vtanh.pop %v2154
    %v2287 = vtanh.pop %v2159
    %v2288 = vtanh.pop %v2162
    %v2289 = vmul.f32 %v2277, %v1973
    %v2290 = vmul.f32 %v2278, %v1974
    %v2291 = vmul.f32 %v2279, %v1975
    %v2292 = vmul.f32 %v2280, %v1976
    %v2293 = vmul.f32 %v2273, %v2285
    %v2294 = vmul.f32 %v2274, %v2286
    %v2295 = vmul.f32 %v2275, %v2287
    %v2296 = vmul.f32 %v2276, %v2288
    %v2297 = vadd.f32 %v2289, %v2293
    %v2298 = vadd.f32 %v2290, %v2294
    %v2299 = vadd.f32 %v2291, %v2295
    %v2300 = vadd.f32 %v2292, %v2296
    %v2301 = vtanh.pop %v2297
    %v2302 = vtanh.pop %v2298
    %v2303 = vtanh.pop %v2299
    %v2304 = vtanh.pop %v2300
    %v2305 = vmul.f32 %v2281, %v2301
    %v2306 = vmul.f32 %v2282, %v2302
    %v2307 = vmul.f32 %v2283, %v2303
    %v2308 = vmul.f32 %v2284, %v2304
    %v2309 = vpack.c.bf16 %v2234, %v2233
    %v2310 = vpack.c.bf16 %v2236, %v2235
    %s2311 = scalar_lea.vmem [#allocation2], 80
    %2312 = vst [vmem:[%s2311] sm:$0xff] %v2309
    %2313 = vst [vmem:[%s2311 + $0x8] sm:$0xff] %v2310
    %v2314 = vpack.c.bf16 %v2306, %v2305
    %v2315 = vpack.c.bf16 %v2308, %v2307
    %s2316 = scalar_lea.vmem [#allocation3], 160
    %2317 = vst [vmem:[%s2316] sm:$0xff] %v2314
    %2318 = vst [vmem:[%s2316 + $0x8] sm:$0xff] %v2315
    %s2319 = scalar_lea.vmem %s0, 48
    %v2320 = vld [vmem:[%s2319] sm:$0xf]
    %v2321 = vld [vmem:[%s2319 + $0x4] sm:$0xf]
    %v2324 = vunpack.c.l.b16 %v2320
    %v2325 = vunpack.c.l.b16 %v2321
    %v2326 = vpack.c.b16 %v2325, %v2324
    %2328 = vmatprep.subr.bf16.mxu0 0
    %2329 = vmatpush1.bf16.msra.mxu0 %v2326
    %2330 = vmatprep.subr.bf16.mxu0 0
    %2331 = vmatpush1.bf16.msra.mxu0 %v2309
    %2332 = vmatprep.subr.bf16.mxu0 0
    %2333 = vmatpush1.bf16.msra.mxu0 %v2310
    %2334 = vmatprep.subr.bf16.mxu0 0
    %2335 = vmatpush1.bf16.msra.mxu0 %v2314
    %2336 = vmatprep.subr.bf16.mxu0 0
    %2337 = vmatpush1.bf16.msra.mxu0 %v2315
    %2338 = vmatprep.subr.bf16.mxu0 0
    %2339 = vmatpush1.bf16.msra.mxu0 0
    %2340 = vmatprep.subr.bf16.mxu0 0
    %2341 = vmatpush1.bf16.msra.mxu0 0
    %2342 = vmatprep.subr.bf16.mxu0 0
    %2343 = vmatpush1.bf16.msra.mxu0 0
    %2344 = vmatprep.subr.bf16.mxu0 0
    %2345 = vmatpush1.bf16.msra.mxu0 0
    %2346 = vmatprep.subr.bf16.mxu0 0
    %2347 = vmatpush1.bf16.msra.mxu0 0
    %2348 = vmatprep.subr.bf16.mxu0 0
    %2349 = vmatpush1.bf16.msra.mxu0 0
    %2350 = vmatprep.subr.bf16.mxu0 0
    %2351 = vmatpush1.bf16.msra.mxu0 0
    %2352 = vmatprep.subr.bf16.mxu0 0
    %2353 = vmatpush1.bf16.msra.mxu0 0
    %2354 = vmatprep.subr.bf16.mxu0 0
    %2355 = vmatpush1.bf16.msra.mxu0 0
    %2356 = vmatprep.subr.bf16.mxu0 0
    %2357 = vmatpush1.bf16.msra.mxu0 0
    %2358 = vmatprep.subr.bf16.mxu0 0
    %2359 = vmatpush1.bf16.msra.mxu0 0
    %2360 = vmatprep.mubr.bf16.mxu0 0
    %2361 = vmatmul.mubr.bf16.gmra.mrb[0].mxu0 %v338
    %v2362 = vpop.f32.mrb[0].mxu0
    %v2363 = vadd.f32 %v99, %v2362
    %v2364 = vpop.f32.mrb[0].mxu0
    %v2365 = vpop.f32.mrb[0].mxu0
    %v2366 = vadd.f32 %v104, %v2365
    %v2367 = vpop.f32.mrb[0].mxu0
    %2368 = vmatprep.mubr.bf16.mxu0 0
    %2369 = vmatmul.mubr.bf16.gmra.mrb[0].mxu0 %v341
    %v2370 = vpop.f32.mrb[0].mxu0
    %v2371 = vadd.f32 %v109, %v2370
    %v2372 = vpop.f32.mrb[0].mxu0
    %v2373 = vpop.f32.mrb[0].mxu0
    %v2374 = vadd.f32 %v114, %v2373
    %v2375 = vpop.f32.mrb[0].mxu0
    %2376 = vmatprep.mubr.bf16.mxu0 0
    %2377 = vmatmul.mubr.bf16.gmra.mrb[0].mxu0 %v344
    %v2378 = vpop.f32.mrb[0].mxu0
    %v2379 = vadd.f32 %v119, %v2378
    %v2380 = vpop.f32.mrb[0].mxu0
    %v2381 = vpop.f32.mrb[0].mxu0
    %v2382 = vadd.f32 %v124, %v2381
    %v2383 = vpop.f32.mrb[0].mxu0
    %2384 = vmatprep.mubr.bf16.mxu0 0
    %2385 = vmatmul.mubr.bf16.gmra.mrb[0].mxu0 %v347
    %v2386 = vpop.f32.mrb[0].mxu0
    %v2387 = vadd.f32 %v129, %v2386
    %v2388 = vpop.f32.mrb[0].mxu0
    %v2389 = vpop.f32.mrb[0].mxu0
    %v2390 = vadd.f32 %v134, %v2389
    %v2391 = vpop.f32.mrb[0].mxu0
    %2392 = vmatprep.mubr.bf16.mxu0 0
    %2393 = vmatmul.mubr.bf16.gmra.mrb[0].mxu0 %v350
    %v2394 = vpop.f32.mrb[0].mxu0
    %v2395 = vadd.f32 %v139, %v2394
    %v2396 = vpop.f32.mrb[0].mxu0
    %v2397 = vpop.f32.mrb[0].mxu0
    %v2398 = vadd.f32 %v144, %v2397
    %v2399 = vpop.f32.mrb[0].mxu0
    %2400 = vmatprep.mubr.bf16.mxu0 0
    %2401 = vmatmul.mubr.bf16.gmra.mrb[0].mxu0 %v353
    %v2402 = vpop.f32.mrb[0].mxu0
    %v2403 = vadd.f32 %v149, %v2402
    %v2404 = vpop.f32.mrb[0].mxu0
    %v2405 = vpop.f32.mrb[0].mxu0
    %v2406 = vadd.f32 %v154, %v2405
    %v2407 = vpop.f32.mrb[0].mxu0
    %2408 = vmatprep.mubr.bf16.mxu0 0
    %2409 = vmatmul.mubr.bf16.gmra.mrb[0].mxu0 %v356
    %v2410 = vpop.f32.mrb[0].mxu0
    %v2411 = vadd.f32 %v159, %v2410
    %v2412 = vpop.f32.mrb[0].mxu0
    %v2413 = vpop.f32.mrb[0].mxu0
    %v2414 = vadd.f32 %v164, %v2413
    %v2415 = vpop.f32.mrb[0].mxu0
    %2416 = vmatprep.mubr.bf16.mxu0 0
    %2417 = vmatmul.mubr.bf16.gmra.mrb[0].mxu0 %v359
    %v2418 = vpop.f32.mrb[0].mxu0
    %v2419 = vadd.f32 %v169, %v2418
    %v2420 = vpop.f32.mrb[0].mxu0
    %v2421 = vpop.f32.mrb[0].mxu0
    %v2422 = vadd.f32 %v174, %v2421
    %v2423 = vpop.f32.mrb[0].mxu0
    %2424 = vmatprep.mubr.bf16.mxu0 0
    %2425 = vmatmul.mubr.bf16.gmra.mrb[0].mxu0 %v362
    %v2426 = vpop.f32.mrb[0].mxu0
    %v2427 = vadd.f32 %v179, %v2426
    %v2428 = vpop.f32.mrb[0].mxu0
    %v2429 = vpop.f32.mrb[0].mxu0
    %v2430 = vadd.f32 %v184, %v2429
    %v2431 = vpop.f32.mrb[0].mxu0
    %2432 = vmatprep.mubr.bf16.mxu0 0
    %2433 = vmatmul.mubr.bf16.gmra.mrb[0].mxu0 %v365
    %v2434 = vpop.f32.mrb[0].mxu0
    %v2435 = vadd.f32 %v189, %v2434
    %v2436 = vpop.f32.mrb[0].mxu0
    %v2437 = vpop.f32.mrb[0].mxu0
    %v2438 = vadd.f32 %v194, %v2437
    %v2439 = vpop.f32.mrb[0].mxu0
    %2440 = vmatprep.mubr.bf16.mxu0 0
    %2441 = vmatmul.mubr.bf16.gmra.mrb[0].mxu0 %v368
    %v2442 = vpop.f32.mrb[0].mxu0
    %v2443 = vadd.f32 %v199, %v2442
    %v2444 = vpop.f32.mrb[0].mxu0
    %v2445 = vpop.f32.mrb[0].mxu0
    %v2446 = vadd.f32 %v204, %v2445
    %v2447 = vpop.f32.mrb[0].mxu0
    %2448 = vmatprep.mubr.bf16.mxu0 0
    %2449 = vmatmul.mubr.bf16.gmra.mrb[0].mxu0 %v371
    %v2450 = vpop.f32.mrb[0].mxu0
    %v2451 = vadd.f32 %v209, %v2450
    %v2452 = vpop.f32.mrb[0].mxu0
    %v2453 = vpop.f32.mrb[0].mxu0
    %v2454 = vadd.f32 %v214, %v2453
    %v2455 = vpop.f32.mrb[0].mxu0
    %2456 = vmatprep.mubr.bf16.mxu0 0
    %2457 = vmatmul.mubr.bf16.gmra.mrb[0].mxu0 %v374
    %v2458 = vpop.f32.mrb[0].mxu0
    %v2459 = vadd.f32 %v219, %v2458
    %v2460 = vpop.f32.mrb[0].mxu0
    %v2461 = vpop.f32.mrb[0].mxu0
    %v2462 = vadd.f32 %v224, %v2461
    %v2463 = vpop.f32.mrb[0].mxu0
    %2464 = vmatprep.mubr.bf16.mxu0 0
    %2465 = vmatmul.mubr.bf16.gmra.mrb[0].mxu0 %v377
    %v2466 = vpop.f32.mrb[0].mxu0
    %v2467 = vadd.f32 %v229, %v2466
    %v2468 = vpop.f32.mrb[0].mxu0
    %v2469 = vpop.f32.mrb[0].mxu0
    %v2470 = vadd.f32 %v234, %v2469
    %v2471 = vpop.f32.mrb[0].mxu0
    %2472 = vmatprep.mubr.bf16.mxu0 0
    %2473 = vmatmul.mubr.bf16.gmra.mrb[0].mxu0 %v380
    %v2474 = vpop.f32.mrb[0].mxu0
    %v2475 = vadd.f32 %v239, %v2474
    %v2476 = vpop.f32.mrb[0].mxu0
    %v2477 = vpop.f32.mrb[0].mxu0
    %v2478 = vadd.f32 %v244, %v2477
    %v2479 = vpop.f32.mrb[0].mxu0
    %2480 = vmatprep.mubr.bf16.mxu0 0
    %2481 = vmatmul.mubr.bf16.gmra.mrb[0].mxu0 %v383
    %v2482 = vpop.f32.mrb[0].mxu0
    %v2483 = vadd.f32 %v249, %v2482
    %v2484 = vpop.f32.mrb[0].mxu0
    %v2485 = vpop.f32.mrb[0].mxu0
    %v2486 = vadd.f32 %v254, %v2485
    %v2487 = vpop.f32.mrb[0].mxu0
    %2488 = vdwg.mxu0
    %v2489 = vmul.f32 %v2363, 0.5
    %v2490 = vmul.f32 %v2366, 0.5
    %v2491 = vmul.f32 %v2371, 0.5
    %v2492 = vmul.f32 %v2374, 0.5
    %v2493 = vmul.f32 %v2379, 0.5
    %v2494 = vmul.f32 %v2382, 0.5
    %v2495 = vmul.f32 %v2387, 0.5
    %v2496 = vmul.f32 %v2390, 0.5
    %v2497 = vmul.f32 %v2395, 0.5
    %v2498 = vmul.f32 %v2398, 0.5
    %v2499 = vmul.f32 %v2403, 0.5
    %v2500 = vmul.f32 %v2406, 0.5
    %v2501 = vtanh.pop %v2489
    %v2502 = vtanh.pop %v2490
    %v2503 = vtanh.pop %v2491
    %v2504 = vtanh.pop %v2492
    %v2505 = vtanh.pop %v2493
    %v2506 = vtanh.pop %v2494
    %v2507 = vtanh.pop %v2495
    %v2508 = vtanh.pop %v2496
    %v2509 = vtanh.pop %v2497
    %v2510 = vtanh.pop %v2498
    %v2511 = vtanh.pop %v2499
    %v2512 = vtanh.pop %v2500
    %v2513 = vadd.f32 %v2501, 1.0
    %v2514 = vadd.f32 %v2502, 1.0
    %v2515 = vadd.f32 %v2503, 1.0
    %v2516 = vadd.f32 %v2504, 1.0
    %v2517 = vadd.f32 %v2505, 1.0
    %v2518 = vadd.f32 %v2506, 1.0
    %v2519 = vadd.f32 %v2507, 1.0
    %v2520 = vadd.f32 %v2508, 1.0
    %v2521 = vadd.f32 %v2509, 1.0
    %v2522 = vadd.f32 %v2510, 1.0
    %v2523 = vadd.f32 %v2511, 1.0
    %v2524 = vadd.f32 %v2512, 1.0
    %v2525 = vmul.f32 %v2513, 0.5
    %v2526 = vmul.f32 %v2514, 0.5
    %v2527 = vmul.f32 %v2515, 0.5
    %v2528 = vmul.f32 %v2516, 0.5
    %v2529 = vmul.f32 %v2517, 0.5
    %v2530 = vmul.f32 %v2518, 0.5
    %v2531 = vmul.f32 %v2519, 0.5
    %v2532 = vmul.f32 %v2520, 0.5
    %v2533 = vmul.f32 %v2521, 0.5
    %v2534 = vmul.f32 %v2522, 0.5
    %v2535 = vmul.f32 %v2523, 0.5
    %v2536 = vmul.f32 %v2524, 0.5
    %v2537 = vtanh.pop %v2411
    %v2538 = vtanh.pop %v2414
    %v2539 = vtanh.pop %v2419
    %v2540 = vtanh.pop %v2422
    %v2541 = vmul.f32 %v2529, %v2225
    %v2542 = vmul.f32 %v2530, %v2226
    %v2543 = vmul.f32 %v2531, %v2227
    %v2544 = vmul.f32 %v2532, %v2228
    %v2545 = vmul.f32 %v2525, %v2537
    %v2546 = vmul.f32 %v2526, %v2538
    %v2547 = vmul.f32 %v2527, %v2539
    %v2548 = vmul.f32 %v2528, %v2540
    %v2549 = vadd.f32 %v2541, %v2545
    %v2550 = vadd.f32 %v2542, %v2546
    %v2551 = vadd.f32 %v2543, %v2547
    %v2552 = vadd.f32 %v2544, %v2548
    %v2553 = vtanh.pop %v2549
    %v2554 = vtanh.pop %v2550
    %v2555 = vtanh.pop %v2551
    %v2556 = vtanh.pop %v2552
    %v2557 = vmul.f32 %v2533, %v2553
    %v2558 = vmul.f32 %v2534, %v2554
    %v2559 = vmul.f32 %v2535, %v2555
    %v2560 = vmul.f32 %v2536, %v2556
    %v2561 = vmul.f32 %v2427, 0.5
    %v2562 = vmul.f32 %v2430, 0.5
    %v2563 = vmul.f32 %v2435, 0.5
    %v2564 = vmul.f32 %v2438, 0.5
    %v2565 = vmul.f32 %v2443, 0.5
    %v2566 = vmul.f32 %v2446, 0.5
    %v2567 = vmul.f32 %v2451, 0.5
    %v2568 = vmul.f32 %v2454, 0.5
    %v2569 = vmul.f32 %v2459, 0.5
    %v2570 = vmul.f32 %v2462, 0.5
    %v2571 = vmul.f32 %v2467, 0.5
    %v2572 = vmul.f32 %v2470, 0.5
    %v2573 = vtanh.pop %v2561
    %v2574 = vtanh.pop %v2562
    %v2575 = vtanh.pop %v2563
    %v2576 = vtanh.pop %v2564
    %v2577 = vtanh.pop %v2565
    %v2578 = vtanh.pop %v2566
    %v2579 = vtanh.pop %v2567
    %v2580 = vtanh.pop %v2568
    %v2581 = vtanh.pop %v2569
    %v2582 = vtanh.pop %v2570
    %v2583 = vtanh.pop %v2571
    %v2584 = vtanh.pop %v2572
    %v2585 = vadd.f32 %v2573, 1.0
    %v2586 = vadd.f32 %v2574, 1.0
    %v2587 = vadd.f32 %v2575, 1.0
    %v2588 = vadd.f32 %v2576, 1.0
    %v2589 = vadd.f32 %v2577, 1.0
    %v2590 = vadd.f32 %v2578, 1.0
    %v2591 = vadd.f32 %v2579, 1.0
    %v2592 = vadd.f32 %v2580, 1.0
    %v2593 = vadd.f32 %v2581, 1.0
    %v2594 = vadd.f32 %v2582, 1.0
    %v2595 = vadd.f32 %v2583, 1.0
    %v2596 = vadd.f32 %v2584, 1.0
    %v2597 = vmul.f32 %v2585, 0.5
    %v2598 = vmul.f32 %v2586, 0.5
    %v2599 = vmul.f32 %v2587, 0.5
    %v2600 = vmul.f32 %v2588, 0.5
    %v2601 = vmul.f32 %v2589, 0.5
    %v2602 = vmul.f32 %v2590, 0.5
    %v2603 = vmul.f32 %v2591, 0.5
    %v2604 = vmul.f32 %v2592, 0.5
    %v2605 = vmul.f32 %v2593, 0.5
    %v2606 = vmul.f32 %v2594, 0.5
    %v2607 = vmul.f32 %v2595, 0.5
    %v2608 = vmul.f32 %v2596, 0.5
    %v2609 = vtanh.pop %v2475
    %v2610 = vtanh.pop %v2478
    %v2611 = vtanh.pop %v2483
    %v2612 = vtanh.pop %v2486
    %v2613 = vmul.f32 %v2601, %v2297
    %v2614 = vmul.f32 %v2602, %v2298
    %v2615 = vmul.f32 %v2603, %v2299
    %v2616 = vmul.f32 %v2604, %v2300
    %v2617 = vmul.f32 %v2597, %v2609
    %v2618 = vmul.f32 %v2598, %v2610
    %v2619 = vmul.f32 %v2599, %v2611
    %v2620 = vmul.f32 %v2600, %v2612
    %v2621 = vadd.f32 %v2613, %v2617
    %v2622 = vadd.f32 %v2614, %v2618
    %v2623 = vadd.f32 %v2615, %v2619
    %v2624 = vadd.f32 %v2616, %v2620
    %v2625 = vtanh.pop %v2621
    %v2626 = vtanh.pop %v2622
    %v2627 = vtanh.pop %v2623
    %v2628 = vtanh.pop %v2624
    %v2629 = vmul.f32 %v2605, %v2625
    %v2630 = vmul.f32 %v2606, %v2626
    %v2631 = vmul.f32 %v2607, %v2627
    %v2632 = vmul.f32 %v2608, %v2628
    %v2633 = vpack.c.bf16 %v2558, %v2557
    %v2634 = vpack.c.bf16 %v2560, %v2559
    %s2635 = scalar_lea.vmem [#allocation2], 96
    %2636 = vst [vmem:[%s2635] sm:$0xff] %v2633
    %2637 = vst [vmem:[%s2635 + $0x8] sm:$0xff] %v2634
    %v2638 = vpack.c.bf16 %v2630, %v2629
    %v2639 = vpack.c.bf16 %v2632, %v2631
    %s2640 = scalar_lea.vmem [#allocation3], 144
    %2641 = vst [vmem:[%s2640] sm:$0xff] %v2638
    %2642 = vst [vmem:[%s2640 + $0x8] sm:$0xff] %v2639
    %s2643 = scalar_lea.vmem %s0, 56
    %v2644 = vld [vmem:[%s2643] sm:$0xf]
    %v2645 = vld [vmem:[%s2643 + $0x4] sm:$0xf]
    %v2648 = vunpack.c.l.b16 %v2644
    %v2649 = vunpack.c.l.b16 %v2645
    %v2650 = vpack.c.b16 %v2649, %v2648
    %2652 = vmatprep.subr.bf16.mxu0 0
    %2653 = vmatpush1.bf16.msra.mxu0 %v2650
    %2654 = vmatprep.subr.bf16.mxu0 0
    %2655 = vmatpush1.bf16.msra.mxu0 %v2633
    %2656 = vmatprep.subr.bf16.mxu0 0
    %2657 = vmatpush1.bf16.msra.mxu0 %v2634
    %2658 = vmatprep.subr.bf16.mxu0 0
    %2659 = vmatpush1.bf16.msra.mxu0 %v2638
    %2660 = vmatprep.subr.bf16.mxu0 0
    %2661 = vmatpush1.bf16.msra.mxu0 %v2639
    %2662 = vmatprep.subr.bf16.mxu0 0
    %2663 = vmatpush1.bf16.msra.mxu0 0
    %2664 = vmatprep.subr.bf16.mxu0 0
    %2665 = vmatpush1.bf16.msra.mxu0 0
    %2666 = vmatprep.subr.bf16.mxu0 0
    %2667 = vmatpush1.bf16.msra.mxu0 0
    %2668 = vmatprep.subr.bf16.mxu0 0
    %2669 = vmatpush1.bf16.msra.mxu0 0
    %2670 = vmatprep.subr.bf16.mxu0 0
    %2671 = vmatpush1.bf16.msra.mxu0 0
    %2672 = vmatprep.subr.bf16.mxu0 0
    %2673 = vmatpush1.bf16.msra.mxu0 0
    %2674 = vmatprep.subr.bf16.mxu0 0
    %2675 = vmatpush1.bf16.msra.mxu0 0
    %2676 = vmatprep.subr.bf16.mxu0 0
    %2677 = vmatpush1.bf16.msra.mxu0 0
    %2678 = vmatprep.subr.bf16.mxu0 0
    %2679 = vmatpush1.bf16.msra.mxu0 0
    %2680 = vmatprep.subr.bf16.mxu0 0
    %2681 = vmatpush1.bf16.msra.mxu0 0
    %2682 = vmatprep.subr.bf16.mxu0 0
    %2683 = vmatpush1.bf16.msra.mxu0 0
    %2684 = vmatprep.mubr.bf16.mxu0 0
    %2685 = vmatmul.mubr.bf16.gmra.mrb[0].mxu0 %v338
    %v2686 = vpop.f32.mrb[0].mxu0
    %v2687 = vadd.f32 %v99, %v2686
    %v2688 = vpop.f32.mrb[0].mxu0
    %v2689 = vpop.f32.mrb[0].mxu0
    %v2690 = vadd.f32 %v104, %v2689
    %v2691 = vpop.f32.mrb[0].mxu0
    %2692 = vmatprep.mubr.bf16.mxu0 0
    %2693 = vmatmul.mubr.bf16.gmra.mrb[0].mxu0 %v341
    %v2694 = vpop.f32.mrb[0].mxu0
    %v2695 = vadd.f32 %v109, %v2694
    %v2696 = vpop.f32.mrb[0].mxu0
    %v2697 = vpop.f32.mrb[0].mxu0
    %v2698 = vadd.f32 %v114, %v2697
    %v2699 = vpop.f32.mrb[0].mxu0
    %2700 = vmatprep.mubr.bf16.mxu0 0
    %2701 = vmatmul.mubr.bf16.gmra.mrb[0].mxu0 %v344
    %v2702 = vpop.f32.mrb[0].mxu0
    %v2703 = vadd.f32 %v119, %v2702
    %v2704 = vpop.f32.mrb[0].mxu0
    %v2705 = vpop.f32.mrb[0].mxu0
    %v2706 = vadd.f32 %v124, %v2705
    %v2707 = vpop.f32.mrb[0].mxu0
    %2708 = vmatprep.mubr.bf16.mxu0 0
    %2709 = vmatmul.mubr.bf16.gmra.mrb[0].mxu0 %v347
    %v2710 = vpop.f32.mrb[0].mxu0
    %v2711 = vadd.f32 %v129, %v2710
    %v2712 = vpop.f32.mrb[0].mxu0
    %v2713 = vpop.f32.mrb[0].mxu0
    %v2714 = vadd.f32 %v134, %v2713
    %v2715 = vpop.f32.mrb[0].mxu0
    %2716 = vmatprep.mubr.bf16.mxu0 0
    %2717 = vmatmul.mubr.bf16.gmra.mrb[0].mxu0 %v350
    %v2718 = vpop.f32.mrb[0].mxu0
    %v2719 = vadd.f32 %v139, %v2718
    %v2720 = vpop.f32.mrb[0].mxu0
    %v2721 = vpop.f32.mrb[0].mxu0
    %v2722 = vadd.f32 %v144, %v2721
    %v2723 = vpop.f32.mrb[0].mxu0
    %2724 = vmatprep.mubr.bf16.mxu0 0
    %2725 = vmatmul.mubr.bf16.gmra.mrb[0].mxu0 %v353
    %v2726 = vpop.f32.mrb[0].mxu0
    %v2727 = vadd.f32 %v149, %v2726
    %v2728 = vpop.f32.mrb[0].mxu0
    %v2729 = vpop.f32.mrb[0].mxu0
    %v2730 = vadd.f32 %v154, %v2729
    %v2731 = vpop.f32.mrb[0].mxu0
    %2732 = vmatprep.mubr.bf16.mxu0 0
    %2733 = vmatmul.mubr.bf16.gmra.mrb[0].mxu0 %v356
    %v2734 = vpop.f32.mrb[0].mxu0
    %v2735 = vadd.f32 %v159, %v2734
    %v2736 = vpop.f32.mrb[0].mxu0
    %v2737 = vpop.f32.mrb[0].mxu0
    %v2738 = vadd.f32 %v164, %v2737
    %v2739 = vpop.f32.mrb[0].mxu0
    %2740 = vmatprep.mubr.bf16.mxu0 0
    %2741 = vmatmul.mubr.bf16.gmra.mrb[0].mxu0 %v359
    %v2742 = vpop.f32.mrb[0].mxu0
    %v2743 = vadd.f32 %v169, %v2742
    %v2744 = vpop.f32.mrb[0].mxu0
    %v2745 = vpop.f32.mrb[0].mxu0
    %v2746 = vadd.f32 %v174, %v2745
    %v2747 = vpop.f32.mrb[0].mxu0
    %2748 = vmatprep.mubr.bf16.mxu0 0
    %2749 = vmatmul.mubr.bf16.gmra.mrb[0].mxu0 %v362
    %v2750 = vpop.f32.mrb[0].mxu0
    %v2751 = vadd.f32 %v179, %v2750
    %v2752 = vpop.f32.mrb[0].mxu0
    %v2753 = vpop.f32.mrb[0].mxu0
    %v2754 = vadd.f32 %v184, %v2753
    %v2755 = vpop.f32.mrb[0].mxu0
    %2756 = vmatprep.mubr.bf16.mxu0 0
    %2757 = vmatmul.mubr.bf16.gmra.mrb[0].mxu0 %v365
    %v2758 = vpop.f32.mrb[0].mxu0
    %v2759 = vadd.f32 %v189, %v2758
    %v2760 = vpop.f32.mrb[0].mxu0
    %v2761 = vpop.f32.mrb[0].mxu0
    %v2762 = vadd.f32 %v194, %v2761
    %v2763 = vpop.f32.mrb[0].mxu0
    %2764 = vmatprep.mubr.bf16.mxu0 0
    %2765 = vmatmul.mubr.bf16.gmra.mrb[0].mxu0 %v368
    %v2766 = vpop.f32.mrb[0].mxu0
    %v2767 = vadd.f32 %v199, %v2766
    %v2768 = vpop.f32.mrb[0].mxu0
    %v2769 = vpop.f32.mrb[0].mxu0
    %v2770 = vadd.f32 %v204, %v2769
    %v2771 = vpop.f32.mrb[0].mxu0
    %2772 = vmatprep.mubr.bf16.mxu0 0
    %2773 = vmatmul.mubr.bf16.gmra.mrb[0].mxu0 %v371
    %v2774 = vpop.f32.mrb[0].mxu0
    %v2775 = vadd.f32 %v209, %v2774
    %v2776 = vpop.f32.mrb[0].mxu0
    %v2777 = vpop.f32.mrb[0].mxu0
    %v2778 = vadd.f32 %v214, %v2777
    %v2779 = vpop.f32.mrb[0].mxu0
    %2780 = vmatprep.mubr.bf16.mxu0 0
    %2781 = vmatmul.mubr.bf16.gmra.mrb[0].mxu0 %v374
    %v2782 = vpop.f32.mrb[0].mxu0
    %v2783 = vadd.f32 %v219, %v2782
    %v2784 = vpop.f32.mrb[0].mxu0
    %v2785 = vpop.f32.mrb[0].mxu0
    %v2786 = vadd.f32 %v224, %v2785
    %v2787 = vpop.f32.mrb[0].mxu0
    %2788 = vmatprep.mubr.bf16.mxu0 0
    %2789 = vmatmul.mubr.bf16.gmra.mrb[0].mxu0 %v377
    %v2790 = vpop.f32.mrb[0].mxu0
    %v2791 = vadd.f32 %v229, %v2790
    %v2792 = vpop.f32.mrb[0].mxu0
    %v2793 = vpop.f32.mrb[0].mxu0
    %v2794 = vadd.f32 %v234, %v2793
    %v2795 = vpop.f32.mrb[0].mxu0
    %2796 = vmatprep.mubr.bf16.mxu0 0
    %2797 = vmatmul.mubr.bf16.gmra.mrb[0].mxu0 %v380
    %v2798 = vpop.f32.mrb[0].mxu0
    %v2799 = vadd.f32 %v239, %v2798
    %v2800 = vpop.f32.mrb[0].mxu0
    %v2801 = vpop.f32.mrb[0].mxu0
    %v2802 = vadd.f32 %v244, %v2801
    %v2803 = vpop.f32.mrb[0].mxu0
    %2804 = vmatprep.mubr.bf16.mxu0 0
    %2805 = vmatmul.mubr.bf16.gmra.mrb[0].mxu0 %v383
    %v2806 = vpop.f32.mrb[0].mxu0
    %v2807 = vadd.f32 %v249, %v2806
    %v2808 = vpop.f32.mrb[0].mxu0
    %v2809 = vpop.f32.mrb[0].mxu0
    %v2810 = vadd.f32 %v254, %v2809
    %v2811 = vpop.f32.mrb[0].mxu0
    %2812 = vdwg.mxu0
    %v2813 = vmul.f32 %v2687, 0.5
    %v2814 = vmul.f32 %v2690, 0.5
    %v2815 = vmul.f32 %v2695, 0.5
    %v2816 = vmul.f32 %v2698, 0.5
    %v2817 = vmul.f32 %v2703, 0.5
    %v2818 = vmul.f32 %v2706, 0.5
    %v2819 = vmul.f32 %v2711, 0.5
    %v2820 = vmul.f32 %v2714, 0.5
    %v2821 = vmul.f32 %v2719, 0.5
    %v2822 = vmul.f32 %v2722, 0.5
    %v2823 = vmul.f32 %v2727, 0.5
    %v2824 = vmul.f32 %v2730, 0.5
    %v2825 = vtanh.pop %v2813
    %v2826 = vtanh.pop %v2814
    %v2827 = vtanh.pop %v2815
    %v2828 = vtanh.pop %v2816
    %v2829 = vtanh.pop %v2817
    %v2830 = vtanh.pop %v2818
    %v2831 = vtanh.pop %v2819
    %v2832 = vtanh.pop %v2820
    %v2833 = vtanh.pop %v2821
    %v2834 = vtanh.pop %v2822
    %v2835 = vtanh.pop %v2823
    %v2836 = vtanh.pop %v2824
    %v2837 = vadd.f32 %v2825, 1.0
    %v2838 = vadd.f32 %v2826, 1.0
    %v2839 = vadd.f32 %v2827, 1.0
    %v2840 = vadd.f32 %v2828, 1.0
    %v2841 = vadd.f32 %v2829, 1.0
    %v2842 = vadd.f32 %v2830, 1.0
    %v2843 = vadd.f32 %v2831, 1.0
    %v2844 = vadd.f32 %v2832, 1.0
    %v2845 = vadd.f32 %v2833, 1.0
    %v2846 = vadd.f32 %v2834, 1.0
    %v2847 = vadd.f32 %v2835, 1.0
    %v2848 = vadd.f32 %v2836, 1.0
    %v2849 = vmul.f32 %v2837, 0.5
    %v2850 = vmul.f32 %v2838, 0.5
    %v2851 = vmul.f32 %v2839, 0.5
    %v2852 = vmul.f32 %v2840, 0.5
    %v2853 = vmul.f32 %v2841, 0.5
    %v2854 = vmul.f32 %v2842, 0.5
    %v2855 = vmul.f32 %v2843, 0.5
    %v2856 = vmul.f32 %v2844, 0.5
    %v2857 = vmul.f32 %v2845, 0.5
    %v2858 = vmul.f32 %v2846, 0.5
    %v2859 = vmul.f32 %v2847, 0.5
    %v2860 = vmul.f32 %v2848, 0.5
    %v2861 = vtanh.pop %v2735
    %v2862 = vtanh.pop %v2738
    %v2863 = vtanh.pop %v2743
    %v2864 = vtanh.pop %v2746
    %v2865 = vmul.f32 %v2853, %v2549
    %v2866 = vmul.f32 %v2854, %v2550
    %v2867 = vmul.f32 %v2855, %v2551
    %v2868 = vmul.f32 %v2856, %v2552
    %v2869 = vmul.f32 %v2849, %v2861
    %v2870 = vmul.f32 %v2850, %v2862
    %v2871 = vmul.f32 %v2851, %v2863
    %v2872 = vmul.f32 %v2852, %v2864
    %v2873 = vadd.f32 %v2865, %v2869
    %v2874 = vadd.f32 %v2866, %v2870
    %v2875 = vadd.f32 %v2867, %v2871
    %v2876 = vadd.f32 %v2868, %v2872
    %v2877 = vtanh.pop %v2873
    %v2878 = vtanh.pop %v2874
    %v2879 = vtanh.pop %v2875
    %v2880 = vtanh.pop %v2876
    %v2881 = vmul.f32 %v2857, %v2877
    %v2882 = vmul.f32 %v2858, %v2878
    %v2883 = vmul.f32 %v2859, %v2879
    %v2884 = vmul.f32 %v2860, %v2880
    %v2885 = vmul.f32 %v2751, 0.5
    %v2886 = vmul.f32 %v2754, 0.5
    %v2887 = vmul.f32 %v2759, 0.5
    %v2888 = vmul.f32 %v2762, 0.5
    %v2889 = vmul.f32 %v2767, 0.5
    %v2890 = vmul.f32 %v2770, 0.5
    %v2891 = vmul.f32 %v2775, 0.5
    %v2892 = vmul.f32 %v2778, 0.5
    %v2893 = vmul.f32 %v2783, 0.5
    %v2894 = vmul.f32 %v2786, 0.5
    %v2895 = vmul.f32 %v2791, 0.5
    %v2896 = vmul.f32 %v2794, 0.5
    %v2897 = vtanh.pop %v2885
    %v2898 = vtanh.pop %v2886
    %v2899 = vtanh.pop %v2887
    %v2900 = vtanh.pop %v2888
    %v2901 = vtanh.pop %v2889
    %v2902 = vtanh.pop %v2890
    %v2903 = vtanh.pop %v2891
    %v2904 = vtanh.pop %v2892
    %v2905 = vtanh.pop %v2893
    %v2906 = vtanh.pop %v2894
    %v2907 = vtanh.pop %v2895
    %v2908 = vtanh.pop %v2896
    %v2909 = vadd.f32 %v2897, 1.0
    %v2910 = vadd.f32 %v2898, 1.0
    %v2911 = vadd.f32 %v2899, 1.0
    %v2912 = vadd.f32 %v2900, 1.0
    %v2913 = vadd.f32 %v2901, 1.0
    %v2914 = vadd.f32 %v2902, 1.0
    %v2915 = vadd.f32 %v2903, 1.0
    %v2916 = vadd.f32 %v2904, 1.0
    %v2917 = vadd.f32 %v2905, 1.0
    %v2918 = vadd.f32 %v2906, 1.0
    %v2919 = vadd.f32 %v2907, 1.0
    %v2920 = vadd.f32 %v2908, 1.0
    %v2921 = vmul.f32 %v2909, 0.5
    %v2922 = vmul.f32 %v2910, 0.5
    %v2923 = vmul.f32 %v2911, 0.5
    %v2924 = vmul.f32 %v2912, 0.5
    %v2925 = vmul.f32 %v2913, 0.5
    %v2926 = vmul.f32 %v2914, 0.5
    %v2927 = vmul.f32 %v2915, 0.5
    %v2928 = vmul.f32 %v2916, 0.5
    %v2929 = vmul.f32 %v2917, 0.5
    %v2930 = vmul.f32 %v2918, 0.5
    %v2931 = vmul.f32 %v2919, 0.5
    %v2932 = vmul.f32 %v2920, 0.5
    %v2933 = vtanh.pop %v2799
    %v2934 = vtanh.pop %v2802
    %v2935 = vtanh.pop %v2807
    %v2936 = vtanh.pop %v2810
    %v2937 = vmul.f32 %v2925, %v2621
    %v2938 = vmul.f32 %v2926, %v2622
    %v2939 = vmul.f32 %v2927, %v2623
    %v2940 = vmul.f32 %v2928, %v2624
    %v2941 = vmul.f32 %v2921, %v2933
    %v2942 = vmul.f32 %v2922, %v2934
    %v2943 = vmul.f32 %v2923, %v2935
    %v2944 = vmul.f32 %v2924, %v2936
    %v2945 = vadd.f32 %v2937, %v2941
    %v2946 = vadd.f32 %v2938, %v2942
    %v2947 = vadd.f32 %v2939, %v2943
    %v2948 = vadd.f32 %v2940, %v2944
    %v2949 = vtanh.pop %v2945
    %v2950 = vtanh.pop %v2946
    %v2951 = vtanh.pop %v2947
    %v2952 = vtanh.pop %v2948
    %v2953 = vmul.f32 %v2929, %v2949
    %v2954 = vmul.f32 %v2930, %v2950
    %v2955 = vmul.f32 %v2931, %v2951
    %v2956 = vmul.f32 %v2932, %v2952
    %v2957 = vpack.c.bf16 %v2882, %v2881
    %v2958 = vpack.c.bf16 %v2884, %v2883
    %s2959 = scalar_lea.vmem [#allocation2], 112
    %2960 = vst [vmem:[%s2959] sm:$0xff] %v2957
    %2961 = vst [vmem:[%s2959 + $0x8] sm:$0xff] %v2958
    %v2962 = vpack.c.bf16 %v2954, %v2953
    %v2963 = vpack.c.bf16 %v2956, %v2955
    %s2964 = scalar_lea.vmem [#allocation3], 128
    %2965 = vst [vmem:[%s2964] sm:$0xff] %v2962
    %2966 = vst [vmem:[%s2964 + $0x8] sm:$0xff] %v2963
    %s2967 = scalar_lea.vmem %s0, 64
    %v2968 = vld [vmem:[%s2967] sm:$0xf]
    %v2969 = vld [vmem:[%s2967 + $0x4] sm:$0xf]
    %v2972 = vunpack.c.l.b16 %v2968
    %v2973 = vunpack.c.l.b16 %v2969
    %v2974 = vpack.c.b16 %v2973, %v2972
    %2976 = vmatprep.subr.bf16.mxu0 0
    %2977 = vmatpush1.bf16.msra.mxu0 %v2974
    %2978 = vmatprep.subr.bf16.mxu0 0
    %2979 = vmatpush1.bf16.msra.mxu0 %v2957
    %2980 = vmatprep.subr.bf16.mxu0 0
    %2981 = vmatpush1.bf16.msra.mxu0 %v2958
    %2982 = vmatprep.subr.bf16.mxu0 0
    %2983 = vmatpush1.bf16.msra.mxu0 %v2962
    %2984 = vmatprep.subr.bf16.mxu0 0
    %2985 = vmatpush1.bf16.msra.mxu0 %v2963
    %2986 = vmatprep.subr.bf16.mxu0 0
    %2987 = vmatpush1.bf16.msra.mxu0 0
    %2988 = vmatprep.subr.bf16.mxu0 0
    %2989 = vmatpush1.bf16.msra.mxu0 0
    %2990 = vmatprep.subr.bf16.mxu0 0
    %2991 = vmatpush1.bf16.msra.mxu0 0
    %2992 = vmatprep.subr.bf16.mxu0 0
    %2993 = vmatpush1.bf16.msra.mxu0 0
    %2994 = vmatprep.subr.bf16.mxu0 0
    %2995 = vmatpush1.bf16.msra.mxu0 0
    %2996 = vmatprep.subr.bf16.mxu0 0
    %2997 = vmatpush1.bf16.msra.mxu0 0
    %2998 = vmatprep.subr.bf16.mxu0 0
    %2999 = vmatpush1.bf16.msra.mxu0 0
    %3000 = vmatprep.subr.bf16.mxu0 0
    %3001 = vmatpush1.bf16.msra.mxu0 0
    %3002 = vmatprep.subr.bf16.mxu0 0
    %3003 = vmatpush1.bf16.msra.mxu0 0
    %3004 = vmatprep.subr.bf16.mxu0 0
    %3005 = vmatpush1.bf16.msra.mxu0 0
    %3006 = vmatprep.subr.bf16.mxu0 0
    %3007 = vmatpush1.bf16.msra.mxu0 0
    %3008 = vmatprep.mubr.bf16.mxu0 0
    %3009 = vmatmul.mubr.bf16.gmra.mrb[0].mxu0 %v338
    %v3010 = vpop.f32.mrb[0].mxu0
    %v3011 = vadd.f32 %v99, %v3010
    %v3012 = vpop.f32.mrb[0].mxu0
    %v3013 = vpop.f32.mrb[0].mxu0
    %v3014 = vadd.f32 %v104, %v3013
    %v3015 = vpop.f32.mrb[0].mxu0
    %3016 = vmatprep.mubr.bf16.mxu0 0
    %3017 = vmatmul.mubr.bf16.gmra.mrb[0].mxu0 %v341
    %v3018 = vpop.f32.mrb[0].mxu0
    %v3019 = vadd.f32 %v109, %v3018
    %v3020 = vpop.f32.mrb[0].mxu0
    %v3021 = vpop.f32.mrb[0].mxu0
    %v3022 = vadd.f32 %v114, %v3021
    %v3023 = vpop.f32.mrb[0].mxu0
    %3024 = vmatprep.mubr.bf16.mxu0 0
    %3025 = vmatmul.mubr.bf16.gmra.mrb[0].mxu0 %v344
    %v3026 = vpop.f32.mrb[0].mxu0
    %v3027 = vadd.f32 %v119, %v3026
    %v3028 = vpop.f32.mrb[0].mxu0
    %v3029 = vpop.f32.mrb[0].mxu0
    %v3030 = vadd.f32 %v124, %v3029
    %v3031 = vpop.f32.mrb[0].mxu0
    %3032 = vmatprep.mubr.bf16.mxu0 0
    %3033 = vmatmul.mubr.bf16.gmra.mrb[0].mxu0 %v347
    %v3034 = vpop.f32.mrb[0].mxu0
    %v3035 = vadd.f32 %v129, %v3034
    %v3036 = vpop.f32.mrb[0].mxu0
    %v3037 = vpop.f32.mrb[0].mxu0
    %v3038 = vadd.f32 %v134, %v3037
    %v3039 = vpop.f32.mrb[0].mxu0
    %3040 = vmatprep.mubr.bf16.mxu0 0
    %3041 = vmatmul.mubr.bf16.gmra.mrb[0].mxu0 %v350
    %v3042 = vpop.f32.mrb[0].mxu0
    %v3043 = vadd.f32 %v139, %v3042
    %v3044 = vpop.f32.mrb[0].mxu0
    %v3045 = vpop.f32.mrb[0].mxu0
    %v3046 = vadd.f32 %v144, %v3045
    %v3047 = vpop.f32.mrb[0].mxu0
    %3048 = vmatprep.mubr.bf16.mxu0 0
    %3049 = vmatmul.mubr.bf16.gmra.mrb[0].mxu0 %v353
    %v3050 = vpop.f32.mrb[0].mxu0
    %v3051 = vadd.f32 %v149, %v3050
    %v3052 = vpop.f32.mrb[0].mxu0
    %v3053 = vpop.f32.mrb[0].mxu0
    %v3054 = vadd.f32 %v154, %v3053
    %v3055 = vpop.f32.mrb[0].mxu0
    %3056 = vmatprep.mubr.bf16.mxu0 0
    %3057 = vmatmul.mubr.bf16.gmra.mrb[0].mxu0 %v356
    %v3058 = vpop.f32.mrb[0].mxu0
    %v3059 = vadd.f32 %v159, %v3058
    %v3060 = vpop.f32.mrb[0].mxu0
    %v3061 = vpop.f32.mrb[0].mxu0
    %v3062 = vadd.f32 %v164, %v3061
    %v3063 = vpop.f32.mrb[0].mxu0
    %3064 = vmatprep.mubr.bf16.mxu0 0
    %3065 = vmatmul.mubr.bf16.gmra.mrb[0].mxu0 %v359
    %v3066 = vpop.f32.mrb[0].mxu0
    %v3067 = vadd.f32 %v169, %v3066
    %v3068 = vpop.f32.mrb[0].mxu0
    %v3069 = vpop.f32.mrb[0].mxu0
    %v3070 = vadd.f32 %v174, %v3069
    %v3071 = vpop.f32.mrb[0].mxu0
    %3072 = vmatprep.mubr.bf16.mxu0 0
    %3073 = vmatmul.mubr.bf16.gmra.mrb[0].mxu0 %v362
    %v3074 = vpop.f32.mrb[0].mxu0
    %v3075 = vadd.f32 %v179, %v3074
    %v3076 = vpop.f32.mrb[0].mxu0
    %v3077 = vpop.f32.mrb[0].mxu0
    %v3078 = vadd.f32 %v184, %v3077
    %v3079 = vpop.f32.mrb[0].mxu0
    %3080 = vmatprep.mubr.bf16.mxu0 0
    %3081 = vmatmul.mubr.bf16.gmra.mrb[0].mxu0 %v365
    %v3082 = vpop.f32.mrb[0].mxu0
    %v3083 = vadd.f32 %v189, %v3082
    %v3084 = vpop.f32.mrb[0].mxu0
    %v3085 = vpop.f32.mrb[0].mxu0
    %v3086 = vadd.f32 %v194, %v3085
    %v3087 = vpop.f32.mrb[0].mxu0
    %3088 = vmatprep.mubr.bf16.mxu0 0
    %3089 = vmatmul.mubr.bf16.gmra.mrb[0].mxu0 %v368
    %v3090 = vpop.f32.mrb[0].mxu0
    %v3091 = vadd.f32 %v199, %v3090
    %v3092 = vpop.f32.mrb[0].mxu0
    %v3093 = vpop.f32.mrb[0].mxu0
    %v3094 = vadd.f32 %v204, %v3093
    %v3095 = vpop.f32.mrb[0].mxu0
    %3096 = vmatprep.mubr.bf16.mxu0 0
    %3097 = vmatmul.mubr.bf16.gmra.mrb[0].mxu0 %v371
    %v3098 = vpop.f32.mrb[0].mxu0
    %v3099 = vadd.f32 %v209, %v3098
    %v3100 = vpop.f32.mrb[0].mxu0
    %v3101 = vpop.f32.mrb[0].mxu0
    %v3102 = vadd.f32 %v214, %v3101
    %v3103 = vpop.f32.mrb[0].mxu0
    %3104 = vmatprep.mubr.bf16.mxu0 0
    %3105 = vmatmul.mubr.bf16.gmra.mrb[0].mxu0 %v374
    %v3106 = vpop.f32.mrb[0].mxu0
    %v3107 = vadd.f32 %v219, %v3106
    %v3108 = vpop.f32.mrb[0].mxu0
    %v3109 = vpop.f32.mrb[0].mxu0
    %v3110 = vadd.f32 %v224, %v3109
    %v3111 = vpop.f32.mrb[0].mxu0
    %3112 = vmatprep.mubr.bf16.mxu0 0
    %3113 = vmatmul.mubr.bf16.gmra.mrb[0].mxu0 %v377
    %v3114 = vpop.f32.mrb[0].mxu0
    %v3115 = vadd.f32 %v229, %v3114
    %v3116 = vpop.f32.mrb[0].mxu0
    %v3117 = vpop.f32.mrb[0].mxu0
    %v3118 = vadd.f32 %v234, %v3117
    %v3119 = vpop.f32.mrb[0].mxu0
    %3120 = vmatprep.mubr.bf16.mxu0 0
    %3121 = vmatmul.mubr.bf16.gmra.mrb[0].mxu0 %v380
    %v3122 = vpop.f32.mrb[0].mxu0
    %v3123 = vadd.f32 %v239, %v3122
    %v3124 = vpop.f32.mrb[0].mxu0
    %v3125 = vpop.f32.mrb[0].mxu0
    %v3126 = vadd.f32 %v244, %v3125
    %v3127 = vpop.f32.mrb[0].mxu0
    %3128 = vmatprep.mubr.bf16.mxu0 0
    %3129 = vmatmul.mubr.bf16.gmra.mrb[0].mxu0 %v383
    %v3130 = vpop.f32.mrb[0].mxu0
    %v3131 = vadd.f32 %v249, %v3130
    %v3132 = vpop.f32.mrb[0].mxu0
    %v3133 = vpop.f32.mrb[0].mxu0
    %v3134 = vadd.f32 %v254, %v3133
    %v3135 = vpop.f32.mrb[0].mxu0
    %3136 = vdwg.mxu0
    %v3137 = vmul.f32 %v3011, 0.5
    %v3138 = vmul.f32 %v3014, 0.5
    %v3139 = vmul.f32 %v3019, 0.5
    %v3140 = vmul.f32 %v3022, 0.5
    %v3141 = vmul.f32 %v3027, 0.5
    %v3142 = vmul.f32 %v3030, 0.5
    %v3143 = vmul.f32 %v3035, 0.5
    %v3144 = vmul.f32 %v3038, 0.5
    %v3145 = vmul.f32 %v3043, 0.5
    %v3146 = vmul.f32 %v3046, 0.5
    %v3147 = vmul.f32 %v3051, 0.5
    %v3148 = vmul.f32 %v3054, 0.5
    %v3149 = vtanh.pop %v3137
    %v3150 = vtanh.pop %v3138
    %v3151 = vtanh.pop %v3139
    %v3152 = vtanh.pop %v3140
    %v3153 = vtanh.pop %v3141
    %v3154 = vtanh.pop %v3142
    %v3155 = vtanh.pop %v3143
    %v3156 = vtanh.pop %v3144
    %v3157 = vtanh.pop %v3145
    %v3158 = vtanh.pop %v3146
    %v3159 = vtanh.pop %v3147
    %v3160 = vtanh.pop %v3148
    %v3161 = vadd.f32 %v3149, 1.0
    %v3162 = vadd.f32 %v3150, 1.0
    %v3163 = vadd.f32 %v3151, 1.0
    %v3164 = vadd.f32 %v3152, 1.0
    %v3165 = vadd.f32 %v3153, 1.0
    %v3166 = vadd.f32 %v3154, 1.0
    %v3167 = vadd.f32 %v3155, 1.0
    %v3168 = vadd.f32 %v3156, 1.0
    %v3169 = vadd.f32 %v3157, 1.0
    %v3170 = vadd.f32 %v3158, 1.0
    %v3171 = vadd.f32 %v3159, 1.0
    %v3172 = vadd.f32 %v3160, 1.0
    %v3173 = vmul.f32 %v3161, 0.5
    %v3174 = vmul.f32 %v3162, 0.5
    %v3175 = vmul.f32 %v3163, 0.5
    %v3176 = vmul.f32 %v3164, 0.5
    %v3177 = vmul.f32 %v3165, 0.5
    %v3178 = vmul.f32 %v3166, 0.5
    %v3179 = vmul.f32 %v3167, 0.5
    %v3180 = vmul.f32 %v3168, 0.5
    %v3181 = vmul.f32 %v3169, 0.5
    %v3182 = vmul.f32 %v3170, 0.5
    %v3183 = vmul.f32 %v3171, 0.5
    %v3184 = vmul.f32 %v3172, 0.5
    %v3185 = vtanh.pop %v3059
    %v3186 = vtanh.pop %v3062
    %v3187 = vtanh.pop %v3067
    %v3188 = vtanh.pop %v3070
    %v3189 = vmul.f32 %v3177, %v2873
    %v3190 = vmul.f32 %v3178, %v2874
    %v3191 = vmul.f32 %v3179, %v2875
    %v3192 = vmul.f32 %v3180, %v2876
    %v3193 = vmul.f32 %v3173, %v3185
    %v3194 = vmul.f32 %v3174, %v3186
    %v3195 = vmul.f32 %v3175, %v3187
    %v3196 = vmul.f32 %v3176, %v3188
    %v3197 = vadd.f32 %v3189, %v3193
    %v3198 = vadd.f32 %v3190, %v3194
    %v3199 = vadd.f32 %v3191, %v3195
    %v3200 = vadd.f32 %v3192, %v3196
    %v3201 = vtanh.pop %v3197
    %v3202 = vtanh.pop %v3198
    %v3203 = vtanh.pop %v3199
    %v3204 = vtanh.pop %v3200
    %v3205 = vmul.f32 %v3181, %v3201
    %v3206 = vmul.f32 %v3182, %v3202
    %v3207 = vmul.f32 %v3183, %v3203
    %v3208 = vmul.f32 %v3184, %v3204
    %v3209 = vmul.f32 %v3075, 0.5
    %v3210 = vmul.f32 %v3078, 0.5
    %v3211 = vmul.f32 %v3083, 0.5
    %v3212 = vmul.f32 %v3086, 0.5
    %v3213 = vmul.f32 %v3091, 0.5
    %v3214 = vmul.f32 %v3094, 0.5
    %v3215 = vmul.f32 %v3099, 0.5
    %v3216 = vmul.f32 %v3102, 0.5
    %v3217 = vmul.f32 %v3107, 0.5
    %v3218 = vmul.f32 %v3110, 0.5
    %v3219 = vmul.f32 %v3115, 0.5
    %v3220 = vmul.f32 %v3118, 0.5
    %v3221 = vtanh.pop %v3209
    %v3222 = vtanh.pop %v3210
    %v3223 = vtanh.pop %v3211
    %v3224 = vtanh.pop %v3212
    %v3225 = vtanh.pop %v3213
    %v3226 = vtanh.pop %v3214
    %v3227 = vtanh.pop %v3215
    %v3228 = vtanh.pop %v3216
    %v3229 = vtanh.pop %v3217
    %v3230 = vtanh.pop %v3218
    %v3231 = vtanh.pop %v3219
    %v3232 = vtanh.pop %v3220
    %v3233 = vadd.f32 %v3221, 1.0
    %v3234 = vadd.f32 %v3222, 1.0
    %v3235 = vadd.f32 %v3223, 1.0
    %v3236 = vadd.f32 %v3224, 1.0
    %v3237 = vadd.f32 %v3225, 1.0
    %v3238 = vadd.f32 %v3226, 1.0
    %v3239 = vadd.f32 %v3227, 1.0
    %v3240 = vadd.f32 %v3228, 1.0
    %v3241 = vadd.f32 %v3229, 1.0
    %v3242 = vadd.f32 %v3230, 1.0
    %v3243 = vadd.f32 %v3231, 1.0
    %v3244 = vadd.f32 %v3232, 1.0
    %v3245 = vmul.f32 %v3233, 0.5
    %v3246 = vmul.f32 %v3234, 0.5
    %v3247 = vmul.f32 %v3235, 0.5
    %v3248 = vmul.f32 %v3236, 0.5
    %v3249 = vmul.f32 %v3237, 0.5
    %v3250 = vmul.f32 %v3238, 0.5
    %v3251 = vmul.f32 %v3239, 0.5
    %v3252 = vmul.f32 %v3240, 0.5
    %v3253 = vmul.f32 %v3241, 0.5
    %v3254 = vmul.f32 %v3242, 0.5
    %v3255 = vmul.f32 %v3243, 0.5
    %v3256 = vmul.f32 %v3244, 0.5
    %v3257 = vtanh.pop %v3123
    %v3258 = vtanh.pop %v3126
    %v3259 = vtanh.pop %v3131
    %v3260 = vtanh.pop %v3134
    %v3261 = vmul.f32 %v3249, %v2945
    %v3262 = vmul.f32 %v3250, %v2946
    %v3263 = vmul.f32 %v3251, %v2947
    %v3264 = vmul.f32 %v3252, %v2948
    %v3265 = vmul.f32 %v3245, %v3257
    %v3266 = vmul.f32 %v3246, %v3258
    %v3267 = vmul.f32 %v3247, %v3259
    %v3268 = vmul.f32 %v3248, %v3260
    %v3269 = vadd.f32 %v3261, %v3265
    %v3270 = vadd.f32 %v3262, %v3266
    %v3271 = vadd.f32 %v3263, %v3267
    %v3272 = vadd.f32 %v3264, %v3268
    %v3273 = vtanh.pop %v3269
    %v3274 = vtanh.pop %v3270
    %v3275 = vtanh.pop %v3271
    %v3276 = vtanh.pop %v3272
    %v3277 = vmul.f32 %v3253, %v3273
    %v3278 = vmul.f32 %v3254, %v3274
    %v3279 = vmul.f32 %v3255, %v3275
    %v3280 = vmul.f32 %v3256, %v3276
    %v3281 = vpack.c.bf16 %v3206, %v3205
    %v3282 = vpack.c.bf16 %v3208, %v3207
    %s3283 = scalar_lea.vmem [#allocation2], 128
    %3284 = vst [vmem:[%s3283] sm:$0xff] %v3281
    %3285 = vst [vmem:[%s3283 + $0x8] sm:$0xff] %v3282
    %v3286 = vpack.c.bf16 %v3278, %v3277
    %v3287 = vpack.c.bf16 %v3280, %v3279
    %s3288 = scalar_lea.vmem [#allocation3], 112
    %3289 = vst [vmem:[%s3288] sm:$0xff] %v3286
    %3290 = vst [vmem:[%s3288 + $0x8] sm:$0xff] %v3287
    %s3291 = scalar_lea.vmem %s0, 72
    %v3292 = vld [vmem:[%s3291] sm:$0xf]
    %v3293 = vld [vmem:[%s3291 + $0x4] sm:$0xf]
    %v3296 = vunpack.c.l.b16 %v3292
    %v3297 = vunpack.c.l.b16 %v3293
    %v3298 = vpack.c.b16 %v3297, %v3296
    %3300 = vmatprep.subr.bf16.mxu0 0
    %3301 = vmatpush1.bf16.msra.mxu0 %v3298
    %3302 = vmatprep.subr.bf16.mxu0 0
    %3303 = vmatpush1.bf16.msra.mxu0 %v3281
    %3304 = vmatprep.subr.bf16.mxu0 0
    %3305 = vmatpush1.bf16.msra.mxu0 %v3282
    %3306 = vmatprep.subr.bf16.mxu0 0
    %3307 = vmatpush1.bf16.msra.mxu0 %v3286
    %3308 = vmatprep.subr.bf16.mxu0 0
    %3309 = vmatpush1.bf16.msra.mxu0 %v3287
    %3310 = vmatprep.subr.bf16.mxu0 0
    %3311 = vmatpush1.bf16.msra.mxu0 0
    %3312 = vmatprep.subr.bf16.mxu0 0
    %3313 = vmatpush1.bf16.msra.mxu0 0
    %3314 = vmatprep.subr.bf16.mxu0 0
    %3315 = vmatpush1.bf16.msra.mxu0 0
    %3316 = vmatprep.subr.bf16.mxu0 0
    %3317 = vmatpush1.bf16.msra.mxu0 0
    %3318 = vmatprep.subr.bf16.mxu0 0
    %3319 = vmatpush1.bf16.msra.mxu0 0
    %3320 = vmatprep.subr.bf16.mxu0 0
    %3321 = vmatpush1.bf16.msra.mxu0 0
    %3322 = vmatprep.subr.bf16.mxu0 0
    %3323 = vmatpush1.bf16.msra.mxu0 0
    %3324 = vmatprep.subr.bf16.mxu0 0
    %3325 = vmatpush1.bf16.msra.mxu0 0
    %3326 = vmatprep.subr.bf16.mxu0 0
    %3327 = vmatpush1.bf16.msra.mxu0 0
    %3328 = vmatprep.subr.bf16.mxu0 0
    %3329 = vmatpush1.bf16.msra.mxu0 0
    %3330 = vmatprep.subr.bf16.mxu0 0
    %3331 = vmatpush1.bf16.msra.mxu0 0
    %3332 = vmatprep.mubr.bf16.mxu0 0
    %3333 = vmatmul.mubr.bf16.gmra.mrb[0].mxu0 %v338
    %v3334 = vpop.f32.mrb[0].mxu0
    %v3335 = vadd.f32 %v99, %v3334
    %v3336 = vpop.f32.mrb[0].mxu0
    %v3337 = vpop.f32.mrb[0].mxu0
    %v3338 = vadd.f32 %v104, %v3337
    %v3339 = vpop.f32.mrb[0].mxu0
    %3340 = vmatprep.mubr.bf16.mxu0 0
    %3341 = vmatmul.mubr.bf16.gmra.mrb[0].mxu0 %v341
    %v3342 = vpop.f32.mrb[0].mxu0
    %v3343 = vadd.f32 %v109, %v3342
    %v3344 = vpop.f32.mrb[0].mxu0
    %v3345 = vpop.f32.mrb[0].mxu0
    %v3346 = vadd.f32 %v114, %v3345
    %v3347 = vpop.f32.mrb[0].mxu0
    %3348 = vmatprep.mubr.bf16.mxu0 0
    %3349 = vmatmul.mubr.bf16.gmra.mrb[0].mxu0 %v344
    %v3350 = vpop.f32.mrb[0].mxu0
    %v3351 = vadd.f32 %v119, %v3350
    %v3352 = vpop.f32.mrb[0].mxu0
    %v3353 = vpop.f32.mrb[0].mxu0
    %v3354 = vadd.f32 %v124, %v3353
    %v3355 = vpop.f32.mrb[0].mxu0
    %3356 = vmatprep.mubr.bf16.mxu0 0
    %3357 = vmatmul.mubr.bf16.gmra.mrb[0].mxu0 %v347
    %v3358 = vpop.f32.mrb[0].mxu0
    %v3359 = vadd.f32 %v129, %v3358
    %v3360 = vpop.f32.mrb[0].mxu0
    %v3361 = vpop.f32.mrb[0].mxu0
    %v3362 = vadd.f32 %v134, %v3361
    %v3363 = vpop.f32.mrb[0].mxu0
    %3364 = vmatprep.mubr.bf16.mxu0 0
    %3365 = vmatmul.mubr.bf16.gmra.mrb[0].mxu0 %v350
    %v3366 = vpop.f32.mrb[0].mxu0
    %v3367 = vadd.f32 %v139, %v3366
    %v3368 = vpop.f32.mrb[0].mxu0
    %v3369 = vpop.f32.mrb[0].mxu0
    %v3370 = vadd.f32 %v144, %v3369
    %v3371 = vpop.f32.mrb[0].mxu0
    %3372 = vmatprep.mubr.bf16.mxu0 0
    %3373 = vmatmul.mubr.bf16.gmra.mrb[0].mxu0 %v353
    %v3374 = vpop.f32.mrb[0].mxu0
    %v3375 = vadd.f32 %v149, %v3374
    %v3376 = vpop.f32.mrb[0].mxu0
    %v3377 = vpop.f32.mrb[0].mxu0
    %v3378 = vadd.f32 %v154, %v3377
    %v3379 = vpop.f32.mrb[0].mxu0
    %3380 = vmatprep.mubr.bf16.mxu0 0
    %3381 = vmatmul.mubr.bf16.gmra.mrb[0].mxu0 %v356
    %v3382 = vpop.f32.mrb[0].mxu0
    %v3383 = vadd.f32 %v159, %v3382
    %v3384 = vpop.f32.mrb[0].mxu0
    %v3385 = vpop.f32.mrb[0].mxu0
    %v3386 = vadd.f32 %v164, %v3385
    %v3387 = vpop.f32.mrb[0].mxu0
    %3388 = vmatprep.mubr.bf16.mxu0 0
    %3389 = vmatmul.mubr.bf16.gmra.mrb[0].mxu0 %v359
    %v3390 = vpop.f32.mrb[0].mxu0
    %v3391 = vadd.f32 %v169, %v3390
    %v3392 = vpop.f32.mrb[0].mxu0
    %v3393 = vpop.f32.mrb[0].mxu0
    %v3394 = vadd.f32 %v174, %v3393
    %v3395 = vpop.f32.mrb[0].mxu0
    %3396 = vmatprep.mubr.bf16.mxu0 0
    %3397 = vmatmul.mubr.bf16.gmra.mrb[0].mxu0 %v362
    %v3398 = vpop.f32.mrb[0].mxu0
    %v3399 = vadd.f32 %v179, %v3398
    %v3400 = vpop.f32.mrb[0].mxu0
    %v3401 = vpop.f32.mrb[0].mxu0
    %v3402 = vadd.f32 %v184, %v3401
    %v3403 = vpop.f32.mrb[0].mxu0
    %3404 = vmatprep.mubr.bf16.mxu0 0
    %3405 = vmatmul.mubr.bf16.gmra.mrb[0].mxu0 %v365
    %v3406 = vpop.f32.mrb[0].mxu0
    %v3407 = vadd.f32 %v189, %v3406
    %v3408 = vpop.f32.mrb[0].mxu0
    %v3409 = vpop.f32.mrb[0].mxu0
    %v3410 = vadd.f32 %v194, %v3409
    %v3411 = vpop.f32.mrb[0].mxu0
    %3412 = vmatprep.mubr.bf16.mxu0 0
    %3413 = vmatmul.mubr.bf16.gmra.mrb[0].mxu0 %v368
    %v3414 = vpop.f32.mrb[0].mxu0
    %v3415 = vadd.f32 %v199, %v3414
    %v3416 = vpop.f32.mrb[0].mxu0
    %v3417 = vpop.f32.mrb[0].mxu0
    %v3418 = vadd.f32 %v204, %v3417
    %v3419 = vpop.f32.mrb[0].mxu0
    %3420 = vmatprep.mubr.bf16.mxu0 0
    %3421 = vmatmul.mubr.bf16.gmra.mrb[0].mxu0 %v371
    %v3422 = vpop.f32.mrb[0].mxu0
    %v3423 = vadd.f32 %v209, %v3422
    %v3424 = vpop.f32.mrb[0].mxu0
    %v3425 = vpop.f32.mrb[0].mxu0
    %v3426 = vadd.f32 %v214, %v3425
    %v3427 = vpop.f32.mrb[0].mxu0
    %3428 = vmatprep.mubr.bf16.mxu0 0
    %3429 = vmatmul.mubr.bf16.gmra.mrb[0].mxu0 %v374
    %v3430 = vpop.f32.mrb[0].mxu0
    %v3431 = vadd.f32 %v219, %v3430
    %v3432 = vpop.f32.mrb[0].mxu0
    %v3433 = vpop.f32.mrb[0].mxu0
    %v3434 = vadd.f32 %v224, %v3433
    %v3435 = vpop.f32.mrb[0].mxu0
    %3436 = vmatprep.mubr.bf16.mxu0 0
    %3437 = vmatmul.mubr.bf16.gmra.mrb[0].mxu0 %v377
    %v3438 = vpop.f32.mrb[0].mxu0
    %v3439 = vadd.f32 %v229, %v3438
    %v3440 = vpop.f32.mrb[0].mxu0
    %v3441 = vpop.f32.mrb[0].mxu0
    %v3442 = vadd.f32 %v234, %v3441
    %v3443 = vpop.f32.mrb[0].mxu0
    %3444 = vmatprep.mubr.bf16.mxu0 0
    %3445 = vmatmul.mubr.bf16.gmra.mrb[0].mxu0 %v380
    %v3446 = vpop.f32.mrb[0].mxu0
    %v3447 = vadd.f32 %v239, %v3446
    %v3448 = vpop.f32.mrb[0].mxu0
    %v3449 = vpop.f32.mrb[0].mxu0
    %v3450 = vadd.f32 %v244, %v3449
    %v3451 = vpop.f32.mrb[0].mxu0
    %3452 = vmatprep.mubr.bf16.mxu0 0
    %3453 = vmatmul.mubr.bf16.gmra.mrb[0].mxu0 %v383
    %v3454 = vpop.f32.mrb[0].mxu0
    %v3455 = vadd.f32 %v249, %v3454
    %v3456 = vpop.f32.mrb[0].mxu0
    %v3457 = vpop.f32.mrb[0].mxu0
    %v3458 = vadd.f32 %v254, %v3457
    %v3459 = vpop.f32.mrb[0].mxu0
    %3460 = vdwg.mxu0
    %v3461 = vmul.f32 %v3335, 0.5
    %v3462 = vmul.f32 %v3338, 0.5
    %v3463 = vmul.f32 %v3343, 0.5
    %v3464 = vmul.f32 %v3346, 0.5
    %v3465 = vmul.f32 %v3351, 0.5
    %v3466 = vmul.f32 %v3354, 0.5
    %v3467 = vmul.f32 %v3359, 0.5
    %v3468 = vmul.f32 %v3362, 0.5
    %v3469 = vmul.f32 %v3367, 0.5
    %v3470 = vmul.f32 %v3370, 0.5
    %v3471 = vmul.f32 %v3375, 0.5
    %v3472 = vmul.f32 %v3378, 0.5
    %v3473 = vtanh.pop %v3461
    %v3474 = vtanh.pop %v3462
    %v3475 = vtanh.pop %v3463
    %v3476 = vtanh.pop %v3464
    %v3477 = vtanh.pop %v3465
    %v3478 = vtanh.pop %v3466
    %v3479 = vtanh.pop %v3467
    %v3480 = vtanh.pop %v3468
    %v3481 = vtanh.pop %v3469
    %v3482 = vtanh.pop %v3470
    %v3483 = vtanh.pop %v3471
    %v3484 = vtanh.pop %v3472
    %v3485 = vadd.f32 %v3473, 1.0
    %v3486 = vadd.f32 %v3474, 1.0
    %v3487 = vadd.f32 %v3475, 1.0
    %v3488 = vadd.f32 %v3476, 1.0
    %v3489 = vadd.f32 %v3477, 1.0
    %v3490 = vadd.f32 %v3478, 1.0
    %v3491 = vadd.f32 %v3479, 1.0
    %v3492 = vadd.f32 %v3480, 1.0
    %v3493 = vadd.f32 %v3481, 1.0
    %v3494 = vadd.f32 %v3482, 1.0
    %v3495 = vadd.f32 %v3483, 1.0
    %v3496 = vadd.f32 %v3484, 1.0
    %v3497 = vmul.f32 %v3485, 0.5
    %v3498 = vmul.f32 %v3486, 0.5
    %v3499 = vmul.f32 %v3487, 0.5
    %v3500 = vmul.f32 %v3488, 0.5
    %v3501 = vmul.f32 %v3489, 0.5
    %v3502 = vmul.f32 %v3490, 0.5
    %v3503 = vmul.f32 %v3491, 0.5
    %v3504 = vmul.f32 %v3492, 0.5
    %v3505 = vmul.f32 %v3493, 0.5
    %v3506 = vmul.f32 %v3494, 0.5
    %v3507 = vmul.f32 %v3495, 0.5
    %v3508 = vmul.f32 %v3496, 0.5
    %v3509 = vtanh.pop %v3383
    %v3510 = vtanh.pop %v3386
    %v3511 = vtanh.pop %v3391
    %v3512 = vtanh.pop %v3394
    %v3513 = vmul.f32 %v3501, %v3197
    %v3514 = vmul.f32 %v3502, %v3198
    %v3515 = vmul.f32 %v3503, %v3199
    %v3516 = vmul.f32 %v3504, %v3200
    %v3517 = vmul.f32 %v3497, %v3509
    %v3518 = vmul.f32 %v3498, %v3510
    %v3519 = vmul.f32 %v3499, %v3511
    %v3520 = vmul.f32 %v3500, %v3512
    %v3521 = vadd.f32 %v3513, %v3517
    %v3522 = vadd.f32 %v3514, %v3518
    %v3523 = vadd.f32 %v3515, %v3519
    %v3524 = vadd.f32 %v3516, %v3520
    %v3525 = vtanh.pop %v3521
    %v3526 = vtanh.pop %v3522
    %v3527 = vtanh.pop %v3523
    %v3528 = vtanh.pop %v3524
    %v3529 = vmul.f32 %v3505, %v3525
    %v3530 = vmul.f32 %v3506, %v3526
    %v3531 = vmul.f32 %v3507, %v3527
    %v3532 = vmul.f32 %v3508, %v3528
    %v3533 = vmul.f32 %v3399, 0.5
    %v3534 = vmul.f32 %v3402, 0.5
    %v3535 = vmul.f32 %v3407, 0.5
    %v3536 = vmul.f32 %v3410, 0.5
    %v3537 = vmul.f32 %v3415, 0.5
    %v3538 = vmul.f32 %v3418, 0.5
    %v3539 = vmul.f32 %v3423, 0.5
    %v3540 = vmul.f32 %v3426, 0.5
    %v3541 = vmul.f32 %v3431, 0.5
    %v3542 = vmul.f32 %v3434, 0.5
    %v3543 = vmul.f32 %v3439, 0.5
    %v3544 = vmul.f32 %v3442, 0.5
    %v3545 = vtanh.pop %v3533
    %v3546 = vtanh.pop %v3534
    %v3547 = vtanh.pop %v3535
    %v3548 = vtanh.pop %v3536
    %v3549 = vtanh.pop %v3537
    %v3550 = vtanh.pop %v3538
    %v3551 = vtanh.pop %v3539
    %v3552 = vtanh.pop %v3540
    %v3553 = vtanh.pop %v3541
    %v3554 = vtanh.pop %v3542
    %v3555 = vtanh.pop %v3543
    %v3556 = vtanh.pop %v3544
    %v3557 = vadd.f32 %v3545, 1.0
    %v3558 = vadd.f32 %v3546, 1.0
    %v3559 = vadd.f32 %v3547, 1.0
    %v3560 = vadd.f32 %v3548, 1.0
    %v3561 = vadd.f32 %v3549, 1.0
    %v3562 = vadd.f32 %v3550, 1.0
    %v3563 = vadd.f32 %v3551, 1.0
    %v3564 = vadd.f32 %v3552, 1.0
    %v3565 = vadd.f32 %v3553, 1.0
    %v3566 = vadd.f32 %v3554, 1.0
    %v3567 = vadd.f32 %v3555, 1.0
    %v3568 = vadd.f32 %v3556, 1.0
    %v3569 = vmul.f32 %v3557, 0.5
    %v3570 = vmul.f32 %v3558, 0.5
    %v3571 = vmul.f32 %v3559, 0.5
    %v3572 = vmul.f32 %v3560, 0.5
    %v3573 = vmul.f32 %v3561, 0.5
    %v3574 = vmul.f32 %v3562, 0.5
    %v3575 = vmul.f32 %v3563, 0.5
    %v3576 = vmul.f32 %v3564, 0.5
    %v3577 = vmul.f32 %v3565, 0.5
    %v3578 = vmul.f32 %v3566, 0.5
    %v3579 = vmul.f32 %v3567, 0.5
    %v3580 = vmul.f32 %v3568, 0.5
    %v3581 = vtanh.pop %v3447
    %v3582 = vtanh.pop %v3450
    %v3583 = vtanh.pop %v3455
    %v3584 = vtanh.pop %v3458
    %v3585 = vmul.f32 %v3573, %v3269
    %v3586 = vmul.f32 %v3574, %v3270
    %v3587 = vmul.f32 %v3575, %v3271
    %v3588 = vmul.f32 %v3576, %v3272
    %v3589 = vmul.f32 %v3569, %v3581
    %v3590 = vmul.f32 %v3570, %v3582
    %v3591 = vmul.f32 %v3571, %v3583
    %v3592 = vmul.f32 %v3572, %v3584
    %v3593 = vadd.f32 %v3585, %v3589
    %v3594 = vadd.f32 %v3586, %v3590
    %v3595 = vadd.f32 %v3587, %v3591
    %v3596 = vadd.f32 %v3588, %v3592
    %v3597 = vtanh.pop %v3593
    %v3598 = vtanh.pop %v3594
    %v3599 = vtanh.pop %v3595
    %v3600 = vtanh.pop %v3596
    %v3601 = vmul.f32 %v3577, %v3597
    %v3602 = vmul.f32 %v3578, %v3598
    %v3603 = vmul.f32 %v3579, %v3599
    %v3604 = vmul.f32 %v3580, %v3600
    %v3605 = vpack.c.bf16 %v3530, %v3529
    %v3606 = vpack.c.bf16 %v3532, %v3531
    %s3607 = scalar_lea.vmem [#allocation2], 144
    %3608 = vst [vmem:[%s3607] sm:$0xff] %v3605
    %3609 = vst [vmem:[%s3607 + $0x8] sm:$0xff] %v3606
    %v3610 = vpack.c.bf16 %v3602, %v3601
    %v3611 = vpack.c.bf16 %v3604, %v3603
    %s3612 = scalar_lea.vmem [#allocation3], 96
    %3613 = vst [vmem:[%s3612] sm:$0xff] %v3610
    %3614 = vst [vmem:[%s3612 + $0x8] sm:$0xff] %v3611
    %s3615 = scalar_lea.vmem %s0, 80
    %v3616 = vld [vmem:[%s3615] sm:$0xf]
    %v3617 = vld [vmem:[%s3615 + $0x4] sm:$0xf]
    %v3620 = vunpack.c.l.b16 %v3616
    %v3621 = vunpack.c.l.b16 %v3617
    %v3622 = vpack.c.b16 %v3621, %v3620
    %3624 = vmatprep.subr.bf16.mxu0 0
    %3625 = vmatpush1.bf16.msra.mxu0 %v3622
    %3626 = vmatprep.subr.bf16.mxu0 0
    %3627 = vmatpush1.bf16.msra.mxu0 %v3605
    %3628 = vmatprep.subr.bf16.mxu0 0
    %3629 = vmatpush1.bf16.msra.mxu0 %v3606
    %3630 = vmatprep.subr.bf16.mxu0 0
    %3631 = vmatpush1.bf16.msra.mxu0 %v3610
    %3632 = vmatprep.subr.bf16.mxu0 0
    %3633 = vmatpush1.bf16.msra.mxu0 %v3611
    %3634 = vmatprep.subr.bf16.mxu0 0
    %3635 = vmatpush1.bf16.msra.mxu0 0
    %3636 = vmatprep.subr.bf16.mxu0 0
    %3637 = vmatpush1.bf16.msra.mxu0 0
    %3638 = vmatprep.subr.bf16.mxu0 0
    %3639 = vmatpush1.bf16.msra.mxu0 0
    %3640 = vmatprep.subr.bf16.mxu0 0
    %3641 = vmatpush1.bf16.msra.mxu0 0
    %3642 = vmatprep.subr.bf16.mxu0 0
    %3643 = vmatpush1.bf16.msra.mxu0 0
    %3644 = vmatprep.subr.bf16.mxu0 0
    %3645 = vmatpush1.bf16.msra.mxu0 0
    %3646 = vmatprep.subr.bf16.mxu0 0
    %3647 = vmatpush1.bf16.msra.mxu0 0
    %3648 = vmatprep.subr.bf16.mxu0 0
    %3649 = vmatpush1.bf16.msra.mxu0 0
    %3650 = vmatprep.subr.bf16.mxu0 0
    %3651 = vmatpush1.bf16.msra.mxu0 0
    %3652 = vmatprep.subr.bf16.mxu0 0
    %3653 = vmatpush1.bf16.msra.mxu0 0
    %3654 = vmatprep.subr.bf16.mxu0 0
    %3655 = vmatpush1.bf16.msra.mxu0 0
    %3656 = vmatprep.mubr.bf16.mxu0 0
    %3657 = vmatmul.mubr.bf16.gmra.mrb[0].mxu0 %v338
    %v3658 = vpop.f32.mrb[0].mxu0
    %v3659 = vadd.f32 %v99, %v3658
    %v3660 = vpop.f32.mrb[0].mxu0
    %v3661 = vpop.f32.mrb[0].mxu0
    %v3662 = vadd.f32 %v104, %v3661
    %v3663 = vpop.f32.mrb[0].mxu0
    %3664 = vmatprep.mubr.bf16.mxu0 0
    %3665 = vmatmul.mubr.bf16.gmra.mrb[0].mxu0 %v341
    %v3666 = vpop.f32.mrb[0].mxu0
    %v3667 = vadd.f32 %v109, %v3666
    %v3668 = vpop.f32.mrb[0].mxu0
    %v3669 = vpop.f32.mrb[0].mxu0
    %v3670 = vadd.f32 %v114, %v3669
    %v3671 = vpop.f32.mrb[0].mxu0
    %3672 = vmatprep.mubr.bf16.mxu0 0
    %3673 = vmatmul.mubr.bf16.gmra.mrb[0].mxu0 %v344
    %v3674 = vpop.f32.mrb[0].mxu0
    %v3675 = vadd.f32 %v119, %v3674
    %v3676 = vpop.f32.mrb[0].mxu0
    %v3677 = vpop.f32.mrb[0].mxu0
    %v3678 = vadd.f32 %v124, %v3677
    %v3679 = vpop.f32.mrb[0].mxu0
    %3680 = vmatprep.mubr.bf16.mxu0 0
    %3681 = vmatmul.mubr.bf16.gmra.mrb[0].mxu0 %v347
    %v3682 = vpop.f32.mrb[0].mxu0
    %v3683 = vadd.f32 %v129, %v3682
    %v3684 = vpop.f32.mrb[0].mxu0
    %v3685 = vpop.f32.mrb[0].mxu0
    %v3686 = vadd.f32 %v134, %v3685
    %v3687 = vpop.f32.mrb[0].mxu0
    %3688 = vmatprep.mubr.bf16.mxu0 0
    %3689 = vmatmul.mubr.bf16.gmra.mrb[0].mxu0 %v350
    %v3690 = vpop.f32.mrb[0].mxu0
    %v3691 = vadd.f32 %v139, %v3690
    %v3692 = vpop.f32.mrb[0].mxu0
    %v3693 = vpop.f32.mrb[0].mxu0
    %v3694 = vadd.f32 %v144, %v3693
    %v3695 = vpop.f32.mrb[0].mxu0
    %3696 = vmatprep.mubr.bf16.mxu0 0
    %3697 = vmatmul.mubr.bf16.gmra.mrb[0].mxu0 %v353
    %v3698 = vpop.f32.mrb[0].mxu0
    %v3699 = vadd.f32 %v149, %v3698
    %v3700 = vpop.f32.mrb[0].mxu0
    %v3701 = vpop.f32.mrb[0].mxu0
    %v3702 = vadd.f32 %v154, %v3701
    %v3703 = vpop.f32.mrb[0].mxu0
    %3704 = vmatprep.mubr.bf16.mxu0 0
    %3705 = vmatmul.mubr.bf16.gmra.mrb[0].mxu0 %v356
    %v3706 = vpop.f32.mrb[0].mxu0
    %v3707 = vadd.f32 %v159, %v3706
    %v3708 = vpop.f32.mrb[0].mxu0
    %v3709 = vpop.f32.mrb[0].mxu0
    %v3710 = vadd.f32 %v164, %v3709
    %v3711 = vpop.f32.mrb[0].mxu0
    %3712 = vmatprep.mubr.bf16.mxu0 0
    %3713 = vmatmul.mubr.bf16.gmra.mrb[0].mxu0 %v359
    %v3714 = vpop.f32.mrb[0].mxu0
    %v3715 = vadd.f32 %v169, %v3714
    %v3716 = vpop.f32.mrb[0].mxu0
    %v3717 = vpop.f32.mrb[0].mxu0
    %v3718 = vadd.f32 %v174, %v3717
    %v3719 = vpop.f32.mrb[0].mxu0
    %3720 = vmatprep.mubr.bf16.mxu0 0
    %3721 = vmatmul.mubr.bf16.gmra.mrb[0].mxu0 %v362
    %v3722 = vpop.f32.mrb[0].mxu0
    %v3723 = vadd.f32 %v179, %v3722
    %v3724 = vpop.f32.mrb[0].mxu0
    %v3725 = vpop.f32.mrb[0].mxu0
    %v3726 = vadd.f32 %v184, %v3725
    %v3727 = vpop.f32.mrb[0].mxu0
    %3728 = vmatprep.mubr.bf16.mxu0 0
    %3729 = vmatmul.mubr.bf16.gmra.mrb[0].mxu0 %v365
    %v3730 = vpop.f32.mrb[0].mxu0
    %v3731 = vadd.f32 %v189, %v3730
    %v3732 = vpop.f32.mrb[0].mxu0
    %v3733 = vpop.f32.mrb[0].mxu0
    %v3734 = vadd.f32 %v194, %v3733
    %v3735 = vpop.f32.mrb[0].mxu0
    %3736 = vmatprep.mubr.bf16.mxu0 0
    %3737 = vmatmul.mubr.bf16.gmra.mrb[0].mxu0 %v368
    %v3738 = vpop.f32.mrb[0].mxu0
    %v3739 = vadd.f32 %v199, %v3738
    %v3740 = vpop.f32.mrb[0].mxu0
    %v3741 = vpop.f32.mrb[0].mxu0
    %v3742 = vadd.f32 %v204, %v3741
    %v3743 = vpop.f32.mrb[0].mxu0
    %3744 = vmatprep.mubr.bf16.mxu0 0
    %3745 = vmatmul.mubr.bf16.gmra.mrb[0].mxu0 %v371
    %v3746 = vpop.f32.mrb[0].mxu0
    %v3747 = vadd.f32 %v209, %v3746
    %v3748 = vpop.f32.mrb[0].mxu0
    %v3749 = vpop.f32.mrb[0].mxu0
    %v3750 = vadd.f32 %v214, %v3749
    %v3751 = vpop.f32.mrb[0].mxu0
    %3752 = vmatprep.mubr.bf16.mxu0 0
    %3753 = vmatmul.mubr.bf16.gmra.mrb[0].mxu0 %v374
    %v3754 = vpop.f32.mrb[0].mxu0
    %v3755 = vadd.f32 %v219, %v3754
    %v3756 = vpop.f32.mrb[0].mxu0
    %v3757 = vpop.f32.mrb[0].mxu0
    %v3758 = vadd.f32 %v224, %v3757
    %v3759 = vpop.f32.mrb[0].mxu0
    %3760 = vmatprep.mubr.bf16.mxu0 0
    %3761 = vmatmul.mubr.bf16.gmra.mrb[0].mxu0 %v377
    %v3762 = vpop.f32.mrb[0].mxu0
    %v3763 = vadd.f32 %v229, %v3762
    %v3764 = vpop.f32.mrb[0].mxu0
    %v3765 = vpop.f32.mrb[0].mxu0
    %v3766 = vadd.f32 %v234, %v3765
    %v3767 = vpop.f32.mrb[0].mxu0
    %3768 = vmatprep.mubr.bf16.mxu0 0
    %3769 = vmatmul.mubr.bf16.gmra.mrb[0].mxu0 %v380
    %v3770 = vpop.f32.mrb[0].mxu0
    %v3771 = vadd.f32 %v239, %v3770
    %v3772 = vpop.f32.mrb[0].mxu0
    %v3773 = vpop.f32.mrb[0].mxu0
    %v3774 = vadd.f32 %v244, %v3773
    %v3775 = vpop.f32.mrb[0].mxu0
    %3776 = vmatprep.mubr.bf16.mxu0 0
    %3777 = vmatmul.mubr.bf16.gmra.mrb[0].mxu0 %v383
    %v3778 = vpop.f32.mrb[0].mxu0
    %v3779 = vadd.f32 %v249, %v3778
    %v3780 = vpop.f32.mrb[0].mxu0
    %v3781 = vpop.f32.mrb[0].mxu0
    %v3782 = vadd.f32 %v254, %v3781
    %v3783 = vpop.f32.mrb[0].mxu0
    %3784 = vdwg.mxu0
    %v3785 = vmul.f32 %v3659, 0.5
    %v3786 = vmul.f32 %v3662, 0.5
    %v3787 = vmul.f32 %v3667, 0.5
    %v3788 = vmul.f32 %v3670, 0.5
    %v3789 = vmul.f32 %v3675, 0.5
    %v3790 = vmul.f32 %v3678, 0.5
    %v3791 = vmul.f32 %v3683, 0.5
    %v3792 = vmul.f32 %v3686, 0.5
    %v3793 = vmul.f32 %v3691, 0.5
    %v3794 = vmul.f32 %v3694, 0.5
    %v3795 = vmul.f32 %v3699, 0.5
    %v3796 = vmul.f32 %v3702, 0.5
    %v3797 = vtanh.pop %v3785
    %v3798 = vtanh.pop %v3786
    %v3799 = vtanh.pop %v3787
    %v3800 = vtanh.pop %v3788
    %v3801 = vtanh.pop %v3789
    %v3802 = vtanh.pop %v3790
    %v3803 = vtanh.pop %v3791
    %v3804 = vtanh.pop %v3792
    %v3805 = vtanh.pop %v3793
    %v3806 = vtanh.pop %v3794
    %v3807 = vtanh.pop %v3795
    %v3808 = vtanh.pop %v3796
    %v3809 = vadd.f32 %v3797, 1.0
    %v3810 = vadd.f32 %v3798, 1.0
    %v3811 = vadd.f32 %v3799, 1.0
    %v3812 = vadd.f32 %v3800, 1.0
    %v3813 = vadd.f32 %v3801, 1.0
    %v3814 = vadd.f32 %v3802, 1.0
    %v3815 = vadd.f32 %v3803, 1.0
    %v3816 = vadd.f32 %v3804, 1.0
    %v3817 = vadd.f32 %v3805, 1.0
    %v3818 = vadd.f32 %v3806, 1.0
    %v3819 = vadd.f32 %v3807, 1.0
    %v3820 = vadd.f32 %v3808, 1.0
    %v3821 = vmul.f32 %v3809, 0.5
    %v3822 = vmul.f32 %v3810, 0.5
    %v3823 = vmul.f32 %v3811, 0.5
    %v3824 = vmul.f32 %v3812, 0.5
    %v3825 = vmul.f32 %v3813, 0.5
    %v3826 = vmul.f32 %v3814, 0.5
    %v3827 = vmul.f32 %v3815, 0.5
    %v3828 = vmul.f32 %v3816, 0.5
    %v3829 = vmul.f32 %v3817, 0.5
    %v3830 = vmul.f32 %v3818, 0.5
    %v3831 = vmul.f32 %v3819, 0.5
    %v3832 = vmul.f32 %v3820, 0.5
    %v3833 = vtanh.pop %v3707
    %v3834 = vtanh.pop %v3710
    %v3835 = vtanh.pop %v3715
    %v3836 = vtanh.pop %v3718
    %v3837 = vmul.f32 %v3825, %v3521
    %v3838 = vmul.f32 %v3826, %v3522
    %v3839 = vmul.f32 %v3827, %v3523
    %v3840 = vmul.f32 %v3828, %v3524
    %v3841 = vmul.f32 %v3821, %v3833
    %v3842 = vmul.f32 %v3822, %v3834
    %v3843 = vmul.f32 %v3823, %v3835
    %v3844 = vmul.f32 %v3824, %v3836
    %v3845 = vadd.f32 %v3837, %v3841
    %v3846 = vadd.f32 %v3838, %v3842
    %v3847 = vadd.f32 %v3839, %v3843
    %v3848 = vadd.f32 %v3840, %v3844
    %v3849 = vtanh.pop %v3845
    %v3850 = vtanh.pop %v3846
    %v3851 = vtanh.pop %v3847
    %v3852 = vtanh.pop %v3848
    %v3853 = vmul.f32 %v3829, %v3849
    %v3854 = vmul.f32 %v3830, %v3850
    %v3855 = vmul.f32 %v3831, %v3851
    %v3856 = vmul.f32 %v3832, %v3852
    %v3857 = vmul.f32 %v3723, 0.5
    %v3858 = vmul.f32 %v3726, 0.5
    %v3859 = vmul.f32 %v3731, 0.5
    %v3860 = vmul.f32 %v3734, 0.5
    %v3861 = vmul.f32 %v3739, 0.5
    %v3862 = vmul.f32 %v3742, 0.5
    %v3863 = vmul.f32 %v3747, 0.5
    %v3864 = vmul.f32 %v3750, 0.5
    %v3865 = vmul.f32 %v3755, 0.5
    %v3866 = vmul.f32 %v3758, 0.5
    %v3867 = vmul.f32 %v3763, 0.5
    %v3868 = vmul.f32 %v3766, 0.5
    %v3869 = vtanh.pop %v3857
    %v3870 = vtanh.pop %v3858
    %v3871 = vtanh.pop %v3859
    %v3872 = vtanh.pop %v3860
    %v3873 = vtanh.pop %v3861
    %v3874 = vtanh.pop %v3862
    %v3875 = vtanh.pop %v3863
    %v3876 = vtanh.pop %v3864
    %v3877 = vtanh.pop %v3865
    %v3878 = vtanh.pop %v3866
    %v3879 = vtanh.pop %v3867
    %v3880 = vtanh.pop %v3868
    %v3881 = vadd.f32 %v3869, 1.0
    %v3882 = vadd.f32 %v3870, 1.0
    %v3883 = vadd.f32 %v3871, 1.0
    %v3884 = vadd.f32 %v3872, 1.0
    %v3885 = vadd.f32 %v3873, 1.0
    %v3886 = vadd.f32 %v3874, 1.0
    %v3887 = vadd.f32 %v3875, 1.0
    %v3888 = vadd.f32 %v3876, 1.0
    %v3889 = vadd.f32 %v3877, 1.0
    %v3890 = vadd.f32 %v3878, 1.0
    %v3891 = vadd.f32 %v3879, 1.0
    %v3892 = vadd.f32 %v3880, 1.0
    %v3893 = vmul.f32 %v3881, 0.5
    %v3894 = vmul.f32 %v3882, 0.5
    %v3895 = vmul.f32 %v3883, 0.5
    %v3896 = vmul.f32 %v3884, 0.5
    %v3897 = vmul.f32 %v3885, 0.5
    %v3898 = vmul.f32 %v3886, 0.5
    %v3899 = vmul.f32 %v3887, 0.5
    %v3900 = vmul.f32 %v3888, 0.5
    %v3901 = vmul.f32 %v3889, 0.5
    %v3902 = vmul.f32 %v3890, 0.5
    %v3903 = vmul.f32 %v3891, 0.5
    %v3904 = vmul.f32 %v3892, 0.5
    %v3905 = vtanh.pop %v3771
    %v3906 = vtanh.pop %v3774
    %v3907 = vtanh.pop %v3779
    %v3908 = vtanh.pop %v3782
    %v3909 = vmul.f32 %v3897, %v3593
    %v3910 = vmul.f32 %v3898, %v3594
    %v3911 = vmul.f32 %v3899, %v3595
    %v3912 = vmul.f32 %v3900, %v3596
    %v3913 = vmul.f32 %v3893, %v3905
    %v3914 = vmul.f32 %v3894, %v3906
    %v3915 = vmul.f32 %v3895, %v3907
    %v3916 = vmul.f32 %v3896, %v3908
    %v3917 = vadd.f32 %v3909, %v3913
    %v3918 = vadd.f32 %v3910, %v3914
    %v3919 = vadd.f32 %v3911, %v3915
    %v3920 = vadd.f32 %v3912, %v3916
    %v3921 = vtanh.pop %v3917
    %v3922 = vtanh.pop %v3918
    %v3923 = vtanh.pop %v3919
    %v3924 = vtanh.pop %v3920
    %v3925 = vmul.f32 %v3901, %v3921
    %v3926 = vmul.f32 %v3902, %v3922
    %v3927 = vmul.f32 %v3903, %v3923
    %v3928 = vmul.f32 %v3904, %v3924
    %v3929 = vpack.c.bf16 %v3854, %v3853
    %v3930 = vpack.c.bf16 %v3856, %v3855
    %s3931 = scalar_lea.vmem [#allocation2], 160
    %3932 = vst [vmem:[%s3931] sm:$0xff] %v3929
    %3933 = vst [vmem:[%s3931 + $0x8] sm:$0xff] %v3930
    %v3934 = vpack.c.bf16 %v3926, %v3925
    %v3935 = vpack.c.bf16 %v3928, %v3927
    %s3936 = scalar_lea.vmem [#allocation3], 80
    %3937 = vst [vmem:[%s3936] sm:$0xff] %v3934
    %3938 = vst [vmem:[%s3936 + $0x8] sm:$0xff] %v3935
    %s3939 = scalar_lea.vmem %s0, 88
    %v3940 = vld [vmem:[%s3939] sm:$0xf]
    %v3941 = vld [vmem:[%s3939 + $0x4] sm:$0xf]
    %v3944 = vunpack.c.l.b16 %v3940
    %v3945 = vunpack.c.l.b16 %v3941
    %v3946 = vpack.c.b16 %v3945, %v3944
    %3948 = vmatprep.subr.bf16.mxu0 0
    %3949 = vmatpush1.bf16.msra.mxu0 %v3946
    %3950 = vmatprep.subr.bf16.mxu0 0
    %3951 = vmatpush1.bf16.msra.mxu0 %v3929
    %3952 = vmatprep.subr.bf16.mxu0 0
    %3953 = vmatpush1.bf16.msra.mxu0 %v3930
    %3954 = vmatprep.subr.bf16.mxu0 0
    %3955 = vmatpush1.bf16.msra.mxu0 %v3934
    %3956 = vmatprep.subr.bf16.mxu0 0
    %3957 = vmatpush1.bf16.msra.mxu0 %v3935
    %3958 = vmatprep.subr.bf16.mxu0 0
    %3959 = vmatpush1.bf16.msra.mxu0 0
    %3960 = vmatprep.subr.bf16.mxu0 0
    %3961 = vmatpush1.bf16.msra.mxu0 0
    %3962 = vmatprep.subr.bf16.mxu0 0
    %3963 = vmatpush1.bf16.msra.mxu0 0
    %3964 = vmatprep.subr.bf16.mxu0 0
    %3965 = vmatpush1.bf16.msra.mxu0 0
    %3966 = vmatprep.subr.bf16.mxu0 0
    %3967 = vmatpush1.bf16.msra.mxu0 0
    %3968 = vmatprep.subr.bf16.mxu0 0
    %3969 = vmatpush1.bf16.msra.mxu0 0
    %3970 = vmatprep.subr.bf16.mxu0 0
    %3971 = vmatpush1.bf16.msra.mxu0 0
    %3972 = vmatprep.subr.bf16.mxu0 0
    %3973 = vmatpush1.bf16.msra.mxu0 0
    %3974 = vmatprep.subr.bf16.mxu0 0
    %3975 = vmatpush1.bf16.msra.mxu0 0
    %3976 = vmatprep.subr.bf16.mxu0 0
    %3977 = vmatpush1.bf16.msra.mxu0 0
    %3978 = vmatprep.subr.bf16.mxu0 0
    %3979 = vmatpush1.bf16.msra.mxu0 0
    %3980 = vmatprep.mubr.bf16.mxu0 0
    %3981 = vmatmul.mubr.bf16.gmra.mrb[0].mxu0 %v338
    %v3982 = vpop.f32.mrb[0].mxu0
    %v3983 = vadd.f32 %v99, %v3982
    %v3984 = vpop.f32.mrb[0].mxu0
    %v3985 = vpop.f32.mrb[0].mxu0
    %v3986 = vadd.f32 %v104, %v3985
    %v3987 = vpop.f32.mrb[0].mxu0
    %3988 = vmatprep.mubr.bf16.mxu0 0
    %3989 = vmatmul.mubr.bf16.gmra.mrb[0].mxu0 %v341
    %v3990 = vpop.f32.mrb[0].mxu0
    %v3991 = vadd.f32 %v109, %v3990
    %v3992 = vpop.f32.mrb[0].mxu0
    %v3993 = vpop.f32.mrb[0].mxu0
    %v3994 = vadd.f32 %v114, %v3993
    %v3995 = vpop.f32.mrb[0].mxu0
    %3996 = vmatprep.mubr.bf16.mxu0 0
    %3997 = vmatmul.mubr.bf16.gmra.mrb[0].mxu0 %v344
    %v3998 = vpop.f32.mrb[0].mxu0
    %v3999 = vadd.f32 %v119, %v3998
    %v4000 = vpop.f32.mrb[0].mxu0
    %v4001 = vpop.f32.mrb[0].mxu0
    %v4002 = vadd.f32 %v124, %v4001
    %v4003 = vpop.f32.mrb[0].mxu0
    %4004 = vmatprep.mubr.bf16.mxu0 0
    %4005 = vmatmul.mubr.bf16.gmra.mrb[0].mxu0 %v347
    %v4006 = vpop.f32.mrb[0].mxu0
    %v4007 = vadd.f32 %v129, %v4006
    %v4008 = vpop.f32.mrb[0].mxu0
    %v4009 = vpop.f32.mrb[0].mxu0
    %v4010 = vadd.f32 %v134, %v4009
    %v4011 = vpop.f32.mrb[0].mxu0
    %4012 = vmatprep.mubr.bf16.mxu0 0
    %4013 = vmatmul.mubr.bf16.gmra.mrb[0].mxu0 %v350
    %v4014 = vpop.f32.mrb[0].mxu0
    %v4015 = vadd.f32 %v139, %v4014
    %v4016 = vpop.f32.mrb[0].mxu0
    %v4017 = vpop.f32.mrb[0].mxu0
    %v4018 = vadd.f32 %v144, %v4017
    %v4019 = vpop.f32.mrb[0].mxu0
    %4020 = vmatprep.mubr.bf16.mxu0 0
    %4021 = vmatmul.mubr.bf16.gmra.mrb[0].mxu0 %v353
    %v4022 = vpop.f32.mrb[0].mxu0
    %v4023 = vadd.f32 %v149, %v4022
    %v4024 = vpop.f32.mrb[0].mxu0
    %v4025 = vpop.f32.mrb[0].mxu0
    %v4026 = vadd.f32 %v154, %v4025
    %v4027 = vpop.f32.mrb[0].mxu0
    %4028 = vmatprep.mubr.bf16.mxu0 0
    %4029 = vmatmul.mubr.bf16.gmra.mrb[0].mxu0 %v356
    %v4030 = vpop.f32.mrb[0].mxu0
    %v4031 = vadd.f32 %v159, %v4030
    %v4032 = vpop.f32.mrb[0].mxu0
    %v4033 = vpop.f32.mrb[0].mxu0
    %v4034 = vadd.f32 %v164, %v4033
    %v4035 = vpop.f32.mrb[0].mxu0
    %4036 = vmatprep.mubr.bf16.mxu0 0
    %4037 = vmatmul.mubr.bf16.gmra.mrb[0].mxu0 %v359
    %v4038 = vpop.f32.mrb[0].mxu0
    %v4039 = vadd.f32 %v169, %v4038
    %v4040 = vpop.f32.mrb[0].mxu0
    %v4041 = vpop.f32.mrb[0].mxu0
    %v4042 = vadd.f32 %v174, %v4041
    %v4043 = vpop.f32.mrb[0].mxu0
    %4044 = vmatprep.mubr.bf16.mxu0 0
    %4045 = vmatmul.mubr.bf16.gmra.mrb[0].mxu0 %v362
    %v4046 = vpop.f32.mrb[0].mxu0
    %v4047 = vadd.f32 %v179, %v4046
    %v4048 = vpop.f32.mrb[0].mxu0
    %v4049 = vpop.f32.mrb[0].mxu0
    %v4050 = vadd.f32 %v184, %v4049
    %v4051 = vpop.f32.mrb[0].mxu0
    %4052 = vmatprep.mubr.bf16.mxu0 0
    %4053 = vmatmul.mubr.bf16.gmra.mrb[0].mxu0 %v365
    %v4054 = vpop.f32.mrb[0].mxu0
    %v4055 = vadd.f32 %v189, %v4054
    %v4056 = vpop.f32.mrb[0].mxu0
    %v4057 = vpop.f32.mrb[0].mxu0
    %v4058 = vadd.f32 %v194, %v4057
    %v4059 = vpop.f32.mrb[0].mxu0
    %4060 = vmatprep.mubr.bf16.mxu0 0
    %4061 = vmatmul.mubr.bf16.gmra.mrb[0].mxu0 %v368
    %v4062 = vpop.f32.mrb[0].mxu0
    %v4063 = vadd.f32 %v199, %v4062
    %v4064 = vpop.f32.mrb[0].mxu0
    %v4065 = vpop.f32.mrb[0].mxu0
    %v4066 = vadd.f32 %v204, %v4065
    %v4067 = vpop.f32.mrb[0].mxu0
    %4068 = vmatprep.mubr.bf16.mxu0 0
    %4069 = vmatmul.mubr.bf16.gmra.mrb[0].mxu0 %v371
    %v4070 = vpop.f32.mrb[0].mxu0
    %v4071 = vadd.f32 %v209, %v4070
    %v4072 = vpop.f32.mrb[0].mxu0
    %v4073 = vpop.f32.mrb[0].mxu0
    %v4074 = vadd.f32 %v214, %v4073
    %v4075 = vpop.f32.mrb[0].mxu0
    %4076 = vmatprep.mubr.bf16.mxu0 0
    %4077 = vmatmul.mubr.bf16.gmra.mrb[0].mxu0 %v374
    %v4078 = vpop.f32.mrb[0].mxu0
    %v4079 = vadd.f32 %v219, %v4078
    %v4080 = vpop.f32.mrb[0].mxu0
    %v4081 = vpop.f32.mrb[0].mxu0
    %v4082 = vadd.f32 %v224, %v4081
    %v4083 = vpop.f32.mrb[0].mxu0
    %4084 = vmatprep.mubr.bf16.mxu0 0
    %4085 = vmatmul.mubr.bf16.gmra.mrb[0].mxu0 %v377
    %v4086 = vpop.f32.mrb[0].mxu0
    %v4087 = vadd.f32 %v229, %v4086
    %v4088 = vpop.f32.mrb[0].mxu0
    %v4089 = vpop.f32.mrb[0].mxu0
    %v4090 = vadd.f32 %v234, %v4089
    %v4091 = vpop.f32.mrb[0].mxu0
    %4092 = vmatprep.mubr.bf16.mxu0 0
    %4093 = vmatmul.mubr.bf16.gmra.mrb[0].mxu0 %v380
    %v4094 = vpop.f32.mrb[0].mxu0
    %v4095 = vadd.f32 %v239, %v4094
    %v4096 = vpop.f32.mrb[0].mxu0
    %v4097 = vpop.f32.mrb[0].mxu0
    %v4098 = vadd.f32 %v244, %v4097
    %v4099 = vpop.f32.mrb[0].mxu0
    %4100 = vmatprep.mubr.bf16.mxu0 0
    %4101 = vmatmul.mubr.bf16.gmra.mrb[0].mxu0 %v383
    %v4102 = vpop.f32.mrb[0].mxu0
    %v4103 = vadd.f32 %v249, %v4102
    %v4104 = vpop.f32.mrb[0].mxu0
    %v4105 = vpop.f32.mrb[0].mxu0
    %v4106 = vadd.f32 %v254, %v4105
    %v4107 = vpop.f32.mrb[0].mxu0
    %4108 = vdwg.mxu0
    %v4109 = vmul.f32 %v3983, 0.5
    %v4110 = vmul.f32 %v3986, 0.5
    %v4111 = vmul.f32 %v3991, 0.5
    %v4112 = vmul.f32 %v3994, 0.5
    %v4113 = vmul.f32 %v3999, 0.5
    %v4114 = vmul.f32 %v4002, 0.5
    %v4115 = vmul.f32 %v4007, 0.5
    %v4116 = vmul.f32 %v4010, 0.5
    %v4117 = vmul.f32 %v4015, 0.5
    %v4118 = vmul.f32 %v4018, 0.5
    %v4119 = vmul.f32 %v4023, 0.5
    %v4120 = vmul.f32 %v4026, 0.5
    %v4121 = vtanh.pop %v4109
    %v4122 = vtanh.pop %v4110
    %v4123 = vtanh.pop %v4111
    %v4124 = vtanh.pop %v4112
    %v4125 = vtanh.pop %v4113
    %v4126 = vtanh.pop %v4114
    %v4127 = vtanh.pop %v4115
    %v4128 = vtanh.pop %v4116
    %v4129 = vtanh.pop %v4117
    %v4130 = vtanh.pop %v4118
    %v4131 = vtanh.pop %v4119
    %v4132 = vtanh.pop %v4120
    %v4133 = vadd.f32 %v4121, 1.0
    %v4134 = vadd.f32 %v4122, 1.0
    %v4135 = vadd.f32 %v4123, 1.0
    %v4136 = vadd.f32 %v4124, 1.0
    %v4137 = vadd.f32 %v4125, 1.0
    %v4138 = vadd.f32 %v4126, 1.0
    %v4139 = vadd.f32 %v4127, 1.0
    %v4140 = vadd.f32 %v4128, 1.0
    %v4141 = vadd.f32 %v4129, 1.0
    %v4142 = vadd.f32 %v4130, 1.0
    %v4143 = vadd.f32 %v4131, 1.0
    %v4144 = vadd.f32 %v4132, 1.0
    %v4145 = vmul.f32 %v4133, 0.5
    %v4146 = vmul.f32 %v4134, 0.5
    %v4147 = vmul.f32 %v4135, 0.5
    %v4148 = vmul.f32 %v4136, 0.5
    %v4149 = vmul.f32 %v4137, 0.5
    %v4150 = vmul.f32 %v4138, 0.5
    %v4151 = vmul.f32 %v4139, 0.5
    %v4152 = vmul.f32 %v4140, 0.5
    %v4153 = vmul.f32 %v4141, 0.5
    %v4154 = vmul.f32 %v4142, 0.5
    %v4155 = vmul.f32 %v4143, 0.5
    %v4156 = vmul.f32 %v4144, 0.5
    %v4157 = vtanh.pop %v4031
    %v4158 = vtanh.pop %v4034
    %v4159 = vtanh.pop %v4039
    %v4160 = vtanh.pop %v4042
    %v4161 = vmul.f32 %v4149, %v3845
    %v4162 = vmul.f32 %v4150, %v3846
    %v4163 = vmul.f32 %v4151, %v3847
    %v4164 = vmul.f32 %v4152, %v3848
    %v4165 = vmul.f32 %v4145, %v4157
    %v4166 = vmul.f32 %v4146, %v4158
    %v4167 = vmul.f32 %v4147, %v4159
    %v4168 = vmul.f32 %v4148, %v4160
    %v4169 = vadd.f32 %v4161, %v4165
    %v4170 = vadd.f32 %v4162, %v4166
    %v4171 = vadd.f32 %v4163, %v4167
    %v4172 = vadd.f32 %v4164, %v4168
    %v4173 = vtanh.pop %v4169
    %v4174 = vtanh.pop %v4170
    %v4175 = vtanh.pop %v4171
    %v4176 = vtanh.pop %v4172
    %v4177 = vmul.f32 %v4153, %v4173
    %v4178 = vmul.f32 %v4154, %v4174
    %v4179 = vmul.f32 %v4155, %v4175
    %v4180 = vmul.f32 %v4156, %v4176
    %v4181 = vmul.f32 %v4047, 0.5
    %v4182 = vmul.f32 %v4050, 0.5
    %v4183 = vmul.f32 %v4055, 0.5
    %v4184 = vmul.f32 %v4058, 0.5
    %v4185 = vmul.f32 %v4063, 0.5
    %v4186 = vmul.f32 %v4066, 0.5
    %v4187 = vmul.f32 %v4071, 0.5
    %v4188 = vmul.f32 %v4074, 0.5
    %v4189 = vmul.f32 %v4079, 0.5
    %v4190 = vmul.f32 %v4082, 0.5
    %v4191 = vmul.f32 %v4087, 0.5
    %v4192 = vmul.f32 %v4090, 0.5
    %v4193 = vtanh.pop %v4181
    %v4194 = vtanh.pop %v4182
    %v4195 = vtanh.pop %v4183
    %v4196 = vtanh.pop %v4184
    %v4197 = vtanh.pop %v4185
    %v4198 = vtanh.pop %v4186
    %v4199 = vtanh.pop %v4187
    %v4200 = vtanh.pop %v4188
    %v4201 = vtanh.pop %v4189
    %v4202 = vtanh.pop %v4190
    %v4203 = vtanh.pop %v4191
    %v4204 = vtanh.pop %v4192
    %v4205 = vadd.f32 %v4193, 1.0
    %v4206 = vadd.f32 %v4194, 1.0
    %v4207 = vadd.f32 %v4195, 1.0
    %v4208 = vadd.f32 %v4196, 1.0
    %v4209 = vadd.f32 %v4197, 1.0
    %v4210 = vadd.f32 %v4198, 1.0
    %v4211 = vadd.f32 %v4199, 1.0
    %v4212 = vadd.f32 %v4200, 1.0
    %v4213 = vadd.f32 %v4201, 1.0
    %v4214 = vadd.f32 %v4202, 1.0
    %v4215 = vadd.f32 %v4203, 1.0
    %v4216 = vadd.f32 %v4204, 1.0
    %v4217 = vmul.f32 %v4205, 0.5
    %v4218 = vmul.f32 %v4206, 0.5
    %v4219 = vmul.f32 %v4207, 0.5
    %v4220 = vmul.f32 %v4208, 0.5
    %v4221 = vmul.f32 %v4209, 0.5
    %v4222 = vmul.f32 %v4210, 0.5
    %v4223 = vmul.f32 %v4211, 0.5
    %v4224 = vmul.f32 %v4212, 0.5
    %v4225 = vmul.f32 %v4213, 0.5
    %v4226 = vmul.f32 %v4214, 0.5
    %v4227 = vmul.f32 %v4215, 0.5
    %v4228 = vmul.f32 %v4216, 0.5
    %v4229 = vtanh.pop %v4095
    %v4230 = vtanh.pop %v4098
    %v4231 = vtanh.pop %v4103
    %v4232 = vtanh.pop %v4106
    %v4233 = vmul.f32 %v4221, %v3917
    %v4234 = vmul.f32 %v4222, %v3918
    %v4235 = vmul.f32 %v4223, %v3919
    %v4236 = vmul.f32 %v4224, %v3920
    %v4237 = vmul.f32 %v4217, %v4229
    %v4238 = vmul.f32 %v4218, %v4230
    %v4239 = vmul.f32 %v4219, %v4231
    %v4240 = vmul.f32 %v4220, %v4232
    %v4241 = vadd.f32 %v4233, %v4237
    %v4242 = vadd.f32 %v4234, %v4238
    %v4243 = vadd.f32 %v4235, %v4239
    %v4244 = vadd.f32 %v4236, %v4240
    %v4245 = vtanh.pop %v4241
    %v4246 = vtanh.pop %v4242
    %v4247 = vtanh.pop %v4243
    %v4248 = vtanh.pop %v4244
    %v4249 = vmul.f32 %v4225, %v4245
    %v4250 = vmul.f32 %v4226, %v4246
    %v4251 = vmul.f32 %v4227, %v4247
    %v4252 = vmul.f32 %v4228, %v4248
    %v4253 = vpack.c.bf16 %v4178, %v4177
    %v4254 = vpack.c.bf16 %v4180, %v4179
    %s4255 = scalar_lea.vmem [#allocation2], 176
    %4256 = vst [vmem:[%s4255] sm:$0xff] %v4253
    %4257 = vst [vmem:[%s4255 + $0x8] sm:$0xff] %v4254
    %v4258 = vpack.c.bf16 %v4250, %v4249
    %v4259 = vpack.c.bf16 %v4252, %v4251
    %s4260 = scalar_lea.vmem [#allocation3], 64
    %4261 = vst [vmem:[%s4260] sm:$0xff] %v4258
    %4262 = vst [vmem:[%s4260 + $0x8] sm:$0xff] %v4259
    %s4263 = scalar_lea.vmem %s0, 96
    %v4264 = vld [vmem:[%s4263] sm:$0xf]
    %v4265 = vld [vmem:[%s4263 + $0x4] sm:$0xf]
    %v4268 = vunpack.c.l.b16 %v4264
    %v4269 = vunpack.c.l.b16 %v4265
    %v4270 = vpack.c.b16 %v4269, %v4268
    %4272 = vmatprep.subr.bf16.mxu0 0
    %4273 = vmatpush1.bf16.msra.mxu0 %v4270
    %4274 = vmatprep.subr.bf16.mxu0 0
    %4275 = vmatpush1.bf16.msra.mxu0 %v4253
    %4276 = vmatprep.subr.bf16.mxu0 0
    %4277 = vmatpush1.bf16.msra.mxu0 %v4254
    %4278 = vmatprep.subr.bf16.mxu0 0
    %4279 = vmatpush1.bf16.msra.mxu0 %v4258
    %4280 = vmatprep.subr.bf16.mxu0 0
    %4281 = vmatpush1.bf16.msra.mxu0 %v4259
    %4282 = vmatprep.subr.bf16.mxu0 0
    %4283 = vmatpush1.bf16.msra.mxu0 0
    %4284 = vmatprep.subr.bf16.mxu0 0
    %4285 = vmatpush1.bf16.msra.mxu0 0
    %4286 = vmatprep.subr.bf16.mxu0 0
    %4287 = vmatpush1.bf16.msra.mxu0 0
    %4288 = vmatprep.subr.bf16.mxu0 0
    %4289 = vmatpush1.bf16.msra.mxu0 0
    %4290 = vmatprep.subr.bf16.mxu0 0
    %4291 = vmatpush1.bf16.msra.mxu0 0
    %4292 = vmatprep.subr.bf16.mxu0 0
    %4293 = vmatpush1.bf16.msra.mxu0 0
    %4294 = vmatprep.subr.bf16.mxu0 0
    %4295 = vmatpush1.bf16.msra.mxu0 0
    %4296 = vmatprep.subr.bf16.mxu0 0
    %4297 = vmatpush1.bf16.msra.mxu0 0
    %4298 = vmatprep.subr.bf16.mxu0 0
    %4299 = vmatpush1.bf16.msra.mxu0 0
    %4300 = vmatprep.subr.bf16.mxu0 0
    %4301 = vmatpush1.bf16.msra.mxu0 0
    %4302 = vmatprep.subr.bf16.mxu0 0
    %4303 = vmatpush1.bf16.msra.mxu0 0
    %4304 = vmatprep.mubr.bf16.mxu0 0
    %4305 = vmatmul.mubr.bf16.gmra.mrb[0].mxu0 %v338
    %v4306 = vpop.f32.mrb[0].mxu0
    %v4307 = vadd.f32 %v99, %v4306
    %v4308 = vpop.f32.mrb[0].mxu0
    %v4309 = vpop.f32.mrb[0].mxu0
    %v4310 = vadd.f32 %v104, %v4309
    %v4311 = vpop.f32.mrb[0].mxu0
    %4312 = vmatprep.mubr.bf16.mxu0 0
    %4313 = vmatmul.mubr.bf16.gmra.mrb[0].mxu0 %v341
    %v4314 = vpop.f32.mrb[0].mxu0
    %v4315 = vadd.f32 %v109, %v4314
    %v4316 = vpop.f32.mrb[0].mxu0
    %v4317 = vpop.f32.mrb[0].mxu0
    %v4318 = vadd.f32 %v114, %v4317
    %v4319 = vpop.f32.mrb[0].mxu0
    %4320 = vmatprep.mubr.bf16.mxu0 0
    %4321 = vmatmul.mubr.bf16.gmra.mrb[0].mxu0 %v344
    %v4322 = vpop.f32.mrb[0].mxu0
    %v4323 = vadd.f32 %v119, %v4322
    %v4324 = vpop.f32.mrb[0].mxu0
    %v4325 = vpop.f32.mrb[0].mxu0
    %v4326 = vadd.f32 %v124, %v4325
    %v4327 = vpop.f32.mrb[0].mxu0
    %4328 = vmatprep.mubr.bf16.mxu0 0
    %4329 = vmatmul.mubr.bf16.gmra.mrb[0].mxu0 %v347
    %v4330 = vpop.f32.mrb[0].mxu0
    %v4331 = vadd.f32 %v129, %v4330
    %v4332 = vpop.f32.mrb[0].mxu0
    %v4333 = vpop.f32.mrb[0].mxu0
    %v4334 = vadd.f32 %v134, %v4333
    %v4335 = vpop.f32.mrb[0].mxu0
    %4336 = vmatprep.mubr.bf16.mxu0 0
    %4337 = vmatmul.mubr.bf16.gmra.mrb[0].mxu0 %v350
    %v4338 = vpop.f32.mrb[0].mxu0
    %v4339 = vadd.f32 %v139, %v4338
    %v4340 = vpop.f32.mrb[0].mxu0
    %v4341 = vpop.f32.mrb[0].mxu0
    %v4342 = vadd.f32 %v144, %v4341
    %v4343 = vpop.f32.mrb[0].mxu0
    %4344 = vmatprep.mubr.bf16.mxu0 0
    %4345 = vmatmul.mubr.bf16.gmra.mrb[0].mxu0 %v353
    %v4346 = vpop.f32.mrb[0].mxu0
    %v4347 = vadd.f32 %v149, %v4346
    %v4348 = vpop.f32.mrb[0].mxu0
    %v4349 = vpop.f32.mrb[0].mxu0
    %v4350 = vadd.f32 %v154, %v4349
    %v4351 = vpop.f32.mrb[0].mxu0
    %4352 = vmatprep.mubr.bf16.mxu0 0
    %4353 = vmatmul.mubr.bf16.gmra.mrb[0].mxu0 %v356
    %v4354 = vpop.f32.mrb[0].mxu0
    %v4355 = vadd.f32 %v159, %v4354
    %v4356 = vpop.f32.mrb[0].mxu0
    %v4357 = vpop.f32.mrb[0].mxu0
    %v4358 = vadd.f32 %v164, %v4357
    %v4359 = vpop.f32.mrb[0].mxu0
    %4360 = vmatprep.mubr.bf16.mxu0 0
    %4361 = vmatmul.mubr.bf16.gmra.mrb[0].mxu0 %v359
    %v4362 = vpop.f32.mrb[0].mxu0
    %v4363 = vadd.f32 %v169, %v4362
    %v4364 = vpop.f32.mrb[0].mxu0
    %v4365 = vpop.f32.mrb[0].mxu0
    %v4366 = vadd.f32 %v174, %v4365
    %v4367 = vpop.f32.mrb[0].mxu0
    %4368 = vmatprep.mubr.bf16.mxu0 0
    %4369 = vmatmul.mubr.bf16.gmra.mrb[0].mxu0 %v362
    %v4370 = vpop.f32.mrb[0].mxu0
    %v4371 = vadd.f32 %v179, %v4370
    %v4372 = vpop.f32.mrb[0].mxu0
    %v4373 = vpop.f32.mrb[0].mxu0
    %v4374 = vadd.f32 %v184, %v4373
    %v4375 = vpop.f32.mrb[0].mxu0
    %4376 = vmatprep.mubr.bf16.mxu0 0
    %4377 = vmatmul.mubr.bf16.gmra.mrb[0].mxu0 %v365
    %v4378 = vpop.f32.mrb[0].mxu0
    %v4379 = vadd.f32 %v189, %v4378
    %v4380 = vpop.f32.mrb[0].mxu0
    %v4381 = vpop.f32.mrb[0].mxu0
    %v4382 = vadd.f32 %v194, %v4381
    %v4383 = vpop.f32.mrb[0].mxu0
    %4384 = vmatprep.mubr.bf16.mxu0 0
    %4385 = vmatmul.mubr.bf16.gmra.mrb[0].mxu0 %v368
    %v4386 = vpop.f32.mrb[0].mxu0
    %v4387 = vadd.f32 %v199, %v4386
    %v4388 = vpop.f32.mrb[0].mxu0
    %v4389 = vpop.f32.mrb[0].mxu0
    %v4390 = vadd.f32 %v204, %v4389
    %v4391 = vpop.f32.mrb[0].mxu0
    %4392 = vmatprep.mubr.bf16.mxu0 0
    %4393 = vmatmul.mubr.bf16.gmra.mrb[0].mxu0 %v371
    %v4394 = vpop.f32.mrb[0].mxu0
    %v4395 = vadd.f32 %v209, %v4394
    %v4396 = vpop.f32.mrb[0].mxu0
    %v4397 = vpop.f32.mrb[0].mxu0
    %v4398 = vadd.f32 %v214, %v4397
    %v4399 = vpop.f32.mrb[0].mxu0
    %4400 = vmatprep.mubr.bf16.mxu0 0
    %4401 = vmatmul.mubr.bf16.gmra.mrb[0].mxu0 %v374
    %v4402 = vpop.f32.mrb[0].mxu0
    %v4403 = vadd.f32 %v219, %v4402
    %v4404 = vpop.f32.mrb[0].mxu0
    %v4405 = vpop.f32.mrb[0].mxu0
    %v4406 = vadd.f32 %v224, %v4405
    %v4407 = vpop.f32.mrb[0].mxu0
    %4408 = vmatprep.mubr.bf16.mxu0 0
    %4409 = vmatmul.mubr.bf16.gmra.mrb[0].mxu0 %v377
    %v4410 = vpop.f32.mrb[0].mxu0
    %v4411 = vadd.f32 %v229, %v4410
    %v4412 = vpop.f32.mrb[0].mxu0
    %v4413 = vpop.f32.mrb[0].mxu0
    %v4414 = vadd.f32 %v234, %v4413
    %v4415 = vpop.f32.mrb[0].mxu0
    %4416 = vmatprep.mubr.bf16.mxu0 0
    %4417 = vmatmul.mubr.bf16.gmra.mrb[0].mxu0 %v380
    %v4418 = vpop.f32.mrb[0].mxu0
    %v4419 = vadd.f32 %v239, %v4418
    %v4420 = vpop.f32.mrb[0].mxu0
    %v4421 = vpop.f32.mrb[0].mxu0
    %v4422 = vadd.f32 %v244, %v4421
    %v4423 = vpop.f32.mrb[0].mxu0
    %4424 = vmatprep.mubr.bf16.mxu0 0
    %4425 = vmatmul.mubr.bf16.gmra.mrb[0].mxu0 %v383
    %v4426 = vpop.f32.mrb[0].mxu0
    %v4427 = vadd.f32 %v249, %v4426
    %v4428 = vpop.f32.mrb[0].mxu0
    %v4429 = vpop.f32.mrb[0].mxu0
    %v4430 = vadd.f32 %v254, %v4429
    %v4431 = vpop.f32.mrb[0].mxu0
    %4432 = vdwg.mxu0
    %v4433 = vmul.f32 %v4307, 0.5
    %v4434 = vmul.f32 %v4310, 0.5
    %v4435 = vmul.f32 %v4315, 0.5
    %v4436 = vmul.f32 %v4318, 0.5
    %v4437 = vmul.f32 %v4323, 0.5
    %v4438 = vmul.f32 %v4326, 0.5
    %v4439 = vmul.f32 %v4331, 0.5
    %v4440 = vmul.f32 %v4334, 0.5
    %v4441 = vmul.f32 %v4339, 0.5
    %v4442 = vmul.f32 %v4342, 0.5
    %v4443 = vmul.f32 %v4347, 0.5
    %v4444 = vmul.f32 %v4350, 0.5
    %v4445 = vtanh.pop %v4433
    %v4446 = vtanh.pop %v4434
    %v4447 = vtanh.pop %v4435
    %v4448 = vtanh.pop %v4436
    %v4449 = vtanh.pop %v4437
    %v4450 = vtanh.pop %v4438
    %v4451 = vtanh.pop %v4439
    %v4452 = vtanh.pop %v4440
    %v4453 = vtanh.pop %v4441
    %v4454 = vtanh.pop %v4442
    %v4455 = vtanh.pop %v4443
    %v4456 = vtanh.pop %v4444
    %v4457 = vadd.f32 %v4445, 1.0
    %v4458 = vadd.f32 %v4446, 1.0
    %v4459 = vadd.f32 %v4447, 1.0
    %v4460 = vadd.f32 %v4448, 1.0
    %v4461 = vadd.f32 %v4449, 1.0
    %v4462 = vadd.f32 %v4450, 1.0
    %v4463 = vadd.f32 %v4451, 1.0
    %v4464 = vadd.f32 %v4452, 1.0
    %v4465 = vadd.f32 %v4453, 1.0
    %v4466 = vadd.f32 %v4454, 1.0
    %v4467 = vadd.f32 %v4455, 1.0
    %v4468 = vadd.f32 %v4456, 1.0
    %v4469 = vmul.f32 %v4457, 0.5
    %v4470 = vmul.f32 %v4458, 0.5
    %v4471 = vmul.f32 %v4459, 0.5
    %v4472 = vmul.f32 %v4460, 0.5
    %v4473 = vmul.f32 %v4461, 0.5
    %v4474 = vmul.f32 %v4462, 0.5
    %v4475 = vmul.f32 %v4463, 0.5
    %v4476 = vmul.f32 %v4464, 0.5
    %v4477 = vmul.f32 %v4465, 0.5
    %v4478 = vmul.f32 %v4466, 0.5
    %v4479 = vmul.f32 %v4467, 0.5
    %v4480 = vmul.f32 %v4468, 0.5
    %v4481 = vtanh.pop %v4355
    %v4482 = vtanh.pop %v4358
    %v4483 = vtanh.pop %v4363
    %v4484 = vtanh.pop %v4366
    %v4485 = vmul.f32 %v4473, %v4169
    %v4486 = vmul.f32 %v4474, %v4170
    %v4487 = vmul.f32 %v4475, %v4171
    %v4488 = vmul.f32 %v4476, %v4172
    %v4489 = vmul.f32 %v4469, %v4481
    %v4490 = vmul.f32 %v4470, %v4482
    %v4491 = vmul.f32 %v4471, %v4483
    %v4492 = vmul.f32 %v4472, %v4484
    %v4493 = vadd.f32 %v4485, %v4489
    %v4494 = vadd.f32 %v4486, %v4490
    %v4495 = vadd.f32 %v4487, %v4491
    %v4496 = vadd.f32 %v4488, %v4492
    %v4497 = vtanh.pop %v4493
    %v4498 = vtanh.pop %v4494
    %v4499 = vtanh.pop %v4495
    %v4500 = vtanh.pop %v4496
    %v4501 = vmul.f32 %v4477, %v4497
    %v4502 = vmul.f32 %v4478, %v4498
    %v4503 = vmul.f32 %v4479, %v4499
    %v4504 = vmul.f32 %v4480, %v4500
    %v4505 = vmul.f32 %v4371, 0.5
    %v4506 = vmul.f32 %v4374, 0.5
    %v4507 = vmul.f32 %v4379, 0.5
    %v4508 = vmul.f32 %v4382, 0.5
    %v4509 = vmul.f32 %v4387, 0.5
    %v4510 = vmul.f32 %v4390, 0.5
    %v4511 = vmul.f32 %v4395, 0.5
    %v4512 = vmul.f32 %v4398, 0.5
    %v4513 = vmul.f32 %v4403, 0.5
    %v4514 = vmul.f32 %v4406, 0.5
    %v4515 = vmul.f32 %v4411, 0.5
    %v4516 = vmul.f32 %v4414, 0.5
    %v4517 = vtanh.pop %v4505
    %v4518 = vtanh.pop %v4506
    %v4519 = vtanh.pop %v4507
    %v4520 = vtanh.pop %v4508
    %v4521 = vtanh.pop %v4509
    %v4522 = vtanh.pop %v4510
    %v4523 = vtanh.pop %v4511
    %v4524 = vtanh.pop %v4512
    %v4525 = vtanh.pop %v4513
    %v4526 = vtanh.pop %v4514
    %v4527 = vtanh.pop %v4515
    %v4528 = vtanh.pop %v4516
    %v4529 = vadd.f32 %v4517, 1.0
    %v4530 = vadd.f32 %v4518, 1.0
    %v4531 = vadd.f32 %v4519, 1.0
    %v4532 = vadd.f32 %v4520, 1.0
    %v4533 = vadd.f32 %v4521, 1.0
    %v4534 = vadd.f32 %v4522, 1.0
    %v4535 = vadd.f32 %v4523, 1.0
    %v4536 = vadd.f32 %v4524, 1.0
    %v4537 = vadd.f32 %v4525, 1.0
    %v4538 = vadd.f32 %v4526, 1.0
    %v4539 = vadd.f32 %v4527, 1.0
    %v4540 = vadd.f32 %v4528, 1.0
    %v4541 = vmul.f32 %v4529, 0.5
    %v4542 = vmul.f32 %v4530, 0.5
    %v4543 = vmul.f32 %v4531, 0.5
    %v4544 = vmul.f32 %v4532, 0.5
    %v4545 = vmul.f32 %v4533, 0.5
    %v4546 = vmul.f32 %v4534, 0.5
    %v4547 = vmul.f32 %v4535, 0.5
    %v4548 = vmul.f32 %v4536, 0.5
    %v4549 = vmul.f32 %v4537, 0.5
    %v4550 = vmul.f32 %v4538, 0.5
    %v4551 = vmul.f32 %v4539, 0.5
    %v4552 = vmul.f32 %v4540, 0.5
    %v4553 = vtanh.pop %v4419
    %v4554 = vtanh.pop %v4422
    %v4555 = vtanh.pop %v4427
    %v4556 = vtanh.pop %v4430
    %v4557 = vmul.f32 %v4545, %v4241
    %v4558 = vmul.f32 %v4546, %v4242
    %v4559 = vmul.f32 %v4547, %v4243
    %v4560 = vmul.f32 %v4548, %v4244
    %v4561 = vmul.f32 %v4541, %v4553
    %v4562 = vmul.f32 %v4542, %v4554
    %v4563 = vmul.f32 %v4543, %v4555
    %v4564 = vmul.f32 %v4544, %v4556
    %v4565 = vadd.f32 %v4557, %v4561
    %v4566 = vadd.f32 %v4558, %v4562
    %v4567 = vadd.f32 %v4559, %v4563
    %v4568 = vadd.f32 %v4560, %v4564
    %v4569 = vtanh.pop %v4565
    %v4570 = vtanh.pop %v4566
    %v4571 = vtanh.pop %v4567
    %v4572 = vtanh.pop %v4568
    %v4573 = vmul.f32 %v4549, %v4569
    %v4574 = vmul.f32 %v4550, %v4570
    %v4575 = vmul.f32 %v4551, %v4571
    %v4576 = vmul.f32 %v4552, %v4572
    %v4577 = vpack.c.bf16 %v4502, %v4501
    %v4578 = vpack.c.bf16 %v4504, %v4503
    %s4579 = scalar_lea.vmem [#allocation2], 192
    %4580 = vst [vmem:[%s4579] sm:$0xff] %v4577
    %4581 = vst [vmem:[%s4579 + $0x8] sm:$0xff] %v4578
    %v4582 = vpack.c.bf16 %v4574, %v4573
    %v4583 = vpack.c.bf16 %v4576, %v4575
    %s4584 = scalar_lea.vmem [#allocation3], 48
    %4585 = vst [vmem:[%s4584] sm:$0xff] %v4582
    %4586 = vst [vmem:[%s4584 + $0x8] sm:$0xff] %v4583
    %s4587 = scalar_lea.vmem %s0, 104
    %v4588 = vld [vmem:[%s4587] sm:$0xf]
    %v4589 = vld [vmem:[%s4587 + $0x4] sm:$0xf]
    %v4592 = vunpack.c.l.b16 %v4588
    %v4593 = vunpack.c.l.b16 %v4589
    %v4594 = vpack.c.b16 %v4593, %v4592
    %4596 = vmatprep.subr.bf16.mxu0 0
    %4597 = vmatpush1.bf16.msra.mxu0 %v4594
    %4598 = vmatprep.subr.bf16.mxu0 0
    %4599 = vmatpush1.bf16.msra.mxu0 %v4577
    %4600 = vmatprep.subr.bf16.mxu0 0
    %4601 = vmatpush1.bf16.msra.mxu0 %v4578
    %4602 = vmatprep.subr.bf16.mxu0 0
    %4603 = vmatpush1.bf16.msra.mxu0 %v4582
    %4604 = vmatprep.subr.bf16.mxu0 0
    %4605 = vmatpush1.bf16.msra.mxu0 %v4583
    %4606 = vmatprep.subr.bf16.mxu0 0
    %4607 = vmatpush1.bf16.msra.mxu0 0
    %4608 = vmatprep.subr.bf16.mxu0 0
    %4609 = vmatpush1.bf16.msra.mxu0 0
    %4610 = vmatprep.subr.bf16.mxu0 0
    %4611 = vmatpush1.bf16.msra.mxu0 0
    %4612 = vmatprep.subr.bf16.mxu0 0
    %4613 = vmatpush1.bf16.msra.mxu0 0
    %4614 = vmatprep.subr.bf16.mxu0 0
    %4615 = vmatpush1.bf16.msra.mxu0 0
    %4616 = vmatprep.subr.bf16.mxu0 0
    %4617 = vmatpush1.bf16.msra.mxu0 0
    %4618 = vmatprep.subr.bf16.mxu0 0
    %4619 = vmatpush1.bf16.msra.mxu0 0
    %4620 = vmatprep.subr.bf16.mxu0 0
    %4621 = vmatpush1.bf16.msra.mxu0 0
    %4622 = vmatprep.subr.bf16.mxu0 0
    %4623 = vmatpush1.bf16.msra.mxu0 0
    %4624 = vmatprep.subr.bf16.mxu0 0
    %4625 = vmatpush1.bf16.msra.mxu0 0
    %4626 = vmatprep.subr.bf16.mxu0 0
    %4627 = vmatpush1.bf16.msra.mxu0 0
    %4628 = vmatprep.mubr.bf16.mxu0 0
    %4629 = vmatmul.mubr.bf16.gmra.mrb[0].mxu0 %v338
    %v4630 = vpop.f32.mrb[0].mxu0
    %v4631 = vadd.f32 %v99, %v4630
    %v4632 = vpop.f32.mrb[0].mxu0
    %v4633 = vpop.f32.mrb[0].mxu0
    %v4634 = vadd.f32 %v104, %v4633
    %v4635 = vpop.f32.mrb[0].mxu0
    %4636 = vmatprep.mubr.bf16.mxu0 0
    %4637 = vmatmul.mubr.bf16.gmra.mrb[0].mxu0 %v341
    %v4638 = vpop.f32.mrb[0].mxu0
    %v4639 = vadd.f32 %v109, %v4638
    %v4640 = vpop.f32.mrb[0].mxu0
    %v4641 = vpop.f32.mrb[0].mxu0
    %v4642 = vadd.f32 %v114, %v4641
    %v4643 = vpop.f32.mrb[0].mxu0
    %4644 = vmatprep.mubr.bf16.mxu0 0
    %4645 = vmatmul.mubr.bf16.gmra.mrb[0].mxu0 %v344
    %v4646 = vpop.f32.mrb[0].mxu0
    %v4647 = vadd.f32 %v119, %v4646
    %v4648 = vpop.f32.mrb[0].mxu0
    %v4649 = vpop.f32.mrb[0].mxu0
    %v4650 = vadd.f32 %v124, %v4649
    %v4651 = vpop.f32.mrb[0].mxu0
    %4652 = vmatprep.mubr.bf16.mxu0 0
    %4653 = vmatmul.mubr.bf16.gmra.mrb[0].mxu0 %v347
    %v4654 = vpop.f32.mrb[0].mxu0
    %v4655 = vadd.f32 %v129, %v4654
    %v4656 = vpop.f32.mrb[0].mxu0
    %v4657 = vpop.f32.mrb[0].mxu0
    %v4658 = vadd.f32 %v134, %v4657
    %v4659 = vpop.f32.mrb[0].mxu0
    %4660 = vmatprep.mubr.bf16.mxu0 0
    %4661 = vmatmul.mubr.bf16.gmra.mrb[0].mxu0 %v350
    %v4662 = vpop.f32.mrb[0].mxu0
    %v4663 = vadd.f32 %v139, %v4662
    %v4664 = vpop.f32.mrb[0].mxu0
    %v4665 = vpop.f32.mrb[0].mxu0
    %v4666 = vadd.f32 %v144, %v4665
    %v4667 = vpop.f32.mrb[0].mxu0
    %4668 = vmatprep.mubr.bf16.mxu0 0
    %4669 = vmatmul.mubr.bf16.gmra.mrb[0].mxu0 %v353
    %v4670 = vpop.f32.mrb[0].mxu0
    %v4671 = vadd.f32 %v149, %v4670
    %v4672 = vpop.f32.mrb[0].mxu0
    %v4673 = vpop.f32.mrb[0].mxu0
    %v4674 = vadd.f32 %v154, %v4673
    %v4675 = vpop.f32.mrb[0].mxu0
    %4676 = vmatprep.mubr.bf16.mxu0 0
    %4677 = vmatmul.mubr.bf16.gmra.mrb[0].mxu0 %v356
    %v4678 = vpop.f32.mrb[0].mxu0
    %v4679 = vadd.f32 %v159, %v4678
    %v4680 = vpop.f32.mrb[0].mxu0
    %v4681 = vpop.f32.mrb[0].mxu0
    %v4682 = vadd.f32 %v164, %v4681
    %v4683 = vpop.f32.mrb[0].mxu0
    %4684 = vmatprep.mubr.bf16.mxu0 0
    %4685 = vmatmul.mubr.bf16.gmra.mrb[0].mxu0 %v359
    %v4686 = vpop.f32.mrb[0].mxu0
    %v4687 = vadd.f32 %v169, %v4686
    %v4688 = vpop.f32.mrb[0].mxu0
    %v4689 = vpop.f32.mrb[0].mxu0
    %v4690 = vadd.f32 %v174, %v4689
    %v4691 = vpop.f32.mrb[0].mxu0
    %4692 = vmatprep.mubr.bf16.mxu0 0
    %4693 = vmatmul.mubr.bf16.gmra.mrb[0].mxu0 %v362
    %v4694 = vpop.f32.mrb[0].mxu0
    %v4695 = vadd.f32 %v179, %v4694
    %v4696 = vpop.f32.mrb[0].mxu0
    %v4697 = vpop.f32.mrb[0].mxu0
    %v4698 = vadd.f32 %v184, %v4697
    %v4699 = vpop.f32.mrb[0].mxu0
    %4700 = vmatprep.mubr.bf16.mxu0 0
    %4701 = vmatmul.mubr.bf16.gmra.mrb[0].mxu0 %v365
    %v4702 = vpop.f32.mrb[0].mxu0
    %v4703 = vadd.f32 %v189, %v4702
    %v4704 = vpop.f32.mrb[0].mxu0
    %v4705 = vpop.f32.mrb[0].mxu0
    %v4706 = vadd.f32 %v194, %v4705
    %v4707 = vpop.f32.mrb[0].mxu0
    %4708 = vmatprep.mubr.bf16.mxu0 0
    %4709 = vmatmul.mubr.bf16.gmra.mrb[0].mxu0 %v368
    %v4710 = vpop.f32.mrb[0].mxu0
    %v4711 = vadd.f32 %v199, %v4710
    %v4712 = vpop.f32.mrb[0].mxu0
    %v4713 = vpop.f32.mrb[0].mxu0
    %v4714 = vadd.f32 %v204, %v4713
    %v4715 = vpop.f32.mrb[0].mxu0
    %4716 = vmatprep.mubr.bf16.mxu0 0
    %4717 = vmatmul.mubr.bf16.gmra.mrb[0].mxu0 %v371
    %v4718 = vpop.f32.mrb[0].mxu0
    %v4719 = vadd.f32 %v209, %v4718
    %v4720 = vpop.f32.mrb[0].mxu0
    %v4721 = vpop.f32.mrb[0].mxu0
    %v4722 = vadd.f32 %v214, %v4721
    %v4723 = vpop.f32.mrb[0].mxu0
    %4724 = vmatprep.mubr.bf16.mxu0 0
    %4725 = vmatmul.mubr.bf16.gmra.mrb[0].mxu0 %v374
    %v4726 = vpop.f32.mrb[0].mxu0
    %v4727 = vadd.f32 %v219, %v4726
    %v4728 = vpop.f32.mrb[0].mxu0
    %v4729 = vpop.f32.mrb[0].mxu0
    %v4730 = vadd.f32 %v224, %v4729
    %v4731 = vpop.f32.mrb[0].mxu0
    %4732 = vmatprep.mubr.bf16.mxu0 0
    %4733 = vmatmul.mubr.bf16.gmra.mrb[0].mxu0 %v377
    %v4734 = vpop.f32.mrb[0].mxu0
    %v4735 = vadd.f32 %v229, %v4734
    %v4736 = vpop.f32.mrb[0].mxu0
    %v4737 = vpop.f32.mrb[0].mxu0
    %v4738 = vadd.f32 %v234, %v4737
    %v4739 = vpop.f32.mrb[0].mxu0
    %4740 = vmatprep.mubr.bf16.mxu0 0
    %4741 = vmatmul.mubr.bf16.gmra.mrb[0].mxu0 %v380
    %v4742 = vpop.f32.mrb[0].mxu0
    %v4743 = vadd.f32 %v239, %v4742
    %v4744 = vpop.f32.mrb[0].mxu0
    %v4745 = vpop.f32.mrb[0].mxu0
    %v4746 = vadd.f32 %v244, %v4745
    %v4747 = vpop.f32.mrb[0].mxu0
    %4748 = vmatprep.mubr.bf16.mxu0 0
    %4749 = vmatmul.mubr.bf16.gmra.mrb[0].mxu0 %v383
    %v4750 = vpop.f32.mrb[0].mxu0
    %v4751 = vadd.f32 %v249, %v4750
    %v4752 = vpop.f32.mrb[0].mxu0
    %v4753 = vpop.f32.mrb[0].mxu0
    %v4754 = vadd.f32 %v254, %v4753
    %v4755 = vpop.f32.mrb[0].mxu0
    %4756 = vdwg.mxu0
    %v4757 = vmul.f32 %v4631, 0.5
    %v4758 = vmul.f32 %v4634, 0.5
    %v4759 = vmul.f32 %v4639, 0.5
    %v4760 = vmul.f32 %v4642, 0.5
    %v4761 = vmul.f32 %v4647, 0.5
    %v4762 = vmul.f32 %v4650, 0.5
    %v4763 = vmul.f32 %v4655, 0.5
    %v4764 = vmul.f32 %v4658, 0.5
    %v4765 = vmul.f32 %v4663, 0.5
    %v4766 = vmul.f32 %v4666, 0.5
    %v4767 = vmul.f32 %v4671, 0.5
    %v4768 = vmul.f32 %v4674, 0.5
    %v4769 = vtanh.pop %v4757
    %v4770 = vtanh.pop %v4758
    %v4771 = vtanh.pop %v4759
    %v4772 = vtanh.pop %v4760
    %v4773 = vtanh.pop %v4761
    %v4774 = vtanh.pop %v4762
    %v4775 = vtanh.pop %v4763
    %v4776 = vtanh.pop %v4764
    %v4777 = vtanh.pop %v4765
    %v4778 = vtanh.pop %v4766
    %v4779 = vtanh.pop %v4767
    %v4780 = vtanh.pop %v4768
    %v4781 = vadd.f32 %v4769, 1.0
    %v4782 = vadd.f32 %v4770, 1.0
    %v4783 = vadd.f32 %v4771, 1.0
    %v4784 = vadd.f32 %v4772, 1.0
    %v4785 = vadd.f32 %v4773, 1.0
    %v4786 = vadd.f32 %v4774, 1.0
    %v4787 = vadd.f32 %v4775, 1.0
    %v4788 = vadd.f32 %v4776, 1.0
    %v4789 = vadd.f32 %v4777, 1.0
    %v4790 = vadd.f32 %v4778, 1.0
    %v4791 = vadd.f32 %v4779, 1.0
    %v4792 = vadd.f32 %v4780, 1.0
    %v4793 = vmul.f32 %v4781, 0.5
    %v4794 = vmul.f32 %v4782, 0.5
    %v4795 = vmul.f32 %v4783, 0.5
    %v4796 = vmul.f32 %v4784, 0.5
    %v4797 = vmul.f32 %v4785, 0.5
    %v4798 = vmul.f32 %v4786, 0.5
    %v4799 = vmul.f32 %v4787, 0.5
    %v4800 = vmul.f32 %v4788, 0.5
    %v4801 = vmul.f32 %v4789, 0.5
    %v4802 = vmul.f32 %v4790, 0.5
    %v4803 = vmul.f32 %v4791, 0.5
    %v4804 = vmul.f32 %v4792, 0.5
    %v4805 = vtanh.pop %v4679
    %v4806 = vtanh.pop %v4682
    %v4807 = vtanh.pop %v4687
    %v4808 = vtanh.pop %v4690
    %v4809 = vmul.f32 %v4797, %v4493
    %v4810 = vmul.f32 %v4798, %v4494
    %v4811 = vmul.f32 %v4799, %v4495
    %v4812 = vmul.f32 %v4800, %v4496
    %v4813 = vmul.f32 %v4793, %v4805
    %v4814 = vmul.f32 %v4794, %v4806
    %v4815 = vmul.f32 %v4795, %v4807
    %v4816 = vmul.f32 %v4796, %v4808
    %v4817 = vadd.f32 %v4809, %v4813
    %v4818 = vadd.f32 %v4810, %v4814
    %v4819 = vadd.f32 %v4811, %v4815
    %v4820 = vadd.f32 %v4812, %v4816
    %v4821 = vtanh.pop %v4817
    %v4822 = vtanh.pop %v4818
    %v4823 = vtanh.pop %v4819
    %v4824 = vtanh.pop %v4820
    %v4825 = vmul.f32 %v4801, %v4821
    %v4826 = vmul.f32 %v4802, %v4822
    %v4827 = vmul.f32 %v4803, %v4823
    %v4828 = vmul.f32 %v4804, %v4824
    %v4829 = vmul.f32 %v4695, 0.5
    %v4830 = vmul.f32 %v4698, 0.5
    %v4831 = vmul.f32 %v4703, 0.5
    %v4832 = vmul.f32 %v4706, 0.5
    %v4833 = vmul.f32 %v4711, 0.5
    %v4834 = vmul.f32 %v4714, 0.5
    %v4835 = vmul.f32 %v4719, 0.5
    %v4836 = vmul.f32 %v4722, 0.5
    %v4837 = vmul.f32 %v4727, 0.5
    %v4838 = vmul.f32 %v4730, 0.5
    %v4839 = vmul.f32 %v4735, 0.5
    %v4840 = vmul.f32 %v4738, 0.5
    %v4841 = vtanh.pop %v4829
    %v4842 = vtanh.pop %v4830
    %v4843 = vtanh.pop %v4831
    %v4844 = vtanh.pop %v4832
    %v4845 = vtanh.pop %v4833
    %v4846 = vtanh.pop %v4834
    %v4847 = vtanh.pop %v4835
    %v4848 = vtanh.pop %v4836
    %v4849 = vtanh.pop %v4837
    %v4850 = vtanh.pop %v4838
    %v4851 = vtanh.pop %v4839
    %v4852 = vtanh.pop %v4840
    %v4853 = vadd.f32 %v4841, 1.0
    %v4854 = vadd.f32 %v4842, 1.0
    %v4855 = vadd.f32 %v4843, 1.0
    %v4856 = vadd.f32 %v4844, 1.0
    %v4857 = vadd.f32 %v4845, 1.0
    %v4858 = vadd.f32 %v4846, 1.0
    %v4859 = vadd.f32 %v4847, 1.0
    %v4860 = vadd.f32 %v4848, 1.0
    %v4861 = vadd.f32 %v4849, 1.0
    %v4862 = vadd.f32 %v4850, 1.0
    %v4863 = vadd.f32 %v4851, 1.0
    %v4864 = vadd.f32 %v4852, 1.0
    %v4865 = vmul.f32 %v4853, 0.5
    %v4866 = vmul.f32 %v4854, 0.5
    %v4867 = vmul.f32 %v4855, 0.5
    %v4868 = vmul.f32 %v4856, 0.5
    %v4869 = vmul.f32 %v4857, 0.5
    %v4870 = vmul.f32 %v4858, 0.5
    %v4871 = vmul.f32 %v4859, 0.5
    %v4872 = vmul.f32 %v4860, 0.5
    %v4873 = vmul.f32 %v4861, 0.5
    %v4874 = vmul.f32 %v4862, 0.5
    %v4875 = vmul.f32 %v4863, 0.5
    %v4876 = vmul.f32 %v4864, 0.5
    %v4877 = vtanh.pop %v4743
    %v4878 = vtanh.pop %v4746
    %v4879 = vtanh.pop %v4751
    %v4880 = vtanh.pop %v4754
    %v4881 = vmul.f32 %v4869, %v4565
    %v4882 = vmul.f32 %v4870, %v4566
    %v4883 = vmul.f32 %v4871, %v4567
    %v4884 = vmul.f32 %v4872, %v4568
    %v4885 = vmul.f32 %v4865, %v4877
    %v4886 = vmul.f32 %v4866, %v4878
    %v4887 = vmul.f32 %v4867, %v4879
    %v4888 = vmul.f32 %v4868, %v4880
    %v4889 = vadd.f32 %v4881, %v4885
    %v4890 = vadd.f32 %v4882, %v4886
    %v4891 = vadd.f32 %v4883, %v4887
    %v4892 = vadd.f32 %v4884, %v4888
    %v4893 = vtanh.pop %v4889
    %v4894 = vtanh.pop %v4890
    %v4895 = vtanh.pop %v4891
    %v4896 = vtanh.pop %v4892
    %v4897 = vmul.f32 %v4873, %v4893
    %v4898 = vmul.f32 %v4874, %v4894
    %v4899 = vmul.f32 %v4875, %v4895
    %v4900 = vmul.f32 %v4876, %v4896
    %v4901 = vpack.c.bf16 %v4826, %v4825
    %v4902 = vpack.c.bf16 %v4828, %v4827
    %s4903 = scalar_lea.vmem [#allocation2], 208
    %4904 = vst [vmem:[%s4903] sm:$0xff] %v4901
    %4905 = vst [vmem:[%s4903 + $0x8] sm:$0xff] %v4902
    %v4906 = vpack.c.bf16 %v4898, %v4897
    %v4907 = vpack.c.bf16 %v4900, %v4899
    %s4908 = scalar_lea.vmem [#allocation3], 32
    %4909 = vst [vmem:[%s4908] sm:$0xff] %v4906
    %4910 = vst [vmem:[%s4908 + $0x8] sm:$0xff] %v4907
    %s4911 = scalar_lea.vmem %s0, 112
    %v4912 = vld [vmem:[%s4911] sm:$0xf]
    %v4913 = vld [vmem:[%s4911 + $0x4] sm:$0xf]
    %v4916 = vunpack.c.l.b16 %v4912
    %v4917 = vunpack.c.l.b16 %v4913
    %v4918 = vpack.c.b16 %v4917, %v4916
    %4920 = vmatprep.subr.bf16.mxu0 0
    %4921 = vmatpush1.bf16.msra.mxu0 %v4918
    %4922 = vmatprep.subr.bf16.mxu0 0
    %4923 = vmatpush1.bf16.msra.mxu0 %v4901
    %4924 = vmatprep.subr.bf16.mxu0 0
    %4925 = vmatpush1.bf16.msra.mxu0 %v4902
    %4926 = vmatprep.subr.bf16.mxu0 0
    %4927 = vmatpush1.bf16.msra.mxu0 %v4906
    %4928 = vmatprep.subr.bf16.mxu0 0
    %4929 = vmatpush1.bf16.msra.mxu0 %v4907
    %4930 = vmatprep.subr.bf16.mxu0 0
    %4931 = vmatpush1.bf16.msra.mxu0 0
    %4932 = vmatprep.subr.bf16.mxu0 0
    %4933 = vmatpush1.bf16.msra.mxu0 0
    %4934 = vmatprep.subr.bf16.mxu0 0
    %4935 = vmatpush1.bf16.msra.mxu0 0
    %4936 = vmatprep.subr.bf16.mxu0 0
    %4937 = vmatpush1.bf16.msra.mxu0 0
    %4938 = vmatprep.subr.bf16.mxu0 0
    %4939 = vmatpush1.bf16.msra.mxu0 0
    %4940 = vmatprep.subr.bf16.mxu0 0
    %4941 = vmatpush1.bf16.msra.mxu0 0
    %4942 = vmatprep.subr.bf16.mxu0 0
    %4943 = vmatpush1.bf16.msra.mxu0 0
    %4944 = vmatprep.subr.bf16.mxu0 0
    %4945 = vmatpush1.bf16.msra.mxu0 0
    %4946 = vmatprep.subr.bf16.mxu0 0
    %4947 = vmatpush1.bf16.msra.mxu0 0
    %4948 = vmatprep.subr.bf16.mxu0 0
    %4949 = vmatpush1.bf16.msra.mxu0 0
    %4950 = vmatprep.subr.bf16.mxu0 0
    %4951 = vmatpush1.bf16.msra.mxu0 0
    %4952 = vmatprep.mubr.bf16.mxu0 0
    %4953 = vmatmul.mubr.bf16.gmra.mrb[0].mxu0 %v338
    %v4954 = vpop.f32.mrb[0].mxu0
    %v4955 = vadd.f32 %v99, %v4954
    %v4956 = vpop.f32.mrb[0].mxu0
    %v4957 = vpop.f32.mrb[0].mxu0
    %v4958 = vadd.f32 %v104, %v4957
    %v4959 = vpop.f32.mrb[0].mxu0
    %4960 = vmatprep.mubr.bf16.mxu0 0
    %4961 = vmatmul.mubr.bf16.gmra.mrb[0].mxu0 %v341
    %v4962 = vpop.f32.mrb[0].mxu0
    %v4963 = vadd.f32 %v109, %v4962
    %v4964 = vpop.f32.mrb[0].mxu0
    %v4965 = vpop.f32.mrb[0].mxu0
    %v4966 = vadd.f32 %v114, %v4965
    %v4967 = vpop.f32.mrb[0].mxu0
    %4968 = vmatprep.mubr.bf16.mxu0 0
    %4969 = vmatmul.mubr.bf16.gmra.mrb[0].mxu0 %v344
    %v4970 = vpop.f32.mrb[0].mxu0
    %v4971 = vadd.f32 %v119, %v4970
    %v4972 = vpop.f32.mrb[0].mxu0
    %v4973 = vpop.f32.mrb[0].mxu0
    %v4974 = vadd.f32 %v124, %v4973
    %v4975 = vpop.f32.mrb[0].mxu0
    %4976 = vmatprep.mubr.bf16.mxu0 0
    %4977 = vmatmul.mubr.bf16.gmra.mrb[0].mxu0 %v347
    %v4978 = vpop.f32.mrb[0].mxu0
    %v4979 = vadd.f32 %v129, %v4978
    %v4980 = vpop.f32.mrb[0].mxu0
    %v4981 = vpop.f32.mrb[0].mxu0
    %v4982 = vadd.f32 %v134, %v4981
    %v4983 = vpop.f32.mrb[0].mxu0
    %4984 = vmatprep.mubr.bf16.mxu0 0
    %4985 = vmatmul.mubr.bf16.gmra.mrb[0].mxu0 %v350
    %v4986 = vpop.f32.mrb[0].mxu0
    %v4987 = vadd.f32 %v139, %v4986
    %v4988 = vpop.f32.mrb[0].mxu0
    %v4989 = vpop.f32.mrb[0].mxu0
    %v4990 = vadd.f32 %v144, %v4989
    %v4991 = vpop.f32.mrb[0].mxu0
    %4992 = vmatprep.mubr.bf16.mxu0 0
    %4993 = vmatmul.mubr.bf16.gmra.mrb[0].mxu0 %v353
    %v4994 = vpop.f32.mrb[0].mxu0
    %v4995 = vadd.f32 %v149, %v4994
    %v4996 = vpop.f32.mrb[0].mxu0
    %v4997 = vpop.f32.mrb[0].mxu0
    %v4998 = vadd.f32 %v154, %v4997
    %v4999 = vpop.f32.mrb[0].mxu0
    %5000 = vmatprep.mubr.bf16.mxu0 0
    %5001 = vmatmul.mubr.bf16.gmra.mrb[0].mxu0 %v356
    %v5002 = vpop.f32.mrb[0].mxu0
    %v5003 = vadd.f32 %v159, %v5002
    %v5004 = vpop.f32.mrb[0].mxu0
    %v5005 = vpop.f32.mrb[0].mxu0
    %v5006 = vadd.f32 %v164, %v5005
    %v5007 = vpop.f32.mrb[0].mxu0
    %5008 = vmatprep.mubr.bf16.mxu0 0
    %5009 = vmatmul.mubr.bf16.gmra.mrb[0].mxu0 %v359
    %v5010 = vpop.f32.mrb[0].mxu0
    %v5011 = vadd.f32 %v169, %v5010
    %v5012 = vpop.f32.mrb[0].mxu0
    %v5013 = vpop.f32.mrb[0].mxu0
    %v5014 = vadd.f32 %v174, %v5013
    %v5015 = vpop.f32.mrb[0].mxu0
    %5016 = vmatprep.mubr.bf16.mxu0 0
    %5017 = vmatmul.mubr.bf16.gmra.mrb[0].mxu0 %v362
    %v5018 = vpop.f32.mrb[0].mxu0
    %v5019 = vadd.f32 %v179, %v5018
    %v5020 = vpop.f32.mrb[0].mxu0
    %v5021 = vpop.f32.mrb[0].mxu0
    %v5022 = vadd.f32 %v184, %v5021
    %v5023 = vpop.f32.mrb[0].mxu0
    %5024 = vmatprep.mubr.bf16.mxu0 0
    %5025 = vmatmul.mubr.bf16.gmra.mrb[0].mxu0 %v365
    %v5026 = vpop.f32.mrb[0].mxu0
    %v5027 = vadd.f32 %v189, %v5026
    %v5028 = vpop.f32.mrb[0].mxu0
    %v5029 = vpop.f32.mrb[0].mxu0
    %v5030 = vadd.f32 %v194, %v5029
    %v5031 = vpop.f32.mrb[0].mxu0
    %5032 = vmatprep.mubr.bf16.mxu0 0
    %5033 = vmatmul.mubr.bf16.gmra.mrb[0].mxu0 %v368
    %v5034 = vpop.f32.mrb[0].mxu0
    %v5035 = vadd.f32 %v199, %v5034
    %v5036 = vpop.f32.mrb[0].mxu0
    %v5037 = vpop.f32.mrb[0].mxu0
    %v5038 = vadd.f32 %v204, %v5037
    %v5039 = vpop.f32.mrb[0].mxu0
    %5040 = vmatprep.mubr.bf16.mxu0 0
    %5041 = vmatmul.mubr.bf16.gmra.mrb[0].mxu0 %v371
    %v5042 = vpop.f32.mrb[0].mxu0
    %v5043 = vadd.f32 %v209, %v5042
    %v5044 = vpop.f32.mrb[0].mxu0
    %v5045 = vpop.f32.mrb[0].mxu0
    %v5046 = vadd.f32 %v214, %v5045
    %v5047 = vpop.f32.mrb[0].mxu0
    %5048 = vmatprep.mubr.bf16.mxu0 0
    %5049 = vmatmul.mubr.bf16.gmra.mrb[0].mxu0 %v374
    %v5050 = vpop.f32.mrb[0].mxu0
    %v5051 = vadd.f32 %v219, %v5050
    %v5052 = vpop.f32.mrb[0].mxu0
    %v5053 = vpop.f32.mrb[0].mxu0
    %v5054 = vadd.f32 %v224, %v5053
    %v5055 = vpop.f32.mrb[0].mxu0
    %5056 = vmatprep.mubr.bf16.mxu0 0
    %5057 = vmatmul.mubr.bf16.gmra.mrb[0].mxu0 %v377
    %v5058 = vpop.f32.mrb[0].mxu0
    %v5059 = vadd.f32 %v229, %v5058
    %v5060 = vpop.f32.mrb[0].mxu0
    %v5061 = vpop.f32.mrb[0].mxu0
    %v5062 = vadd.f32 %v234, %v5061
    %v5063 = vpop.f32.mrb[0].mxu0
    %5064 = vmatprep.mubr.bf16.mxu0 0
    %5065 = vmatmul.mubr.bf16.gmra.mrb[0].mxu0 %v380
    %v5066 = vpop.f32.mrb[0].mxu0
    %v5067 = vadd.f32 %v239, %v5066
    %v5068 = vpop.f32.mrb[0].mxu0
    %v5069 = vpop.f32.mrb[0].mxu0
    %v5070 = vadd.f32 %v244, %v5069
    %v5071 = vpop.f32.mrb[0].mxu0
    %5072 = vmatprep.mubr.bf16.mxu0 0
    %5073 = vmatmul.mubr.bf16.gmra.mrb[0].mxu0 %v383
    %v5074 = vpop.f32.mrb[0].mxu0
    %v5075 = vadd.f32 %v249, %v5074
    %v5076 = vpop.f32.mrb[0].mxu0
    %v5077 = vpop.f32.mrb[0].mxu0
    %v5078 = vadd.f32 %v254, %v5077
    %v5079 = vpop.f32.mrb[0].mxu0
    %5080 = vdwg.mxu0
    %v5081 = vmul.f32 %v4955, 0.5
    %v5082 = vmul.f32 %v4958, 0.5
    %v5083 = vmul.f32 %v4963, 0.5
    %v5084 = vmul.f32 %v4966, 0.5
    %v5085 = vmul.f32 %v4971, 0.5
    %v5086 = vmul.f32 %v4974, 0.5
    %v5087 = vmul.f32 %v4979, 0.5
    %v5088 = vmul.f32 %v4982, 0.5
    %v5089 = vmul.f32 %v4987, 0.5
    %v5090 = vmul.f32 %v4990, 0.5
    %v5091 = vmul.f32 %v4995, 0.5
    %v5092 = vmul.f32 %v4998, 0.5
    %v5093 = vtanh.pop %v5081
    %v5094 = vtanh.pop %v5082
    %v5095 = vtanh.pop %v5083
    %v5096 = vtanh.pop %v5084
    %v5097 = vtanh.pop %v5085
    %v5098 = vtanh.pop %v5086
    %v5099 = vtanh.pop %v5087
    %v5100 = vtanh.pop %v5088
    %v5101 = vtanh.pop %v5089
    %v5102 = vtanh.pop %v5090
    %v5103 = vtanh.pop %v5091
    %v5104 = vtanh.pop %v5092
    %v5105 = vadd.f32 %v5093, 1.0
    %v5106 = vadd.f32 %v5094, 1.0
    %v5107 = vadd.f32 %v5095, 1.0
    %v5108 = vadd.f32 %v5096, 1.0
    %v5109 = vadd.f32 %v5097, 1.0
    %v5110 = vadd.f32 %v5098, 1.0
    %v5111 = vadd.f32 %v5099, 1.0
    %v5112 = vadd.f32 %v5100, 1.0
    %v5113 = vadd.f32 %v5101, 1.0
    %v5114 = vadd.f32 %v5102, 1.0
    %v5115 = vadd.f32 %v5103, 1.0
    %v5116 = vadd.f32 %v5104, 1.0
    %v5117 = vmul.f32 %v5105, 0.5
    %v5118 = vmul.f32 %v5106, 0.5
    %v5119 = vmul.f32 %v5107, 0.5
    %v5120 = vmul.f32 %v5108, 0.5
    %v5121 = vmul.f32 %v5109, 0.5
    %v5122 = vmul.f32 %v5110, 0.5
    %v5123 = vmul.f32 %v5111, 0.5
    %v5124 = vmul.f32 %v5112, 0.5
    %v5125 = vmul.f32 %v5113, 0.5
    %v5126 = vmul.f32 %v5114, 0.5
    %v5127 = vmul.f32 %v5115, 0.5
    %v5128 = vmul.f32 %v5116, 0.5
    %v5129 = vtanh.pop %v5003
    %v5130 = vtanh.pop %v5006
    %v5131 = vtanh.pop %v5011
    %v5132 = vtanh.pop %v5014
    %v5133 = vmul.f32 %v5121, %v4817
    %v5134 = vmul.f32 %v5122, %v4818
    %v5135 = vmul.f32 %v5123, %v4819
    %v5136 = vmul.f32 %v5124, %v4820
    %v5137 = vmul.f32 %v5117, %v5129
    %v5138 = vmul.f32 %v5118, %v5130
    %v5139 = vmul.f32 %v5119, %v5131
    %v5140 = vmul.f32 %v5120, %v5132
    %v5141 = vadd.f32 %v5133, %v5137
    %v5142 = vadd.f32 %v5134, %v5138
    %v5143 = vadd.f32 %v5135, %v5139
    %v5144 = vadd.f32 %v5136, %v5140
    %v5145 = vtanh.pop %v5141
    %v5146 = vtanh.pop %v5142
    %v5147 = vtanh.pop %v5143
    %v5148 = vtanh.pop %v5144
    %v5149 = vmul.f32 %v5125, %v5145
    %v5150 = vmul.f32 %v5126, %v5146
    %v5151 = vmul.f32 %v5127, %v5147
    %v5152 = vmul.f32 %v5128, %v5148
    %v5153 = vmul.f32 %v5019, 0.5
    %v5154 = vmul.f32 %v5022, 0.5
    %v5155 = vmul.f32 %v5027, 0.5
    %v5156 = vmul.f32 %v5030, 0.5
    %v5157 = vmul.f32 %v5035, 0.5
    %v5158 = vmul.f32 %v5038, 0.5
    %v5159 = vmul.f32 %v5043, 0.5
    %v5160 = vmul.f32 %v5046, 0.5
    %v5161 = vmul.f32 %v5051, 0.5
    %v5162 = vmul.f32 %v5054, 0.5
    %v5163 = vmul.f32 %v5059, 0.5
    %v5164 = vmul.f32 %v5062, 0.5
    %v5165 = vtanh.pop %v5153
    %v5166 = vtanh.pop %v5154
    %v5167 = vtanh.pop %v5155
    %v5168 = vtanh.pop %v5156
    %v5169 = vtanh.pop %v5157
    %v5170 = vtanh.pop %v5158
    %v5171 = vtanh.pop %v5159
    %v5172 = vtanh.pop %v5160
    %v5173 = vtanh.pop %v5161
    %v5174 = vtanh.pop %v5162
    %v5175 = vtanh.pop %v5163
    %v5176 = vtanh.pop %v5164
    %v5177 = vadd.f32 %v5165, 1.0
    %v5178 = vadd.f32 %v5166, 1.0
    %v5179 = vadd.f32 %v5167, 1.0
    %v5180 = vadd.f32 %v5168, 1.0
    %v5181 = vadd.f32 %v5169, 1.0
    %v5182 = vadd.f32 %v5170, 1.0
    %v5183 = vadd.f32 %v5171, 1.0
    %v5184 = vadd.f32 %v5172, 1.0
    %v5185 = vadd.f32 %v5173, 1.0
    %v5186 = vadd.f32 %v5174, 1.0
    %v5187 = vadd.f32 %v5175, 1.0
    %v5188 = vadd.f32 %v5176, 1.0
    %v5189 = vmul.f32 %v5177, 0.5
    %v5190 = vmul.f32 %v5178, 0.5
    %v5191 = vmul.f32 %v5179, 0.5
    %v5192 = vmul.f32 %v5180, 0.5
    %v5193 = vmul.f32 %v5181, 0.5
    %v5194 = vmul.f32 %v5182, 0.5
    %v5195 = vmul.f32 %v5183, 0.5
    %v5196 = vmul.f32 %v5184, 0.5
    %v5197 = vmul.f32 %v5185, 0.5
    %v5198 = vmul.f32 %v5186, 0.5
    %v5199 = vmul.f32 %v5187, 0.5
    %v5200 = vmul.f32 %v5188, 0.5
    %v5201 = vtanh.pop %v5067
    %v5202 = vtanh.pop %v5070
    %v5203 = vtanh.pop %v5075
    %v5204 = vtanh.pop %v5078
    %v5205 = vmul.f32 %v5193, %v4889
    %v5206 = vmul.f32 %v5194, %v4890
    %v5207 = vmul.f32 %v5195, %v4891
    %v5208 = vmul.f32 %v5196, %v4892
    %v5209 = vmul.f32 %v5189, %v5201
    %v5210 = vmul.f32 %v5190, %v5202
    %v5211 = vmul.f32 %v5191, %v5203
    %v5212 = vmul.f32 %v5192, %v5204
    %v5213 = vadd.f32 %v5205, %v5209
    %v5214 = vadd.f32 %v5206, %v5210
    %v5215 = vadd.f32 %v5207, %v5211
    %v5216 = vadd.f32 %v5208, %v5212
    %v5217 = vtanh.pop %v5213
    %v5218 = vtanh.pop %v5214
    %v5219 = vtanh.pop %v5215
    %v5220 = vtanh.pop %v5216
    %v5221 = vmul.f32 %v5197, %v5217
    %v5222 = vmul.f32 %v5198, %v5218
    %v5223 = vmul.f32 %v5199, %v5219
    %v5224 = vmul.f32 %v5200, %v5220
    %v5225 = vpack.c.bf16 %v5150, %v5149
    %v5226 = vpack.c.bf16 %v5152, %v5151
    %s5227 = scalar_lea.vmem [#allocation2], 224
    %5228 = vst [vmem:[%s5227] sm:$0xff] %v5225
    %5229 = vst [vmem:[%s5227 + $0x8] sm:$0xff] %v5226
    %v5230 = vpack.c.bf16 %v5222, %v5221
    %v5231 = vpack.c.bf16 %v5224, %v5223
    %s5232 = scalar_lea.vmem [#allocation3], 16
    %5233 = vst [vmem:[%s5232] sm:$0xff] %v5230
    %5234 = vst [vmem:[%s5232 + $0x8] sm:$0xff] %v5231
    %s5235 = scalar_lea.vmem %s0, 120
    %v5236 = vld [vmem:[%s5235] sm:$0xf]
    %v5237 = vld [vmem:[%s5235 + $0x4] sm:$0xf]
    %v5240 = vunpack.c.l.b16 %v5236
    %v5241 = vunpack.c.l.b16 %v5237
    %v5242 = vpack.c.b16 %v5241, %v5240
    %5244 = vmatprep.subr.bf16.mxu0 0
    %5245 = vmatpush1.bf16.msra.mxu0 %v5242
    %5246 = vmatprep.subr.bf16.mxu0 0
    %5247 = vmatpush1.bf16.msra.mxu0 %v5225
    %5248 = vmatprep.subr.bf16.mxu0 0
    %5249 = vmatpush1.bf16.msra.mxu0 %v5226
    %5250 = vmatprep.subr.bf16.mxu0 0
    %5251 = vmatpush1.bf16.msra.mxu0 %v5230
    %5252 = vmatprep.subr.bf16.mxu0 0
    %5253 = vmatpush1.bf16.msra.mxu0 %v5231
    %5254 = vmatprep.subr.bf16.mxu0 0
    %5255 = vmatpush1.bf16.msra.mxu0 0
    %5256 = vmatprep.subr.bf16.mxu0 0
    %5257 = vmatpush1.bf16.msra.mxu0 0
    %5258 = vmatprep.subr.bf16.mxu0 0
    %5259 = vmatpush1.bf16.msra.mxu0 0
    %5260 = vmatprep.subr.bf16.mxu0 0
    %5261 = vmatpush1.bf16.msra.mxu0 0
    %5262 = vmatprep.subr.bf16.mxu0 0
    %5263 = vmatpush1.bf16.msra.mxu0 0
    %5264 = vmatprep.subr.bf16.mxu0 0
    %5265 = vmatpush1.bf16.msra.mxu0 0
    %5266 = vmatprep.subr.bf16.mxu0 0
    %5267 = vmatpush1.bf16.msra.mxu0 0
    %5268 = vmatprep.subr.bf16.mxu0 0
    %5269 = vmatpush1.bf16.msra.mxu0 0
    %5270 = vmatprep.subr.bf16.mxu0 0
    %5271 = vmatpush1.bf16.msra.mxu0 0
    %5272 = vmatprep.subr.bf16.mxu0 0
    %5273 = vmatpush1.bf16.msra.mxu0 0
    %5274 = vmatprep.subr.bf16.mxu0 0
    %5275 = vmatpush1.bf16.msra.mxu0 0
    %5276 = vmatprep.mubr.bf16.mxu0 0
    %5277 = vmatmul.mubr.bf16.gmra.mrb[0].mxu0 %v338
    %v5278 = vpop.f32.mrb[0].mxu0
    %v5279 = vadd.f32 %v99, %v5278
    %v5280 = vpop.f32.mrb[0].mxu0
    %v5281 = vpop.f32.mrb[0].mxu0
    %v5282 = vadd.f32 %v104, %v5281
    %v5283 = vpop.f32.mrb[0].mxu0
    %5284 = vmatprep.mubr.bf16.mxu0 0
    %5285 = vmatmul.mubr.bf16.gmra.mrb[0].mxu0 %v341
    %v5286 = vpop.f32.mrb[0].mxu0
    %v5287 = vadd.f32 %v109, %v5286
    %v5288 = vpop.f32.mrb[0].mxu0
    %v5289 = vpop.f32.mrb[0].mxu0
    %v5290 = vadd.f32 %v114, %v5289
    %v5291 = vpop.f32.mrb[0].mxu0
    %5292 = vmatprep.mubr.bf16.mxu0 0
    %5293 = vmatmul.mubr.bf16.gmra.mrb[0].mxu0 %v344
    %v5294 = vpop.f32.mrb[0].mxu0
    %v5295 = vadd.f32 %v119, %v5294
    %v5296 = vpop.f32.mrb[0].mxu0
    %v5297 = vpop.f32.mrb[0].mxu0
    %v5298 = vadd.f32 %v124, %v5297
    %v5299 = vpop.f32.mrb[0].mxu0
    %5300 = vmatprep.mubr.bf16.mxu0 0
    %5301 = vmatmul.mubr.bf16.gmra.mrb[0].mxu0 %v347
    %v5302 = vpop.f32.mrb[0].mxu0
    %v5303 = vadd.f32 %v129, %v5302
    %v5304 = vpop.f32.mrb[0].mxu0
    %v5305 = vpop.f32.mrb[0].mxu0
    %v5306 = vadd.f32 %v134, %v5305
    %v5307 = vpop.f32.mrb[0].mxu0
    %5308 = vmatprep.mubr.bf16.mxu0 0
    %5309 = vmatmul.mubr.bf16.gmra.mrb[0].mxu0 %v350
    %v5310 = vpop.f32.mrb[0].mxu0
    %v5311 = vadd.f32 %v139, %v5310
    %v5312 = vpop.f32.mrb[0].mxu0
    %v5313 = vpop.f32.mrb[0].mxu0
    %v5314 = vadd.f32 %v144, %v5313
    %v5315 = vpop.f32.mrb[0].mxu0
    %5316 = vmatprep.mubr.bf16.mxu0 0
    %5317 = vmatmul.mubr.bf16.gmra.mrb[0].mxu0 %v353
    %v5318 = vpop.f32.mrb[0].mxu0
    %v5319 = vadd.f32 %v149, %v5318
    %v5320 = vpop.f32.mrb[0].mxu0
    %v5321 = vpop.f32.mrb[0].mxu0
    %v5322 = vadd.f32 %v154, %v5321
    %v5323 = vpop.f32.mrb[0].mxu0
    %5324 = vmatprep.mubr.bf16.mxu0 0
    %5325 = vmatmul.mubr.bf16.gmra.mrb[0].mxu0 %v356
    %v5326 = vpop.f32.mrb[0].mxu0
    %v5327 = vadd.f32 %v159, %v5326
    %v5328 = vpop.f32.mrb[0].mxu0
    %v5329 = vpop.f32.mrb[0].mxu0
    %v5330 = vadd.f32 %v164, %v5329
    %v5331 = vpop.f32.mrb[0].mxu0
    %5332 = vmatprep.mubr.bf16.mxu0 0
    %5333 = vmatmul.mubr.bf16.gmra.mrb[0].mxu0 %v359
    %v5334 = vpop.f32.mrb[0].mxu0
    %v5335 = vadd.f32 %v169, %v5334
    %v5336 = vpop.f32.mrb[0].mxu0
    %v5337 = vpop.f32.mrb[0].mxu0
    %v5338 = vadd.f32 %v174, %v5337
    %v5339 = vpop.f32.mrb[0].mxu0
    %5340 = vmatprep.mubr.bf16.mxu0 0
    %5341 = vmatmul.mubr.bf16.gmra.mrb[0].mxu0 %v362
    %v5342 = vpop.f32.mrb[0].mxu0
    %v5343 = vadd.f32 %v179, %v5342
    %v5344 = vpop.f32.mrb[0].mxu0
    %v5345 = vpop.f32.mrb[0].mxu0
    %v5346 = vadd.f32 %v184, %v5345
    %v5347 = vpop.f32.mrb[0].mxu0
    %5348 = vmatprep.mubr.bf16.mxu0 0
    %5349 = vmatmul.mubr.bf16.gmra.mrb[0].mxu0 %v365
    %v5350 = vpop.f32.mrb[0].mxu0
    %v5351 = vadd.f32 %v189, %v5350
    %v5352 = vpop.f32.mrb[0].mxu0
    %v5353 = vpop.f32.mrb[0].mxu0
    %v5354 = vadd.f32 %v194, %v5353
    %v5355 = vpop.f32.mrb[0].mxu0
    %5356 = vmatprep.mubr.bf16.mxu0 0
    %5357 = vmatmul.mubr.bf16.gmra.mrb[0].mxu0 %v368
    %v5358 = vpop.f32.mrb[0].mxu0
    %v5359 = vadd.f32 %v199, %v5358
    %v5360 = vpop.f32.mrb[0].mxu0
    %v5361 = vpop.f32.mrb[0].mxu0
    %v5362 = vadd.f32 %v204, %v5361
    %v5363 = vpop.f32.mrb[0].mxu0
    %5364 = vmatprep.mubr.bf16.mxu0 0
    %5365 = vmatmul.mubr.bf16.gmra.mrb[0].mxu0 %v371
    %v5366 = vpop.f32.mrb[0].mxu0
    %v5367 = vadd.f32 %v209, %v5366
    %v5368 = vpop.f32.mrb[0].mxu0
    %v5369 = vpop.f32.mrb[0].mxu0
    %v5370 = vadd.f32 %v214, %v5369
    %v5371 = vpop.f32.mrb[0].mxu0
    %5372 = vmatprep.mubr.bf16.mxu0 0
    %5373 = vmatmul.mubr.bf16.gmra.mrb[0].mxu0 %v374
    %v5374 = vpop.f32.mrb[0].mxu0
    %v5375 = vadd.f32 %v219, %v5374
    %v5376 = vpop.f32.mrb[0].mxu0
    %v5377 = vpop.f32.mrb[0].mxu0
    %v5378 = vadd.f32 %v224, %v5377
    %v5379 = vpop.f32.mrb[0].mxu0
    %5380 = vmatprep.mubr.bf16.mxu0 0
    %5381 = vmatmul.mubr.bf16.gmra.mrb[0].mxu0 %v377
    %v5382 = vpop.f32.mrb[0].mxu0
    %v5383 = vadd.f32 %v229, %v5382
    %v5384 = vpop.f32.mrb[0].mxu0
    %v5385 = vpop.f32.mrb[0].mxu0
    %v5386 = vadd.f32 %v234, %v5385
    %v5387 = vpop.f32.mrb[0].mxu0
    %5388 = vmatprep.mubr.bf16.mxu0 0
    %5389 = vmatmul.mubr.bf16.gmra.mrb[0].mxu0 %v380
    %v5390 = vpop.f32.mrb[0].mxu0
    %v5391 = vadd.f32 %v239, %v5390
    %v5392 = vpop.f32.mrb[0].mxu0
    %v5393 = vpop.f32.mrb[0].mxu0
    %v5394 = vadd.f32 %v244, %v5393
    %v5395 = vpop.f32.mrb[0].mxu0
    %5396 = vmatprep.mubr.bf16.mxu0 0
    %5397 = vmatmul.mubr.bf16.gmra.mrb[0].mxu0 %v383
    %v5398 = vpop.f32.mrb[0].mxu0
    %v5399 = vadd.f32 %v249, %v5398
    %v5400 = vpop.f32.mrb[0].mxu0
    %v5401 = vpop.f32.mrb[0].mxu0
    %v5402 = vadd.f32 %v254, %v5401
    %v5403 = vpop.f32.mrb[0].mxu0
    %5404 = vdwg.mxu0
    %v5405 = vmul.f32 %v5279, 0.5
    %v5406 = vmul.f32 %v5282, 0.5
    %v5407 = vmul.f32 %v5287, 0.5
    %v5408 = vmul.f32 %v5290, 0.5
    %v5409 = vmul.f32 %v5295, 0.5
    %v5410 = vmul.f32 %v5298, 0.5
    %v5411 = vmul.f32 %v5303, 0.5
    %v5412 = vmul.f32 %v5306, 0.5
    %v5413 = vmul.f32 %v5311, 0.5
    %v5414 = vmul.f32 %v5314, 0.5
    %v5415 = vmul.f32 %v5319, 0.5
    %v5416 = vmul.f32 %v5322, 0.5
    %v5417 = vtanh.pop %v5405
    %v5418 = vtanh.pop %v5406
    %v5419 = vtanh.pop %v5407
    %v5420 = vtanh.pop %v5408
    %v5421 = vtanh.pop %v5409
    %v5422 = vtanh.pop %v5410
    %v5423 = vtanh.pop %v5411
    %v5424 = vtanh.pop %v5412
    %v5425 = vtanh.pop %v5413
    %v5426 = vtanh.pop %v5414
    %v5427 = vtanh.pop %v5415
    %v5428 = vtanh.pop %v5416
    %v5429 = vadd.f32 %v5417, 1.0
    %v5430 = vadd.f32 %v5418, 1.0
    %v5431 = vadd.f32 %v5419, 1.0
    %v5432 = vadd.f32 %v5420, 1.0
    %v5433 = vadd.f32 %v5421, 1.0
    %v5434 = vadd.f32 %v5422, 1.0
    %v5435 = vadd.f32 %v5423, 1.0
    %v5436 = vadd.f32 %v5424, 1.0
    %v5437 = vadd.f32 %v5425, 1.0
    %v5438 = vadd.f32 %v5426, 1.0
    %v5439 = vadd.f32 %v5427, 1.0
    %v5440 = vadd.f32 %v5428, 1.0
    %v5441 = vmul.f32 %v5429, 0.5
    %v5442 = vmul.f32 %v5430, 0.5
    %v5443 = vmul.f32 %v5431, 0.5
    %v5444 = vmul.f32 %v5432, 0.5
    %v5445 = vmul.f32 %v5433, 0.5
    %v5446 = vmul.f32 %v5434, 0.5
    %v5447 = vmul.f32 %v5435, 0.5
    %v5448 = vmul.f32 %v5436, 0.5
    %v5449 = vmul.f32 %v5437, 0.5
    %v5450 = vmul.f32 %v5438, 0.5
    %v5451 = vmul.f32 %v5439, 0.5
    %v5452 = vmul.f32 %v5440, 0.5
    %v5453 = vtanh.pop %v5327
    %v5454 = vtanh.pop %v5330
    %v5455 = vtanh.pop %v5335
    %v5456 = vtanh.pop %v5338
    %v5457 = vmul.f32 %v5445, %v5141
    %v5458 = vmul.f32 %v5446, %v5142
    %v5459 = vmul.f32 %v5447, %v5143
    %v5460 = vmul.f32 %v5448, %v5144
    %v5461 = vmul.f32 %v5441, %v5453
    %v5462 = vmul.f32 %v5442, %v5454
    %v5463 = vmul.f32 %v5443, %v5455
    %v5464 = vmul.f32 %v5444, %v5456
    %v5465 = vadd.f32 %v5457, %v5461
    %v5466 = vadd.f32 %v5458, %v5462
    %v5467 = vadd.f32 %v5459, %v5463
    %v5468 = vadd.f32 %v5460, %v5464
    %v5469 = vtanh.pop %v5465
    %v5470 = vtanh.pop %v5466
    %v5471 = vtanh.pop %v5467
    %v5472 = vtanh.pop %v5468
    %v5473 = vmul.f32 %v5449, %v5469
    %v5474 = vmul.f32 %v5450, %v5470
    %v5475 = vmul.f32 %v5451, %v5471
    %v5476 = vmul.f32 %v5452, %v5472
    %v5477 = vmul.f32 %v5343, 0.5
    %v5478 = vmul.f32 %v5346, 0.5
    %v5479 = vmul.f32 %v5351, 0.5
    %v5480 = vmul.f32 %v5354, 0.5
    %v5481 = vmul.f32 %v5359, 0.5
    %v5482 = vmul.f32 %v5362, 0.5
    %v5483 = vmul.f32 %v5367, 0.5
    %v5484 = vmul.f32 %v5370, 0.5
    %v5485 = vmul.f32 %v5375, 0.5
    %v5486 = vmul.f32 %v5378, 0.5
    %v5487 = vmul.f32 %v5383, 0.5
    %v5488 = vmul.f32 %v5386, 0.5
    %v5489 = vtanh.pop %v5477
    %v5490 = vtanh.pop %v5478
    %v5491 = vtanh.pop %v5479
    %v5492 = vtanh.pop %v5480
    %v5493 = vtanh.pop %v5481
    %v5494 = vtanh.pop %v5482
    %v5495 = vtanh.pop %v5483
    %v5496 = vtanh.pop %v5484
    %v5497 = vtanh.pop %v5485
    %v5498 = vtanh.pop %v5486
    %v5499 = vtanh.pop %v5487
    %v5500 = vtanh.pop %v5488
    %v5501 = vadd.f32 %v5489, 1.0
    %v5502 = vadd.f32 %v5490, 1.0
    %v5503 = vadd.f32 %v5491, 1.0
    %v5504 = vadd.f32 %v5492, 1.0
    %v5505 = vadd.f32 %v5493, 1.0
    %v5506 = vadd.f32 %v5494, 1.0
    %v5507 = vadd.f32 %v5495, 1.0
    %v5508 = vadd.f32 %v5496, 1.0
    %v5509 = vadd.f32 %v5497, 1.0
    %v5510 = vadd.f32 %v5498, 1.0
    %v5511 = vadd.f32 %v5499, 1.0
    %v5512 = vadd.f32 %v5500, 1.0
    %v5513 = vmul.f32 %v5501, 0.5
    %v5514 = vmul.f32 %v5502, 0.5
    %v5515 = vmul.f32 %v5503, 0.5
    %v5516 = vmul.f32 %v5504, 0.5
    %v5517 = vmul.f32 %v5505, 0.5
    %v5518 = vmul.f32 %v5506, 0.5
    %v5519 = vmul.f32 %v5507, 0.5
    %v5520 = vmul.f32 %v5508, 0.5
    %v5521 = vmul.f32 %v5509, 0.5
    %v5522 = vmul.f32 %v5510, 0.5
    %v5523 = vmul.f32 %v5511, 0.5
    %v5524 = vmul.f32 %v5512, 0.5
    %v5525 = vtanh.pop %v5391
    %v5526 = vtanh.pop %v5394
    %v5527 = vtanh.pop %v5399
    %v5528 = vtanh.pop %v5402
    %v5529 = vmul.f32 %v5517, %v5213
    %v5530 = vmul.f32 %v5518, %v5214
    %v5531 = vmul.f32 %v5519, %v5215
    %v5532 = vmul.f32 %v5520, %v5216
    %v5533 = vmul.f32 %v5513, %v5525
    %v5534 = vmul.f32 %v5514, %v5526
    %v5535 = vmul.f32 %v5515, %v5527
    %v5536 = vmul.f32 %v5516, %v5528
    %v5537 = vadd.f32 %v5529, %v5533
    %v5538 = vadd.f32 %v5530, %v5534
    %v5539 = vadd.f32 %v5531, %v5535
    %v5540 = vadd.f32 %v5532, %v5536
    %v5541 = vtanh.pop %v5537
    %v5542 = vtanh.pop %v5538
    %v5543 = vtanh.pop %v5539
    %v5544 = vtanh.pop %v5540
    %v5545 = vmul.f32 %v5521, %v5541
    %v5546 = vmul.f32 %v5522, %v5542
    %v5547 = vmul.f32 %v5523, %v5543
    %v5548 = vmul.f32 %v5524, %v5544
    %v5549 = vpack.c.bf16 %v5474, %v5473
    %v5550 = vpack.c.bf16 %v5476, %v5475
    %s5551 = scalar_lea.vmem [#allocation2], 240
    %5552 = vst [vmem:[%s5551] sm:$0xff] %v5549
    %5553 = vst [vmem:[%s5551 + $0x8] sm:$0xff] %v5550
    %v5554 = vpack.c.bf16 %v5546, %v5545
    %v5555 = vpack.c.bf16 %v5548, %v5547
    %5556 = vst [vmem:[#allocation3] sm:$0xff] %v5554
    %5557 = vst [vmem:[#allocation3 + $0x8] sm:$0xff] %v5555
    %v5558 = vld [vmem:[#allocation2] sm:$0xff]
    %v5559 = vld [vmem:[#allocation2 + $0x8] sm:$0xff]
    %v5560 = vld [vmem:[#allocation3] sm:$0xff]
    %v5561 = vld [vmem:[#allocation3 + $0x8] sm:$0xff]
    %5563 = vset.pattern.permute.xlu0 0
    %5564 = vperm.xlu0 %5563, %v87
    %v5565 = vpop.permute.xlu0 %5564
    %vm5567 = vcmask 523264
    %v5569 = vsel %vm5567, %v86, 0
    %5571 = vmatprep.subr.bf16.mxu0 0
    %5572 = vmatpush1.bf16.msra.mxu0 %v5558
    %5573 = vmatprep.subr.bf16.mxu0 0
    %5574 = vmatpush1.bf16.msra.mxu0 %v5559
    %5575 = vmatprep.subr.bf16.mxu0 0
    %5576 = vmatpush1.bf16.msra.mxu0 %v5560
    %5577 = vmatprep.subr.bf16.mxu0 0
    %5578 = vmatpush1.bf16.msra.mxu0 %v5561
    %5579 = vmatprep.subr.bf16.mxu0 0
    %5580 = vmatpush1.bf16.msra.mxu0 0
    %5581 = vmatprep.subr.bf16.mxu0 0
    %5582 = vmatpush1.bf16.msra.mxu0 0
    %5583 = vmatprep.subr.bf16.mxu0 0
    %5584 = vmatpush1.bf16.msra.mxu0 0
    %5585 = vmatprep.subr.bf16.mxu0 0
    %5586 = vmatpush1.bf16.msra.mxu0 0
    %5587 = vmatprep.subr.bf16.mxu0 0
    %5588 = vmatpush1.bf16.msra.mxu0 0
    %5589 = vmatprep.subr.bf16.mxu0 0
    %5590 = vmatpush1.bf16.msra.mxu0 0
    %5591 = vmatprep.subr.bf16.mxu0 0
    %5592 = vmatpush1.bf16.msra.mxu0 0
    %5593 = vmatprep.subr.bf16.mxu0 0
    %5594 = vmatpush1.bf16.msra.mxu0 0
    %5595 = vmatprep.subr.bf16.mxu0 0
    %5596 = vmatpush1.bf16.msra.mxu0 0
    %5597 = vmatprep.subr.bf16.mxu0 0
    %5598 = vmatpush1.bf16.msra.mxu0 0
    %5599 = vmatprep.subr.bf16.mxu0 0
    %5600 = vmatpush1.bf16.msra.mxu0 0
    %5601 = vmatprep.subr.bf16.mxu0 0
    %5602 = vmatpush1.bf16.msra.mxu0 0
    %5603 = vmatprep.mubr.bf16.mxu0 0
    %5604 = vmatmul.mubr.bf16.gmra.mrb[0].mxu0 %v5569
    %v5605 = vpop.f32.mrb[0].mxu0
    %v5606 = vadd.f32 %v5565, %v5605
    %v5607 = vpop.f32.mrb[0].mxu0
    %v5608 = vpop.f32.mrb[0].mxu0
    %v5609 = vpop.f32.mrb[0].mxu0
    %5610 = vdwg.mxu0
    %5611 = vst [vmem:[#allocation4] sm:$0xf] %v5606
    %v5612 = vld [vmem:[%s1015] sm:$0xff]
    %v5613 = vld [vmem:[%s1015 + $0x8] sm:$0xff]
    %v5614 = vld [vmem:[%s5232] sm:$0xff]
    %v5615 = vld [vmem:[%s5232 + $0x8] sm:$0xff]
    %5616 = vmatprep.subr.bf16.mxu0 0
    %5617 = vmatpush1.bf16.msra.mxu0 %v5612
    %5618 = vmatprep.subr.bf16.mxu0 0
    %5619 = vmatpush1.bf16.msra.mxu0 %v5613
    %5620 = vmatprep.subr.bf16.mxu0 0
    %5621 = vmatpush1.bf16.msra.mxu0 %v5614
    %5622 = vmatprep.subr.bf16.mxu0 0
    %5623 = vmatpush1.bf16.msra.mxu0 %v5615
    %5624 = vmatprep.subr.bf16.mxu0 0
    %5625 = vmatpush1.bf16.msra.mxu0 0
    %5626 = vmatprep.subr.bf16.mxu0 0
    %5627 = vmatpush1.bf16.msra.mxu0 0
    %5628 = vmatprep.subr.bf16.mxu0 0
    %5629 = vmatpush1.bf16.msra.mxu0 0
    %5630 = vmatprep.subr.bf16.mxu0 0
    %5631 = vmatpush1.bf16.msra.mxu0 0
    %5632 = vmatprep.subr.bf16.mxu0 0
    %5633 = vmatpush1.bf16.msra.mxu0 0
    %5634 = vmatprep.subr.bf16.mxu0 0
    %5635 = vmatpush1.bf16.msra.mxu0 0
    %5636 = vmatprep.subr.bf16.mxu0 0
    %5637 = vmatpush1.bf16.msra.mxu0 0
    %5638 = vmatprep.subr.bf16.mxu0 0
    %5639 = vmatpush1.bf16.msra.mxu0 0
    %5640 = vmatprep.subr.bf16.mxu0 0
    %5641 = vmatpush1.bf16.msra.mxu0 0
    %5642 = vmatprep.subr.bf16.mxu0 0
    %5643 = vmatpush1.bf16.msra.mxu0 0
    %5644 = vmatprep.subr.bf16.mxu0 0
    %5645 = vmatpush1.bf16.msra.mxu0 0
    %5646 = vmatprep.subr.bf16.mxu0 0
    %5647 = vmatpush1.bf16.msra.mxu0 0
    %5648 = vmatprep.mubr.bf16.mxu0 0
    %5649 = vmatmul.mubr.bf16.gmra.mrb[0].mxu0 %v5569
    %v5650 = vpop.f32.mrb[0].mxu0
    %v5651 = vadd.f32 %v5565, %v5650
    %v5652 = vpop.f32.mrb[0].mxu0
    %v5653 = vpop.f32.mrb[0].mxu0
    %v5654 = vpop.f32.mrb[0].mxu0
    %5655 = vdwg.mxu0
    %s5656 = scalar_lea.vmem [#allocation4], 4
    %5657 = vst [vmem:[%s5656] sm:$0xf] %v5651
    %v5658 = vld [vmem:[%s1339] sm:$0xff]
    %v5659 = vld [vmem:[%s1339 + $0x8] sm:$0xff]
    %v5660 = vld [vmem:[%s4908] sm:$0xff]
    %v5661 = vld [vmem:[%s4908 + $0x8] sm:$0xff]
    %5662 = vmatprep.subr.bf16.mxu0 0
    %5663 = vmatpush1.bf16.msra.mxu0 %v5658
    %5664 = vmatprep.subr.bf16.mxu0 0
    %5665 = vmatpush1.bf16.msra.mxu0 %v5659
    %5666 = vmatprep.subr.bf16.mxu0 0
    %5667 = vmatpush1.bf16.msra.mxu0 %v5660
    %5668 = vmatprep.subr.bf16.mxu0 0
    %5669 = vmatpush1.bf16.msra.mxu0 %v5661
    %5670 = vmatprep.subr.bf16.mxu0 0
    %5671 = vmatpush1.bf16.msra.mxu0 0
    %5672 = vmatprep.subr.bf16.mxu0 0
    %5673 = vmatpush1.bf16.msra.mxu0 0
    %5674 = vmatprep.subr.bf16.mxu0 0
    %5675 = vmatpush1.bf16.msra.mxu0 0
    %5676 = vmatprep.subr.bf16.mxu0 0
    %5677 = vmatpush1.bf16.msra.mxu0 0
    %5678 = vmatprep.subr.bf16.mxu0 0
    %5679 = vmatpush1.bf16.msra.mxu0 0
    %5680 = vmatprep.subr.bf16.mxu0 0
    %5681 = vmatpush1.bf16.msra.mxu0 0
    %5682 = vmatprep.subr.bf16.mxu0 0
    %5683 = vmatpush1.bf16.msra.mxu0 0
    %5684 = vmatprep.subr.bf16.mxu0 0
    %5685 = vmatpush1.bf16.msra.mxu0 0
    %5686 = vmatprep.subr.bf16.mxu0 0
    %5687 = vmatpush1.bf16.msra.mxu0 0
    %5688 = vmatprep.subr.bf16.mxu0 0
    %5689 = vmatpush1.bf16.msra.mxu0 0
    %5690 = vmatprep.subr.bf16.mxu0 0
    %5691 = vmatpush1.bf16.msra.mxu0 0
    %5692 = vmatprep.subr.bf16.mxu0 0
    %5693 = vmatpush1.bf16.msra.mxu0 0
    %5694 = vmatprep.mubr.bf16.mxu0 0
    %5695 = vmatmul.mubr.bf16.gmra.mrb[0].mxu0 %v5569
    %v5696 = vpop.f32.mrb[0].mxu0
    %v5697 = vadd.f32 %v5565, %v5696
    %v5698 = vpop.f32.mrb[0].mxu0
    %v5699 = vpop.f32.mrb[0].mxu0
    %v5700 = vpop.f32.mrb[0].mxu0
    %5701 = vdwg.mxu0
    %s5702 = scalar_lea.vmem [#allocation4], 8
    %5703 = vst [vmem:[%s5702] sm:$0xf] %v5697
    %v5704 = vld [vmem:[%s1663] sm:$0xff]
    %v5705 = vld [vmem:[%s1663 + $0x8] sm:$0xff]
    %v5706 = vld [vmem:[%s4584] sm:$0xff]
    %v5707 = vld [vmem:[%s4584 + $0x8] sm:$0xff]
    %5708 = vmatprep.subr.bf16.mxu0 0
    %5709 = vmatpush1.bf16.msra.mxu0 %v5704
    %5710 = vmatprep.subr.bf16.mxu0 0
    %5711 = vmatpush1.bf16.msra.mxu0 %v5705
    %5712 = vmatprep.subr.bf16.mxu0 0
    %5713 = vmatpush1.bf16.msra.mxu0 %v5706
    %5714 = vmatprep.subr.bf16.mxu0 0
    %5715 = vmatpush1.bf16.msra.mxu0 %v5707
    %5716 = vmatprep.subr.bf16.mxu0 0
    %5717 = vmatpush1.bf16.msra.mxu0 0
    %5718 = vmatprep.subr.bf16.mxu0 0
    %5719 = vmatpush1.bf16.msra.mxu0 0
    %5720 = vmatprep.subr.bf16.mxu0 0
    %5721 = vmatpush1.bf16.msra.mxu0 0
    %5722 = vmatprep.subr.bf16.mxu0 0
    %5723 = vmatpush1.bf16.msra.mxu0 0
    %5724 = vmatprep.subr.bf16.mxu0 0
    %5725 = vmatpush1.bf16.msra.mxu0 0
    %5726 = vmatprep.subr.bf16.mxu0 0
    %5727 = vmatpush1.bf16.msra.mxu0 0
    %5728 = vmatprep.subr.bf16.mxu0 0
    %5729 = vmatpush1.bf16.msra.mxu0 0
    %5730 = vmatprep.subr.bf16.mxu0 0
    %5731 = vmatpush1.bf16.msra.mxu0 0
    %5732 = vmatprep.subr.bf16.mxu0 0
    %5733 = vmatpush1.bf16.msra.mxu0 0
    %5734 = vmatprep.subr.bf16.mxu0 0
    %5735 = vmatpush1.bf16.msra.mxu0 0
    %5736 = vmatprep.subr.bf16.mxu0 0
    %5737 = vmatpush1.bf16.msra.mxu0 0
    %5738 = vmatprep.subr.bf16.mxu0 0
    %5739 = vmatpush1.bf16.msra.mxu0 0
    %5740 = vmatprep.mubr.bf16.mxu0 0
    %5741 = vmatmul.mubr.bf16.gmra.mrb[0].mxu0 %v5569
    %v5742 = vpop.f32.mrb[0].mxu0
    %v5743 = vadd.f32 %v5565, %v5742
    %v5744 = vpop.f32.mrb[0].mxu0
    %v5745 = vpop.f32.mrb[0].mxu0
    %v5746 = vpop.f32.mrb[0].mxu0
    %5747 = vdwg.mxu0
    %s5748 = scalar_lea.vmem [#allocation4], 12
    %5749 = vst [vmem:[%s5748] sm:$0xf] %v5743
    %v5750 = vld [vmem:[%s1987] sm:$0xff]
    %v5751 = vld [vmem:[%s1987 + $0x8] sm:$0xff]
    %v5752 = vld [vmem:[%s4260] sm:$0xff]
    %v5753 = vld [vmem:[%s4260 + $0x8] sm:$0xff]
    %5754 = vmatprep.subr.bf16.mxu0 0
    %5755 = vmatpush1.bf16.msra.mxu0 %v5750
    %5756 = vmatprep.subr.bf16.mxu0 0
    %5757 = vmatpush1.bf16.msra.mxu0 %v5751
    %5758 = vmatprep.subr.bf16.mxu0 0
    %5759 = vmatpush1.bf16.msra.mxu0 %v5752
    %5760 = vmatprep.subr.bf16.mxu0 0
    %5761 = vmatpush1.bf16.msra.mxu0 %v5753
    %5762 = vmatprep.subr.bf16.mxu0 0
    %5763 = vmatpush1.bf16.msra.mxu0 0
    %5764 = vmatprep.subr.bf16.mxu0 0
    %5765 = vmatpush1.bf16.msra.mxu0 0
    %5766 = vmatprep.subr.bf16.mxu0 0
    %5767 = vmatpush1.bf16.msra.mxu0 0
    %5768 = vmatprep.subr.bf16.mxu0 0
    %5769 = vmatpush1.bf16.msra.mxu0 0
    %5770 = vmatprep.subr.bf16.mxu0 0
    %5771 = vmatpush1.bf16.msra.mxu0 0
    %5772 = vmatprep.subr.bf16.mxu0 0
    %5773 = vmatpush1.bf16.msra.mxu0 0
    %5774 = vmatprep.subr.bf16.mxu0 0
    %5775 = vmatpush1.bf16.msra.mxu0 0
    %5776 = vmatprep.subr.bf16.mxu0 0
    %5777 = vmatpush1.bf16.msra.mxu0 0
    %5778 = vmatprep.subr.bf16.mxu0 0
    %5779 = vmatpush1.bf16.msra.mxu0 0
    %5780 = vmatprep.subr.bf16.mxu0 0
    %5781 = vmatpush1.bf16.msra.mxu0 0
    %5782 = vmatprep.subr.bf16.mxu0 0
    %5783 = vmatpush1.bf16.msra.mxu0 0
    %5784 = vmatprep.subr.bf16.mxu0 0
    %5785 = vmatpush1.bf16.msra.mxu0 0
    %5786 = vmatprep.mubr.bf16.mxu0 0
    %5787 = vmatmul.mubr.bf16.gmra.mrb[0].mxu0 %v5569
    %v5788 = vpop.f32.mrb[0].mxu0
    %v5789 = vadd.f32 %v5565, %v5788
    %v5790 = vpop.f32.mrb[0].mxu0
    %v5791 = vpop.f32.mrb[0].mxu0
    %v5792 = vpop.f32.mrb[0].mxu0
    %5793 = vdwg.mxu0
    %s5794 = scalar_lea.vmem [#allocation4], 16
    %5795 = vst [vmem:[%s5794] sm:$0xf] %v5789
    %v5796 = vld [vmem:[%s2311] sm:$0xff]
    %v5797 = vld [vmem:[%s2311 + $0x8] sm:$0xff]
    %v5798 = vld [vmem:[%s3936] sm:$0xff]
    %v5799 = vld [vmem:[%s3936 + $0x8] sm:$0xff]
    %5800 = vmatprep.subr.bf16.mxu0 0
    %5801 = vmatpush1.bf16.msra.mxu0 %v5796
    %5802 = vmatprep.subr.bf16.mxu0 0
    %5803 = vmatpush1.bf16.msra.mxu0 %v5797
    %5804 = vmatprep.subr.bf16.mxu0 0
    %5805 = vmatpush1.bf16.msra.mxu0 %v5798
    %5806 = vmatprep.subr.bf16.mxu0 0
    %5807 = vmatpush1.bf16.msra.mxu0 %v5799
    %5808 = vmatprep.subr.bf16.mxu0 0
    %5809 = vmatpush1.bf16.msra.mxu0 0
    %5810 = vmatprep.subr.bf16.mxu0 0
    %5811 = vmatpush1.bf16.msra.mxu0 0
    %5812 = vmatprep.subr.bf16.mxu0 0
    %5813 = vmatpush1.bf16.msra.mxu0 0
    %5814 = vmatprep.subr.bf16.mxu0 0
    %5815 = vmatpush1.bf16.msra.mxu0 0
    %5816 = vmatprep.subr.bf16.mxu0 0
    %5817 = vmatpush1.bf16.msra.mxu0 0
    %5818 = vmatprep.subr.bf16.mxu0 0
    %5819 = vmatpush1.bf16.msra.mxu0 0
    %5820 = vmatprep.subr.bf16.mxu0 0
    %5821 = vmatpush1.bf16.msra.mxu0 0
    %5822 = vmatprep.subr.bf16.mxu0 0
    %5823 = vmatpush1.bf16.msra.mxu0 0
    %5824 = vmatprep.subr.bf16.mxu0 0
    %5825 = vmatpush1.bf16.msra.mxu0 0
    %5826 = vmatprep.subr.bf16.mxu0 0
    %5827 = vmatpush1.bf16.msra.mxu0 0
    %5828 = vmatprep.subr.bf16.mxu0 0
    %5829 = vmatpush1.bf16.msra.mxu0 0
    %5830 = vmatprep.subr.bf16.mxu0 0
    %5831 = vmatpush1.bf16.msra.mxu0 0
    %5832 = vmatprep.mubr.bf16.mxu0 0
    %5833 = vmatmul.mubr.bf16.gmra.mrb[0].mxu0 %v5569
    %v5834 = vpop.f32.mrb[0].mxu0
    %v5835 = vadd.f32 %v5565, %v5834
    %v5836 = vpop.f32.mrb[0].mxu0
    %v5837 = vpop.f32.mrb[0].mxu0
    %v5838 = vpop.f32.mrb[0].mxu0
    %5839 = vdwg.mxu0
    %s5840 = scalar_lea.vmem [#allocation4], 20
    %5841 = vst [vmem:[%s5840] sm:$0xf] %v5835
    %v5842 = vld [vmem:[%s2635] sm:$0xff]
    %v5843 = vld [vmem:[%s2635 + $0x8] sm:$0xff]
    %v5844 = vld [vmem:[%s3612] sm:$0xff]
    %v5845 = vld [vmem:[%s3612 + $0x8] sm:$0xff]
    %5846 = vmatprep.subr.bf16.mxu0 0
    %5847 = vmatpush1.bf16.msra.mxu0 %v5842
    %5848 = vmatprep.subr.bf16.mxu0 0
    %5849 = vmatpush1.bf16.msra.mxu0 %v5843
    %5850 = vmatprep.subr.bf16.mxu0 0
    %5851 = vmatpush1.bf16.msra.mxu0 %v5844
    %5852 = vmatprep.subr.bf16.mxu0 0
    %5853 = vmatpush1.bf16.msra.mxu0 %v5845
    %5854 = vmatprep.subr.bf16.mxu0 0
    %5855 = vmatpush1.bf16.msra.mxu0 0
    %5856 = vmatprep.subr.bf16.mxu0 0
    %5857 = vmatpush1.bf16.msra.mxu0 0
    %5858 = vmatprep.subr.bf16.mxu0 0
    %5859 = vmatpush1.bf16.msra.mxu0 0
    %5860 = vmatprep.subr.bf16.mxu0 0
    %5861 = vmatpush1.bf16.msra.mxu0 0
    %5862 = vmatprep.subr.bf16.mxu0 0
    %5863 = vmatpush1.bf16.msra.mxu0 0
    %5864 = vmatprep.subr.bf16.mxu0 0
    %5865 = vmatpush1.bf16.msra.mxu0 0
    %5866 = vmatprep.subr.bf16.mxu0 0
    %5867 = vmatpush1.bf16.msra.mxu0 0
    %5868 = vmatprep.subr.bf16.mxu0 0
    %5869 = vmatpush1.bf16.msra.mxu0 0
    %5870 = vmatprep.subr.bf16.mxu0 0
    %5871 = vmatpush1.bf16.msra.mxu0 0
    %5872 = vmatprep.subr.bf16.mxu0 0
    %5873 = vmatpush1.bf16.msra.mxu0 0
    %5874 = vmatprep.subr.bf16.mxu0 0
    %5875 = vmatpush1.bf16.msra.mxu0 0
    %5876 = vmatprep.subr.bf16.mxu0 0
    %5877 = vmatpush1.bf16.msra.mxu0 0
    %5878 = vmatprep.mubr.bf16.mxu0 0
    %5879 = vmatmul.mubr.bf16.gmra.mrb[0].mxu0 %v5569
    %v5880 = vpop.f32.mrb[0].mxu0
    %v5881 = vadd.f32 %v5565, %v5880
    %v5882 = vpop.f32.mrb[0].mxu0
    %v5883 = vpop.f32.mrb[0].mxu0
    %v5884 = vpop.f32.mrb[0].mxu0
    %5885 = vdwg.mxu0
    %s5886 = scalar_lea.vmem [#allocation4], 24
    %5887 = vst [vmem:[%s5886] sm:$0xf] %v5881
    %v5888 = vld [vmem:[%s2959] sm:$0xff]
    %v5889 = vld [vmem:[%s2959 + $0x8] sm:$0xff]
    %v5890 = vld [vmem:[%s3288] sm:$0xff]
    %v5891 = vld [vmem:[%s3288 + $0x8] sm:$0xff]
    %5892 = vmatprep.subr.bf16.mxu0 0
    %5893 = vmatpush1.bf16.msra.mxu0 %v5888
    %5894 = vmatprep.subr.bf16.mxu0 0
    %5895 = vmatpush1.bf16.msra.mxu0 %v5889
    %5896 = vmatprep.subr.bf16.mxu0 0
    %5897 = vmatpush1.bf16.msra.mxu0 %v5890
    %5898 = vmatprep.subr.bf16.mxu0 0
    %5899 = vmatpush1.bf16.msra.mxu0 %v5891
    %5900 = vmatprep.subr.bf16.mxu0 0
    %5901 = vmatpush1.bf16.msra.mxu0 0
    %5902 = vmatprep.subr.bf16.mxu0 0
    %5903 = vmatpush1.bf16.msra.mxu0 0
    %5904 = vmatprep.subr.bf16.mxu0 0
    %5905 = vmatpush1.bf16.msra.mxu0 0
    %5906 = vmatprep.subr.bf16.mxu0 0
    %5907 = vmatpush1.bf16.msra.mxu0 0
    %5908 = vmatprep.subr.bf16.mxu0 0
    %5909 = vmatpush1.bf16.msra.mxu0 0
    %5910 = vmatprep.subr.bf16.mxu0 0
    %5911 = vmatpush1.bf16.msra.mxu0 0
    %5912 = vmatprep.subr.bf16.mxu0 0
    %5913 = vmatpush1.bf16.msra.mxu0 0
    %5914 = vmatprep.subr.bf16.mxu0 0
    %5915 = vmatpush1.bf16.msra.mxu0 0
    %5916 = vmatprep.subr.bf16.mxu0 0
    %5917 = vmatpush1.bf16.msra.mxu0 0
    %5918 = vmatprep.subr.bf16.mxu0 0
    %5919 = vmatpush1.bf16.msra.mxu0 0
    %5920 = vmatprep.subr.bf16.mxu0 0
    %5921 = vmatpush1.bf16.msra.mxu0 0
    %5922 = vmatprep.subr.bf16.mxu0 0
    %5923 = vmatpush1.bf16.msra.mxu0 0
    %5924 = vmatprep.mubr.bf16.mxu0 0
    %5925 = vmatmul.mubr.bf16.gmra.mrb[0].mxu0 %v5569
    %v5926 = vpop.f32.mrb[0].mxu0
    %v5927 = vadd.f32 %v5565, %v5926
    %v5928 = vpop.f32.mrb[0].mxu0
    %v5929 = vpop.f32.mrb[0].mxu0
    %v5930 = vpop.f32.mrb[0].mxu0
    %5931 = vdwg.mxu0
    %s5932 = scalar_lea.vmem [#allocation4], 28
    %5933 = vst [vmem:[%s5932] sm:$0xf] %v5927
    %v5934 = vld [vmem:[%s3283] sm:$0xff]
    %v5935 = vld [vmem:[%s3283 + $0x8] sm:$0xff]
    %v5936 = vld [vmem:[%s2964] sm:$0xff]
    %v5937 = vld [vmem:[%s2964 + $0x8] sm:$0xff]
    %5938 = vmatprep.subr.bf16.mxu0 0
    %5939 = vmatpush1.bf16.msra.mxu0 %v5934
    %5940 = vmatprep.subr.bf16.mxu0 0
    %5941 = vmatpush1.bf16.msra.mxu0 %v5935
    %5942 = vmatprep.subr.bf16.mxu0 0
    %5943 = vmatpush1.bf16.msra.mxu0 %v5936
    %5944 = vmatprep.subr.bf16.mxu0 0
    %5945 = vmatpush1.bf16.msra.mxu0 %v5937
    %5946 = vmatprep.subr.bf16.mxu0 0
    %5947 = vmatpush1.bf16.msra.mxu0 0
    %5948 = vmatprep.subr.bf16.mxu0 0
    %5949 = vmatpush1.bf16.msra.mxu0 0
    %5950 = vmatprep.subr.bf16.mxu0 0
    %5951 = vmatpush1.bf16.msra.mxu0 0
    %5952 = vmatprep.subr.bf16.mxu0 0
    %5953 = vmatpush1.bf16.msra.mxu0 0
    %5954 = vmatprep.subr.bf16.mxu0 0
    %5955 = vmatpush1.bf16.msra.mxu0 0
    %5956 = vmatprep.subr.bf16.mxu0 0
    %5957 = vmatpush1.bf16.msra.mxu0 0
    %5958 = vmatprep.subr.bf16.mxu0 0
    %5959 = vmatpush1.bf16.msra.mxu0 0
    %5960 = vmatprep.subr.bf16.mxu0 0
    %5961 = vmatpush1.bf16.msra.mxu0 0
    %5962 = vmatprep.subr.bf16.mxu0 0
    %5963 = vmatpush1.bf16.msra.mxu0 0
    %5964 = vmatprep.subr.bf16.mxu0 0
    %5965 = vmatpush1.bf16.msra.mxu0 0
    %5966 = vmatprep.subr.bf16.mxu0 0
    %5967 = vmatpush1.bf16.msra.mxu0 0
    %5968 = vmatprep.subr.bf16.mxu0 0
    %5969 = vmatpush1.bf16.msra.mxu0 0
    %5970 = vmatprep.mubr.bf16.mxu0 0
    %5971 = vmatmul.mubr.bf16.gmra.mrb[0].mxu0 %v5569
    %v5972 = vpop.f32.mrb[0].mxu0
    %v5973 = vadd.f32 %v5565, %v5972
    %v5974 = vpop.f32.mrb[0].mxu0
    %v5975 = vpop.f32.mrb[0].mxu0
    %v5976 = vpop.f32.mrb[0].mxu0
    %5977 = vdwg.mxu0
    %s5978 = scalar_lea.vmem [#allocation4], 32
    %5979 = vst [vmem:[%s5978] sm:$0xf] %v5973
    %v5980 = vld [vmem:[%s3607] sm:$0xff]
    %v5981 = vld [vmem:[%s3607 + $0x8] sm:$0xff]
    %v5982 = vld [vmem:[%s2640] sm:$0xff]
    %v5983 = vld [vmem:[%s2640 + $0x8] sm:$0xff]
    %5984 = vmatprep.subr.bf16.mxu0 0
    %5985 = vmatpush1.bf16.msra.mxu0 %v5980
    %5986 = vmatprep.subr.bf16.mxu0 0
    %5987 = vmatpush1.bf16.msra.mxu0 %v5981
    %5988 = vmatprep.subr.bf16.mxu0 0
    %5989 = vmatpush1.bf16.msra.mxu0 %v5982
    %5990 = vmatprep.subr.bf16.mxu0 0
    %5991 = vmatpush1.bf16.msra.mxu0 %v5983
    %5992 = vmatprep.subr.bf16.mxu0 0
    %5993 = vmatpush1.bf16.msra.mxu0 0
    %5994 = vmatprep.subr.bf16.mxu0 0
    %5995 = vmatpush1.bf16.msra.mxu0 0
    %5996 = vmatprep.subr.bf16.mxu0 0
    %5997 = vmatpush1.bf16.msra.mxu0 0
    %5998 = vmatprep.subr.bf16.mxu0 0
    %5999 = vmatpush1.bf16.msra.mxu0 0
    %6000 = vmatprep.subr.bf16.mxu0 0
    %6001 = vmatpush1.bf16.msra.mxu0 0
    %6002 = vmatprep.subr.bf16.mxu0 0
    %6003 = vmatpush1.bf16.msra.mxu0 0
    %6004 = vmatprep.subr.bf16.mxu0 0
    %6005 = vmatpush1.bf16.msra.mxu0 0
    %6006 = vmatprep.subr.bf16.mxu0 0
    %6007 = vmatpush1.bf16.msra.mxu0 0
    %6008 = vmatprep.subr.bf16.mxu0 0
    %6009 = vmatpush1.bf16.msra.mxu0 0
    %6010 = vmatprep.subr.bf16.mxu0 0
    %6011 = vmatpush1.bf16.msra.mxu0 0
    %6012 = vmatprep.subr.bf16.mxu0 0
    %6013 = vmatpush1.bf16.msra.mxu0 0
    %6014 = vmatprep.subr.bf16.mxu0 0
    %6015 = vmatpush1.bf16.msra.mxu0 0
    %6016 = vmatprep.mubr.bf16.mxu0 0
    %6017 = vmatmul.mubr.bf16.gmra.mrb[0].mxu0 %v5569
    %v6018 = vpop.f32.mrb[0].mxu0
    %v6019 = vadd.f32 %v5565, %v6018
    %v6020 = vpop.f32.mrb[0].mxu0
    %v6021 = vpop.f32.mrb[0].mxu0
    %v6022 = vpop.f32.mrb[0].mxu0
    %6023 = vdwg.mxu0
    %s6024 = scalar_lea.vmem [#allocation4], 36
    %6025 = vst [vmem:[%s6024] sm:$0xf] %v6019
    %v6026 = vld [vmem:[%s3931] sm:$0xff]
    %v6027 = vld [vmem:[%s3931 + $0x8] sm:$0xff]
    %v6028 = vld [vmem:[%s2316] sm:$0xff]
    %v6029 = vld [vmem:[%s2316 + $0x8] sm:$0xff]
    %6030 = vmatprep.subr.bf16.mxu0 0
    %6031 = vmatpush1.bf16.msra.mxu0 %v6026
    %6032 = vmatprep.subr.bf16.mxu0 0
    %6033 = vmatpush1.bf16.msra.mxu0 %v6027
    %6034 = vmatprep.subr.bf16.mxu0 0
    %6035 = vmatpush1.bf16.msra.mxu0 %v6028
    %6036 = vmatprep.subr.bf16.mxu0 0
    %6037 = vmatpush1.bf16.msra.mxu0 %v6029
    %6038 = vmatprep.subr.bf16.mxu0 0
    %6039 = vmatpush1.bf16.msra.mxu0 0
    %6040 = vmatprep.subr.bf16.mxu0 0
    %6041 = vmatpush1.bf16.msra.mxu0 0
    %6042 = vmatprep.subr.bf16.mxu0 0
    %6043 = vmatpush1.bf16.msra.mxu0 0
    %6044 = vmatprep.subr.bf16.mxu0 0
    %6045 = vmatpush1.bf16.msra.mxu0 0
    %6046 = vmatprep.subr.bf16.mxu0 0
    %6047 = vmatpush1.bf16.msra.mxu0 0
    %6048 = vmatprep.subr.bf16.mxu0 0
    %6049 = vmatpush1.bf16.msra.mxu0 0
    %6050 = vmatprep.subr.bf16.mxu0 0
    %6051 = vmatpush1.bf16.msra.mxu0 0
    %6052 = vmatprep.subr.bf16.mxu0 0
    %6053 = vmatpush1.bf16.msra.mxu0 0
    %6054 = vmatprep.subr.bf16.mxu0 0
    %6055 = vmatpush1.bf16.msra.mxu0 0
    %6056 = vmatprep.subr.bf16.mxu0 0
    %6057 = vmatpush1.bf16.msra.mxu0 0
    %6058 = vmatprep.subr.bf16.mxu0 0
    %6059 = vmatpush1.bf16.msra.mxu0 0
    %6060 = vmatprep.subr.bf16.mxu0 0
    %6061 = vmatpush1.bf16.msra.mxu0 0
    %6062 = vmatprep.mubr.bf16.mxu0 0
    %6063 = vmatmul.mubr.bf16.gmra.mrb[0].mxu0 %v5569
    %v6064 = vpop.f32.mrb[0].mxu0
    %v6065 = vadd.f32 %v5565, %v6064
    %v6066 = vpop.f32.mrb[0].mxu0
    %v6067 = vpop.f32.mrb[0].mxu0
    %v6068 = vpop.f32.mrb[0].mxu0
    %6069 = vdwg.mxu0
    %s6070 = scalar_lea.vmem [#allocation4], 40
    %6071 = vst [vmem:[%s6070] sm:$0xf] %v6065
    %v6072 = vld [vmem:[%s4255] sm:$0xff]
    %v6073 = vld [vmem:[%s4255 + $0x8] sm:$0xff]
    %v6074 = vld [vmem:[%s1992] sm:$0xff]
    %v6075 = vld [vmem:[%s1992 + $0x8] sm:$0xff]
    %6076 = vmatprep.subr.bf16.mxu0 0
    %6077 = vmatpush1.bf16.msra.mxu0 %v6072
    %6078 = vmatprep.subr.bf16.mxu0 0
    %6079 = vmatpush1.bf16.msra.mxu0 %v6073
    %6080 = vmatprep.subr.bf16.mxu0 0
    %6081 = vmatpush1.bf16.msra.mxu0 %v6074
    %6082 = vmatprep.subr.bf16.mxu0 0
    %6083 = vmatpush1.bf16.msra.mxu0 %v6075
    %6084 = vmatprep.subr.bf16.mxu0 0
    %6085 = vmatpush1.bf16.msra.mxu0 0
    %6086 = vmatprep.subr.bf16.mxu0 0
    %6087 = vmatpush1.bf16.msra.mxu0 0
    %6088 = vmatprep.subr.bf16.mxu0 0
    %6089 = vmatpush1.bf16.msra.mxu0 0
    %6090 = vmatprep.subr.bf16.mxu0 0
    %6091 = vmatpush1.bf16.msra.mxu0 0
    %6092 = vmatprep.subr.bf16.mxu0 0
    %6093 = vmatpush1.bf16.msra.mxu0 0
    %6094 = vmatprep.subr.bf16.mxu0 0
    %6095 = vmatpush1.bf16.msra.mxu0 0
    %6096 = vmatprep.subr.bf16.mxu0 0
    %6097 = vmatpush1.bf16.msra.mxu0 0
    %6098 = vmatprep.subr.bf16.mxu0 0
    %6099 = vmatpush1.bf16.msra.mxu0 0
    %6100 = vmatprep.subr.bf16.mxu0 0
    %6101 = vmatpush1.bf16.msra.mxu0 0
    %6102 = vmatprep.subr.bf16.mxu0 0
    %6103 = vmatpush1.bf16.msra.mxu0 0
    %6104 = vmatprep.subr.bf16.mxu0 0
    %6105 = vmatpush1.bf16.msra.mxu0 0
    %6106 = vmatprep.subr.bf16.mxu0 0
    %6107 = vmatpush1.bf16.msra.mxu0 0
    %6108 = vmatprep.mubr.bf16.mxu0 0
    %6109 = vmatmul.mubr.bf16.gmra.mrb[0].mxu0 %v5569
    %v6110 = vpop.f32.mrb[0].mxu0
    %v6111 = vadd.f32 %v5565, %v6110
    %v6112 = vpop.f32.mrb[0].mxu0
    %v6113 = vpop.f32.mrb[0].mxu0
    %v6114 = vpop.f32.mrb[0].mxu0
    %6115 = vdwg.mxu0
    %s6116 = scalar_lea.vmem [#allocation4], 44
    %6117 = vst [vmem:[%s6116] sm:$0xf] %v6111
    %v6118 = vld [vmem:[%s4579] sm:$0xff]
    %v6119 = vld [vmem:[%s4579 + $0x8] sm:$0xff]
    %v6120 = vld [vmem:[%s1668] sm:$0xff]
    %v6121 = vld [vmem:[%s1668 + $0x8] sm:$0xff]
    %6122 = vmatprep.subr.bf16.mxu0 0
    %6123 = vmatpush1.bf16.msra.mxu0 %v6118
    %6124 = vmatprep.subr.bf16.mxu0 0
    %6125 = vmatpush1.bf16.msra.mxu0 %v6119
    %6126 = vmatprep.subr.bf16.mxu0 0
    %6127 = vmatpush1.bf16.msra.mxu0 %v6120
    %6128 = vmatprep.subr.bf16.mxu0 0
    %6129 = vmatpush1.bf16.msra.mxu0 %v6121
    %6130 = vmatprep.subr.bf16.mxu0 0
    %6131 = vmatpush1.bf16.msra.mxu0 0
    %6132 = vmatprep.subr.bf16.mxu0 0
    %6133 = vmatpush1.bf16.msra.mxu0 0
    %6134 = vmatprep.subr.bf16.mxu0 0
    %6135 = vmatpush1.bf16.msra.mxu0 0
    %6136 = vmatprep.subr.bf16.mxu0 0
    %6137 = vmatpush1.bf16.msra.mxu0 0
    %6138 = vmatprep.subr.bf16.mxu0 0
    %6139 = vmatpush1.bf16.msra.mxu0 0
    %6140 = vmatprep.subr.bf16.mxu0 0
    %6141 = vmatpush1.bf16.msra.mxu0 0
    %6142 = vmatprep.subr.bf16.mxu0 0
    %6143 = vmatpush1.bf16.msra.mxu0 0
    %6144 = vmatprep.subr.bf16.mxu0 0
    %6145 = vmatpush1.bf16.msra.mxu0 0
    %6146 = vmatprep.subr.bf16.mxu0 0
    %6147 = vmatpush1.bf16.msra.mxu0 0
    %6148 = vmatprep.subr.bf16.mxu0 0
    %6149 = vmatpush1.bf16.msra.mxu0 0
    %6150 = vmatprep.subr.bf16.mxu0 0
    %6151 = vmatpush1.bf16.msra.mxu0 0
    %6152 = vmatprep.subr.bf16.mxu0 0
    %6153 = vmatpush1.bf16.msra.mxu0 0
    %6154 = vmatprep.mubr.bf16.mxu0 0
    %6155 = vmatmul.mubr.bf16.gmra.mrb[0].mxu0 %v5569
    %v6156 = vpop.f32.mrb[0].mxu0
    %v6157 = vadd.f32 %v5565, %v6156
    %v6158 = vpop.f32.mrb[0].mxu0
    %v6159 = vpop.f32.mrb[0].mxu0
    %v6160 = vpop.f32.mrb[0].mxu0
    %6161 = vdwg.mxu0
    %s6162 = scalar_lea.vmem [#allocation4], 48
    %6163 = vst [vmem:[%s6162] sm:$0xf] %v6157
    %v6164 = vld [vmem:[%s4903] sm:$0xff]
    %v6165 = vld [vmem:[%s4903 + $0x8] sm:$0xff]
    %v6166 = vld [vmem:[%s1344] sm:$0xff]
    %v6167 = vld [vmem:[%s1344 + $0x8] sm:$0xff]
    %6168 = vmatprep.subr.bf16.mxu0 0
    %6169 = vmatpush1.bf16.msra.mxu0 %v6164
    %6170 = vmatprep.subr.bf16.mxu0 0
    %6171 = vmatpush1.bf16.msra.mxu0 %v6165
    %6172 = vmatprep.subr.bf16.mxu0 0
    %6173 = vmatpush1.bf16.msra.mxu0 %v6166
    %6174 = vmatprep.subr.bf16.mxu0 0
    %6175 = vmatpush1.bf16.msra.mxu0 %v6167
    %6176 = vmatprep.subr.bf16.mxu0 0
    %6177 = vmatpush1.bf16.msra.mxu0 0
    %6178 = vmatprep.subr.bf16.mxu0 0
    %6179 = vmatpush1.bf16.msra.mxu0 0
    %6180 = vmatprep.subr.bf16.mxu0 0
    %6181 = vmatpush1.bf16.msra.mxu0 0
    %6182 = vmatprep.subr.bf16.mxu0 0
    %6183 = vmatpush1.bf16.msra.mxu0 0
    %6184 = vmatprep.subr.bf16.mxu0 0
    %6185 = vmatpush1.bf16.msra.mxu0 0
    %6186 = vmatprep.subr.bf16.mxu0 0
    %6187 = vmatpush1.bf16.msra.mxu0 0
    %6188 = vmatprep.subr.bf16.mxu0 0
    %6189 = vmatpush1.bf16.msra.mxu0 0
    %6190 = vmatprep.subr.bf16.mxu0 0
    %6191 = vmatpush1.bf16.msra.mxu0 0
    %6192 = vmatprep.subr.bf16.mxu0 0
    %6193 = vmatpush1.bf16.msra.mxu0 0
    %6194 = vmatprep.subr.bf16.mxu0 0
    %6195 = vmatpush1.bf16.msra.mxu0 0
    %6196 = vmatprep.subr.bf16.mxu0 0
    %6197 = vmatpush1.bf16.msra.mxu0 0
    %6198 = vmatprep.subr.bf16.mxu0 0
    %6199 = vmatpush1.bf16.msra.mxu0 0
    %6200 = vmatprep.mubr.bf16.mxu0 0
    %6201 = vmatmul.mubr.bf16.gmra.mrb[0].mxu0 %v5569
    %v6202 = vpop.f32.mrb[0].mxu0
    %v6203 = vadd.f32 %v5565, %v6202
    %v6204 = vpop.f32.mrb[0].mxu0
    %v6205 = vpop.f32.mrb[0].mxu0
    %v6206 = vpop.f32.mrb[0].mxu0
    %6207 = vdwg.mxu0
    %s6208 = scalar_lea.vmem [#allocation4], 52
    %6209 = vst [vmem:[%s6208] sm:$0xf] %v6203
    %v6210 = vld [vmem:[%s5227] sm:$0xff]
    %v6211 = vld [vmem:[%s5227 + $0x8] sm:$0xff]
    %v6212 = vld [vmem:[%s1020] sm:$0xff]
    %v6213 = vld [vmem:[%s1020 + $0x8] sm:$0xff]
    %6214 = vmatprep.subr.bf16.mxu0 0
    %6215 = vmatpush1.bf16.msra.mxu0 %v6210
    %6216 = vmatprep.subr.bf16.mxu0 0
    %6217 = vmatpush1.bf16.msra.mxu0 %v6211
    %6218 = vmatprep.subr.bf16.mxu0 0
    %6219 = vmatpush1.bf16.msra.mxu0 %v6212
    %6220 = vmatprep.subr.bf16.mxu0 0
    %6221 = vmatpush1.bf16.msra.mxu0 %v6213
    %6222 = vmatprep.subr.bf16.mxu0 0
    %6223 = vmatpush1.bf16.msra.mxu0 0
    %6224 = vmatprep.subr.bf16.mxu0 0
    %6225 = vmatpush1.bf16.msra.mxu0 0
    %6226 = vmatprep.subr.bf16.mxu0 0
    %6227 = vmatpush1.bf16.msra.mxu0 0
    %6228 = vmatprep.subr.bf16.mxu0 0
    %6229 = vmatpush1.bf16.msra.mxu0 0
    %6230 = vmatprep.subr.bf16.mxu0 0
    %6231 = vmatpush1.bf16.msra.mxu0 0
    %6232 = vmatprep.subr.bf16.mxu0 0
    %6233 = vmatpush1.bf16.msra.mxu0 0
    %6234 = vmatprep.subr.bf16.mxu0 0
    %6235 = vmatpush1.bf16.msra.mxu0 0
    %6236 = vmatprep.subr.bf16.mxu0 0
    %6237 = vmatpush1.bf16.msra.mxu0 0
    %6238 = vmatprep.subr.bf16.mxu0 0
    %6239 = vmatpush1.bf16.msra.mxu0 0
    %6240 = vmatprep.subr.bf16.mxu0 0
    %6241 = vmatpush1.bf16.msra.mxu0 0
    %6242 = vmatprep.subr.bf16.mxu0 0
    %6243 = vmatpush1.bf16.msra.mxu0 0
    %6244 = vmatprep.subr.bf16.mxu0 0
    %6245 = vmatpush1.bf16.msra.mxu0 0
    %6246 = vmatprep.mubr.bf16.mxu0 0
    %6247 = vmatmul.mubr.bf16.gmra.mrb[0].mxu0 %v5569
    %v6248 = vpop.f32.mrb[0].mxu0
    %v6249 = vadd.f32 %v5565, %v6248
    %v6250 = vpop.f32.mrb[0].mxu0
    %v6251 = vpop.f32.mrb[0].mxu0
    %v6252 = vpop.f32.mrb[0].mxu0
    %6253 = vdwg.mxu0
    %s6254 = scalar_lea.vmem [#allocation4], 56
    %6255 = vst [vmem:[%s6254] sm:$0xf] %v6249
    %v6256 = vld [vmem:[%s5551] sm:$0xff]
    %v6257 = vld [vmem:[%s5551 + $0x8] sm:$0xff]
    %v6258 = vld [vmem:[%s696] sm:$0xff]
    %v6259 = vld [vmem:[%s696 + $0x8] sm:$0xff]
    %6260 = vmatprep.subr.bf16.mxu0 0
    %6261 = vmatpush1.bf16.msra.mxu0 %v6256
    %6262 = vmatprep.subr.bf16.mxu0 0
    %6263 = vmatpush1.bf16.msra.mxu0 %v6257
    %6264 = vmatprep.subr.bf16.mxu0 0
    %6265 = vmatpush1.bf16.msra.mxu0 %v6258
    %6266 = vmatprep.subr.bf16.mxu0 0
    %6267 = vmatpush1.bf16.msra.mxu0 %v6259
    %6268 = vmatprep.subr.bf16.mxu0 0
    %6269 = vmatpush1.bf16.msra.mxu0 0
    %6270 = vmatprep.subr.bf16.mxu0 0
    %6271 = vmatpush1.bf16.msra.mxu0 0
    %6272 = vmatprep.subr.bf16.mxu0 0
    %6273 = vmatpush1.bf16.msra.mxu0 0
    %6274 = vmatprep.subr.bf16.mxu0 0
    %6275 = vmatpush1.bf16.msra.mxu0 0
    %6276 = vmatprep.subr.bf16.mxu0 0
    %6277 = vmatpush1.bf16.msra.mxu0 0
    %6278 = vmatprep.subr.bf16.mxu0 0
    %6279 = vmatpush1.bf16.msra.mxu0 0
    %6280 = vmatprep.subr.bf16.mxu0 0
    %6281 = vmatpush1.bf16.msra.mxu0 0
    %6282 = vmatprep.subr.bf16.mxu0 0
    %6283 = vmatpush1.bf16.msra.mxu0 0
    %6284 = vmatprep.subr.bf16.mxu0 0
    %6285 = vmatpush1.bf16.msra.mxu0 0
    %6286 = vmatprep.subr.bf16.mxu0 0
    %6287 = vmatpush1.bf16.msra.mxu0 0
    %6288 = vmatprep.subr.bf16.mxu0 0
    %6289 = vmatpush1.bf16.msra.mxu0 0
    %6290 = vmatprep.subr.bf16.mxu0 0
    %6291 = vmatpush1.bf16.msra.mxu0 0
    %6292 = vmatprep.mubr.bf16.mxu0 0
    %6293 = vmatmul.mubr.bf16.gmra.mrb[0].mxu0 %v5569
    %v6294 = vpop.f32.mrb[0].mxu0
    %v6295 = vadd.f32 %v5565, %v6294
    %v6296 = vpop.f32.mrb[0].mxu0
    %v6297 = vpop.f32.mrb[0].mxu0
    %v6298 = vpop.f32.mrb[0].mxu0
    %6299 = vdwg.mxu0
    %s6300 = scalar_lea.vmem [#allocation4], 60
    %6301 = vst [vmem:[%s6300] sm:$0xf] %v6295
    // Predicated region
    $region22: #{tpu_custom_call.1} parent=1 // pred_check
      _
    $region23: #{tpu_custom_call.1} parent=1 // pred_check_branch
      %6303 = sbr.rel (0) target = $region25
    $region24: #{tpu_custom_call.1} parent=1 // pred_region
      %s6305 = ssub.s32 1024, 1024
      %6306 = vsyncadd [#allocation5], %s6305
      %s6307 = sshll.u32 [#allocation4], 4
      %s6308 = int_to_ptr.vmem [resolvable:$true] %s6307
      %6313 = dma.vmem_to_hbm [thread:$0]  %s6308, 1024, %s5, [#allocation5], 64, 64, 4
    $region25: #{tpu_custom_call.1} parent=1 // pred_fallthru
      _
    // Predicated region
    $region26: #{tpu_custom_call.1} parent=1 // pred_check
      _
    $region27: #{tpu_custom_call.1} parent=1 // pred_check_branch
      %6315 = sbr.rel (0) target = $region29
    $region28: #{tpu_custom_call.1} parent=1 // pred_region
      %6316 = dma.done [#allocation5], 1024
    $region29: #{tpu_custom_call.1} parent=1 // pred_fallthru
      _
    %6317 = vsyncpa [#allocation5], 1

</llo_original>
